<compile_context>
chip_gen: v6e
topology: v6e:2x2x1
jax: 0.10.0
libtpu: 0.0.40
codegen_flags: <defaults>
</compile_context>

<pallas_src>
import functools

import jax
import jax.numpy as jnp
import numpy as np
from jax import lax
from jax.experimental import pallas as pl
from jax.experimental.pallas import tpu as pltpu


_LN_EPS = 1e-5
_GELU_C = float(np.sqrt(2.0 / np.pi))


def _gelu_tanh(x):
    # tanh-approximate GELU (EUP tanh slot). torch F.gelu default is the exact
    # erf form; the tanh approximation is within ~1e-3 of it.
    # TODO(synk): switch to exact erf GELU once erf lowering in Mosaic is confirmed.
    return 0.5 * x * (1.0 + jnp.tanh(_GELU_C * (x + 0.044715 * x * x * x)))


def _layer_norm_lastdim(x, gamma, beta, eps=_LN_EPS):
    mu = jnp.mean(x, axis=-1, keepdims=True)
    xc = x - mu
    var = jnp.mean(xc * xc, axis=-1, keepdims=True)
    return xc * lax.rsqrt(var + eps) * gamma + beta


# ----------------------------------------------------------------------------
# Pallas kernel: one batch element per grid step
# ----------------------------------------------------------------------------
def dds_kernel(lens_ref, *refs, channels, kernel_size, n_layers, has_g, pad_buf):
    """
    lens_ref : SMEM (B,) int32        per-batch valid length (scalar prefetch)
    x_ref    : (1, T, C)              input activations
    g_ref    : (1, T, C)              optional conditioning (added once to x)
    dw_w_ref : (nL, K, 1, C)          depthwise conv weights (tap-major)
    dw_b_ref : (nL, 1, C)             depthwise conv bias
    pw_w_ref : (nL, C, C) bf16        1x1 conv weights (in -> out)
    pw_b_ref : (nL, 1, C)             1x1 conv bias
    g1/b1/g2/b2 : (nL, 1, C)          LayerNorm affine params
    out_ref  : (1, T, C)              output; also used as the residual state
    xpad_ref : (T + 2*pad_buf, C)     VMEM scratch, zero halo + masked centre
    """
    if has_g:
        (x_ref, g_ref, dw_w_ref, dw_b_ref, pw_w_ref, pw_b_ref,
         g1_ref, b1_ref, g2_ref, b2_ref, out_ref, xpad_ref) = refs
    else:
        (x_ref, dw_w_ref, dw_b_ref, pw_w_ref, pw_b_ref,
         g1_ref, b1_ref, g2_ref, b2_ref, out_ref, xpad_ref) = refs
        g_ref = None

    C = channels
    K = kernel_size
    mid = (K - 1) // 2
    T = x_ref.shape[1]

    # Sequence mask built in-kernel from the prefetched length: one lane-dense
    # (T, C) value, reused every layer (no lane-sparse (T,1) DMA stream).
    length = lens_ref[pl.program_id(0)]
    m = (lax.broadcasted_iota(jnp.int32, (T, C), 0) < length).astype(jnp.float32)

    # Residual-carried state x lives in the output ref (in-place updates).
    if has_g:
        out_ref[0] = x_ref[0] + g_ref[0]          # x = x + g
    else:
        out_ref[0] = x_ref[0]

    # Zero the padded scratch once; the halo region is never written afterwards.
    xpad_ref[...] = jnp.zeros_like(xpad_ref)

    for i in range(n_layers):
        d = K ** i                                 # dilation = kernel_size ** i
        pad = mid * d                              # == (K*d - d)//2 for odd K

        # Write the masked state into the centre of the padded scratch.
        xpad_ref[pad_buf:pad_buf + T, :] = out_ref[0] * m

        # Depthwise dilated conv: K static-offset slices, VPU mul-accumulate.
        base = pad_buf - pad
        y = xpad_ref[base:base + T, :] * dw_w_ref[i, 0]
        for k in range(1, K):
            off = base + k * d
            y = y + xpad_ref[off:off + T, :] * dw_w_ref[i, k]
        y = y + dw_b_ref[i]

        # LayerNorm over channels (lanes) + GELU.
        y = _gelu_tanh(_layer_norm_lastdim(y, g1_ref[i], b1_ref[i]))

        # Pointwise 1x1 conv == bf16 MXU matmul with f32 accumulation.
        z = jnp.dot(y.astype(jnp.bfloat16), pw_w_ref[i],
                    preferred_element_type=jnp.float32) + pw_b_ref[i]

        # LayerNorm + GELU.  Dropout with p_dropout=0 is the identity
        # (inference path).  TODO(synk): training-mode dropout via pltpu PRNG.
        z = _gelu_tanh(_layer_norm_lastdim(z, g2_ref[i], b2_ref[i]))

        # Residual update of the carried state: x = x + y
        out_ref[0] = out_ref[0] + z

    out_ref[0] = out_ref[0] * m                    # return x * x_mask


# ----------------------------------------------------------------------------
# Wrapper: layout transposes + pallas_call plumbing
# ----------------------------------------------------------------------------
def ddsconv_pallas(x_nct, x_lengths, g_nct, kparams,
                   *, channels, kernel_size, n_layers):
    B, C, T = x_nct.shape
    assert C == channels
    assert kernel_size % 2 == 1, "odd kernel_size assumed for 'same' padding"

    mid = (kernel_size - 1) // 2
    pad_max = mid * kernel_size ** (n_layers - 1)
    pad_buf = ((pad_max + 7) // 8) * 8             # sublane-align the centre writes

    x = jnp.transpose(x_nct, (0, 2, 1)).astype(jnp.float32)     # (B, T, C)
    has_g = g_nct is not None

    data_spec = pl.BlockSpec((1, T, C), lambda b, lens: (b, 0, 0))
    inputs = [x]
    in_specs = [data_spec]
    if has_g:
        inputs.append(jnp.transpose(g_nct, (0, 2, 1)).astype(jnp.float32))
        in_specs.append(data_spec)

    # Weights: full-array blocks with constant index maps (tiny for DDSConv).
    for name in ("dw_w", "dw_b", "pw_w", "pw_b", "g1", "b1", "g2", "b2"):
        w = kparams[name]
        inputs.append(w)
        in_specs.append(
            pl.BlockSpec(w.shape, lambda b, lens, nd=w.ndim: (0,) * nd))

    kernel = functools.partial(
        dds_kernel, channels=C, kernel_size=kernel_size,
        n_layers=n_layers, has_g=has_g, pad_buf=pad_buf)

    out = pl.pallas_call(
        kernel,
        out_shape=jax.ShapeDtypeStruct((B, T, C), jnp.float32),
        grid_spec=pltpu.PrefetchScalarGridSpec(
            num_scalar_prefetch=1,
            grid=(B,),
            in_specs=in_specs,
            out_specs=pl.BlockSpec((1, T, C), lambda b, lens: (b, 0, 0)),
            scratch_shapes=[pltpu.VMEM((T + 2 * pad_buf, C), jnp.float32)],
        ),
        compiler_params=pltpu.CompilerParams(
            dimension_semantics=("parallel",),
            vmem_limit_bytes=48 * 1024 * 1024,
        ),
    )(x_lengths.astype(jnp.int32), *inputs)

    return jnp.transpose(out, (0, 2, 1))           # back to (B, C, T)


# ----------------------------------------------------------------------------
# Deterministic parameter init (mirrors nn.Conv1d / LayerNorm) + kernel repack
# ----------------------------------------------------------------------------
def make_ddsconv_params(key, channels, kernel_size, n_layers):
    C, K = channels, kernel_size
    params = {k: [] for k in
              ("sep_w", "sep_b", "pw_w", "pw_b", "g1", "b1", "g2", "b2")}
    keys = jax.random.split(key, 6 * n_layers)

    for i in range(n_layers):
        k_sw, k_sb, k_pw, k_pb, k_n1, k_n2 = keys[6 * i:6 * i + 6]
        # depthwise Conv1d(C, C, K, groups=C): fan_in = 1 * K
        bs = 1.0 / np.sqrt(K)
        params["sep_w"].append(
            jax.random.uniform(k_sw, (C, 1, K), jnp.float32, -bs, bs))
        params["sep_b"].append(
            jax.random.uniform(k_sb, (C,), jnp.float32, -bs, bs))
        # pointwise Conv1d(C, C, 1): fan_in = C.  Round weights to bf16 so the
        # reference and the bf16-MXU kernel use identical weight values.
        bp = 1.0 / np.sqrt(C)
        pw = jax.random.uniform(k_pw, (C, C, 1), jnp.float32, -bp, bp)
        pw = pw.astype(jnp.bfloat16).astype(jnp.float32)
        params["pw_w"].append(pw)
        params["pw_b"].append(
            jax.random.uniform(k_pb, (C,), jnp.float32, -bp, bp))
        # LayerNorm affine params (init is ones/zeros; perturbed to exercise them)
        k1a, k1b = jax.random.split(k_n1)
        k2a, k2b = jax.random.split(k_n2)
        params["g1"].append(1.0 + 0.1 * jax.random.normal(k1a, (C,), jnp.float32))
        params["b1"].append(0.1 * jax.random.normal(k1b, (C,), jnp.float32))
        params["g2"].append(1.0 + 0.1 * jax.random.normal(k2a, (C,), jnp.float32))
        params["b2"].append(0.1 * jax.random.normal(k2b, (C,), jnp.float32))

    kparams = {
        "dw_w": jnp.stack([jnp.transpose(w[:, 0, :], (1, 0))[:, None, :]
                           for w in params["sep_w"]]),                 # (nL,K,1,C)
        "dw_b": jnp.stack([b[None, :] for b in params["sep_b"]]),      # (nL,1,C)
        "pw_w": jnp.stack([jnp.transpose(w[:, :, 0], (1, 0))
                           for w in params["pw_w"]]).astype(jnp.bfloat16),  # (nL,C,C)
        "pw_b": jnp.stack([b[None, :] for b in params["pw_b"]]),       # (nL,1,C)
        "g1": jnp.stack([v[None, :] for v in params["g1"]]),
        "b1": jnp.stack([v[None, :] for v in params["b1"]]),
        "g2": jnp.stack([v[None, :] for v in params["g2"]]),
        "b2": jnp.stack([v[None, :] for v in params["b2"]]),
    }
    return params, kparams


# ----------------------------------------------------------------------------
# Pure-JAX reference (mirrors the PyTorch forward) for validation
# ----------------------------------------------------------------------------
def _depthwise_conv1d_nct(x, w, b, dilation, padding):
    out = lax.conv_general_dilated(
        x, w, window_strides=(1,), padding=[(padding, padding)],
        rhs_dilation=(dilation,), dimension_numbers=("NCH", "OIH", "NCH"),
        feature_group_count=x.shape[1])
    return out + b[None, :, None]


def _conv1x1_nct(x, w, b):
    out = lax.conv_general_dilated(
        x, w, window_strides=(1,), padding=[(0, 0)],
        dimension_numbers=("NCH", "OIH", "NCH"))
    return out + b[None, :, None]


def _layer_norm_nct(x, gamma, beta, eps=_LN_EPS):
    mu = jnp.mean(x, axis=1, keepdims=True)
    xc = x - mu
    var = jnp.mean(xc * xc, axis=1, keepdims=True)
    return xc * lax.rsqrt(var + eps) * gamma[None, :, None] + beta[None, :, None]


def ddsconv_ref(x, x_mask, g, params, *, channels, kernel_size, n_layers):
    K = kernel_size
    if g is not None:
        x = x + g
    for i in range(n_layers):
        d = K ** i
        pad = (K * d - d) // 2
        y = _depthwise_conv1d_nct(x * x_mask, params["sep_w"][i],
                                  params["sep_b"][i], d, pad)
        y = _gelu_tanh(_layer_norm_nct(y, params["g1"][i], params["b1"][i]))
        y = _conv1x1_nct(y, params["pw_w"][i], params["pw_b"][i])
        y = _gelu_tanh(_layer_norm_nct(y, params["g2"][i], params["b2"][i]))
        x = x + y
    return x * x_mask


# ----------------------------------------------------------------------------
if __name__ == "__main__":
    # small but tile-aligned DDSConv config (lane-dense: C multiple of 128)
    channels = 128
    kernel_size = 3
    n_layers = 3
    B, T = 2, 256

    key = jax.random.PRNGKey(0)
    k_p, k_x, k_g = jax.random.split(key, 3)

    params, kparams = make_ddsconv_params(k_p, channels, kernel_size, n_layers)

    # PyTorch-style NCT inputs; mask is the usual sequence-length mask.
    x = jax.random.normal(k_x, (B, channels, T), jnp.float32)
    g = jax.random.normal(k_g, (B, channels, T), jnp.float32)
    lengths = jnp.array([T, T - 37], jnp.int32)
    x_mask = (jnp.arange(T)[None, None, :] < lengths[:, None, None]
              ).astype(jnp.float32)                              # (B, 1, T)

    out_pallas = ddsconv_pallas(
        x, lengths, g, kparams,
        channels=channels, kernel_size=kernel_size, n_layers=n_layers)
    out_pallas = jax.block_until_ready(out_pallas)

    out_reference = ddsconv_ref(
        x, x_mask, g, params,
        channels=channels, kernel_size=kernel_size, n_layers=n_layers)

    # bf16 MXU matmuls inside the kernel -> loosened tolerance vs f32 reference.
    np.testing.assert_allclose(np.asarray(out_pallas), np.asarray(out_reference),
                               rtol=3e-2, atol=3e-2)

    print("KERNEL_OK")
</pallas_src>

<mosaic_0001>
module attributes {stable_mosaic.version = 11 : i64} {
  func.func @dds_kernel(%arg0: i32, %arg1: memref<2xi32, #tpu.memory_space<smem>>, %arg2: memref<1x256x128xf32, #tpu.memory_space<vmem>>, %arg3: memref<1x256x128xf32, #tpu.memory_space<vmem>>, %arg4: memref<3x3x1x128xf32, #tpu.memory_space<vmem>>, %arg5: memref<3x1x128xf32, #tpu.memory_space<vmem>>, %arg6: memref<3x128x128xbf16, #tpu.memory_space<vmem>>, %arg7: memref<3x1x128xf32, #tpu.memory_space<vmem>>, %arg8: memref<3x1x128xf32, #tpu.memory_space<vmem>>, %arg9: memref<3x1x128xf32, #tpu.memory_space<vmem>>, %arg10: memref<3x1x128xf32, #tpu.memory_space<vmem>>, %arg11: memref<3x1x128xf32, #tpu.memory_space<vmem>>, %arg12: memref<1x256x128xf32, #tpu.memory_space<vmem>>, %arg13: memref<288x128xf32, #tpu.memory_space<vmem>>) attributes {dimension_semantics = [#tpu.dimension_semantics<parallel>], iteration_bounds = array<i64: 2>, scalar_prefetch = 1 : i64, scratch_operands = 1 : i64, tpu.core_type = #tpu.core_type<tc>, window_params = [{transform_indices = @transform_0, window_bounds = array<i64: 1, 256, 128>}, {transform_indices = @transform_1, window_bounds = array<i64: 1, 256, 128>}, {pipeline_mode = #tpu.pipeline_mode<synchronous>, transform_indices = @transform_2, window_bounds = array<i64: 3, 3, 1, 128>}, {pipeline_mode = #tpu.pipeline_mode<synchronous>, transform_indices = @transform_3, window_bounds = array<i64: 3, 1, 128>}, {pipeline_mode = #tpu.pipeline_mode<synchronous>, transform_indices = @transform_4, window_bounds = array<i64: 3, 128, 128>}, {pipeline_mode = #tpu.pipeline_mode<synchronous>, transform_indices = @transform_5, window_bounds = array<i64: 3, 1, 128>}, {pipeline_mode = #tpu.pipeline_mode<synchronous>, transform_indices = @transform_6, window_bounds = array<i64: 3, 1, 128>}, {pipeline_mode = #tpu.pipeline_mode<synchronous>, transform_indices = @transform_7, window_bounds = array<i64: 3, 1, 128>}, {pipeline_mode = #tpu.pipeline_mode<synchronous>, transform_indices = @transform_8, window_bounds = array<i64: 3, 1, 128>}, {pipeline_mode = #tpu.pipeline_mode<synchronous>, transform_indices = @transform_9, window_bounds = array<i64: 3, 1, 128>}, {transform_indices = @transform_10, window_bounds = array<i64: 1, 256, 128>}]} {
    %0 = arith.index_cast %arg0 : i32 to index
    %1 = memref.load %arg1[%0] : memref<2xi32, #tpu.memory_space<smem>>
    %2 = tpu.iota {dimensions = array<i32: 0>} : vector<256x128xi32>
    %3 = vector.broadcast %1 : i32 to vector<256x128xi32>
    %4 = arith.cmpi slt, %2, %3 : vector<256x128xi32>
    %5 = arith.extui %4 : vector<256x128xi1> to vector<256x128xi32>
    %6 = arith.sitofp %5 : vector<256x128xi32> to vector<256x128xf32>
    %c0 = arith.constant 0 : index
    %c0_0 = arith.constant 0 : index
    %c0_1 = arith.constant 0 : index
    %7 = vector.load %arg2[%c0, %c0_0, %c0_1] : memref<1x256x128xf32, #tpu.memory_space<vmem>>, vector<1x256x128xf32>
    %8 = vector.shape_cast %7 : vector<1x256x128xf32> to vector<256x128xf32>
    %c0_2 = arith.constant 0 : index
    %c0_3 = arith.constant 0 : index
    %c0_4 = arith.constant 0 : index
    %9 = vector.load %arg3[%c0_2, %c0_3, %c0_4] : memref<1x256x128xf32, #tpu.memory_space<vmem>>, vector<1x256x128xf32>
    %10 = vector.shape_cast %9 : vector<1x256x128xf32> to vector<256x128xf32>
    %11 = arith.addf %8, %10 : vector<256x128xf32>
    %c0_5 = arith.constant 0 : index
    %c0_6 = arith.constant 0 : index
    %c0_7 = arith.constant 0 : index
    %12 = vector.load %arg12[%c0_5, %c0_6, %c0_7] : memref<1x256x128xf32, #tpu.memory_space<vmem>>, vector<1x256x128xf32>
    %13 = vector.shape_cast %12 : vector<1x256x128xf32> to vector<256x128xf32>
    %14 = vector.shape_cast %11 : vector<256x128xf32> to vector<1x256x128xf32>
    tpu.vector_store %arg12[%c0_5, %c0_6, %c0_7], %14 {strides = array<i32>} : memref<1x256x128xf32, #tpu.memory_space<vmem>>, vector<1x256x128xf32>,
    %cst = arith.constant 0.000000e+00 : f32
    %15 = vector.broadcast %cst : f32 to vector<288x128xf32>
    %c0_8 = arith.constant 0 : index
    %c0_9 = arith.constant 0 : index
    %16 = vector.load %arg13[%c0_8, %c0_9] : memref<288x128xf32, #tpu.memory_space<vmem>>, vector<288x128xf32>
    tpu.vector_store %arg13[%c0_8, %c0_9], %15 {strides = array<i32>} : memref<288x128xf32, #tpu.memory_space<vmem>>, vector<288x128xf32>,
    %c0_10 = arith.constant 0 : index
    %c0_11 = arith.constant 0 : index
    %c0_12 = arith.constant 0 : index
    %17 = vector.load %arg12[%c0_10, %c0_11, %c0_12] : memref<1x256x128xf32, #tpu.memory_space<vmem>>, vector<1x256x128xf32>
    %18 = vector.shape_cast %17 : vector<1x256x128xf32> to vector<256x128xf32>
    %19 = arith.mulf %18, %6 : vector<256x128xf32>
    %c16 = arith.constant 16 : index
    %c0_13 = arith.constant 0 : index
    %20 = vector.load %arg13[%c16, %c0_13] : memref<288x128xf32, #tpu.memory_space<vmem>>, vector<256x128xf32>
    tpu.vector_store %arg13[%c16, %c0_13], %19 {strides = array<i32>} : memref<288x128xf32, #tpu.memory_space<vmem>>, vector<256x128xf32>,
    %c15 = arith.constant 15 : index
    %c0_14 = arith.constant 0 : index
    %21 = vector.load %arg13[%c15, %c0_14] : memref<288x128xf32, #tpu.memory_space<vmem>>, vector<256x128xf32>
    %c0_15 = arith.constant 0 : index
    %c0_16 = arith.constant 0 : index
    %c0_17 = arith.constant 0 : index
    %c0_18 = arith.constant 0 : index
    %22 = vector.load %arg4[%c0_15, %c0_16, %c0_17, %c0_18] : memref<3x3x1x128xf32, #tpu.memory_space<vmem>>, vector<1x1x1x128xf32>
    %23 = vector.shape_cast %22 : vector<1x1x1x128xf32> to vector<1x128xf32>
    %24 = vector.broadcast %23 : vector<1x128xf32> to vector<256x128xf32>
    %25 = arith.mulf %21, %24 : vector<256x128xf32>
    %c16_19 = arith.constant 16 : index
    %c0_20 = arith.constant 0 : index
    %26 = vector.load %arg13[%c16_19, %c0_20] : memref<288x128xf32, #tpu.memory_space<vmem>>, vector<256x128xf32>
    %c0_21 = arith.constant 0 : index
    %c1 = arith.constant 1 : index
    %c0_22 = arith.constant 0 : index
    %c0_23 = arith.constant 0 : index
    %27 = vector.load %arg4[%c0_21, %c1, %c0_22, %c0_23] : memref<3x3x1x128xf32, #tpu.memory_space<vmem>>, vector<1x1x1x128xf32>
    %28 = vector.shape_cast %27 : vector<1x1x1x128xf32> to vector<1x128xf32>
    %29 = vector.broadcast %28 : vector<1x128xf32> to vector<256x128xf32>
    %30 = arith.mulf %26, %29 : vector<256x128xf32>
    %31 = arith.addf %25, %30 : vector<256x128xf32>
    %c17 = arith.constant 17 : index
    %c0_24 = arith.constant 0 : index
    %32 = vector.load %arg13[%c17, %c0_24] : memref<288x128xf32, #tpu.memory_space<vmem>>, vector<256x128xf32>
    %c0_25 = arith.constant 0 : index
    %c2 = arith.constant 2 : index
    %c0_26 = arith.constant 0 : index
    %c0_27 = arith.constant 0 : index
    %33 = vector.load %arg4[%c0_25, %c2, %c0_26, %c0_27] : memref<3x3x1x128xf32, #tpu.memory_space<vmem>>, vector<1x1x1x128xf32>
    %34 = vector.shape_cast %33 : vector<1x1x1x128xf32> to vector<1x128xf32>
    %35 = vector.broadcast %34 : vector<1x128xf32> to vector<256x128xf32>
    %36 = arith.mulf %32, %35 : vector<256x128xf32>
    %37 = arith.addf %31, %36 : vector<256x128xf32>
    %c0_28 = arith.constant 0 : index
    %c0_29 = arith.constant 0 : index
    %c0_30 = arith.constant 0 : index
    %38 = vector.load %arg5[%c0_28, %c0_29, %c0_30] : memref<3x1x128xf32, #tpu.memory_space<vmem>>, vector<1x1x128xf32>
    %39 = vector.shape_cast %38 : vector<1x1x128xf32> to vector<1x128xf32>
    %40 = vector.broadcast %39 : vector<1x128xf32> to vector<256x128xf32>
    %41 = arith.addf %37, %40 : vector<256x128xf32>
    %c0_31 = arith.constant 0 : index
    %c0_32 = arith.constant 0 : index
    %c0_33 = arith.constant 0 : index
    %42 = vector.load %arg8[%c0_31, %c0_32, %c0_33] : memref<3x1x128xf32, #tpu.memory_space<vmem>>, vector<1x1x128xf32>
    %43 = vector.shape_cast %42 : vector<1x1x128xf32> to vector<1x128xf32>
    %c0_34 = arith.constant 0 : index
    %c0_35 = arith.constant 0 : index
    %c0_36 = arith.constant 0 : index
    %44 = vector.load %arg9[%c0_34, %c0_35, %c0_36] : memref<3x1x128xf32, #tpu.memory_space<vmem>>, vector<1x1x128xf32>
    %45 = vector.shape_cast %44 : vector<1x1x128xf32> to vector<1x128xf32>
    %cst_37 = arith.constant dense<0.000000e+00> : vector<256xf32>
    %46 = vector.multi_reduction <add>, %41, %cst_37 [1] : vector<256x128xf32> to vector<256xf32>
    %47 = vector.shape_cast %46 : vector<256xf32> to vector<256x1xf32>
    %cst_38 = arith.constant 1.280000e+02 : f32
    %48 = vector.broadcast %cst_38 : f32 to vector<256x1xf32>
    %49 = arith.divf %47, %48 : vector<256x1xf32>
    %50 = vector.broadcast %49 : vector<256x1xf32> to vector<256x128xf32>
    %51 = arith.subf %41, %50 : vector<256x128xf32>
    %52 = arith.mulf %51, %51 : vector<256x128xf32>
    %cst_39 = arith.constant dense<0.000000e+00> : vector<256xf32>
    %53 = vector.multi_reduction <add>, %52, %cst_39 [1] : vector<256x128xf32> to vector<256xf32>
    %54 = vector.shape_cast %53 : vector<256xf32> to vector<256x1xf32>
    %cst_40 = arith.constant 1.280000e+02 : f32
    %55 = vector.broadcast %cst_40 : f32 to vector<256x1xf32>
    %56 = arith.divf %54, %55 : vector<256x1xf32>
    %cst_41 = arith.constant 9.99999974E-6 : f32
    %57 = vector.broadcast %cst_41 : f32 to vector<256x1xf32>
    %58 = arith.addf %56, %57 : vector<256x1xf32>
    %59 = math.rsqrt %58 : vector<256x1xf32>
    %60 = vector.broadcast %59 : vector<256x1xf32> to vector<256x128xf32>
    %61 = arith.mulf %51, %60 : vector<256x128xf32>
    %62 = vector.broadcast %43 : vector<1x128xf32> to vector<256x128xf32>
    %63 = arith.mulf %61, %62 : vector<256x128xf32>
    %64 = vector.broadcast %45 : vector<1x128xf32> to vector<256x128xf32>
    %65 = arith.addf %63, %64 : vector<256x128xf32>
    %cst_42 = arith.constant 5.000000e-01 : f32
    %66 = vector.broadcast %cst_42 : f32 to vector<256x128xf32>
    %67 = arith.mulf %66, %65 : vector<256x128xf32>
    %cst_43 = arith.constant 4.471500e-02 : f32
    %68 = vector.broadcast %cst_43 : f32 to vector<256x128xf32>
    %69 = arith.mulf %68, %65 : vector<256x128xf32>
    %70 = arith.mulf %69, %65 : vector<256x128xf32>
    %71 = arith.mulf %70, %65 : vector<256x128xf32>
    %72 = arith.addf %65, %71 : vector<256x128xf32>
    %cst_44 = arith.constant 0.797884583 : f32
    %73 = vector.broadcast %cst_44 : f32 to vector<256x128xf32>
    %74 = arith.mulf %73, %72 : vector<256x128xf32>
    %75 = math.tanh %74 : vector<256x128xf32>
    %cst_45 = arith.constant 1.000000e+00 : f32
    %76 = vector.broadcast %cst_45 : f32 to vector<256x128xf32>
    %77 = arith.addf %76, %75 : vector<256x128xf32>
    %78 = arith.mulf %67, %77 : vector<256x128xf32>
    %79 = arith.truncf %78 : vector<256x128xf32> to vector<256x128xbf16>
    %c0_46 = arith.constant 0 : index
    %c0_47 = arith.constant 0 : index
    %c0_48 = arith.constant 0 : index
    %80 = vector.load %arg6[%c0_46, %c0_47, %c0_48] : memref<3x128x128xbf16, #tpu.memory_space<vmem>>, vector<1x128x128xbf16>
    %81 = vector.shape_cast %80 : vector<1x128x128xbf16> to vector<128x128xbf16>
    %cst_49 = arith.constant dense<0.000000e+00> : vector<256x128xf32>
    %82 = tpu.matmul %79, %81, %cst_49 {dimension_numbers = #tpu.dot_dimension_numbers<[1], [0], [0], [1], [0, 0, 1, 1], [], []>} : vector<256x128xbf16>, vector<128x128xbf16>, vector<256x128xf32> -> vector<256x128xf32>
    %c0_50 = arith.constant 0 : index
    %c0_51 = arith.constant 0 : index
    %c0_52 = arith.constant 0 : index
    %83 = vector.load %arg7[%c0_50, %c0_51, %c0_52] : memref<3x1x128xf32, #tpu.memory_space<vmem>>, vector<1x1x128xf32>
    %84 = vector.shape_cast %83 : vector<1x1x128xf32> to vector<1x128xf32>
    %85 = vector.broadcast %84 : vector<1x128xf32> to vector<256x128xf32>
    %86 = arith.addf %82, %85 : vector<256x128xf32>
    %c0_53 = arith.constant 0 : index
    %c0_54 = arith.constant 0 : index
    %c0_55 = arith.constant 0 : index
    %87 = vector.load %arg10[%c0_53, %c0_54, %c0_55] : memref<3x1x128xf32, #tpu.memory_space<vmem>>, vector<1x1x128xf32>
    %88 = vector.shape_cast %87 : vector<1x1x128xf32> to vector<1x128xf32>
    %c0_56 = arith.constant 0 : index
    %c0_57 = arith.constant 0 : index
    %c0_58 = arith.constant 0 : index
    %89 = vector.load %arg11[%c0_56, %c0_57, %c0_58] : memref<3x1x128xf32, #tpu.memory_space<vmem>>, vector<1x1x128xf32>
    %90 = vector.shape_cast %89 : vector<1x1x128xf32> to vector<1x128xf32>
    %cst_59 = arith.constant dense<0.000000e+00> : vector<256xf32>
    %91 = vector.multi_reduction <add>, %86, %cst_59 [1] : vector<256x128xf32> to vector<256xf32>
    %92 = vector.shape_cast %91 : vector<256xf32> to vector<256x1xf32>
    %cst_60 = arith.constant 1.280000e+02 : f32
    %93 = vector.broadcast %cst_60 : f32 to vector<256x1xf32>
    %94 = arith.divf %92, %93 : vector<256x1xf32>
    %95 = vector.broadcast %94 : vector<256x1xf32> to vector<256x128xf32>
    %96 = arith.subf %86, %95 : vector<256x128xf32>
    %97 = arith.mulf %96, %96 : vector<256x128xf32>
    %cst_61 = arith.constant dense<0.000000e+00> : vector<256xf32>
    %98 = vector.multi_reduction <add>, %97, %cst_61 [1] : vector<256x128xf32> to vector<256xf32>
    %99 = vector.shape_cast %98 : vector<256xf32> to vector<256x1xf32>
    %cst_62 = arith.constant 1.280000e+02 : f32
    %100 = vector.broadcast %cst_62 : f32 to vector<256x1xf32>
    %101 = arith.divf %99, %100 : vector<256x1xf32>
    %cst_63 = arith.constant 9.99999974E-6 : f32
    %102 = vector.broadcast %cst_63 : f32 to vector<256x1xf32>
    %103 = arith.addf %101, %102 : vector<256x1xf32>
    %104 = math.rsqrt %103 : vector<256x1xf32>
    %105 = vector.broadcast %104 : vector<256x1xf32> to vector<256x128xf32>
    %106 = arith.mulf %96, %105 : vector<256x128xf32>
    %107 = vector.broadcast %88 : vector<1x128xf32> to vector<256x128xf32>
    %108 = arith.mulf %106, %107 : vector<256x128xf32>
    %109 = vector.broadcast %90 : vector<1x128xf32> to vector<256x128xf32>
    %110 = arith.addf %108, %109 : vector<256x128xf32>
    %cst_64 = arith.constant 5.000000e-01 : f32
    %111 = vector.broadcast %cst_64 : f32 to vector<256x128xf32>
    %112 = arith.mulf %111, %110 : vector<256x128xf32>
    %cst_65 = arith.constant 4.471500e-02 : f32
    %113 = vector.broadcast %cst_65 : f32 to vector<256x128xf32>
    %114 = arith.mulf %113, %110 : vector<256x128xf32>
    %115 = arith.mulf %114, %110 : vector<256x128xf32>
    %116 = arith.mulf %115, %110 : vector<256x128xf32>
    %117 = arith.addf %110, %116 : vector<256x128xf32>
    %cst_66 = arith.constant 0.797884583 : f32
    %118 = vector.broadcast %cst_66 : f32 to vector<256x128xf32>
    %119 = arith.mulf %118, %117 : vector<256x128xf32>
    %120 = math.tanh %119 : vector<256x128xf32>
    %cst_67 = arith.constant 1.000000e+00 : f32
    %121 = vector.broadcast %cst_67 : f32 to vector<256x128xf32>
    %122 = arith.addf %121, %120 : vector<256x128xf32>
    %123 = arith.mulf %112, %122 : vector<256x128xf32>
    %c0_68 = arith.constant 0 : index
    %c0_69 = arith.constant 0 : index
    %c0_70 = arith.constant 0 : index
    %124 = vector.load %arg12[%c0_68, %c0_69, %c0_70] : memref<1x256x128xf32, #tpu.memory_space<vmem>>, vector<1x256x128xf32>
    %125 = vector.shape_cast %124 : vector<1x256x128xf32> to vector<256x128xf32>
    %126 = arith.addf %125, %123 : vector<256x128xf32>
    %c0_71 = arith.constant 0 : index
    %c0_72 = arith.constant 0 : index
    %c0_73 = arith.constant 0 : index
    %127 = vector.load %arg12[%c0_71, %c0_72, %c0_73] : memref<1x256x128xf32, #tpu.memory_space<vmem>>, vector<1x256x128xf32>
    %128 = vector.shape_cast %127 : vector<1x256x128xf32> to vector<256x128xf32>
    %129 = vector.shape_cast %126 : vector<256x128xf32> to vector<1x256x128xf32>
    tpu.vector_store %arg12[%c0_71, %c0_72, %c0_73], %129 {strides = array<i32>} : memref<1x256x128xf32, #tpu.memory_space<vmem>>, vector<1x256x128xf32>,
    %c0_74 = arith.constant 0 : index
    %c0_75 = arith.constant 0 : index
    %c0_76 = arith.constant 0 : index
    %130 = vector.load %arg12[%c0_74, %c0_75, %c0_76] : memref<1x256x128xf32, #tpu.memory_space<vmem>>, vector<1x256x128xf32>
    %131 = vector.shape_cast %130 : vector<1x256x128xf32> to vector<256x128xf32>
    %132 = arith.mulf %131, %6 : vector<256x128xf32>
    %c16_77 = arith.constant 16 : index
    %c0_78 = arith.constant 0 : index
    %133 = vector.load %arg13[%c16_77, %c0_78] : memref<288x128xf32, #tpu.memory_space<vmem>>, vector<256x128xf32>
    tpu.vector_store %arg13[%c16_77, %c0_78], %132 {strides = array<i32>} : memref<288x128xf32, #tpu.memory_space<vmem>>, vector<256x128xf32>,
    %c13 = arith.constant 13 : index
    %c0_79 = arith.constant 0 : index
    %134 = vector.load %arg13[%c13, %c0_79] : memref<288x128xf32, #tpu.memory_space<vmem>>, vector<256x128xf32>
    %c1_80 = arith.constant 1 : index
    %c0_81 = arith.constant 0 : index
    %c0_82 = arith.constant 0 : index
    %c0_83 = arith.constant 0 : index
    %135 = vector.load %arg4[%c1_80, %c0_81, %c0_82, %c0_83] : memref<3x3x1x128xf32, #tpu.memory_space<vmem>>, vector<1x1x1x128xf32>
    %136 = vector.shape_cast %135 : vector<1x1x1x128xf32> to vector<1x128xf32>
    %137 = vector.broadcast %136 : vector<1x128xf32> to vector<256x128xf32>
    %138 = arith.mulf %134, %137 : vector<256x128xf32>
    %c16_84 = arith.constant 16 : index
    %c0_85 = arith.constant 0 : index
    %139 = vector.load %arg13[%c16_84, %c0_85] : memref<288x128xf32, #tpu.memory_space<vmem>>, vector<256x128xf32>
    %c1_86 = arith.constant 1 : index
    %c1_87 = arith.constant 1 : index
    %c0_88 = arith.constant 0 : index
    %c0_89 = arith.constant 0 : index
    %140 = vector.load %arg4[%c1_86, %c1_87, %c0_88, %c0_89] : memref<3x3x1x128xf32, #tpu.memory_space<vmem>>, vector<1x1x1x128xf32>
    %141 = vector.shape_cast %140 : vector<1x1x1x128xf32> to vector<1x128xf32>
    %142 = vector.broadcast %141 : vector<1x128xf32> to vector<256x128xf32>
    %143 = arith.mulf %139, %142 : vector<256x128xf32>
    %144 = arith.addf %138, %143 : vector<256x128xf32>
    %c19 = arith.constant 19 : index
    %c0_90 = arith.constant 0 : index
    %145 = vector.load %arg13[%c19, %c0_90] : memref<288x128xf32, #tpu.memory_space<vmem>>, vector<256x128xf32>
    %c1_91 = arith.constant 1 : index
    %c2_92 = arith.constant 2 : index
    %c0_93 = arith.constant 0 : index
    %c0_94 = arith.constant 0 : index
    %146 = vector.load %arg4[%c1_91, %c2_92, %c0_93, %c0_94] : memref<3x3x1x128xf32, #tpu.memory_space<vmem>>, vector<1x1x1x128xf32>
    %147 = vector.shape_cast %146 : vector<1x1x1x128xf32> to vector<1x128xf32>
    %148 = vector.broadcast %147 : vector<1x128xf32> to vector<256x128xf32>
    %149 = arith.mulf %145, %148 : vector<256x128xf32>
    %150 = arith.addf %144, %149 : vector<256x128xf32>
    %c1_95 = arith.constant 1 : index
    %c0_96 = arith.constant 0 : index
    %c0_97 = arith.constant 0 : index
    %151 = vector.load %arg5[%c1_95, %c0_96, %c0_97] : memref<3x1x128xf32, #tpu.memory_space<vmem>>, vector<1x1x128xf32>
    %152 = vector.shape_cast %151 : vector<1x1x128xf32> to vector<1x128xf32>
    %153 = vector.broadcast %152 : vector<1x128xf32> to vector<256x128xf32>
    %154 = arith.addf %150, %153 : vector<256x128xf32>
    %c1_98 = arith.constant 1 : index
    %c0_99 = arith.constant 0 : index
    %c0_100 = arith.constant 0 : index
    %155 = vector.load %arg8[%c1_98, %c0_99, %c0_100] : memref<3x1x128xf32, #tpu.memory_space<vmem>>, vector<1x1x128xf32>
    %156 = vector.shape_cast %155 : vector<1x1x128xf32> to vector<1x128xf32>
    %c1_101 = arith.constant 1 : index
    %c0_102 = arith.constant 0 : index
    %c0_103 = arith.constant 0 : index
    %157 = vector.load %arg9[%c1_101, %c0_102, %c0_103] : memref<3x1x128xf32, #tpu.memory_space<vmem>>, vector<1x1x128xf32>
    %158 = vector.shape_cast %157 : vector<1x1x128xf32> to vector<1x128xf32>
    %cst_104 = arith.constant dense<0.000000e+00> : vector<256xf32>
    %159 = vector.multi_reduction <add>, %154, %cst_104 [1] : vector<256x128xf32> to vector<256xf32>
    %160 = vector.shape_cast %159 : vector<256xf32> to vector<256x1xf32>
    %cst_105 = arith.constant 1.280000e+02 : f32
    %161 = vector.broadcast %cst_105 : f32 to vector<256x1xf32>
    %162 = arith.divf %160, %161 : vector<256x1xf32>
    %163 = vector.broadcast %162 : vector<256x1xf32> to vector<256x128xf32>
    %164 = arith.subf %154, %163 : vector<256x128xf32>
    %165 = arith.mulf %164, %164 : vector<256x128xf32>
    %cst_106 = arith.constant dense<0.000000e+00> : vector<256xf32>
    %166 = vector.multi_reduction <add>, %165, %cst_106 [1] : vector<256x128xf32> to vector<256xf32>
    %167 = vector.shape_cast %166 : vector<256xf32> to vector<256x1xf32>
    %cst_107 = arith.constant 1.280000e+02 : f32
    %168 = vector.broadcast %cst_107 : f32 to vector<256x1xf32>
    %169 = arith.divf %167, %168 : vector<256x1xf32>
    %cst_108 = arith.constant 9.99999974E-6 : f32
    %170 = vector.broadcast %cst_108 : f32 to vector<256x1xf32>
    %171 = arith.addf %169, %170 : vector<256x1xf32>
    %172 = math.rsqrt %171 : vector<256x1xf32>
    %173 = vector.broadcast %172 : vector<256x1xf32> to vector<256x128xf32>
    %174 = arith.mulf %164, %173 : vector<256x128xf32>
    %175 = vector.broadcast %156 : vector<1x128xf32> to vector<256x128xf32>
    %176 = arith.mulf %174, %175 : vector<256x128xf32>
    %177 = vector.broadcast %158 : vector<1x128xf32> to vector<256x128xf32>
    %178 = arith.addf %176, %177 : vector<256x128xf32>
    %cst_109 = arith.constant 5.000000e-01 : f32
    %179 = vector.broadcast %cst_109 : f32 to vector<256x128xf32>
    %180 = arith.mulf %179, %178 : vector<256x128xf32>
    %cst_110 = arith.constant 4.471500e-02 : f32
    %181 = vector.broadcast %cst_110 : f32 to vector<256x128xf32>
    %182 = arith.mulf %181, %178 : vector<256x128xf32>
    %183 = arith.mulf %182, %178 : vector<256x128xf32>
    %184 = arith.mulf %183, %178 : vector<256x128xf32>
    %185 = arith.addf %178, %184 : vector<256x128xf32>
    %cst_111 = arith.constant 0.797884583 : f32
    %186 = vector.broadcast %cst_111 : f32 to vector<256x128xf32>
    %187 = arith.mulf %186, %185 : vector<256x128xf32>
    %188 = math.tanh %187 : vector<256x128xf32>
    %cst_112 = arith.constant 1.000000e+00 : f32
    %189 = vector.broadcast %cst_112 : f32 to vector<256x128xf32>
    %190 = arith.addf %189, %188 : vector<256x128xf32>
    %191 = arith.mulf %180, %190 : vector<256x128xf32>
    %192 = arith.truncf %191 : vector<256x128xf32> to vector<256x128xbf16>
    %c1_113 = arith.constant 1 : index
    %c0_114 = arith.constant 0 : index
    %c0_115 = arith.constant 0 : index
    %193 = vector.load %arg6[%c1_113, %c0_114, %c0_115] : memref<3x128x128xbf16, #tpu.memory_space<vmem>>, vector<1x128x128xbf16>
    %194 = vector.shape_cast %193 : vector<1x128x128xbf16> to vector<128x128xbf16>
    %cst_116 = arith.constant dense<0.000000e+00> : vector<256x128xf32>
    %195 = tpu.matmul %192, %194, %cst_116 {dimension_numbers = #tpu.dot_dimension_numbers<[1], [0], [0], [1], [0, 0, 1, 1], [], []>} : vector<256x128xbf16>, vector<128x128xbf16>, vector<256x128xf32> -> vector<256x128xf32>
    %c1_117 = arith.constant 1 : index
    %c0_118 = arith.constant 0 : index
    %c0_119 = arith.constant 0 : index
    %196 = vector.load %arg7[%c1_117, %c0_118, %c0_119] : memref<3x1x128xf32, #tpu.memory_space<vmem>>, vector<1x1x128xf32>
    %197 = vector.shape_cast %196 : vector<1x1x128xf32> to vector<1x128xf32>
    %198 = vector.broadcast %197 : vector<1x128xf32> to vector<256x128xf32>
    %199 = arith.addf %195, %198 : vector<256x128xf32>
    %c1_120 = arith.constant 1 : index
    %c0_121 = arith.constant 0 : index
    %c0_122 = arith.constant 0 : index
    %200 = vector.load %arg10[%c1_120, %c0_121, %c0_122] : memref<3x1x128xf32, #tpu.memory_space<vmem>>, vector<1x1x128xf32>
    %201 = vector.shape_cast %200 : vector<1x1x128xf32> to vector<1x128xf32>
    %c1_123 = arith.constant 1 : index
    %c0_124 = arith.constant 0 : index
    %c0_125 = arith.constant 0 : index
    %202 = vector.load %arg11[%c1_123, %c0_124, %c0_125] : memref<3x1x128xf32, #tpu.memory_space<vmem>>, vector<1x1x128xf32>
    %203 = vector.shape_cast %202 : vector<1x1x128xf32> to vector<1x128xf32>
    %cst_126 = arith.constant dense<0.000000e+00> : vector<256xf32>
    %204 = vector.multi_reduction <add>, %199, %cst_126 [1] : vector<256x128xf32> to vector<256xf32>
    %205 = vector.shape_cast %204 : vector<256xf32> to vector<256x1xf32>
    %cst_127 = arith.constant 1.280000e+02 : f32
    %206 = vector.broadcast %cst_127 : f32 to vector<256x1xf32>
    %207 = arith.divf %205, %206 : vector<256x1xf32>
    %208 = vector.broadcast %207 : vector<256x1xf32> to vector<256x128xf32>
    %209 = arith.subf %199, %208 : vector<256x128xf32>
    %210 = arith.mulf %209, %209 : vector<256x128xf32>
    %cst_128 = arith.constant dense<0.000000e+00> : vector<256xf32>
    %211 = vector.multi_reduction <add>, %210, %cst_128 [1] : vector<256x128xf32> to vector<256xf32>
    %212 = vector.shape_cast %211 : vector<256xf32> to vector<256x1xf32>
    %cst_129 = arith.constant 1.280000e+02 : f32
    %213 = vector.broadcast %cst_129 : f32 to vector<256x1xf32>
    %214 = arith.divf %212, %213 : vector<256x1xf32>
    %cst_130 = arith.constant 9.99999974E-6 : f32
    %215 = vector.broadcast %cst_130 : f32 to vector<256x1xf32>
    %216 = arith.addf %214, %215 : vector<256x1xf32>
    %217 = math.rsqrt %216 : vector<256x1xf32>
    %218 = vector.broadcast %217 : vector<256x1xf32> to vector<256x128xf32>
    %219 = arith.mulf %209, %218 : vector<256x128xf32>
    %220 = vector.broadcast %201 : vector<1x128xf32> to vector<256x128xf32>
    %221 = arith.mulf %219, %220 : vector<256x128xf32>
    %222 = vector.broadcast %203 : vector<1x128xf32> to vector<256x128xf32>
    %223 = arith.addf %221, %222 : vector<256x128xf32>
    %cst_131 = arith.constant 5.000000e-01 : f32
    %224 = vector.broadcast %cst_131 : f32 to vector<256x128xf32>
    %225 = arith.mulf %224, %223 : vector<256x128xf32>
    %cst_132 = arith.constant 4.471500e-02 : f32
    %226 = vector.broadcast %cst_132 : f32 to vector<256x128xf32>
    %227 = arith.mulf %226, %223 : vector<256x128xf32>
    %228 = arith.mulf %227, %223 : vector<256x128xf32>
    %229 = arith.mulf %228, %223 : vector<256x128xf32>
    %230 = arith.addf %223, %229 : vector<256x128xf32>
    %cst_133 = arith.constant 0.797884583 : f32
    %231 = vector.broadcast %cst_133 : f32 to vector<256x128xf32>
    %232 = arith.mulf %231, %230 : vector<256x128xf32>
    %233 = math.tanh %232 : vector<256x128xf32>
    %cst_134 = arith.constant 1.000000e+00 : f32
    %234 = vector.broadcast %cst_134 : f32 to vector<256x128xf32>
    %235 = arith.addf %234, %233 : vector<256x128xf32>
    %236 = arith.mulf %225, %235 : vector<256x128xf32>
    %c0_135 = arith.constant 0 : index
    %c0_136 = arith.constant 0 : index
    %c0_137 = arith.constant 0 : index
    %237 = vector.load %arg12[%c0_135, %c0_136, %c0_137] : memref<1x256x128xf32, #tpu.memory_space<vmem>>, vector<1x256x128xf32>
    %238 = vector.shape_cast %237 : vector<1x256x128xf32> to vector<256x128xf32>
    %239 = arith.addf %238, %236 : vector<256x128xf32>
    %c0_138 = arith.constant 0 : index
    %c0_139 = arith.constant 0 : index
    %c0_140 = arith.constant 0 : index
    %240 = vector.load %arg12[%c0_138, %c0_139, %c0_140] : memref<1x256x128xf32, #tpu.memory_space<vmem>>, vector<1x256x128xf32>
    %241 = vector.shape_cast %240 : vector<1x256x128xf32> to vector<256x128xf32>
    %242 = vector.shape_cast %239 : vector<256x128xf32> to vector<1x256x128xf32>
    tpu.vector_store %arg12[%c0_138, %c0_139, %c0_140], %242 {strides = array<i32>} : memref<1x256x128xf32, #tpu.memory_space<vmem>>, vector<1x256x128xf32>,
    %c0_141 = arith.constant 0 : index
    %c0_142 = arith.constant 0 : index
    %c0_143 = arith.constant 0 : index
    %243 = vector.load %arg12[%c0_141, %c0_142, %c0_143] : memref<1x256x128xf32, #tpu.memory_space<vmem>>, vector<1x256x128xf32>
    %244 = vector.shape_cast %243 : vector<1x256x128xf32> to vector<256x128xf32>
    %245 = arith.mulf %244, %6 : vector<256x128xf32>
    %c16_144 = arith.constant 16 : index
    %c0_145 = arith.constant 0 : index
    %246 = vector.load %arg13[%c16_144, %c0_145] : memref<288x128xf32, #tpu.memory_space<vmem>>, vector<256x128xf32>
    tpu.vector_store %arg13[%c16_144, %c0_145], %245 {strides = array<i32>} : memref<288x128xf32, #tpu.memory_space<vmem>>, vector<256x128xf32>,
    %c7 = arith.constant 7 : index
    %c0_146 = arith.constant 0 : index
    %247 = vector.load %arg13[%c7, %c0_146] : memref<288x128xf32, #tpu.memory_space<vmem>>, vector<256x128xf32>
    %c2_147 = arith.constant 2 : index
    %c0_148 = arith.constant 0 : index
    %c0_149 = arith.constant 0 : index
    %c0_150 = arith.constant 0 : index
    %248 = vector.load %arg4[%c2_147, %c0_148, %c0_149, %c0_150] : memref<3x3x1x128xf32, #tpu.memory_space<vmem>>, vector<1x1x1x128xf32>
    %249 = vector.shape_cast %248 : vector<1x1x1x128xf32> to vector<1x128xf32>
    %250 = vector.broadcast %249 : vector<1x128xf32> to vector<256x128xf32>
    %251 = arith.mulf %247, %250 : vector<256x128xf32>
    %c16_151 = arith.constant 16 : index
    %c0_152 = arith.constant 0 : index
    %252 = vector.load %arg13[%c16_151, %c0_152] : memref<288x128xf32, #tpu.memory_space<vmem>>, vector<256x128xf32>
    %c2_153 = arith.constant 2 : index
    %c1_154 = arith.constant 1 : index
    %c0_155 = arith.constant 0 : index
    %c0_156 = arith.constant 0 : index
    %253 = vector.load %arg4[%c2_153, %c1_154, %c0_155, %c0_156] : memref<3x3x1x128xf32, #tpu.memory_space<vmem>>, vector<1x1x1x128xf32>
    %254 = vector.shape_cast %253 : vector<1x1x1x128xf32> to vector<1x128xf32>
    %255 = vector.broadcast %254 : vector<1x128xf32> to vector<256x128xf32>
    %256 = arith.mulf %252, %255 : vector<256x128xf32>
    %257 = arith.addf %251, %256 : vector<256x128xf32>
    %c25 = arith.constant 25 : index
    %c0_157 = arith.constant 0 : index
    %258 = vector.load %arg13[%c25, %c0_157] : memref<288x128xf32, #tpu.memory_space<vmem>>, vector<256x128xf32>
    %c2_158 = arith.constant 2 : index
    %c2_159 = arith.constant 2 : index
    %c0_160 = arith.constant 0 : index
    %c0_161 = arith.constant 0 : index
    %259 = vector.load %arg4[%c2_158, %c2_159, %c0_160, %c0_161] : memref<3x3x1x128xf32, #tpu.memory_space<vmem>>, vector<1x1x1x128xf32>
    %260 = vector.shape_cast %259 : vector<1x1x1x128xf32> to vector<1x128xf32>
    %261 = vector.broadcast %260 : vector<1x128xf32> to vector<256x128xf32>
    %262 = arith.mulf %258, %261 : vector<256x128xf32>
    %263 = arith.addf %257, %262 : vector<256x128xf32>
    %c2_162 = arith.constant 2 : index
    %c0_163 = arith.constant 0 : index
    %c0_164 = arith.constant 0 : index
    %264 = vector.load %arg5[%c2_162, %c0_163, %c0_164] : memref<3x1x128xf32, #tpu.memory_space<vmem>>, vector<1x1x128xf32>
    %265 = vector.shape_cast %264 : vector<1x1x128xf32> to vector<1x128xf32>
    %266 = vector.broadcast %265 : vector<1x128xf32> to vector<256x128xf32>
    %267 = arith.addf %263, %266 : vector<256x128xf32>
    %c2_165 = arith.constant 2 : index
    %c0_166 = arith.constant 0 : index
    %c0_167 = arith.constant 0 : index
    %268 = vector.load %arg8[%c2_165, %c0_166, %c0_167] : memref<3x1x128xf32, #tpu.memory_space<vmem>>, vector<1x1x128xf32>
    %269 = vector.shape_cast %268 : vector<1x1x128xf32> to vector<1x128xf32>
    %c2_168 = arith.constant 2 : index
    %c0_169 = arith.constant 0 : index
    %c0_170 = arith.constant 0 : index
    %270 = vector.load %arg9[%c2_168, %c0_169, %c0_170] : memref<3x1x128xf32, #tpu.memory_space<vmem>>, vector<1x1x128xf32>
    %271 = vector.shape_cast %270 : vector<1x1x128xf32> to vector<1x128xf32>
    %cst_171 = arith.constant dense<0.000000e+00> : vector<256xf32>
    %272 = vector.multi_reduction <add>, %267, %cst_171 [1] : vector<256x128xf32> to vector<256xf32>
    %273 = vector.shape_cast %272 : vector<256xf32> to vector<256x1xf32>
    %cst_172 = arith.constant 1.280000e+02 : f32
    %274 = vector.broadcast %cst_172 : f32 to vector<256x1xf32>
    %275 = arith.divf %273, %274 : vector<256x1xf32>
    %276 = vector.broadcast %275 : vector<256x1xf32> to vector<256x128xf32>
    %277 = arith.subf %267, %276 : vector<256x128xf32>
    %278 = arith.mulf %277, %277 : vector<256x128xf32>
    %cst_173 = arith.constant dense<0.000000e+00> : vector<256xf32>
    %279 = vector.multi_reduction <add>, %278, %cst_173 [1] : vector<256x128xf32> to vector<256xf32>
    %280 = vector.shape_cast %279 : vector<256xf32> to vector<256x1xf32>
    %cst_174 = arith.constant 1.280000e+02 : f32
    %281 = vector.broadcast %cst_174 : f32 to vector<256x1xf32>
    %282 = arith.divf %280, %281 : vector<256x1xf32>
    %cst_175 = arith.constant 9.99999974E-6 : f32
    %283 = vector.broadcast %cst_175 : f32 to vector<256x1xf32>
    %284 = arith.addf %282, %283 : vector<256x1xf32>
    %285 = math.rsqrt %284 : vector<256x1xf32>
    %286 = vector.broadcast %285 : vector<256x1xf32> to vector<256x128xf32>
    %287 = arith.mulf %277, %286 : vector<256x128xf32>
    %288 = vector.broadcast %269 : vector<1x128xf32> to vector<256x128xf32>
    %289 = arith.mulf %287, %288 : vector<256x128xf32>
    %290 = vector.broadcast %271 : vector<1x128xf32> to vector<256x128xf32>
    %291 = arith.addf %289, %290 : vector<256x128xf32>
    %cst_176 = arith.constant 5.000000e-01 : f32
    %292 = vector.broadcast %cst_176 : f32 to vector<256x128xf32>
    %293 = arith.mulf %292, %291 : vector<256x128xf32>
    %cst_177 = arith.constant 4.471500e-02 : f32
    %294 = vector.broadcast %cst_177 : f32 to vector<256x128xf32>
    %295 = arith.mulf %294, %291 : vector<256x128xf32>
    %296 = arith.mulf %295, %291 : vector<256x128xf32>
    %297 = arith.mulf %296, %291 : vector<256x128xf32>
    %298 = arith.addf %291, %297 : vector<256x128xf32>
    %cst_178 = arith.constant 0.797884583 : f32
    %299 = vector.broadcast %cst_178 : f32 to vector<256x128xf32>
    %300 = arith.mulf %299, %298 : vector<256x128xf32>
    %301 = math.tanh %300 : vector<256x128xf32>
    %cst_179 = arith.constant 1.000000e+00 : f32
    %302 = vector.broadcast %cst_179 : f32 to vector<256x128xf32>
    %303 = arith.addf %302, %301 : vector<256x128xf32>
    %304 = arith.mulf %293, %303 : vector<256x128xf32>
    %305 = arith.truncf %304 : vector<256x128xf32> to vector<256x128xbf16>
    %c2_180 = arith.constant 2 : index
    %c0_181 = arith.constant 0 : index
    %c0_182 = arith.constant 0 : index
    %306 = vector.load %arg6[%c2_180, %c0_181, %c0_182] : memref<3x128x128xbf16, #tpu.memory_space<vmem>>, vector<1x128x128xbf16>
    %307 = vector.shape_cast %306 : vector<1x128x128xbf16> to vector<128x128xbf16>
    %cst_183 = arith.constant dense<0.000000e+00> : vector<256x128xf32>
    %308 = tpu.matmul %305, %307, %cst_183 {dimension_numbers = #tpu.dot_dimension_numbers<[1], [0], [0], [1], [0, 0, 1, 1], [], []>} : vector<256x128xbf16>, vector<128x128xbf16>, vector<256x128xf32> -> vector<256x128xf32>
    %c2_184 = arith.constant 2 : index
    %c0_185 = arith.constant 0 : index
    %c0_186 = arith.constant 0 : index
    %309 = vector.load %arg7[%c2_184, %c0_185, %c0_186] : memref<3x1x128xf32, #tpu.memory_space<vmem>>, vector<1x1x128xf32>
    %310 = vector.shape_cast %309 : vector<1x1x128xf32> to vector<1x128xf32>
    %311 = vector.broadcast %310 : vector<1x128xf32> to vector<256x128xf32>
    %312 = arith.addf %308, %311 : vector<256x128xf32>
    %c2_187 = arith.constant 2 : index
    %c0_188 = arith.constant 0 : index
    %c0_189 = arith.constant 0 : index
    %313 = vector.load %arg10[%c2_187, %c0_188, %c0_189] : memref<3x1x128xf32, #tpu.memory_space<vmem>>, vector<1x1x128xf32>
    %314 = vector.shape_cast %313 : vector<1x1x128xf32> to vector<1x128xf32>
    %c2_190 = arith.constant 2 : index
    %c0_191 = arith.constant 0 : index
    %c0_192 = arith.constant 0 : index
    %315 = vector.load %arg11[%c2_190, %c0_191, %c0_192] : memref<3x1x128xf32, #tpu.memory_space<vmem>>, vector<1x1x128xf32>
    %316 = vector.shape_cast %315 : vector<1x1x128xf32> to vector<1x128xf32>
    %cst_193 = arith.constant dense<0.000000e+00> : vector<256xf32>
    %317 = vector.multi_reduction <add>, %312, %cst_193 [1] : vector<256x128xf32> to vector<256xf32>
    %318 = vector.shape_cast %317 : vector<256xf32> to vector<256x1xf32>
    %cst_194 = arith.constant 1.280000e+02 : f32
    %319 = vector.broadcast %cst_194 : f32 to vector<256x1xf32>
    %320 = arith.divf %318, %319 : vector<256x1xf32>
    %321 = vector.broadcast %320 : vector<256x1xf32> to vector<256x128xf32>
    %322 = arith.subf %312, %321 : vector<256x128xf32>
    %323 = arith.mulf %322, %322 : vector<256x128xf32>
    %cst_195 = arith.constant dense<0.000000e+00> : vector<256xf32>
    %324 = vector.multi_reduction <add>, %323, %cst_195 [1] : vector<256x128xf32> to vector<256xf32>
    %325 = vector.shape_cast %324 : vector<256xf32> to vector<256x1xf32>
    %cst_196 = arith.constant 1.280000e+02 : f32
    %326 = vector.broadcast %cst_196 : f32 to vector<256x1xf32>
    %327 = arith.divf %325, %326 : vector<256x1xf32>
    %cst_197 = arith.constant 9.99999974E-6 : f32
    %328 = vector.broadcast %cst_197 : f32 to vector<256x1xf32>
    %329 = arith.addf %327, %328 : vector<256x1xf32>
    %330 = math.rsqrt %329 : vector<256x1xf32>
    %331 = vector.broadcast %330 : vector<256x1xf32> to vector<256x128xf32>
    %332 = arith.mulf %322, %331 : vector<256x128xf32>
    %333 = vector.broadcast %314 : vector<1x128xf32> to vector<256x128xf32>
    %334 = arith.mulf %332, %333 : vector<256x128xf32>
    %335 = vector.broadcast %316 : vector<1x128xf32> to vector<256x128xf32>
    %336 = arith.addf %334, %335 : vector<256x128xf32>
    %cst_198 = arith.constant 5.000000e-01 : f32
    %337 = vector.broadcast %cst_198 : f32 to vector<256x128xf32>
    %338 = arith.mulf %337, %336 : vector<256x128xf32>
    %cst_199 = arith.constant 4.471500e-02 : f32
    %339 = vector.broadcast %cst_199 : f32 to vector<256x128xf32>
    %340 = arith.mulf %339, %336 : vector<256x128xf32>
    %341 = arith.mulf %340, %336 : vector<256x128xf32>
    %342 = arith.mulf %341, %336 : vector<256x128xf32>
    %343 = arith.addf %336, %342 : vector<256x128xf32>
    %cst_200 = arith.constant 0.797884583 : f32
    %344 = vector.broadcast %cst_200 : f32 to vector<256x128xf32>
    %345 = arith.mulf %344, %343 : vector<256x128xf32>
    %346 = math.tanh %345 : vector<256x128xf32>
    %cst_201 = arith.constant 1.000000e+00 : f32
    %347 = vector.broadcast %cst_201 : f32 to vector<256x128xf32>
    %348 = arith.addf %347, %346 : vector<256x128xf32>
    %349 = arith.mulf %338, %348 : vector<256x128xf32>
    %c0_202 = arith.constant 0 : index
    %c0_203 = arith.constant 0 : index
    %c0_204 = arith.constant 0 : index
    %350 = vector.load %arg12[%c0_202, %c0_203, %c0_204] : memref<1x256x128xf32, #tpu.memory_space<vmem>>, vector<1x256x128xf32>
    %351 = vector.shape_cast %350 : vector<1x256x128xf32> to vector<256x128xf32>
    %352 = arith.addf %351, %349 : vector<256x128xf32>
    %c0_205 = arith.constant 0 : index
    %c0_206 = arith.constant 0 : index
    %c0_207 = arith.constant 0 : index
    %353 = vector.load %arg12[%c0_205, %c0_206, %c0_207] : memref<1x256x128xf32, #tpu.memory_space<vmem>>, vector<1x256x128xf32>
    %354 = vector.shape_cast %353 : vector<1x256x128xf32> to vector<256x128xf32>
    %355 = vector.shape_cast %352 : vector<256x128xf32> to vector<1x256x128xf32>
    tpu.vector_store %arg12[%c0_205, %c0_206, %c0_207], %355 {strides = array<i32>} : memref<1x256x128xf32, #tpu.memory_space<vmem>>, vector<1x256x128xf32>,
    %c0_208 = arith.constant 0 : index
    %c0_209 = arith.constant 0 : index
    %c0_210 = arith.constant 0 : index
    %356 = vector.load %arg12[%c0_208, %c0_209, %c0_210] : memref<1x256x128xf32, #tpu.memory_space<vmem>>, vector<1x256x128xf32>
    %357 = vector.shape_cast %356 : vector<1x256x128xf32> to vector<256x128xf32>
    %358 = arith.mulf %357, %6 : vector<256x128xf32>
    %c0_211 = arith.constant 0 : index
    %c0_212 = arith.constant 0 : index
    %c0_213 = arith.constant 0 : index
    %359 = vector.load %arg12[%c0_211, %c0_212, %c0_213] : memref<1x256x128xf32, #tpu.memory_space<vmem>>, vector<1x256x128xf32>
    %360 = vector.shape_cast %359 : vector<1x256x128xf32> to vector<256x128xf32>
    %361 = vector.shape_cast %358 : vector<256x128xf32> to vector<1x256x128xf32>
    tpu.vector_store %arg12[%c0_211, %c0_212, %c0_213], %361 {strides = array<i32>} : memref<1x256x128xf32, #tpu.memory_space<vmem>>, vector<1x256x128xf32>,
    return
  }
  func.func @transform_0(%arg0: i32, %arg1: memref<2xi32, #tpu.memory_space<smem>>) -> (i32, i32, i32) {
    %c0_i32 = arith.constant 0 : i32
    %c0_i32_0 = arith.constant 0 : i32
    %c0_i32_1 = arith.constant 0 : i32
    return %arg0, %c0_i32, %c0_i32_0 : i32, i32, i32
  }
  func.func @transform_1(%arg0: i32, %arg1: memref<2xi32, #tpu.memory_space<smem>>) -> (i32, i32, i32) {
    %c0_i32 = arith.constant 0 : i32
    %c0_i32_0 = arith.constant 0 : i32
    %c0_i32_1 = arith.constant 0 : i32
    return %arg0, %c0_i32, %c0_i32_0 : i32, i32, i32
  }
  func.func @transform_2(%arg0: i32, %arg1: memref<2xi32, #tpu.memory_space<smem>>) -> (i32, i32, i32, i32) {
    %c0_i32 = arith.constant 0 : i32
    %c0_i32_0 = arith.constant 0 : i32
    %c0_i32_1 = arith.constant 0 : i32
    %c0_i32_2 = arith.constant 0 : i32
    %c0_i32_3 = arith.constant 0 : i32
    return %c0_i32, %c0_i32_0, %c0_i32_1, %c0_i32_2 : i32, i32, i32, i32
  }
  func.func @transform_3(%arg0: i32, %arg1: memref<2xi32, #tpu.memory_space<smem>>) -> (i32, i32, i32) {
    %c0_i32 = arith.constant 0 : i32
    %c0_i32_0 = arith.constant 0 : i32
    %c0_i32_1 = arith.constant 0 : i32
    %c0_i32_2 = arith.constant 0 : i32
    return %c0_i32, %c0_i32_0, %c0_i32_1 : i32, i32, i32
  }
  func.func @transform_4(%arg0: i32, %arg1: memref<2xi32, #tpu.memory_space<smem>>) -> (i32, i32, i32) {
    %c0_i32 = arith.constant 0 : i32
    %c0_i32_0 = arith.constant 0 : i32
    %c0_i32_1 = arith.constant 0 : i32
    %c0_i32_2 = arith.constant 0 : i32
    return %c0_i32, %c0_i32_0, %c0_i32_1 : i32, i32, i32
  }
  func.func @transform_5(%arg0: i32, %arg1: memref<2xi32, #tpu.memory_space<smem>>) -> (i32, i32, i32) {
    %c0_i32 = arith.constant 0 : i32
    %c0_i32_0 = arith.constant 0 : i32
    %c0_i32_1 = arith.constant 0 : i32
    %c0_i32_2 = arith.constant 0 : i32
    return %c0_i32, %c0_i32_0, %c0_i32_1 : i32, i32, i32
  }
  func.func @transform_6(%arg0: i32, %arg1: memref<2xi32, #tpu.memory_space<smem>>) -> (i32, i32, i32) {
    %c0_i32 = arith.constant 0 : i32
    %c0_i32_0 = arith.constant 0 : i32
    %c0_i32_1 = arith.constant 0 : i32
    %c0_i32_2 = arith.constant 0 : i32
    return %c0_i32, %c0_i32_0, %c0_i32_1 : i32, i32, i32
  }
  func.func @transform_7(%arg0: i32, %arg1: memref<2xi32, #tpu.memory_space<smem>>) -> (i32, i32, i32) {
    %c0_i32 = arith.constant 0 : i32
    %c0_i32_0 = arith.constant 0 : i32
    %c0_i32_1 = arith.constant 0 : i32
    %c0_i32_2 = arith.constant 0 : i32
    return %c0_i32, %c0_i32_0, %c0_i32_1 : i32, i32, i32
  }
  func.func @transform_8(%arg0: i32, %arg1: memref<2xi32, #tpu.memory_space<smem>>) -> (i32, i32, i32) {
    %c0_i32 = arith.constant 0 : i32
    %c0_i32_0 = arith.constant 0 : i32
    %c0_i32_1 = arith.constant 0 : i32
    %c0_i32_2 = arith.constant 0 : i32
    return %c0_i32, %c0_i32_0, %c0_i32_1 : i32, i32, i32
  }
  func.func @transform_9(%arg0: i32, %arg1: memref<2xi32, #tpu.memory_space<smem>>) -> (i32, i32, i32) {
    %c0_i32 = arith.constant 0 : i32
    %c0_i32_0 = arith.constant 0 : i32
    %c0_i32_1 = arith.constant 0 : i32
    %c0_i32_2 = arith.constant 0 : i32
    return %c0_i32, %c0_i32_0, %c0_i32_1 : i32, i32, i32
  }
  func.func @transform_10(%arg0: i32, %arg1: memref<2xi32, #tpu.memory_space<smem>>) -> (i32, i32, i32) {
    %c0_i32 = arith.constant 0 : i32
    %c0_i32_0 = arith.constant 0 : i32
    %c0_i32_1 = arith.constant 0 : i32
    return %arg0, %c0_i32, %c0_i32_0 : i32, i32, i32
  }
}

</mosaic_0001>

<llo_original>
// kernel: tpu_custom_call.1
$region0: #{tpu_custom_call.1}
  #allocation0 [shape = 'u32[]', space=smem, size = 0x4, offset = 0x4, fixed_abs, tag = 'smem constant byte address 0x4 - core index']
  #allocation1 [shape = 'u32[144,128]{1,0:T(1,128)}', space=vmem, size = 0x12000, scoped, tag = 'internal scratch']
  #allocation2 [shape = 'f32[288,128]{1,0:T(8,128)}', space=vmem, size = 0x24000, scoped, tag = 'scratch operand']
  #allocation3 [shape = 's32[1]{0}', space=sflag, size = 0x4, scoped, tag = 'scoped memory for tpu_custom_call.1']
  #allocation4 [shape = 'u8[512]{0}', space=smem, size = 0x200, scoped, tag = 'prefetched SMEM operand 0']
  %s0 = inlined_call_operand.hbm [shape: s32[2], index: 0, kind: input, shape index: {}]
  %s1 = inlined_call_operand.hbm [shape: f32[2,256,128], index: 1, kind: input, shape index: {}]
  %s2 = inlined_call_operand.hbm [shape: f32[2,256,128], index: 2, kind: input, shape index: {}]
  %s3 = inlined_call_operand.hbm [shape: f32[3,3,1,128], index: 3, kind: input, shape index: {}]
  %s4 = inlined_call_operand.vmem [shape: f32[3,1,128], index: 4, kind: input, shape index: {}]
  %s5 = inlined_call_operand.hbm [shape: bf16[3,128,128], index: 5, kind: input, shape index: {}]
  %s6 = inlined_call_operand.vmem [shape: f32[3,1,128], index: 6, kind: input, shape index: {}]
  %s7 = inlined_call_operand.vmem [shape: f32[3,1,128], index: 7, kind: input, shape index: {}]
  %s8 = inlined_call_operand.vmem [shape: f32[3,1,128], index: 8, kind: input, shape index: {}]
  %s9 = inlined_call_operand.vmem [shape: f32[3,1,128], index: 9, kind: input, shape index: {}]
  %s10 = inlined_call_operand.vmem [shape: f32[3,1,128], index: 10, kind: input, shape index: {}]
  %s11 = inlined_call_operand.hbm [shape: f32[2,256,128], index: 11, kind: output, shape index: {}]
  %s12 = sld [smem:[#allocation0]]
  $region89: #{tpu_custom_call.1} parent=0
    _
  %s14 = ssub.s32 1, %s12
  %s15 = scalar_select 0, %s14, %s12
  %17 = dma.hbm_to_smem %s0, 16, [#allocation4], [#allocation3]
  %18 = dma.done [#allocation3], 16
  %19 = sfence
  $region1: #{tpu_custom_call.1} parent=0
    #allocation5 [shape = 'u8[262144]{0}', space=vmem, size = 0x40000, scoped, tag = 'input window, operand 1']
    #allocation6 [shape = 's32[2]{0}', space=sflag, size = 0x8, scoped, tag = 'scoped memory for tpu_custom_call.1']
    #allocation7 [shape = 's32[2]{0}', space=sflag, size = 0x8, scoped, tag = 'scoped memory for tpu_custom_call.1']
    #allocation8 [shape = 'u8[262144]{0}', space=vmem, size = 0x40000, scoped, tag = 'input window, operand 2']
    #allocation9 [shape = 's32[2]{0}', space=sflag, size = 0x8, scoped, tag = 'scoped memory for tpu_custom_call.1']
    #allocation10 [shape = 'u8[4608]{0}', space=vmem, size = 0x1400, scoped, tag = 'input window, operand 3, single buffered']
    #allocation11 [shape = 'u8[98304]{0}', space=vmem, size = 0x18000, scoped, tag = 'input window, operand 5, single buffered']
    #allocation12 [shape = 's32[1]{0}', space=sflag, size = 0x4, scoped, tag = 'scoped memory for tpu_custom_call.1']
    #allocation13 [shape = 'u8[262144]{0}', space=vmem, size = 0x40000, scoped, tag = 'output window, operand 0']
    %20 = vsyncpa [#allocation6], 0
    %s21 = scalar_lea.sflag [#allocation6], 1
    %22 = vsyncpa %s21, 0
    %23 = vsyncpa [#allocation9], 0
    %s24 = scalar_lea.sflag [#allocation9], 1
    %25 = vsyncpa %s24, 0
    %26 = vsyncpa [#allocation12], 0
    %27 = vsyncpa [#allocation7], 0
    %s28 = scalar_lea.sflag [#allocation7], 1
    %29 = vsyncpa %s28, 0
    loop: start=0, step=1, limit=4
    $region2: #{tpu_custom_call.1} parent=1 // loop_pre_header
      _
    $region3: #{tpu_custom_call.1} parent=1 // loop_header
      %s31 = sphi 0, %s35
      %p32 = scmp.ge.s32.totalorder %s31, 4
      %s41 = sphi 0, %s43
      %s44 = sphi 0, %s41
      %s45 = sphi 0, %s44
      %s61 = sphi 0, %s45
      %s67 = sphi 0, %s69
      %s70 = sphi 0, %s67
      %s71 = sphi 0, %s70
      %s87 = sphi 0, %s71
      %s91 = sphi 0, %s91
      %s93 = sphi 0, %s91
      %s94 = sphi 0, %s93
      %s108 = sphi 0, %s94
      %s112 = sphi 0, %s112
      %s114 = sphi 0, %s112
      %s115 = sphi 0, %s114
      %s129 = sphi 0, %s115
      %s133 = sphi 0, %s133
      %s135 = sphi 0, %s133
      %s136 = sphi 0, %s135
      %s150 = sphi 0, %s136
      %s154 = sphi 0, %s154
      %s156 = sphi 0, %s154
      %s157 = sphi 0, %s156
      %s171 = sphi 0, %s157
      %s175 = sphi 0, %s175
      %s177 = sphi 0, %s175
      %s178 = sphi 0, %s177
      %s192 = sphi 0, %s178
      %s196 = sphi 0, %s196
      %s198 = sphi 0, %s196
      %s199 = sphi 0, %s198
      %s213 = sphi 0, %s199
      %s217 = sphi 0, %s217
      %s219 = sphi 0, %s217
      %s220 = sphi 0, %s219
      %s234 = sphi 0, %s220
      %s238 = sphi 0, %s238
      %s240 = sphi 0, %s238
      %s241 = sphi 0, %s240
      %s255 = sphi 0, %s241
      %s261 = sphi 0, %s263
      %s264 = sphi 0, %s261
      %s265 = sphi 0, %s264
      %s281 = sphi 0, %s265
    $region4: #{tpu_custom_call.1} parent=1 // loop_header_branch
      %34 = sbr.rel (%p32) target = $region8
    $region5: #{tpu_custom_call.1} parent=1 // loop_body
      %s36 = ssub.s32 %s31, 1
      %s37 = ssub.s32 %s31, 2
      %s38 = sadd.s32 %s31, 1
      %s39 = ssub.s32 %s31, %s38
      %p40 = scmp.eq.s32.totalorder %s39, 0
      %s42 = sadd.s32 %s41, 1
      %s43 = scalar_select %p40, %s41, %s42
      %p46 = pneg %p40
      %p47 = scmp.eq.s32.totalorder %s31, 1
      %p48 = por %p46, %p47
      %p49 = scmp.ne.s32.totalorder %s41, %s44
      %p50 = scmp.eq.s32.totalorder %s31, 0
      %p51 = por %p49, %p50
      %p52 = scmp.ne.s32.totalorder %s41, %s44
      %p53 = scmp.eq.s32.totalorder %s36, 1
      %p54 = por %p52, %p53
      %p55 = scmp.ne.s32.totalorder %s44, %s45
      %p56 = scmp.eq.s32.totalorder %s36, 0
      %p57 = por %p55, %p56
      %p58 = scmp.ne.s32.totalorder %s44, %s45
      %p59 = scmp.eq.s32.totalorder %s37, 1
      %p60 = por %p58, %p59
      %p62 = scmp.ne.s32.totalorder %s45, %s61
      %p63 = scmp.eq.s32.totalorder %s37, 0
      %p64 = por %p62, %p63
      %s65 = ssub.s32 %s31, %s38
      %p66 = scmp.eq.s32.totalorder %s65, 0
      %s68 = sadd.s32 %s67, 1
      %s69 = scalar_select %p66, %s67, %s68
      %p72 = pneg %p66
      %p73 = scmp.eq.s32.totalorder %s31, 1
      %p74 = por %p72, %p73
      %p75 = scmp.ne.s32.totalorder %s67, %s70
      %p76 = scmp.eq.s32.totalorder %s31, 0
      %p77 = por %p75, %p76
      %p78 = scmp.ne.s32.totalorder %s67, %s70
      %p79 = scmp.eq.s32.totalorder %s36, 1
      %p80 = por %p78, %p79
      %p81 = scmp.ne.s32.totalorder %s70, %s71
      %p82 = scmp.eq.s32.totalorder %s36, 0
      %p83 = por %p81, %p82
      %p84 = scmp.ne.s32.totalorder %s70, %s71
      %p85 = scmp.eq.s32.totalorder %s37, 1
      %p86 = por %p84, %p85
      %p88 = scmp.ne.s32.totalorder %s71, %s87
      %p89 = scmp.eq.s32.totalorder %s37, 0
      %p90 = por %p88, %p89
      %s92 = sadd.s32 %s91, 1
      %p95 = scmp.eq.s32.totalorder %s31, 1
      %p96 = scmp.ne.s32.totalorder %s91, %s93
      %p97 = scmp.eq.s32.totalorder %s31, 0
      %p98 = por %p96, %p97
      %p99 = scmp.ne.s32.totalorder %s91, %s93
      %p100 = scmp.eq.s32.totalorder %s36, 1
      %p101 = por %p99, %p100
      %p102 = scmp.ne.s32.totalorder %s93, %s94
      %p103 = scmp.eq.s32.totalorder %s36, 0
      %p104 = por %p102, %p103
      %p105 = scmp.ne.s32.totalorder %s93, %s94
      %p106 = scmp.eq.s32.totalorder %s37, 1
      %p107 = por %p105, %p106
      %p109 = scmp.ne.s32.totalorder %s94, %s108
      %p110 = scmp.eq.s32.totalorder %s37, 0
      %p111 = por %p109, %p110
      %s113 = sadd.s32 %s112, 1
      %p116 = scmp.eq.s32.totalorder %s31, 1
      %p117 = scmp.ne.s32.totalorder %s112, %s114
      %p118 = scmp.eq.s32.totalorder %s31, 0
      %p119 = por %p117, %p118
      %p120 = scmp.ne.s32.totalorder %s112, %s114
      %p121 = scmp.eq.s32.totalorder %s36, 1
      %p122 = por %p120, %p121
      %p123 = scmp.ne.s32.totalorder %s114, %s115
      %p124 = scmp.eq.s32.totalorder %s36, 0
      %p125 = por %p123, %p124
      %p126 = scmp.ne.s32.totalorder %s114, %s115
      %p127 = scmp.eq.s32.totalorder %s37, 1
      %p128 = por %p126, %p127
      %p130 = scmp.ne.s32.totalorder %s115, %s129
      %p131 = scmp.eq.s32.totalorder %s37, 0
      %p132 = por %p130, %p131
      %s134 = sadd.s32 %s133, 1
      %p137 = scmp.eq.s32.totalorder %s31, 1
      %p138 = scmp.ne.s32.totalorder %s133, %s135
      %p139 = scmp.eq.s32.totalorder %s31, 0
      %p140 = por %p138, %p139
      %p141 = scmp.ne.s32.totalorder %s133, %s135
      %p142 = scmp.eq.s32.totalorder %s36, 1
      %p143 = por %p141, %p142
      %p144 = scmp.ne.s32.totalorder %s135, %s136
      %p145 = scmp.eq.s32.totalorder %s36, 0
      %p146 = por %p144, %p145
      %p147 = scmp.ne.s32.totalorder %s135, %s136
      %p148 = scmp.eq.s32.totalorder %s37, 1
      %p149 = por %p147, %p148
      %p151 = scmp.ne.s32.totalorder %s136, %s150
      %p152 = scmp.eq.s32.totalorder %s37, 0
      %p153 = por %p151, %p152
      %s155 = sadd.s32 %s154, 1
      %p158 = scmp.eq.s32.totalorder %s31, 1
      %p159 = scmp.ne.s32.totalorder %s154, %s156
      %p160 = scmp.eq.s32.totalorder %s31, 0
      %p161 = por %p159, %p160
      %p162 = scmp.ne.s32.totalorder %s154, %s156
      %p163 = scmp.eq.s32.totalorder %s36, 1
      %p164 = por %p162, %p163
      %p165 = scmp.ne.s32.totalorder %s156, %s157
      %p166 = scmp.eq.s32.totalorder %s36, 0
      %p167 = por %p165, %p166
      %p168 = scmp.ne.s32.totalorder %s156, %s157
      %p169 = scmp.eq.s32.totalorder %s37, 1
      %p170 = por %p168, %p169
      %p172 = scmp.ne.s32.totalorder %s157, %s171
      %p173 = scmp.eq.s32.totalorder %s37, 0
      %p174 = por %p172, %p173
      %s176 = sadd.s32 %s175, 1
      %p179 = scmp.eq.s32.totalorder %s31, 1
      %p180 = scmp.ne.s32.totalorder %s175, %s177
      %p181 = scmp.eq.s32.totalorder %s31, 0
      %p182 = por %p180, %p181
      %p183 = scmp.ne.s32.totalorder %s175, %s177
      %p184 = scmp.eq.s32.totalorder %s36, 1
      %p185 = por %p183, %p184
      %p186 = scmp.ne.s32.totalorder %s177, %s178
      %p187 = scmp.eq.s32.totalorder %s36, 0
      %p188 = por %p186, %p187
      %p189 = scmp.ne.s32.totalorder %s177, %s178
      %p190 = scmp.eq.s32.totalorder %s37, 1
      %p191 = por %p189, %p190
      %p193 = scmp.ne.s32.totalorder %s178, %s192
      %p194 = scmp.eq.s32.totalorder %s37, 0
      %p195 = por %p193, %p194
      %s197 = sadd.s32 %s196, 1
      %p200 = scmp.eq.s32.totalorder %s31, 1
      %p201 = scmp.ne.s32.totalorder %s196, %s198
      %p202 = scmp.eq.s32.totalorder %s31, 0
      %p203 = por %p201, %p202
      %p204 = scmp.ne.s32.totalorder %s196, %s198
      %p205 = scmp.eq.s32.totalorder %s36, 1
      %p206 = por %p204, %p205
      %p207 = scmp.ne.s32.totalorder %s198, %s199
      %p208 = scmp.eq.s32.totalorder %s36, 0
      %p209 = por %p207, %p208
      %p210 = scmp.ne.s32.totalorder %s198, %s199
      %p211 = scmp.eq.s32.totalorder %s37, 1
      %p212 = por %p210, %p211
      %p214 = scmp.ne.s32.totalorder %s199, %s213
      %p215 = scmp.eq.s32.totalorder %s37, 0
      %p216 = por %p214, %p215
      %s218 = sadd.s32 %s217, 1
      %p221 = scmp.eq.s32.totalorder %s31, 1
      %p222 = scmp.ne.s32.totalorder %s217, %s219
      %p223 = scmp.eq.s32.totalorder %s31, 0
      %p224 = por %p222, %p223
      %p225 = scmp.ne.s32.totalorder %s217, %s219
      %p226 = scmp.eq.s32.totalorder %s36, 1
      %p227 = por %p225, %p226
      %p228 = scmp.ne.s32.totalorder %s219, %s220
      %p229 = scmp.eq.s32.totalorder %s36, 0
      %p230 = por %p228, %p229
      %p231 = scmp.ne.s32.totalorder %s219, %s220
      %p232 = scmp.eq.s32.totalorder %s37, 1
      %p233 = por %p231, %p232
      %p235 = scmp.ne.s32.totalorder %s220, %s234
      %p236 = scmp.eq.s32.totalorder %s37, 0
      %p237 = por %p235, %p236
      %s239 = sadd.s32 %s238, 1
      %p242 = scmp.eq.s32.totalorder %s31, 1
      %p243 = scmp.ne.s32.totalorder %s238, %s240
      %p244 = scmp.eq.s32.totalorder %s31, 0
      %p245 = por %p243, %p244
      %p246 = scmp.ne.s32.totalorder %s238, %s240
      %p247 = scmp.eq.s32.totalorder %s36, 1
      %p248 = por %p246, %p247
      %p249 = scmp.ne.s32.totalorder %s240, %s241
      %p250 = scmp.eq.s32.totalorder %s36, 0
      %p251 = por %p249, %p250
      %p252 = scmp.ne.s32.totalorder %s240, %s241
      %p253 = scmp.eq.s32.totalorder %s37, 1
      %p254 = por %p252, %p253
      %p256 = scmp.ne.s32.totalorder %s241, %s255
      %p257 = scmp.eq.s32.totalorder %s37, 0
      %p258 = por %p256, %p257
      %s259 = ssub.s32 %s31, %s38
      %p260 = scmp.eq.s32.totalorder %s259, 0
      %s262 = sadd.s32 %s261, 1
      %s263 = scalar_select %p260, %s261, %s262
      %p266 = pneg %p260
      %p267 = scmp.eq.s32.totalorder %s31, 1
      %p268 = por %p266, %p267
      %p269 = scmp.ne.s32.totalorder %s261, %s264
      %p270 = scmp.eq.s32.totalorder %s31, 0
      %p271 = por %p269, %p270
      %p272 = scmp.ne.s32.totalorder %s261, %s264
      %p273 = scmp.eq.s32.totalorder %s36, 1
      %p274 = por %p272, %p273
      %p275 = scmp.ne.s32.totalorder %s264, %s265
      %p276 = scmp.eq.s32.totalorder %s36, 0
      %p277 = por %p275, %p276
      %p278 = scmp.ne.s32.totalorder %s264, %s265
      %p279 = scmp.eq.s32.totalorder %s37, 1
      %p280 = por %p278, %p279
      %p282 = scmp.ne.s32.totalorder %s265, %s281
      %p283 = scmp.eq.s32.totalorder %s37, 0
      %p284 = por %p282, %p283
      %p285 = scmp.le.s32.totalorder 1, %s31
      %p286 = scmp.lt.s32.totalorder %s31, 3
      %p287 = pnand %p285, %p286
      %p288 = pneg %p287
      // Predicated region
      $region9: #{tpu_custom_call.1} parent=5 // pred_check
        _
      $region10: #{tpu_custom_call.1} parent=5 // pred_check_branch
        %290 = sbr.rel (%p287) target = $region12
      $region11: #{tpu_custom_call.1} parent=5 // pred_region
        %s291 = ssub.s32 %s31, 1
        // Predicated region
        $region13: #{tpu_custom_call.1} parent=11 // pred_check
          %p292 = pneg %p104
        $region14: #{tpu_custom_call.1} parent=11 // pred_check_branch
          %294 = sbr.rel (%p292) target = $region16
        $region15: #{tpu_custom_call.1} parent=11 // pred_region
          %s296 = ssub.s32 144, 144
          %297 = vsyncadd [#allocation9], %s296
          %s298 = sshll.u32 [#allocation10], 4
          %s299 = int_to_ptr.vmem [resolvable:$true] %s298
          %304 = dma.hbm_to_vmem [thread:$0]  %s3, 144, %s299, [#allocation9], 16, 16, 1
        $region16: #{tpu_custom_call.1} parent=11 // pred_fallthru
          _
        // Predicated region
        $region17: #{tpu_custom_call.1} parent=11 // pred_check
          %p305 = pneg %p125
        $region18: #{tpu_custom_call.1} parent=11 // pred_check_branch
          %307 = sbr.rel (%p305) target = $region20
        $region19: #{tpu_custom_call.1} parent=11 // pred_region
          _
        $region20: #{tpu_custom_call.1} parent=11 // pred_fallthru
          _
        // Predicated region
        $region21: #{tpu_custom_call.1} parent=11 // pred_check
          %p308 = pneg %p146
        $region22: #{tpu_custom_call.1} parent=11 // pred_check_branch
          %310 = sbr.rel (%p308) target = $region24
        $region23: #{tpu_custom_call.1} parent=11 // pred_region
          %s312 = ssub.s32 3072, 3072
          %313 = vsyncadd [#allocation12], %s312
          %s314 = sshll.u32 [#allocation11], 4
          %s315 = int_to_ptr.vmem [resolvable:$true] %s314
          %320 = dma.hbm_to_vmem [thread:$0]  %s5, 3072, %s315, [#allocation12], 64, 64, 4
        $region24: #{tpu_custom_call.1} parent=11 // pred_fallthru
          _
        // Predicated region
        $region25: #{tpu_custom_call.1} parent=11 // pred_check
          %p321 = pneg %p167
        $region26: #{tpu_custom_call.1} parent=11 // pred_check_branch
          %323 = sbr.rel (%p321) target = $region28
        $region27: #{tpu_custom_call.1} parent=11 // pred_region
          _
        $region28: #{tpu_custom_call.1} parent=11 // pred_fallthru
          _
        // Predicated region
        $region29: #{tpu_custom_call.1} parent=11 // pred_check
          %p324 = pneg %p188
        $region30: #{tpu_custom_call.1} parent=11 // pred_check_branch
          %326 = sbr.rel (%p324) target = $region32
        $region31: #{tpu_custom_call.1} parent=11 // pred_region
          _
        $region32: #{tpu_custom_call.1} parent=11 // pred_fallthru
          _
        // Predicated region
        $region33: #{tpu_custom_call.1} parent=11 // pred_check
          %p327 = pneg %p209
        $region34: #{tpu_custom_call.1} parent=11 // pred_check_branch
          %329 = sbr.rel (%p327) target = $region36
        $region35: #{tpu_custom_call.1} parent=11 // pred_region
          _
        $region36: #{tpu_custom_call.1} parent=11 // pred_fallthru
          _
        // Predicated region
        $region37: #{tpu_custom_call.1} parent=11 // pred_check
          %p330 = pneg %p230
        $region38: #{tpu_custom_call.1} parent=11 // pred_check_branch
          %332 = sbr.rel (%p330) target = $region40
        $region39: #{tpu_custom_call.1} parent=11 // pred_region
          _
        $region40: #{tpu_custom_call.1} parent=11 // pred_fallthru
          _
        // Predicated region
        $region41: #{tpu_custom_call.1} parent=11 // pred_check
          %p333 = pneg %p251
        $region42: #{tpu_custom_call.1} parent=11 // pred_check_branch
          %335 = sbr.rel (%p333) target = $region44
        $region43: #{tpu_custom_call.1} parent=11 // pred_region
          _
        $region44: #{tpu_custom_call.1} parent=11 // pred_fallthru
          _
      $region12: #{tpu_custom_call.1} parent=5 // pred_fallthru
        _
      %p336 = scmp.lt.s32.totalorder %s31, 2
      // Predicated region
      $region45: #{tpu_custom_call.1} parent=5 // pred_check
        %p337 = pneg %p336
      $region46: #{tpu_custom_call.1} parent=5 // pred_check_branch
        %339 = sbr.rel (%p337) target = $region48
      $region47: #{tpu_custom_call.1} parent=5 // pred_region
        // Predicated region
        $region49: #{tpu_custom_call.1} parent=47 // pred_check
          %p340 = pneg %p51
        $region50: #{tpu_custom_call.1} parent=47 // pred_check_branch
          %342 = sbr.rel (%p340) target = $region52
        $region51: #{tpu_custom_call.1} parent=47 // pred_region
          %s343 = sand.u32 %s41, 1
          %s344 = scalar_lea.sflag [#allocation6], %s343
          %s345 = sand.u32 %s41, 1
          %s346 = smul.addr %s345, 256
          %s347 = scalar_lea.vmem [#allocation5], %s346
          %s349 = ssub.s32 4096, 4096
          %350 = vsyncadd %s344, %s349
          %s351 = smul.addr %s31, 32
          %s352 = smul.addr %s351, 128
          %s353 = scalar_lea.hbm %s1, %s352
          %s354 = sshll.u32 %s347, 4
          %s355 = int_to_ptr.vmem [resolvable:$true] %s354
          %360 = dma.hbm_to_vmem [thread:$0]  %s353, 4096, %s355, %s344, 128, 128, 8
        $region52: #{tpu_custom_call.1} parent=47 // pred_fallthru
          _
        // Predicated region
        $region53: #{tpu_custom_call.1} parent=47 // pred_check
          %p361 = pneg %p77
        $region54: #{tpu_custom_call.1} parent=47 // pred_check_branch
          %363 = sbr.rel (%p361) target = $region56
        $region55: #{tpu_custom_call.1} parent=47 // pred_region
          %s364 = sand.u32 %s31, 1
          %s365 = scalar_lea.sflag [#allocation9], %s364
          %s366 = sand.u32 %s67, 1
          %s367 = smul.addr %s366, 256
          %s368 = scalar_lea.vmem [#allocation8], %s367
          %s370 = ssub.s32 4096, 4096
          %371 = vsyncadd %s365, %s370
          %s372 = smul.addr %s31, 32
          %s373 = smul.addr %s372, 128
          %s374 = scalar_lea.hbm %s2, %s373
          %s375 = sshll.u32 %s368, 4
          %s376 = int_to_ptr.vmem [resolvable:$true] %s375
          %381 = dma.hbm_to_vmem [thread:$0]  %s374, 4096, %s376, %s365, 128, 128, 8
        $region56: #{tpu_custom_call.1} parent=47 // pred_fallthru
          _
      $region48: #{tpu_custom_call.1} parent=5 // pred_fallthru
        _
      %p382 = scmp.le.s32.totalorder 1, %s31
      %p383 = scmp.lt.s32.totalorder %s31, 3
      %p384 = pnand %p382, %p383
      %p385 = pneg %p384
      // Predicated region
      $region57: #{tpu_custom_call.1} parent=5 // pred_check
        _
      $region58: #{tpu_custom_call.1} parent=5 // pred_check_branch
        %387 = sbr.rel (%p384) target = $region60
      $region59: #{tpu_custom_call.1} parent=5 // pred_region
        %s388 = ssub.s32 %s31, 1
        %s389 = sand.u32 %s44, 1
        %s390 = scalar_lea.sflag [#allocation6], %s389
        %s391 = sand.u32 %s44, 1
        %s392 = smul.addr %s391, 256
        %s393 = scalar_lea.vmem [#allocation5], %s392
        // Predicated region
        $region61: #{tpu_custom_call.1} parent=59 // pred_check
          %p394 = pneg %p57
        $region62: #{tpu_custom_call.1} parent=59 // pred_check_branch
          %396 = sbr.rel (%p394) target = $region64
        $region63: #{tpu_custom_call.1} parent=59 // pred_region
          %397 = dma.done %s390, 4096
        $region64: #{tpu_custom_call.1} parent=59 // pred_fallthru
          _
        %s398 = sand.u32 %s36, 1
        %s399 = scalar_lea.sflag [#allocation9], %s398
        %s400 = sand.u32 %s70, 1
        %s401 = smul.addr %s400, 256
        %s402 = scalar_lea.vmem [#allocation8], %s401
        // Predicated region
        $region65: #{tpu_custom_call.1} parent=59 // pred_check
          %p403 = pneg %p83
        $region66: #{tpu_custom_call.1} parent=59 // pred_check_branch
          %405 = sbr.rel (%p403) target = $region68
        $region67: #{tpu_custom_call.1} parent=59 // pred_region
          %406 = dma.done %s399, 4096
        $region68: #{tpu_custom_call.1} parent=59 // pred_fallthru
          _
        // Predicated region
        $region69: #{tpu_custom_call.1} parent=59 // pred_check
          %p407 = pneg %p104
        $region70: #{tpu_custom_call.1} parent=59 // pred_check_branch
          %409 = sbr.rel (%p407) target = $region72
        $region71: #{tpu_custom_call.1} parent=59 // pred_region
          %410 = dma.done [#allocation9], 144
        $region72: #{tpu_custom_call.1} parent=59 // pred_fallthru
          _
        // Predicated region
        $region73: #{tpu_custom_call.1} parent=59 // pred_check
          %p411 = pneg %p146
        $region74: #{tpu_custom_call.1} parent=59 // pred_check_branch
          %413 = sbr.rel (%p411) target = $region76
        $region75: #{tpu_custom_call.1} parent=59 // pred_region
          %414 = dma.done [#allocation12], 3072
        $region76: #{tpu_custom_call.1} parent=59 // pred_fallthru
          _
        %s415 = sand.u32 %s44, 1
        %s416 = scalar_lea.sflag [#allocation6], %s415
        %s417 = sand.u32 %s44, 1
        %s418 = smul.addr %s417, 256
        %s419 = scalar_lea.vmem [#allocation5], %s418
        %p420 = pneg %p57
        %p421 = pneg %p54
        %s422 = sand.u32 %s36, 1
        %s423 = scalar_lea.sflag [#allocation9], %s422
        %s424 = sand.u32 %s70, 1
        %s425 = smul.addr %s424, 256
        %s426 = scalar_lea.vmem [#allocation8], %s425
        %p427 = pneg %p83
        %p428 = pneg %p80
        %p429 = pneg %p104
        %p430 = pneg %p101
        %p431 = pneg %p125
        %p432 = pneg %p122
        %p433 = pneg %p146
        %p434 = pneg %p143
        %p435 = pneg %p167
        %p436 = pneg %p164
        %p437 = pneg %p188
        %p438 = pneg %p185
        %p439 = pneg %p209
        %p440 = pneg %p206
        %p441 = pneg %p230
        %p442 = pneg %p227
        %p443 = pneg %p251
        %p444 = pneg %p248
        %p445 = pneg %p277
        %p446 = pneg %p274
        %s447 = sand.u32 %s264, 1
        %s448 = scalar_lea.sflag [#allocation7], %s447
        %s449 = sand.u32 %s264, 1
        %s450 = smul.addr %s449, 256
        %s451 = scalar_lea.vmem [#allocation13], %s450
        %s453 = sld [smem:[#allocation4 + %s36]]
        %v454 = vlaneseq
        %v455 = vshrl.u32 %v454, 7
        %v456 = vadd.s32 %v455, 8
        %v457 = vadd.s32 %v455, 16
        %v458 = vadd.s32 %v455, 24
        %v459 = vadd.s32 %v455, 32
        %v460 = vadd.s32 %v455, 40
        %v461 = vadd.s32 %v455, 48
        %v462 = vadd.s32 %v455, 56
        %v463 = vadd.s32 %v455, 64
        %v464 = vadd.s32 %v455, 72
        %v465 = vadd.s32 %v455, 80
        %v466 = vadd.s32 %v455, 88
        %v467 = vadd.s32 %v455, 96
        %v468 = vadd.s32 %v455, 104
        %v469 = vadd.s32 %v455, 112
        %v470 = vadd.s32 %v455, 120
        %v471 = vadd.s32 %v455, 128
        %v472 = vadd.s32 %v455, 136
        %v473 = vadd.s32 %v455, 144
        %v474 = vadd.s32 %v455, 152
        %v475 = vadd.s32 %v455, 160
        %v476 = vadd.s32 %v455, 168
        %v477 = vadd.s32 %v455, 176
        %v478 = vadd.s32 %v455, 184
        %v479 = vadd.s32 %v455, 192
        %v480 = vadd.s32 %v455, 200
        %v481 = vadd.s32 %v455, 208
        %v482 = vadd.s32 %v455, 216
        %v483 = vadd.s32 %v455, 224
        %v484 = vadd.s32 %v455, 232
        %v485 = vadd.s32 %v455, 240
        %v486 = vadd.s32 %v455, 248
        %v487 = vstv %s453
        %vm488 = vcmp.lt.s32.totalorder %v455, %v487
        %vm489 = vcmp.lt.s32.totalorder %v456, %v487
        %vm490 = vcmp.lt.s32.totalorder %v457, %v487
        %vm491 = vcmp.lt.s32.totalorder %v458, %v487
        %vm492 = vcmp.lt.s32.totalorder %v459, %v487
        %vm493 = vcmp.lt.s32.totalorder %v460, %v487
        %vm494 = vcmp.lt.s32.totalorder %v461, %v487
        %vm495 = vcmp.lt.s32.totalorder %v462, %v487
        %vm496 = vcmp.lt.s32.totalorder %v463, %v487
        %vm497 = vcmp.lt.s32.totalorder %v464, %v487
        %vm498 = vcmp.lt.s32.totalorder %v465, %v487
        %vm499 = vcmp.lt.s32.totalorder %v466, %v487
        %vm500 = vcmp.lt.s32.totalorder %v467, %v487
        %vm501 = vcmp.lt.s32.totalorder %v468, %v487
        %vm502 = vcmp.lt.s32.totalorder %v469, %v487
        %vm503 = vcmp.lt.s32.totalorder %v470, %v487
        %vm504 = vcmp.lt.s32.totalorder %v471, %v487
        %vm505 = vcmp.lt.s32.totalorder %v472, %v487
        %vm506 = vcmp.lt.s32.totalorder %v473, %v487
        %vm507 = vcmp.lt.s32.totalorder %v474, %v487
        %vm508 = vcmp.lt.s32.totalorder %v475, %v487
        %vm509 = vcmp.lt.s32.totalorder %v476, %v487
        %vm510 = vcmp.lt.s32.totalorder %v477, %v487
        %vm511 = vcmp.lt.s32.totalorder %v478, %v487
        %vm512 = vcmp.lt.s32.totalorder %v479, %v487
        %vm513 = vcmp.lt.s32.totalorder %v480, %v487
        %vm514 = vcmp.lt.s32.totalorder %v481, %v487
        %vm515 = vcmp.lt.s32.totalorder %v482, %v487
        %vm516 = vcmp.lt.s32.totalorder %v483, %v487
        %vm517 = vcmp.lt.s32.totalorder %v484, %v487
        %vm518 = vcmp.lt.s32.totalorder %v485, %v487
        %vm519 = vcmp.lt.s32.totalorder %v486, %v487
        %v520 = vsel %vm488, 1, 0
        %v521 = vsel %vm489, 1, 0
        %v522 = vsel %vm490, 1, 0
        %v523 = vsel %vm491, 1, 0
        %v524 = vsel %vm492, 1, 0
        %v525 = vsel %vm493, 1, 0
        %v526 = vsel %vm494, 1, 0
        %v527 = vsel %vm495, 1, 0
        %v528 = vsel %vm496, 1, 0
        %v529 = vsel %vm497, 1, 0
        %v530 = vsel %vm498, 1, 0
        %v531 = vsel %vm499, 1, 0
        %v532 = vsel %vm500, 1, 0
        %v533 = vsel %vm501, 1, 0
        %v534 = vsel %vm502, 1, 0
        %v535 = vsel %vm503, 1, 0
        %v536 = vsel %vm504, 1, 0
        %v537 = vsel %vm505, 1, 0
        %v538 = vsel %vm506, 1, 0
        %v539 = vsel %vm507, 1, 0
        %v540 = vsel %vm508, 1, 0
        %v541 = vsel %vm509, 1, 0
        %v542 = vsel %vm510, 1, 0
        %v543 = vsel %vm511, 1, 0
        %v544 = vsel %vm512, 1, 0
        %v545 = vsel %vm513, 1, 0
        %v546 = vsel %vm514, 1, 0
        %v547 = vsel %vm515, 1, 0
        %v548 = vsel %vm516, 1, 0
        %v549 = vsel %vm517, 1, 0
        %v550 = vsel %vm518, 1, 0
        %v551 = vsel %vm519, 1, 0
        %v552 = vcvt.s32.f32 %v520
        %v553 = vcvt.s32.f32 %v521
        %v554 = vcvt.s32.f32 %v522
        %v555 = vcvt.s32.f32 %v523
        %v556 = vcvt.s32.f32 %v524
        %v557 = vcvt.s32.f32 %v525
        %v558 = vcvt.s32.f32 %v526
        %v559 = vcvt.s32.f32 %v527
        %v560 = vcvt.s32.f32 %v528
        %v561 = vcvt.s32.f32 %v529
        %v562 = vcvt.s32.f32 %v530
        %v563 = vcvt.s32.f32 %v531
        %v564 = vcvt.s32.f32 %v532
        %v565 = vcvt.s32.f32 %v533
        %v566 = vcvt.s32.f32 %v534
        %v567 = vcvt.s32.f32 %v535
        %v568 = vcvt.s32.f32 %v536
        %v569 = vcvt.s32.f32 %v537
        %v570 = vcvt.s32.f32 %v538
        %v571 = vcvt.s32.f32 %v539
        %v572 = vcvt.s32.f32 %v540
        %v573 = vcvt.s32.f32 %v541
        %v574 = vcvt.s32.f32 %v542
        %v575 = vcvt.s32.f32 %v543
        %v576 = vcvt.s32.f32 %v544
        %v577 = vcvt.s32.f32 %v545
        %v578 = vcvt.s32.f32 %v546
        %v579 = vcvt.s32.f32 %v547
        %v580 = vcvt.s32.f32 %v548
        %v581 = vcvt.s32.f32 %v549
        %v582 = vcvt.s32.f32 %v550
        %v583 = vcvt.s32.f32 %v551
        %v584 = vld [vmem:[%s393] sm:$0xff]
        %v585 = vld [vmem:[%s393 + $0x8] sm:$0xff]
        %v586 = vld [vmem:[%s393 + $0x10] sm:$0xff]
        %v587 = vld [vmem:[%s393 + $0x18] sm:$0xff]
        %v588 = vld [vmem:[%s393 + $0x20] sm:$0xff]
        %v589 = vld [vmem:[%s393 + $0x28] sm:$0xff]
        %v590 = vld [vmem:[%s393 + $0x30] sm:$0xff]
        %v591 = vld [vmem:[%s393 + $0x38] sm:$0xff]
        %v592 = vld [vmem:[%s393 + $0x40] sm:$0xff]
        %v593 = vld [vmem:[%s393 + $0x48] sm:$0xff]
        %v594 = vld [vmem:[%s393 + $0x50] sm:$0xff]
        %v595 = vld [vmem:[%s393 + $0x58] sm:$0xff]
        %v596 = vld [vmem:[%s393 + $0x60] sm:$0xff]
        %v597 = vld [vmem:[%s393 + $0x68] sm:$0xff]
        %v598 = vld [vmem:[%s393 + $0x70] sm:$0xff]
        %v599 = vld [vmem:[%s393 + $0x78] sm:$0xff]
        %v600 = vld [vmem:[%s393 + $0x80] sm:$0xff]
        %v601 = vld [vmem:[%s393 + $0x88] sm:$0xff]
        %v602 = vld [vmem:[%s393 + $0x90] sm:$0xff]
        %v603 = vld [vmem:[%s393 + $0x98] sm:$0xff]
        %v604 = vld [vmem:[%s393 + $0xa0] sm:$0xff]
        %v605 = vld [vmem:[%s393 + $0xa8] sm:$0xff]
        %v606 = vld [vmem:[%s393 + $0xb0] sm:$0xff]
        %v607 = vld [vmem:[%s393 + $0xb8] sm:$0xff]
        %v608 = vld [vmem:[%s393 + $0xc0] sm:$0xff]
        %v609 = vld [vmem:[%s393 + $0xc8] sm:$0xff]
        %v610 = vld [vmem:[%s393 + $0xd0] sm:$0xff]
        %v611 = vld [vmem:[%s393 + $0xd8] sm:$0xff]
        %v612 = vld [vmem:[%s393 + $0xe0] sm:$0xff]
        %v613 = vld [vmem:[%s393 + $0xe8] sm:$0xff]
        %v614 = vld [vmem:[%s393 + $0xf0] sm:$0xff]
        %v615 = vld [vmem:[%s393 + $0xf8] sm:$0xff]
        %v616 = vld [vmem:[%s402] sm:$0xff]
        %v617 = vld [vmem:[%s402 + $0x8] sm:$0xff]
        %v618 = vld [vmem:[%s402 + $0x10] sm:$0xff]
        %v619 = vld [vmem:[%s402 + $0x18] sm:$0xff]
        %v620 = vld [vmem:[%s402 + $0x20] sm:$0xff]
        %v621 = vld [vmem:[%s402 + $0x28] sm:$0xff]
        %v622 = vld [vmem:[%s402 + $0x30] sm:$0xff]
        %v623 = vld [vmem:[%s402 + $0x38] sm:$0xff]
        %v624 = vld [vmem:[%s402 + $0x40] sm:$0xff]
        %v625 = vld [vmem:[%s402 + $0x48] sm:$0xff]
        %v626 = vld [vmem:[%s402 + $0x50] sm:$0xff]
        %v627 = vld [vmem:[%s402 + $0x58] sm:$0xff]
        %v628 = vld [vmem:[%s402 + $0x60] sm:$0xff]
        %v629 = vld [vmem:[%s402 + $0x68] sm:$0xff]
        %v630 = vld [vmem:[%s402 + $0x70] sm:$0xff]
        %v631 = vld [vmem:[%s402 + $0x78] sm:$0xff]
        %v632 = vld [vmem:[%s402 + $0x80] sm:$0xff]
        %v633 = vld [vmem:[%s402 + $0x88] sm:$0xff]
        %v634 = vld [vmem:[%s402 + $0x90] sm:$0xff]
        %v635 = vld [vmem:[%s402 + $0x98] sm:$0xff]
        %v636 = vld [vmem:[%s402 + $0xa0] sm:$0xff]
        %v637 = vld [vmem:[%s402 + $0xa8] sm:$0xff]
        %v638 = vld [vmem:[%s402 + $0xb0] sm:$0xff]
        %v639 = vld [vmem:[%s402 + $0xb8] sm:$0xff]
        %v640 = vld [vmem:[%s402 + $0xc0] sm:$0xff]
        %v641 = vld [vmem:[%s402 + $0xc8] sm:$0xff]
        %v642 = vld [vmem:[%s402 + $0xd0] sm:$0xff]
        %v643 = vld [vmem:[%s402 + $0xd8] sm:$0xff]
        %v644 = vld [vmem:[%s402 + $0xe0] sm:$0xff]
        %v645 = vld [vmem:[%s402 + $0xe8] sm:$0xff]
        %v646 = vld [vmem:[%s402 + $0xf0] sm:$0xff]
        %v647 = vld [vmem:[%s402 + $0xf8] sm:$0xff]
        %v648 = vadd.f32 %v584, %v616
        %v649 = vadd.f32 %v585, %v617
        %v650 = vadd.f32 %v586, %v618
        %v651 = vadd.f32 %v587, %v619
        %v652 = vadd.f32 %v588, %v620
        %v653 = vadd.f32 %v589, %v621
        %v654 = vadd.f32 %v590, %v622
        %v655 = vadd.f32 %v591, %v623
        %v656 = vadd.f32 %v592, %v624
        %v657 = vadd.f32 %v593, %v625
        %v658 = vadd.f32 %v594, %v626
        %v659 = vadd.f32 %v595, %v627
        %v660 = vadd.f32 %v596, %v628
        %v661 = vadd.f32 %v597, %v629
        %v662 = vadd.f32 %v598, %v630
        %v663 = vadd.f32 %v599, %v631
        %v664 = vadd.f32 %v600, %v632
        %v665 = vadd.f32 %v601, %v633
        %v666 = vadd.f32 %v602, %v634
        %v667 = vadd.f32 %v603, %v635
        %v668 = vadd.f32 %v604, %v636
        %v669 = vadd.f32 %v605, %v637
        %v670 = vadd.f32 %v606, %v638
        %v671 = vadd.f32 %v607, %v639
        %v672 = vadd.f32 %v608, %v640
        %v673 = vadd.f32 %v609, %v641
        %v674 = vadd.f32 %v610, %v642
        %v675 = vadd.f32 %v611, %v643
        %v676 = vadd.f32 %v612, %v644
        %v677 = vadd.f32 %v613, %v645
        %v678 = vadd.f32 %v614, %v646
        %v679 = vadd.f32 %v615, %v647
        %680 = vst [vmem:[%s451] sm:$0xff] %v648
        %681 = vst [vmem:[%s451 + $0x8] sm:$0xff] %v649
        %682 = vst [vmem:[%s451 + $0x10] sm:$0xff] %v650
        %683 = vst [vmem:[%s451 + $0x18] sm:$0xff] %v651
        %684 = vst [vmem:[%s451 + $0x20] sm:$0xff] %v652
        %685 = vst [vmem:[%s451 + $0x28] sm:$0xff] %v653
        %686 = vst [vmem:[%s451 + $0x30] sm:$0xff] %v654
        %687 = vst [vmem:[%s451 + $0x38] sm:$0xff] %v655
        %688 = vst [vmem:[%s451 + $0x40] sm:$0xff] %v656
        %689 = vst [vmem:[%s451 + $0x48] sm:$0xff] %v657
        %690 = vst [vmem:[%s451 + $0x50] sm:$0xff] %v658
        %691 = vst [vmem:[%s451 + $0x58] sm:$0xff] %v659
        %692 = vst [vmem:[%s451 + $0x60] sm:$0xff] %v660
        %693 = vst [vmem:[%s451 + $0x68] sm:$0xff] %v661
        %694 = vst [vmem:[%s451 + $0x70] sm:$0xff] %v662
        %695 = vst [vmem:[%s451 + $0x78] sm:$0xff] %v663
        %696 = vst [vmem:[%s451 + $0x80] sm:$0xff] %v664
        %697 = vst [vmem:[%s451 + $0x88] sm:$0xff] %v665
        %698 = vst [vmem:[%s451 + $0x90] sm:$0xff] %v666
        %699 = vst [vmem:[%s451 + $0x98] sm:$0xff] %v667
        %700 = vst [vmem:[%s451 + $0xa0] sm:$0xff] %v668
        %701 = vst [vmem:[%s451 + $0xa8] sm:$0xff] %v669
        %702 = vst [vmem:[%s451 + $0xb0] sm:$0xff] %v670
        %703 = vst [vmem:[%s451 + $0xb8] sm:$0xff] %v671
        %704 = vst [vmem:[%s451 + $0xc0] sm:$0xff] %v672
        %705 = vst [vmem:[%s451 + $0xc8] sm:$0xff] %v673
        %706 = vst [vmem:[%s451 + $0xd0] sm:$0xff] %v674
        %707 = vst [vmem:[%s451 + $0xd8] sm:$0xff] %v675
        %708 = vst [vmem:[%s451 + $0xe0] sm:$0xff] %v676
        %709 = vst [vmem:[%s451 + $0xe8] sm:$0xff] %v677
        %710 = vst [vmem:[%s451 + $0xf0] sm:$0xff] %v678
        %711 = vst [vmem:[%s451 + $0xf8] sm:$0xff] %v679
        %712 = vst [vmem:[#allocation2] sm:$0xff] 0.0
        %713 = vst [vmem:[#allocation2 + $0x8] sm:$0xff] 0.0
        %714 = vst [vmem:[#allocation2 + $0x10] sm:$0xff] 0.0
        %715 = vst [vmem:[#allocation2 + $0x18] sm:$0xff] 0.0
        %716 = vst [vmem:[#allocation2 + $0x20] sm:$0xff] 0.0
        %717 = vst [vmem:[#allocation2 + $0x28] sm:$0xff] 0.0
        %718 = vst [vmem:[#allocation2 + $0x30] sm:$0xff] 0.0
        %719 = vst [vmem:[#allocation2 + $0x38] sm:$0xff] 0.0
        %720 = vst [vmem:[#allocation2 + $0x40] sm:$0xff] 0.0
        %721 = vst [vmem:[#allocation2 + $0x48] sm:$0xff] 0.0
        %722 = vst [vmem:[#allocation2 + $0x50] sm:$0xff] 0.0
        %723 = vst [vmem:[#allocation2 + $0x58] sm:$0xff] 0.0
        %724 = vst [vmem:[#allocation2 + $0x60] sm:$0xff] 0.0
        %725 = vst [vmem:[#allocation2 + $0x68] sm:$0xff] 0.0
        %726 = vst [vmem:[#allocation2 + $0x70] sm:$0xff] 0.0
        %727 = vst [vmem:[#allocation2 + $0x78] sm:$0xff] 0.0
        %728 = vst [vmem:[#allocation2 + $0x80] sm:$0xff] 0.0
        %729 = vst [vmem:[#allocation2 + $0x88] sm:$0xff] 0.0
        %730 = vst [vmem:[#allocation2 + $0x90] sm:$0xff] 0.0
        %731 = vst [vmem:[#allocation2 + $0x98] sm:$0xff] 0.0
        %732 = vst [vmem:[#allocation2 + $0xa0] sm:$0xff] 0.0
        %733 = vst [vmem:[#allocation2 + $0xa8] sm:$0xff] 0.0
        %734 = vst [vmem:[#allocation2 + $0xb0] sm:$0xff] 0.0
        %735 = vst [vmem:[#allocation2 + $0xb8] sm:$0xff] 0.0
        %736 = vst [vmem:[#allocation2 + $0xc0] sm:$0xff] 0.0
        %737 = vst [vmem:[#allocation2 + $0xc8] sm:$0xff] 0.0
        %738 = vst [vmem:[#allocation2 + $0xd0] sm:$0xff] 0.0
        %739 = vst [vmem:[#allocation2 + $0xd8] sm:$0xff] 0.0
        %740 = vst [vmem:[#allocation2 + $0xe0] sm:$0xff] 0.0
        %741 = vst [vmem:[#allocation2 + $0xe8] sm:$0xff] 0.0
        %742 = vst [vmem:[#allocation2 + $0xf0] sm:$0xff] 0.0
        %743 = vst [vmem:[#allocation2 + $0xf8] sm:$0xff] 0.0
        %744 = vst [vmem:[#allocation2 + $0x100] sm:$0xff] 0.0
        %745 = vst [vmem:[#allocation2 + $0x108] sm:$0xff] 0.0
        %746 = vst [vmem:[#allocation2 + $0x110] sm:$0xff] 0.0
        %747 = vst [vmem:[#allocation2 + $0x118] sm:$0xff] 0.0
        %v748 = vld [vmem:[%s451] sm:$0xff]
        %v749 = vld [vmem:[%s451 + $0x8] sm:$0xff]
        %v750 = vld [vmem:[%s451 + $0x10] sm:$0xff]
        %v751 = vld [vmem:[%s451 + $0x18] sm:$0xff]
        %v752 = vld [vmem:[%s451 + $0x20] sm:$0xff]
        %v753 = vld [vmem:[%s451 + $0x28] sm:$0xff]
        %v754 = vld [vmem:[%s451 + $0x30] sm:$0xff]
        %v755 = vld [vmem:[%s451 + $0x38] sm:$0xff]
        %v756 = vld [vmem:[%s451 + $0x40] sm:$0xff]
        %v757 = vld [vmem:[%s451 + $0x48] sm:$0xff]
        %v758 = vld [vmem:[%s451 + $0x50] sm:$0xff]
        %v759 = vld [vmem:[%s451 + $0x58] sm:$0xff]
        %v760 = vld [vmem:[%s451 + $0x60] sm:$0xff]
        %v761 = vld [vmem:[%s451 + $0x68] sm:$0xff]
        %v762 = vld [vmem:[%s451 + $0x70] sm:$0xff]
        %v763 = vld [vmem:[%s451 + $0x78] sm:$0xff]
        %v764 = vld [vmem:[%s451 + $0x80] sm:$0xff]
        %v765 = vld [vmem:[%s451 + $0x88] sm:$0xff]
        %v766 = vld [vmem:[%s451 + $0x90] sm:$0xff]
        %v767 = vld [vmem:[%s451 + $0x98] sm:$0xff]
        %v768 = vld [vmem:[%s451 + $0xa0] sm:$0xff]
        %v769 = vld [vmem:[%s451 + $0xa8] sm:$0xff]
        %v770 = vld [vmem:[%s451 + $0xb0] sm:$0xff]
        %v771 = vld [vmem:[%s451 + $0xb8] sm:$0xff]
        %v772 = vld [vmem:[%s451 + $0xc0] sm:$0xff]
        %v773 = vld [vmem:[%s451 + $0xc8] sm:$0xff]
        %v774 = vld [vmem:[%s451 + $0xd0] sm:$0xff]
        %v775 = vld [vmem:[%s451 + $0xd8] sm:$0xff]
        %v776 = vld [vmem:[%s451 + $0xe0] sm:$0xff]
        %v777 = vld [vmem:[%s451 + $0xe8] sm:$0xff]
        %v778 = vld [vmem:[%s451 + $0xf0] sm:$0xff]
        %v779 = vld [vmem:[%s451 + $0xf8] sm:$0xff]
        %v780 = vmul.f32 %v748, %v552
        %v781 = vmul.f32 %v749, %v553
        %v782 = vmul.f32 %v750, %v554
        %v783 = vmul.f32 %v751, %v555
        %v784 = vmul.f32 %v752, %v556
        %v785 = vmul.f32 %v753, %v557
        %v786 = vmul.f32 %v754, %v558
        %v787 = vmul.f32 %v755, %v559
        %v788 = vmul.f32 %v756, %v560
        %v789 = vmul.f32 %v757, %v561
        %v790 = vmul.f32 %v758, %v562
        %v791 = vmul.f32 %v759, %v563
        %v792 = vmul.f32 %v760, %v564
        %v793 = vmul.f32 %v761, %v565
        %v794 = vmul.f32 %v762, %v566
        %v795 = vmul.f32 %v763, %v567
        %v796 = vmul.f32 %v764, %v568
        %v797 = vmul.f32 %v765, %v569
        %v798 = vmul.f32 %v766, %v570
        %v799 = vmul.f32 %v767, %v571
        %v800 = vmul.f32 %v768, %v572
        %v801 = vmul.f32 %v769, %v573
        %v802 = vmul.f32 %v770, %v574
        %v803 = vmul.f32 %v771, %v575
        %v804 = vmul.f32 %v772, %v576
        %v805 = vmul.f32 %v773, %v577
        %v806 = vmul.f32 %v774, %v578
        %v807 = vmul.f32 %v775, %v579
        %v808 = vmul.f32 %v776, %v580
        %v809 = vmul.f32 %v777, %v581
        %v810 = vmul.f32 %v778, %v582
        %v811 = vmul.f32 %v779, %v583
        %812 = vst [vmem:[#allocation2 + $0x10] sm:$0xff] %v780
        %813 = vst [vmem:[#allocation2 + $0x18] sm:$0xff] %v781
        %814 = vst [vmem:[#allocation2 + $0x20] sm:$0xff] %v782
        %815 = vst [vmem:[#allocation2 + $0x28] sm:$0xff] %v783
        %816 = vst [vmem:[#allocation2 + $0x30] sm:$0xff] %v784
        %817 = vst [vmem:[#allocation2 + $0x38] sm:$0xff] %v785
        %818 = vst [vmem:[#allocation2 + $0x40] sm:$0xff] %v786
        %819 = vst [vmem:[#allocation2 + $0x48] sm:$0xff] %v787
        %820 = vst [vmem:[#allocation2 + $0x50] sm:$0xff] %v788
        %821 = vst [vmem:[#allocation2 + $0x58] sm:$0xff] %v789
        %822 = vst [vmem:[#allocation2 + $0x60] sm:$0xff] %v790
        %823 = vst [vmem:[#allocation2 + $0x68] sm:$0xff] %v791
        %824 = vst [vmem:[#allocation2 + $0x70] sm:$0xff] %v792
        %825 = vst [vmem:[#allocation2 + $0x78] sm:$0xff] %v793
        %826 = vst [vmem:[#allocation2 + $0x80] sm:$0xff] %v794
        %827 = vst [vmem:[#allocation2 + $0x88] sm:$0xff] %v795
        %828 = vst [vmem:[#allocation2 + $0x90] sm:$0xff] %v796
        %829 = vst [vmem:[#allocation2 + $0x98] sm:$0xff] %v797
        %830 = vst [vmem:[#allocation2 + $0xa0] sm:$0xff] %v798
        %831 = vst [vmem:[#allocation2 + $0xa8] sm:$0xff] %v799
        %832 = vst [vmem:[#allocation2 + $0xb0] sm:$0xff] %v800
        %833 = vst [vmem:[#allocation2 + $0xb8] sm:$0xff] %v801
        %834 = vst [vmem:[#allocation2 + $0xc0] sm:$0xff] %v802
        %835 = vst [vmem:[#allocation2 + $0xc8] sm:$0xff] %v803
        %836 = vst [vmem:[#allocation2 + $0xd0] sm:$0xff] %v804
        %837 = vst [vmem:[#allocation2 + $0xd8] sm:$0xff] %v805
        %838 = vst [vmem:[#allocation2 + $0xe0] sm:$0xff] %v806
        %839 = vst [vmem:[#allocation2 + $0xe8] sm:$0xff] %v807
        %840 = vst [vmem:[#allocation2 + $0xf0] sm:$0xff] %v808
        %841 = vst [vmem:[#allocation2 + $0xf8] sm:$0xff] %v809
        %842 = vst [vmem:[#allocation2 + $0x100] sm:$0xff] %v810
        %843 = vst [vmem:[#allocation2 + $0x108] sm:$0xff] %v811
        %v844 = vld [vmem:[#allocation2 + $0xf] sm:$0xff]
        %v845 = vld [vmem:[#allocation2 + $0x17] sm:$0xff]
        %v846 = vld [vmem:[#allocation2 + $0x1f] sm:$0xff]
        %v847 = vld [vmem:[#allocation2 + $0x27] sm:$0xff]
        %v848 = vld [vmem:[#allocation2 + $0x2f] sm:$0xff]
        %v849 = vld [vmem:[#allocation2 + $0x37] sm:$0xff]
        %v850 = vld [vmem:[#allocation2 + $0x3f] sm:$0xff]
        %v851 = vld [vmem:[#allocation2 + $0x47] sm:$0xff]
        %v852 = vld [vmem:[#allocation2 + $0x4f] sm:$0xff]
        %v853 = vld [vmem:[#allocation2 + $0x57] sm:$0xff]
        %v854 = vld [vmem:[#allocation2 + $0x5f] sm:$0xff]
        %v855 = vld [vmem:[#allocation2 + $0x67] sm:$0xff]
        %v856 = vld [vmem:[#allocation2 + $0x6f] sm:$0xff]
        %v857 = vld [vmem:[#allocation2 + $0x77] sm:$0xff]
        %v858 = vld [vmem:[#allocation2 + $0x7f] sm:$0xff]
        %v859 = vld [vmem:[#allocation2 + $0x87] sm:$0xff]
        %v860 = vld [vmem:[#allocation2 + $0x8f] sm:$0xff]
        %v861 = vld [vmem:[#allocation2 + $0x97] sm:$0xff]
        %v862 = vld [vmem:[#allocation2 + $0x9f] sm:$0xff]
        %v863 = vld [vmem:[#allocation2 + $0xa7] sm:$0xff]
        %v864 = vld [vmem:[#allocation2 + $0xaf] sm:$0xff]
        %v865 = vld [vmem:[#allocation2 + $0xb7] sm:$0xff]
        %v866 = vld [vmem:[#allocation2 + $0xbf] sm:$0xff]
        %v867 = vld [vmem:[#allocation2 + $0xc7] sm:$0xff]
        %v868 = vld [vmem:[#allocation2 + $0xcf] sm:$0xff]
        %v869 = vld [vmem:[#allocation2 + $0xd7] sm:$0xff]
        %v870 = vld [vmem:[#allocation2 + $0xdf] sm:$0xff]
        %v871 = vld [vmem:[#allocation2 + $0xe7] sm:$0xff]
        %v872 = vld [vmem:[#allocation2 + $0xef] sm:$0xff]
        %v873 = vld [vmem:[#allocation2 + $0xf7] sm:$0xff]
        %v874 = vld [vmem:[#allocation2 + $0xff] sm:$0xff]
        %v875 = vld [vmem:[#allocation2 + $0x107] sm:$0xff]
        %v876 = vld [vmem:[#allocation10] sm:$0x1]
        %v878 = vlaneseq
        %v879 = vshrl.u32 %v878, 7
        %v880 = vsub.s32 0, %v879
        %v881 = vrot.slane %v876, %v880
        %v883 = vmul.f32 %v844, %v881
        %v884 = vmul.f32 %v845, %v881
        %v885 = vmul.f32 %v846, %v881
        %v886 = vmul.f32 %v847, %v881
        %v887 = vmul.f32 %v848, %v881
        %v888 = vmul.f32 %v849, %v881
        %v889 = vmul.f32 %v850, %v881
        %v890 = vmul.f32 %v851, %v881
        %v891 = vmul.f32 %v852, %v881
        %v892 = vmul.f32 %v853, %v881
        %v893 = vmul.f32 %v854, %v881
        %v894 = vmul.f32 %v855, %v881
        %v895 = vmul.f32 %v856, %v881
        %v896 = vmul.f32 %v857, %v881
        %v897 = vmul.f32 %v858, %v881
        %v898 = vmul.f32 %v859, %v881
        %v899 = vmul.f32 %v860, %v881
        %v900 = vmul.f32 %v861, %v881
        %v901 = vmul.f32 %v862, %v881
        %v902 = vmul.f32 %v863, %v881
        %v903 = vmul.f32 %v864, %v881
        %v904 = vmul.f32 %v865, %v881
        %v905 = vmul.f32 %v866, %v881
        %v906 = vmul.f32 %v867, %v881
        %v907 = vmul.f32 %v868, %v881
        %v908 = vmul.f32 %v869, %v881
        %v909 = vmul.f32 %v870, %v881
        %v910 = vmul.f32 %v871, %v881
        %v911 = vmul.f32 %v872, %v881
        %v912 = vmul.f32 %v873, %v881
        %v913 = vmul.f32 %v874, %v881
        %v914 = vmul.f32 %v875, %v881
        %v915 = vld [vmem:[#allocation2 + $0x10] sm:$0xff]
        %v916 = vld [vmem:[#allocation2 + $0x18] sm:$0xff]
        %v917 = vld [vmem:[#allocation2 + $0x20] sm:$0xff]
        %v918 = vld [vmem:[#allocation2 + $0x28] sm:$0xff]
        %v919 = vld [vmem:[#allocation2 + $0x30] sm:$0xff]
        %v920 = vld [vmem:[#allocation2 + $0x38] sm:$0xff]
        %v921 = vld [vmem:[#allocation2 + $0x40] sm:$0xff]
        %v922 = vld [vmem:[#allocation2 + $0x48] sm:$0xff]
        %v923 = vld [vmem:[#allocation2 + $0x50] sm:$0xff]
        %v924 = vld [vmem:[#allocation2 + $0x58] sm:$0xff]
        %v925 = vld [vmem:[#allocation2 + $0x60] sm:$0xff]
        %v926 = vld [vmem:[#allocation2 + $0x68] sm:$0xff]
        %v927 = vld [vmem:[#allocation2 + $0x70] sm:$0xff]
        %v928 = vld [vmem:[#allocation2 + $0x78] sm:$0xff]
        %v929 = vld [vmem:[#allocation2 + $0x80] sm:$0xff]
        %v930 = vld [vmem:[#allocation2 + $0x88] sm:$0xff]
        %v931 = vld [vmem:[#allocation2 + $0x90] sm:$0xff]
        %v932 = vld [vmem:[#allocation2 + $0x98] sm:$0xff]
        %v933 = vld [vmem:[#allocation2 + $0xa0] sm:$0xff]
        %v934 = vld [vmem:[#allocation2 + $0xa8] sm:$0xff]
        %v935 = vld [vmem:[#allocation2 + $0xb0] sm:$0xff]
        %v936 = vld [vmem:[#allocation2 + $0xb8] sm:$0xff]
        %v937 = vld [vmem:[#allocation2 + $0xc0] sm:$0xff]
        %v938 = vld [vmem:[#allocation2 + $0xc8] sm:$0xff]
        %v939 = vld [vmem:[#allocation2 + $0xd0] sm:$0xff]
        %v940 = vld [vmem:[#allocation2 + $0xd8] sm:$0xff]
        %v941 = vld [vmem:[#allocation2 + $0xe0] sm:$0xff]
        %v942 = vld [vmem:[#allocation2 + $0xe8] sm:$0xff]
        %v943 = vld [vmem:[#allocation2 + $0xf0] sm:$0xff]
        %v944 = vld [vmem:[#allocation2 + $0xf8] sm:$0xff]
        %v945 = vld [vmem:[#allocation2 + $0x100] sm:$0xff]
        %v946 = vld [vmem:[#allocation2 + $0x108] sm:$0xff]
        %s947 = scalar_lea.vmem [#allocation10], 1
        %v948 = vld [vmem:[%s947] sm:$0x1]
        %v950 = vlaneseq
        %v951 = vshrl.u32 %v950, 7
        %v952 = vsub.s32 0, %v951
        %v953 = vrot.slane %v948, %v952
        %v955 = vmul.f32 %v915, %v953
        %v956 = vmul.f32 %v916, %v953
        %v957 = vmul.f32 %v917, %v953
        %v958 = vmul.f32 %v918, %v953
        %v959 = vmul.f32 %v919, %v953
        %v960 = vmul.f32 %v920, %v953
        %v961 = vmul.f32 %v921, %v953
        %v962 = vmul.f32 %v922, %v953
        %v963 = vmul.f32 %v923, %v953
        %v964 = vmul.f32 %v924, %v953
        %v965 = vmul.f32 %v925, %v953
        %v966 = vmul.f32 %v926, %v953
        %v967 = vmul.f32 %v927, %v953
        %v968 = vmul.f32 %v928, %v953
        %v969 = vmul.f32 %v929, %v953
        %v970 = vmul.f32 %v930, %v953
        %v971 = vmul.f32 %v931, %v953
        %v972 = vmul.f32 %v932, %v953
        %v973 = vmul.f32 %v933, %v953
        %v974 = vmul.f32 %v934, %v953
        %v975 = vmul.f32 %v935, %v953
        %v976 = vmul.f32 %v936, %v953
        %v977 = vmul.f32 %v937, %v953
        %v978 = vmul.f32 %v938, %v953
        %v979 = vmul.f32 %v939, %v953
        %v980 = vmul.f32 %v940, %v953
        %v981 = vmul.f32 %v941, %v953
        %v982 = vmul.f32 %v942, %v953
        %v983 = vmul.f32 %v943, %v953
        %v984 = vmul.f32 %v944, %v953
        %v985 = vmul.f32 %v945, %v953
        %v986 = vmul.f32 %v946, %v953
        %v987 = vadd.f32 %v883, %v955
        %v988 = vadd.f32 %v884, %v956
        %v989 = vadd.f32 %v885, %v957
        %v990 = vadd.f32 %v886, %v958
        %v991 = vadd.f32 %v887, %v959
        %v992 = vadd.f32 %v888, %v960
        %v993 = vadd.f32 %v889, %v961
        %v994 = vadd.f32 %v890, %v962
        %v995 = vadd.f32 %v891, %v963
        %v996 = vadd.f32 %v892, %v964
        %v997 = vadd.f32 %v893, %v965
        %v998 = vadd.f32 %v894, %v966
        %v999 = vadd.f32 %v895, %v967
        %v1000 = vadd.f32 %v896, %v968
        %v1001 = vadd.f32 %v897, %v969
        %v1002 = vadd.f32 %v898, %v970
        %v1003 = vadd.f32 %v899, %v971
        %v1004 = vadd.f32 %v900, %v972
        %v1005 = vadd.f32 %v901, %v973
        %v1006 = vadd.f32 %v902, %v974
        %v1007 = vadd.f32 %v903, %v975
        %v1008 = vadd.f32 %v904, %v976
        %v1009 = vadd.f32 %v905, %v977
        %v1010 = vadd.f32 %v906, %v978
        %v1011 = vadd.f32 %v907, %v979
        %v1012 = vadd.f32 %v908, %v980
        %v1013 = vadd.f32 %v909, %v981
        %v1014 = vadd.f32 %v910, %v982
        %v1015 = vadd.f32 %v911, %v983
        %v1016 = vadd.f32 %v912, %v984
        %v1017 = vadd.f32 %v913, %v985
        %v1018 = vadd.f32 %v914, %v986
        %v1019 = vld [vmem:[#allocation2 + $0x11] sm:$0xff]
        %v1020 = vld [vmem:[#allocation2 + $0x19] sm:$0xff]
        %v1021 = vld [vmem:[#allocation2 + $0x21] sm:$0xff]
        %v1022 = vld [vmem:[#allocation2 + $0x29] sm:$0xff]
        %v1023 = vld [vmem:[#allocation2 + $0x31] sm:$0xff]
        %v1024 = vld [vmem:[#allocation2 + $0x39] sm:$0xff]
        %v1025 = vld [vmem:[#allocation2 + $0x41] sm:$0xff]
        %v1026 = vld [vmem:[#allocation2 + $0x49] sm:$0xff]
        %v1027 = vld [vmem:[#allocation2 + $0x51] sm:$0xff]
        %v1028 = vld [vmem:[#allocation2 + $0x59] sm:$0xff]
        %v1029 = vld [vmem:[#allocation2 + $0x61] sm:$0xff]
        %v1030 = vld [vmem:[#allocation2 + $0x69] sm:$0xff]
        %v1031 = vld [vmem:[#allocation2 + $0x71] sm:$0xff]
        %v1032 = vld [vmem:[#allocation2 + $0x79] sm:$0xff]
        %v1033 = vld [vmem:[#allocation2 + $0x81] sm:$0xff]
        %v1034 = vld [vmem:[#allocation2 + $0x89] sm:$0xff]
        %v1035 = vld [vmem:[#allocation2 + $0x91] sm:$0xff]
        %v1036 = vld [vmem:[#allocation2 + $0x99] sm:$0xff]
        %v1037 = vld [vmem:[#allocation2 + $0xa1] sm:$0xff]
        %v1038 = vld [vmem:[#allocation2 + $0xa9] sm:$0xff]
        %v1039 = vld [vmem:[#allocation2 + $0xb1] sm:$0xff]
        %v1040 = vld [vmem:[#allocation2 + $0xb9] sm:$0xff]
        %v1041 = vld [vmem:[#allocation2 + $0xc1] sm:$0xff]
        %v1042 = vld [vmem:[#allocation2 + $0xc9] sm:$0xff]
        %v1043 = vld [vmem:[#allocation2 + $0xd1] sm:$0xff]
        %v1044 = vld [vmem:[#allocation2 + $0xd9] sm:$0xff]
        %v1045 = vld [vmem:[#allocation2 + $0xe1] sm:$0xff]
        %v1046 = vld [vmem:[#allocation2 + $0xe9] sm:$0xff]
        %v1047 = vld [vmem:[#allocation2 + $0xf1] sm:$0xff]
        %v1048 = vld [vmem:[#allocation2 + $0xf9] sm:$0xff]
        %v1049 = vld [vmem:[#allocation2 + $0x101] sm:$0xff]
        %v1050 = vld [vmem:[#allocation2 + $0x109] sm:$0xff]
        %s1051 = scalar_lea.vmem [#allocation10], 2
        %v1052 = vld [vmem:[%s1051] sm:$0x1]
        %v1054 = vlaneseq
        %v1055 = vshrl.u32 %v1054, 7
        %v1056 = vsub.s32 0, %v1055
        %v1057 = vrot.slane %v1052, %v1056
        %v1059 = vmul.f32 %v1019, %v1057
        %v1060 = vmul.f32 %v1020, %v1057
        %v1061 = vmul.f32 %v1021, %v1057
        %v1062 = vmul.f32 %v1022, %v1057
        %v1063 = vmul.f32 %v1023, %v1057
        %v1064 = vmul.f32 %v1024, %v1057
        %v1065 = vmul.f32 %v1025, %v1057
        %v1066 = vmul.f32 %v1026, %v1057
        %v1067 = vmul.f32 %v1027, %v1057
        %v1068 = vmul.f32 %v1028, %v1057
        %v1069 = vmul.f32 %v1029, %v1057
        %v1070 = vmul.f32 %v1030, %v1057
        %v1071 = vmul.f32 %v1031, %v1057
        %v1072 = vmul.f32 %v1032, %v1057
        %v1073 = vmul.f32 %v1033, %v1057
        %v1074 = vmul.f32 %v1034, %v1057
        %v1075 = vmul.f32 %v1035, %v1057
        %v1076 = vmul.f32 %v1036, %v1057
        %v1077 = vmul.f32 %v1037, %v1057
        %v1078 = vmul.f32 %v1038, %v1057
        %v1079 = vmul.f32 %v1039, %v1057
        %v1080 = vmul.f32 %v1040, %v1057
        %v1081 = vmul.f32 %v1041, %v1057
        %v1082 = vmul.f32 %v1042, %v1057
        %v1083 = vmul.f32 %v1043, %v1057
        %v1084 = vmul.f32 %v1044, %v1057
        %v1085 = vmul.f32 %v1045, %v1057
        %v1086 = vmul.f32 %v1046, %v1057
        %v1087 = vmul.f32 %v1047, %v1057
        %v1088 = vmul.f32 %v1048, %v1057
        %v1089 = vmul.f32 %v1049, %v1057
        %v1090 = vmul.f32 %v1050, %v1057
        %v1091 = vadd.f32 %v987, %v1059
        %v1092 = vadd.f32 %v988, %v1060
        %v1093 = vadd.f32 %v989, %v1061
        %v1094 = vadd.f32 %v990, %v1062
        %v1095 = vadd.f32 %v991, %v1063
        %v1096 = vadd.f32 %v992, %v1064
        %v1097 = vadd.f32 %v993, %v1065
        %v1098 = vadd.f32 %v994, %v1066
        %v1099 = vadd.f32 %v995, %v1067
        %v1100 = vadd.f32 %v996, %v1068
        %v1101 = vadd.f32 %v997, %v1069
        %v1102 = vadd.f32 %v998, %v1070
        %v1103 = vadd.f32 %v999, %v1071
        %v1104 = vadd.f32 %v1000, %v1072
        %v1105 = vadd.f32 %v1001, %v1073
        %v1106 = vadd.f32 %v1002, %v1074
        %v1107 = vadd.f32 %v1003, %v1075
        %v1108 = vadd.f32 %v1004, %v1076
        %v1109 = vadd.f32 %v1005, %v1077
        %v1110 = vadd.f32 %v1006, %v1078
        %v1111 = vadd.f32 %v1007, %v1079
        %v1112 = vadd.f32 %v1008, %v1080
        %v1113 = vadd.f32 %v1009, %v1081
        %v1114 = vadd.f32 %v1010, %v1082
        %v1115 = vadd.f32 %v1011, %v1083
        %v1116 = vadd.f32 %v1012, %v1084
        %v1117 = vadd.f32 %v1013, %v1085
        %v1118 = vadd.f32 %v1014, %v1086
        %v1119 = vadd.f32 %v1015, %v1087
        %v1120 = vadd.f32 %v1016, %v1088
        %v1121 = vadd.f32 %v1017, %v1089
        %v1122 = vadd.f32 %v1018, %v1090
        %v1123 = vld [vmem:[%s4] sm:$0x1]
        %v1125 = vlaneseq
        %v1126 = vshrl.u32 %v1125, 7
        %v1127 = vsub.s32 0, %v1126
        %v1128 = vrot.slane %v1123, %v1127
        %v1130 = vadd.f32 %v1091, %v1128
        %v1131 = vadd.f32 %v1092, %v1128
        %v1132 = vadd.f32 %v1093, %v1128
        %v1133 = vadd.f32 %v1094, %v1128
        %v1134 = vadd.f32 %v1095, %v1128
        %v1135 = vadd.f32 %v1096, %v1128
        %v1136 = vadd.f32 %v1097, %v1128
        %v1137 = vadd.f32 %v1098, %v1128
        %v1138 = vadd.f32 %v1099, %v1128
        %v1139 = vadd.f32 %v1100, %v1128
        %v1140 = vadd.f32 %v1101, %v1128
        %v1141 = vadd.f32 %v1102, %v1128
        %v1142 = vadd.f32 %v1103, %v1128
        %v1143 = vadd.f32 %v1104, %v1128
        %v1144 = vadd.f32 %v1105, %v1128
        %v1145 = vadd.f32 %v1106, %v1128
        %v1146 = vadd.f32 %v1107, %v1128
        %v1147 = vadd.f32 %v1108, %v1128
        %v1148 = vadd.f32 %v1109, %v1128
        %v1149 = vadd.f32 %v1110, %v1128
        %v1150 = vadd.f32 %v1111, %v1128
        %v1151 = vadd.f32 %v1112, %v1128
        %v1152 = vadd.f32 %v1113, %v1128
        %v1153 = vadd.f32 %v1114, %v1128
        %v1154 = vadd.f32 %v1115, %v1128
        %v1155 = vadd.f32 %v1116, %v1128
        %v1156 = vadd.f32 %v1117, %v1128
        %v1157 = vadd.f32 %v1118, %v1128
        %v1158 = vadd.f32 %v1119, %v1128
        %v1159 = vadd.f32 %v1120, %v1128
        %v1160 = vadd.f32 %v1121, %v1128
        %v1161 = vadd.f32 %v1122, %v1128
        %v1162 = vld [vmem:[%s7] sm:$0x1]
        %v1163 = vld [vmem:[%s8] sm:$0x1]
        %1164 = vadd.xlane.f32.xlu0 %v1130
        %v1165 = vpop.xlane.xlu0 %1164
        %1166 = vadd.xlane.f32.xlu0 %v1131
        %v1167 = vpop.xlane.xlu0 %1166
        %1168 = vadd.xlane.f32.xlu0 %v1132
        %v1169 = vpop.xlane.xlu0 %1168
        %1170 = vadd.xlane.f32.xlu0 %v1133
        %v1171 = vpop.xlane.xlu0 %1170
        %1172 = vadd.xlane.f32.xlu0 %v1134
        %v1173 = vpop.xlane.xlu0 %1172
        %1174 = vadd.xlane.f32.xlu0 %v1135
        %v1175 = vpop.xlane.xlu0 %1174
        %1176 = vadd.xlane.f32.xlu0 %v1136
        %v1177 = vpop.xlane.xlu0 %1176
        %1178 = vadd.xlane.f32.xlu0 %v1137
        %v1179 = vpop.xlane.xlu0 %1178
        %1180 = vadd.xlane.f32.xlu0 %v1138
        %v1181 = vpop.xlane.xlu0 %1180
        %1182 = vadd.xlane.f32.xlu0 %v1139
        %v1183 = vpop.xlane.xlu0 %1182
        %1184 = vadd.xlane.f32.xlu0 %v1140
        %v1185 = vpop.xlane.xlu0 %1184
        %1186 = vadd.xlane.f32.xlu0 %v1141
        %v1187 = vpop.xlane.xlu0 %1186
        %1188 = vadd.xlane.f32.xlu0 %v1142
        %v1189 = vpop.xlane.xlu0 %1188
        %1190 = vadd.xlane.f32.xlu0 %v1143
        %v1191 = vpop.xlane.xlu0 %1190
        %1192 = vadd.xlane.f32.xlu0 %v1144
        %v1193 = vpop.xlane.xlu0 %1192
        %1194 = vadd.xlane.f32.xlu0 %v1145
        %v1195 = vpop.xlane.xlu0 %1194
        %1196 = vadd.xlane.f32.xlu0 %v1146
        %v1197 = vpop.xlane.xlu0 %1196
        %1198 = vadd.xlane.f32.xlu0 %v1147
        %v1199 = vpop.xlane.xlu0 %1198
        %1200 = vadd.xlane.f32.xlu0 %v1148
        %v1201 = vpop.xlane.xlu0 %1200
        %1202 = vadd.xlane.f32.xlu0 %v1149
        %v1203 = vpop.xlane.xlu0 %1202
        %1204 = vadd.xlane.f32.xlu0 %v1150
        %v1205 = vpop.xlane.xlu0 %1204
        %1206 = vadd.xlane.f32.xlu0 %v1151
        %v1207 = vpop.xlane.xlu0 %1206
        %1208 = vadd.xlane.f32.xlu0 %v1152
        %v1209 = vpop.xlane.xlu0 %1208
        %1210 = vadd.xlane.f32.xlu0 %v1153
        %v1211 = vpop.xlane.xlu0 %1210
        %1212 = vadd.xlane.f32.xlu0 %v1154
        %v1213 = vpop.xlane.xlu0 %1212
        %1214 = vadd.xlane.f32.xlu0 %v1155
        %v1215 = vpop.xlane.xlu0 %1214
        %1216 = vadd.xlane.f32.xlu0 %v1156
        %v1217 = vpop.xlane.xlu0 %1216
        %1218 = vadd.xlane.f32.xlu0 %v1157
        %v1219 = vpop.xlane.xlu0 %1218
        %1220 = vadd.xlane.f32.xlu0 %v1158
        %v1221 = vpop.xlane.xlu0 %1220
        %1222 = vadd.xlane.f32.xlu0 %v1159
        %v1223 = vpop.xlane.xlu0 %1222
        %1224 = vadd.xlane.f32.xlu0 %v1160
        %v1225 = vpop.xlane.xlu0 %1224
        %1226 = vadd.xlane.f32.xlu0 %v1161
        %v1227 = vpop.xlane.xlu0 %1226
        %v1228 = vrcp.pop 128.0
        %v1229 = vmul.f32 %v1165, %v1228
        %v1230 = vmul.f32 %v1167, %v1228
        %v1231 = vmul.f32 %v1169, %v1228
        %v1232 = vmul.f32 %v1171, %v1228
        %v1233 = vmul.f32 %v1173, %v1228
        %v1234 = vmul.f32 %v1175, %v1228
        %v1235 = vmul.f32 %v1177, %v1228
        %v1236 = vmul.f32 %v1179, %v1228
        %v1237 = vmul.f32 %v1181, %v1228
        %v1238 = vmul.f32 %v1183, %v1228
        %v1239 = vmul.f32 %v1185, %v1228
        %v1240 = vmul.f32 %v1187, %v1228
        %v1241 = vmul.f32 %v1189, %v1228
        %v1242 = vmul.f32 %v1191, %v1228
        %v1243 = vmul.f32 %v1193, %v1228
        %v1244 = vmul.f32 %v1195, %v1228
        %v1245 = vmul.f32 %v1197, %v1228
        %v1246 = vmul.f32 %v1199, %v1228
        %v1247 = vmul.f32 %v1201, %v1228
        %v1248 = vmul.f32 %v1203, %v1228
        %v1249 = vmul.f32 %v1205, %v1228
        %v1250 = vmul.f32 %v1207, %v1228
        %v1251 = vmul.f32 %v1209, %v1228
        %v1252 = vmul.f32 %v1211, %v1228
        %v1253 = vmul.f32 %v1213, %v1228
        %v1254 = vmul.f32 %v1215, %v1228
        %v1255 = vmul.f32 %v1217, %v1228
        %v1256 = vmul.f32 %v1219, %v1228
        %v1257 = vmul.f32 %v1221, %v1228
        %v1258 = vmul.f32 %v1223, %v1228
        %v1259 = vmul.f32 %v1225, %v1228
        %v1260 = vmul.f32 %v1227, %v1228
        %v1261 = vsub.f32 %v1130, %v1229
        %v1262 = vsub.f32 %v1131, %v1230
        %v1263 = vsub.f32 %v1132, %v1231
        %v1264 = vsub.f32 %v1133, %v1232
        %v1265 = vsub.f32 %v1134, %v1233
        %v1266 = vsub.f32 %v1135, %v1234
        %v1267 = vsub.f32 %v1136, %v1235
        %v1268 = vsub.f32 %v1137, %v1236
        %v1269 = vsub.f32 %v1138, %v1237
        %v1270 = vsub.f32 %v1139, %v1238
        %v1271 = vsub.f32 %v1140, %v1239
        %v1272 = vsub.f32 %v1141, %v1240
        %v1273 = vsub.f32 %v1142, %v1241
        %v1274 = vsub.f32 %v1143, %v1242
        %v1275 = vsub.f32 %v1144, %v1243
        %v1276 = vsub.f32 %v1145, %v1244
        %v1277 = vsub.f32 %v1146, %v1245
        %v1278 = vsub.f32 %v1147, %v1246
        %v1279 = vsub.f32 %v1148, %v1247
        %v1280 = vsub.f32 %v1149, %v1248
        %v1281 = vsub.f32 %v1150, %v1249
        %v1282 = vsub.f32 %v1151, %v1250
        %v1283 = vsub.f32 %v1152, %v1251
        %v1284 = vsub.f32 %v1153, %v1252
        %v1285 = vsub.f32 %v1154, %v1253
        %v1286 = vsub.f32 %v1155, %v1254
        %v1287 = vsub.f32 %v1156, %v1255
        %v1288 = vsub.f32 %v1157, %v1256
        %v1289 = vsub.f32 %v1158, %v1257
        %v1290 = vsub.f32 %v1159, %v1258
        %v1291 = vsub.f32 %v1160, %v1259
        %v1292 = vsub.f32 %v1161, %v1260
        %v1293 = vmul.f32 %v1261, %v1261
        %v1294 = vmul.f32 %v1262, %v1262
        %v1295 = vmul.f32 %v1263, %v1263
        %v1296 = vmul.f32 %v1264, %v1264
        %v1297 = vmul.f32 %v1265, %v1265
        %v1298 = vmul.f32 %v1266, %v1266
        %v1299 = vmul.f32 %v1267, %v1267
        %v1300 = vmul.f32 %v1268, %v1268
        %v1301 = vmul.f32 %v1269, %v1269
        %v1302 = vmul.f32 %v1270, %v1270
        %v1303 = vmul.f32 %v1271, %v1271
        %v1304 = vmul.f32 %v1272, %v1272
        %v1305 = vmul.f32 %v1273, %v1273
        %v1306 = vmul.f32 %v1274, %v1274
        %v1307 = vmul.f32 %v1275, %v1275
        %v1308 = vmul.f32 %v1276, %v1276
        %v1309 = vmul.f32 %v1277, %v1277
        %v1310 = vmul.f32 %v1278, %v1278
        %v1311 = vmul.f32 %v1279, %v1279
        %v1312 = vmul.f32 %v1280, %v1280
        %v1313 = vmul.f32 %v1281, %v1281
        %v1314 = vmul.f32 %v1282, %v1282
        %v1315 = vmul.f32 %v1283, %v1283
        %v1316 = vmul.f32 %v1284, %v1284
        %v1317 = vmul.f32 %v1285, %v1285
        %v1318 = vmul.f32 %v1286, %v1286
        %v1319 = vmul.f32 %v1287, %v1287
        %v1320 = vmul.f32 %v1288, %v1288
        %v1321 = vmul.f32 %v1289, %v1289
        %v1322 = vmul.f32 %v1290, %v1290
        %v1323 = vmul.f32 %v1291, %v1291
        %v1324 = vmul.f32 %v1292, %v1292
        %1325 = vadd.xlane.f32.xlu0 %v1293
        %v1326 = vpop.xlane.xlu0 %1325
        %1327 = vadd.xlane.f32.xlu0 %v1294
        %v1328 = vpop.xlane.xlu0 %1327
        %1329 = vadd.xlane.f32.xlu0 %v1295
        %v1330 = vpop.xlane.xlu0 %1329
        %1331 = vadd.xlane.f32.xlu0 %v1296
        %v1332 = vpop.xlane.xlu0 %1331
        %1333 = vadd.xlane.f32.xlu0 %v1297
        %v1334 = vpop.xlane.xlu0 %1333
        %1335 = vadd.xlane.f32.xlu0 %v1298
        %v1336 = vpop.xlane.xlu0 %1335
        %1337 = vadd.xlane.f32.xlu0 %v1299
        %v1338 = vpop.xlane.xlu0 %1337
        %1339 = vadd.xlane.f32.xlu0 %v1300
        %v1340 = vpop.xlane.xlu0 %1339
        %1341 = vadd.xlane.f32.xlu0 %v1301
        %v1342 = vpop.xlane.xlu0 %1341
        %1343 = vadd.xlane.f32.xlu0 %v1302
        %v1344 = vpop.xlane.xlu0 %1343
        %1345 = vadd.xlane.f32.xlu0 %v1303
        %v1346 = vpop.xlane.xlu0 %1345
        %1347 = vadd.xlane.f32.xlu0 %v1304
        %v1348 = vpop.xlane.xlu0 %1347
        %1349 = vadd.xlane.f32.xlu0 %v1305
        %v1350 = vpop.xlane.xlu0 %1349
        %1351 = vadd.xlane.f32.xlu0 %v1306
        %v1352 = vpop.xlane.xlu0 %1351
        %1353 = vadd.xlane.f32.xlu0 %v1307
        %v1354 = vpop.xlane.xlu0 %1353
        %1355 = vadd.xlane.f32.xlu0 %v1308
        %v1356 = vpop.xlane.xlu0 %1355
        %1357 = vadd.xlane.f32.xlu0 %v1309
        %v1358 = vpop.xlane.xlu0 %1357
        %1359 = vadd.xlane.f32.xlu0 %v1310
        %v1360 = vpop.xlane.xlu0 %1359
        %1361 = vadd.xlane.f32.xlu0 %v1311
        %v1362 = vpop.xlane.xlu0 %1361
        %1363 = vadd.xlane.f32.xlu0 %v1312
        %v1364 = vpop.xlane.xlu0 %1363
        %1365 = vadd.xlane.f32.xlu0 %v1313
        %v1366 = vpop.xlane.xlu0 %1365
        %1367 = vadd.xlane.f32.xlu0 %v1314
        %v1368 = vpop.xlane.xlu0 %1367
        %1369 = vadd.xlane.f32.xlu0 %v1315
        %v1370 = vpop.xlane.xlu0 %1369
        %1371 = vadd.xlane.f32.xlu0 %v1316
        %v1372 = vpop.xlane.xlu0 %1371
        %1373 = vadd.xlane.f32.xlu0 %v1317
        %v1374 = vpop.xlane.xlu0 %1373
        %1375 = vadd.xlane.f32.xlu0 %v1318
        %v1376 = vpop.xlane.xlu0 %1375
        %1377 = vadd.xlane.f32.xlu0 %v1319
        %v1378 = vpop.xlane.xlu0 %1377
        %1379 = vadd.xlane.f32.xlu0 %v1320
        %v1380 = vpop.xlane.xlu0 %1379
        %1381 = vadd.xlane.f32.xlu0 %v1321
        %v1382 = vpop.xlane.xlu0 %1381
        %1383 = vadd.xlane.f32.xlu0 %v1322
        %v1384 = vpop.xlane.xlu0 %1383
        %1385 = vadd.xlane.f32.xlu0 %v1323
        %v1386 = vpop.xlane.xlu0 %1385
        %1387 = vadd.xlane.f32.xlu0 %v1324
        %v1388 = vpop.xlane.xlu0 %1387
        %v1389 = vmul.f32 %v1326, %v1228
        %v1390 = vmul.f32 %v1328, %v1228
        %v1391 = vmul.f32 %v1330, %v1228
        %v1392 = vmul.f32 %v1332, %v1228
        %v1393 = vmul.f32 %v1334, %v1228
        %v1394 = vmul.f32 %v1336, %v1228
        %v1395 = vmul.f32 %v1338, %v1228
        %v1396 = vmul.f32 %v1340, %v1228
        %v1397 = vmul.f32 %v1342, %v1228
        %v1398 = vmul.f32 %v1344, %v1228
        %v1399 = vmul.f32 %v1346, %v1228
        %v1400 = vmul.f32 %v1348, %v1228
        %v1401 = vmul.f32 %v1350, %v1228
        %v1402 = vmul.f32 %v1352, %v1228
        %v1403 = vmul.f32 %v1354, %v1228
        %v1404 = vmul.f32 %v1356, %v1228
        %v1405 = vmul.f32 %v1358, %v1228
        %v1406 = vmul.f32 %v1360, %v1228
        %v1407 = vmul.f32 %v1362, %v1228
        %v1408 = vmul.f32 %v1364, %v1228
        %v1409 = vmul.f32 %v1366, %v1228
        %v1410 = vmul.f32 %v1368, %v1228
        %v1411 = vmul.f32 %v1370, %v1228
        %v1412 = vmul.f32 %v1372, %v1228
        %v1413 = vmul.f32 %v1374, %v1228
        %v1414 = vmul.f32 %v1376, %v1228
        %v1415 = vmul.f32 %v1378, %v1228
        %v1416 = vmul.f32 %v1380, %v1228
        %v1417 = vmul.f32 %v1382, %v1228
        %v1418 = vmul.f32 %v1384, %v1228
        %v1419 = vmul.f32 %v1386, %v1228
        %v1420 = vmul.f32 %v1388, %v1228
        %v1421 = vadd.f32 %v1389, 1e-05
        %v1422 = vadd.f32 %v1390, 1e-05
        %v1423 = vadd.f32 %v1391, 1e-05
        %v1424 = vadd.f32 %v1392, 1e-05
        %v1425 = vadd.f32 %v1393, 1e-05
        %v1426 = vadd.f32 %v1394, 1e-05
        %v1427 = vadd.f32 %v1395, 1e-05
        %v1428 = vadd.f32 %v1396, 1e-05
        %v1429 = vadd.f32 %v1397, 1e-05
        %v1430 = vadd.f32 %v1398, 1e-05
        %v1431 = vadd.f32 %v1399, 1e-05
        %v1432 = vadd.f32 %v1400, 1e-05
        %v1433 = vadd.f32 %v1401, 1e-05
        %v1434 = vadd.f32 %v1402, 1e-05
        %v1435 = vadd.f32 %v1403, 1e-05
        %v1436 = vadd.f32 %v1404, 1e-05
        %v1437 = vadd.f32 %v1405, 1e-05
        %v1438 = vadd.f32 %v1406, 1e-05
        %v1439 = vadd.f32 %v1407, 1e-05
        %v1440 = vadd.f32 %v1408, 1e-05
        %v1441 = vadd.f32 %v1409, 1e-05
        %v1442 = vadd.f32 %v1410, 1e-05
        %v1443 = vadd.f32 %v1411, 1e-05
        %v1444 = vadd.f32 %v1412, 1e-05
        %v1445 = vadd.f32 %v1413, 1e-05
        %v1446 = vadd.f32 %v1414, 1e-05
        %v1447 = vadd.f32 %v1415, 1e-05
        %v1448 = vadd.f32 %v1416, 1e-05
        %v1449 = vadd.f32 %v1417, 1e-05
        %v1450 = vadd.f32 %v1418, 1e-05
        %v1451 = vadd.f32 %v1419, 1e-05
        %v1452 = vadd.f32 %v1420, 1e-05
        %v1453 = vrsqrt.pop %v1421
        %v1454 = vrsqrt.pop %v1422
        %v1455 = vrsqrt.pop %v1423
        %v1456 = vrsqrt.pop %v1424
        %v1457 = vrsqrt.pop %v1425
        %v1458 = vrsqrt.pop %v1426
        %v1459 = vrsqrt.pop %v1427
        %v1460 = vrsqrt.pop %v1428
        %v1461 = vrsqrt.pop %v1429
        %v1462 = vrsqrt.pop %v1430
        %v1463 = vrsqrt.pop %v1431
        %v1464 = vrsqrt.pop %v1432
        %v1465 = vrsqrt.pop %v1433
        %v1466 = vrsqrt.pop %v1434
        %v1467 = vrsqrt.pop %v1435
        %v1468 = vrsqrt.pop %v1436
        %v1469 = vrsqrt.pop %v1437
        %v1470 = vrsqrt.pop %v1438
        %v1471 = vrsqrt.pop %v1439
        %v1472 = vrsqrt.pop %v1440
        %v1473 = vrsqrt.pop %v1441
        %v1474 = vrsqrt.pop %v1442
        %v1475 = vrsqrt.pop %v1443
        %v1476 = vrsqrt.pop %v1444
        %v1477 = vrsqrt.pop %v1445
        %v1478 = vrsqrt.pop %v1446
        %v1479 = vrsqrt.pop %v1447
        %v1480 = vrsqrt.pop %v1448
        %v1481 = vrsqrt.pop %v1449
        %v1482 = vrsqrt.pop %v1450
        %v1483 = vrsqrt.pop %v1451
        %v1484 = vrsqrt.pop %v1452
        %v1485 = vmul.f32 %v1261, %v1453
        %v1486 = vmul.f32 %v1262, %v1454
        %v1487 = vmul.f32 %v1263, %v1455
        %v1488 = vmul.f32 %v1264, %v1456
        %v1489 = vmul.f32 %v1265, %v1457
        %v1490 = vmul.f32 %v1266, %v1458
        %v1491 = vmul.f32 %v1267, %v1459
        %v1492 = vmul.f32 %v1268, %v1460
        %v1493 = vmul.f32 %v1269, %v1461
        %v1494 = vmul.f32 %v1270, %v1462
        %v1495 = vmul.f32 %v1271, %v1463
        %v1496 = vmul.f32 %v1272, %v1464
        %v1497 = vmul.f32 %v1273, %v1465
        %v1498 = vmul.f32 %v1274, %v1466
        %v1499 = vmul.f32 %v1275, %v1467
        %v1500 = vmul.f32 %v1276, %v1468
        %v1501 = vmul.f32 %v1277, %v1469
        %v1502 = vmul.f32 %v1278, %v1470
        %v1503 = vmul.f32 %v1279, %v1471
        %v1504 = vmul.f32 %v1280, %v1472
        %v1505 = vmul.f32 %v1281, %v1473
        %v1506 = vmul.f32 %v1282, %v1474
        %v1507 = vmul.f32 %v1283, %v1475
        %v1508 = vmul.f32 %v1284, %v1476
        %v1509 = vmul.f32 %v1285, %v1477
        %v1510 = vmul.f32 %v1286, %v1478
        %v1511 = vmul.f32 %v1287, %v1479
        %v1512 = vmul.f32 %v1288, %v1480
        %v1513 = vmul.f32 %v1289, %v1481
        %v1514 = vmul.f32 %v1290, %v1482
        %v1515 = vmul.f32 %v1291, %v1483
        %v1516 = vmul.f32 %v1292, %v1484
        %v1518 = vlaneseq
        %v1519 = vshrl.u32 %v1518, 7
        %v1520 = vsub.s32 0, %v1519
        %v1521 = vrot.slane %v1162, %v1520
        %v1523 = vmul.f32 %v1485, %v1521
        %v1524 = vmul.f32 %v1486, %v1521
        %v1525 = vmul.f32 %v1487, %v1521
        %v1526 = vmul.f32 %v1488, %v1521
        %v1527 = vmul.f32 %v1489, %v1521
        %v1528 = vmul.f32 %v1490, %v1521
        %v1529 = vmul.f32 %v1491, %v1521
        %v1530 = vmul.f32 %v1492, %v1521
        %v1531 = vmul.f32 %v1493, %v1521
        %v1532 = vmul.f32 %v1494, %v1521
        %v1533 = vmul.f32 %v1495, %v1521
        %v1534 = vmul.f32 %v1496, %v1521
        %v1535 = vmul.f32 %v1497, %v1521
        %v1536 = vmul.f32 %v1498, %v1521
        %v1537 = vmul.f32 %v1499, %v1521
        %v1538 = vmul.f32 %v1500, %v1521
        %v1539 = vmul.f32 %v1501, %v1521
        %v1540 = vmul.f32 %v1502, %v1521
        %v1541 = vmul.f32 %v1503, %v1521
        %v1542 = vmul.f32 %v1504, %v1521
        %v1543 = vmul.f32 %v1505, %v1521
        %v1544 = vmul.f32 %v1506, %v1521
        %v1545 = vmul.f32 %v1507, %v1521
        %v1546 = vmul.f32 %v1508, %v1521
        %v1547 = vmul.f32 %v1509, %v1521
        %v1548 = vmul.f32 %v1510, %v1521
        %v1549 = vmul.f32 %v1511, %v1521
        %v1550 = vmul.f32 %v1512, %v1521
        %v1551 = vmul.f32 %v1513, %v1521
        %v1552 = vmul.f32 %v1514, %v1521
        %v1553 = vmul.f32 %v1515, %v1521
        %v1554 = vmul.f32 %v1516, %v1521
        %v1556 = vlaneseq
        %v1557 = vshrl.u32 %v1556, 7
        %v1558 = vsub.s32 0, %v1557
        %v1559 = vrot.slane %v1163, %v1558
        %v1561 = vadd.f32 %v1523, %v1559
        %v1562 = vadd.f32 %v1524, %v1559
        %v1563 = vadd.f32 %v1525, %v1559
        %v1564 = vadd.f32 %v1526, %v1559
        %v1565 = vadd.f32 %v1527, %v1559
        %v1566 = vadd.f32 %v1528, %v1559
        %v1567 = vadd.f32 %v1529, %v1559
        %v1568 = vadd.f32 %v1530, %v1559
        %v1569 = vadd.f32 %v1531, %v1559
        %v1570 = vadd.f32 %v1532, %v1559
        %v1571 = vadd.f32 %v1533, %v1559
        %v1572 = vadd.f32 %v1534, %v1559
        %v1573 = vadd.f32 %v1535, %v1559
        %v1574 = vadd.f32 %v1536, %v1559
        %v1575 = vadd.f32 %v1537, %v1559
        %v1576 = vadd.f32 %v1538, %v1559
        %v1577 = vadd.f32 %v1539, %v1559
        %v1578 = vadd.f32 %v1540, %v1559
        %v1579 = vadd.f32 %v1541, %v1559
        %v1580 = vadd.f32 %v1542, %v1559
        %v1581 = vadd.f32 %v1543, %v1559
        %v1582 = vadd.f32 %v1544, %v1559
        %v1583 = vadd.f32 %v1545, %v1559
        %v1584 = vadd.f32 %v1546, %v1559
        %v1585 = vadd.f32 %v1547, %v1559
        %v1586 = vadd.f32 %v1548, %v1559
        %v1587 = vadd.f32 %v1549, %v1559
        %v1588 = vadd.f32 %v1550, %v1559
        %v1589 = vadd.f32 %v1551, %v1559
        %v1590 = vadd.f32 %v1552, %v1559
        %v1591 = vadd.f32 %v1553, %v1559
        %v1592 = vadd.f32 %v1554, %v1559
        %v1593 = vmul.f32 %v1561, 0.5
        %v1594 = vmul.f32 %v1562, 0.5
        %v1595 = vmul.f32 %v1563, 0.5
        %v1596 = vmul.f32 %v1564, 0.5
        %v1597 = vmul.f32 %v1565, 0.5
        %v1598 = vmul.f32 %v1566, 0.5
        %v1599 = vmul.f32 %v1567, 0.5
        %v1600 = vmul.f32 %v1568, 0.5
        %v1601 = vmul.f32 %v1569, 0.5
        %v1602 = vmul.f32 %v1570, 0.5
        %v1603 = vmul.f32 %v1571, 0.5
        %v1604 = vmul.f32 %v1572, 0.5
        %v1605 = vmul.f32 %v1573, 0.5
        %v1606 = vmul.f32 %v1574, 0.5
        %v1607 = vmul.f32 %v1575, 0.5
        %v1608 = vmul.f32 %v1576, 0.5
        %v1609 = vmul.f32 %v1577, 0.5
        %v1610 = vmul.f32 %v1578, 0.5
        %v1611 = vmul.f32 %v1579, 0.5
        %v1612 = vmul.f32 %v1580, 0.5
        %v1613 = vmul.f32 %v1581, 0.5
        %v1614 = vmul.f32 %v1582, 0.5
        %v1615 = vmul.f32 %v1583, 0.5
        %v1616 = vmul.f32 %v1584, 0.5
        %v1617 = vmul.f32 %v1585, 0.5
        %v1618 = vmul.f32 %v1586, 0.5
        %v1619 = vmul.f32 %v1587, 0.5
        %v1620 = vmul.f32 %v1588, 0.5
        %v1621 = vmul.f32 %v1589, 0.5
        %v1622 = vmul.f32 %v1590, 0.5
        %v1623 = vmul.f32 %v1591, 0.5
        %v1624 = vmul.f32 %v1592, 0.5
        %v1625 = vmul.f32 %v1561, 0.044715
        %v1626 = vmul.f32 %v1562, 0.044715
        %v1627 = vmul.f32 %v1563, 0.044715
        %v1628 = vmul.f32 %v1564, 0.044715
        %v1629 = vmul.f32 %v1565, 0.044715
        %v1630 = vmul.f32 %v1566, 0.044715
        %v1631 = vmul.f32 %v1567, 0.044715
        %v1632 = vmul.f32 %v1568, 0.044715
        %v1633 = vmul.f32 %v1569, 0.044715
        %v1634 = vmul.f32 %v1570, 0.044715
        %v1635 = vmul.f32 %v1571, 0.044715
        %v1636 = vmul.f32 %v1572, 0.044715
        %v1637 = vmul.f32 %v1573, 0.044715
        %v1638 = vmul.f32 %v1574, 0.044715
        %v1639 = vmul.f32 %v1575, 0.044715
        %v1640 = vmul.f32 %v1576, 0.044715
        %v1641 = vmul.f32 %v1577, 0.044715
        %v1642 = vmul.f32 %v1578, 0.044715
        %v1643 = vmul.f32 %v1579, 0.044715
        %v1644 = vmul.f32 %v1580, 0.044715
        %v1645 = vmul.f32 %v1581, 0.044715
        %v1646 = vmul.f32 %v1582, 0.044715
        %v1647 = vmul.f32 %v1583, 0.044715
        %v1648 = vmul.f32 %v1584, 0.044715
        %v1649 = vmul.f32 %v1585, 0.044715
        %v1650 = vmul.f32 %v1586, 0.044715
        %v1651 = vmul.f32 %v1587, 0.044715
        %v1652 = vmul.f32 %v1588, 0.044715
        %v1653 = vmul.f32 %v1589, 0.044715
        %v1654 = vmul.f32 %v1590, 0.044715
        %v1655 = vmul.f32 %v1591, 0.044715
        %v1656 = vmul.f32 %v1592, 0.044715
        %v1657 = vmul.f32 %v1625, %v1561
        %v1658 = vmul.f32 %v1626, %v1562
        %v1659 = vmul.f32 %v1627, %v1563
        %v1660 = vmul.f32 %v1628, %v1564
        %v1661 = vmul.f32 %v1629, %v1565
        %v1662 = vmul.f32 %v1630, %v1566
        %v1663 = vmul.f32 %v1631, %v1567
        %v1664 = vmul.f32 %v1632, %v1568
        %v1665 = vmul.f32 %v1633, %v1569
        %v1666 = vmul.f32 %v1634, %v1570
        %v1667 = vmul.f32 %v1635, %v1571
        %v1668 = vmul.f32 %v1636, %v1572
        %v1669 = vmul.f32 %v1637, %v1573
        %v1670 = vmul.f32 %v1638, %v1574
        %v1671 = vmul.f32 %v1639, %v1575
        %v1672 = vmul.f32 %v1640, %v1576
        %v1673 = vmul.f32 %v1641, %v1577
        %v1674 = vmul.f32 %v1642, %v1578
        %v1675 = vmul.f32 %v1643, %v1579
        %v1676 = vmul.f32 %v1644, %v1580
        %v1677 = vmul.f32 %v1645, %v1581
        %v1678 = vmul.f32 %v1646, %v1582
        %v1679 = vmul.f32 %v1647, %v1583
        %v1680 = vmul.f32 %v1648, %v1584
        %v1681 = vmul.f32 %v1649, %v1585
        %v1682 = vmul.f32 %v1650, %v1586
        %v1683 = vmul.f32 %v1651, %v1587
        %v1684 = vmul.f32 %v1652, %v1588
        %v1685 = vmul.f32 %v1653, %v1589
        %v1686 = vmul.f32 %v1654, %v1590
        %v1687 = vmul.f32 %v1655, %v1591
        %v1688 = vmul.f32 %v1656, %v1592
        %v1689 = vmul.f32 %v1657, %v1561
        %v1690 = vmul.f32 %v1658, %v1562
        %v1691 = vmul.f32 %v1659, %v1563
        %v1692 = vmul.f32 %v1660, %v1564
        %v1693 = vmul.f32 %v1661, %v1565
        %v1694 = vmul.f32 %v1662, %v1566
        %v1695 = vmul.f32 %v1663, %v1567
        %v1696 = vmul.f32 %v1664, %v1568
        %v1697 = vmul.f32 %v1665, %v1569
        %v1698 = vmul.f32 %v1666, %v1570
        %v1699 = vmul.f32 %v1667, %v1571
        %v1700 = vmul.f32 %v1668, %v1572
        %v1701 = vmul.f32 %v1669, %v1573
        %v1702 = vmul.f32 %v1670, %v1574
        %v1703 = vmul.f32 %v1671, %v1575
        %v1704 = vmul.f32 %v1672, %v1576
        %v1705 = vmul.f32 %v1673, %v1577
        %v1706 = vmul.f32 %v1674, %v1578
        %v1707 = vmul.f32 %v1675, %v1579
        %v1708 = vmul.f32 %v1676, %v1580
        %v1709 = vmul.f32 %v1677, %v1581
        %v1710 = vmul.f32 %v1678, %v1582
        %v1711 = vmul.f32 %v1679, %v1583
        %v1712 = vmul.f32 %v1680, %v1584
        %v1713 = vmul.f32 %v1681, %v1585
        %v1714 = vmul.f32 %v1682, %v1586
        %v1715 = vmul.f32 %v1683, %v1587
        %v1716 = vmul.f32 %v1684, %v1588
        %v1717 = vmul.f32 %v1685, %v1589
        %v1718 = vmul.f32 %v1686, %v1590
        %v1719 = vmul.f32 %v1687, %v1591
        %v1720 = vmul.f32 %v1688, %v1592
        %v1721 = vadd.f32 %v1561, %v1689
        %v1722 = vadd.f32 %v1562, %v1690
        %v1723 = vadd.f32 %v1563, %v1691
        %v1724 = vadd.f32 %v1564, %v1692
        %v1725 = vadd.f32 %v1565, %v1693
        %v1726 = vadd.f32 %v1566, %v1694
        %v1727 = vadd.f32 %v1567, %v1695
        %v1728 = vadd.f32 %v1568, %v1696
        %v1729 = vadd.f32 %v1569, %v1697
        %v1730 = vadd.f32 %v1570, %v1698
        %v1731 = vadd.f32 %v1571, %v1699
        %v1732 = vadd.f32 %v1572, %v1700
        %v1733 = vadd.f32 %v1573, %v1701
        %v1734 = vadd.f32 %v1574, %v1702
        %v1735 = vadd.f32 %v1575, %v1703
        %v1736 = vadd.f32 %v1576, %v1704
        %v1737 = vadd.f32 %v1577, %v1705
        %v1738 = vadd.f32 %v1578, %v1706
        %v1739 = vadd.f32 %v1579, %v1707
        %v1740 = vadd.f32 %v1580, %v1708
        %v1741 = vadd.f32 %v1581, %v1709
        %v1742 = vadd.f32 %v1582, %v1710
        %v1743 = vadd.f32 %v1583, %v1711
        %v1744 = vadd.f32 %v1584, %v1712
        %v1745 = vadd.f32 %v1585, %v1713
        %v1746 = vadd.f32 %v1586, %v1714
        %v1747 = vadd.f32 %v1587, %v1715
        %v1748 = vadd.f32 %v1588, %v1716
        %v1749 = vadd.f32 %v1589, %v1717
        %v1750 = vadd.f32 %v1590, %v1718
        %v1751 = vadd.f32 %v1591, %v1719
        %v1752 = vadd.f32 %v1592, %v1720
        %v1753 = vmul.f32 %v1721, 0.7978846
        %v1754 = vmul.f32 %v1722, 0.7978846
        %v1755 = vmul.f32 %v1723, 0.7978846
        %v1756 = vmul.f32 %v1724, 0.7978846
        %v1757 = vmul.f32 %v1725, 0.7978846
        %v1758 = vmul.f32 %v1726, 0.7978846
        %v1759 = vmul.f32 %v1727, 0.7978846
        %v1760 = vmul.f32 %v1728, 0.7978846
        %v1761 = vmul.f32 %v1729, 0.7978846
        %v1762 = vmul.f32 %v1730, 0.7978846
        %v1763 = vmul.f32 %v1731, 0.7978846
        %v1764 = vmul.f32 %v1732, 0.7978846
        %v1765 = vmul.f32 %v1733, 0.7978846
        %v1766 = vmul.f32 %v1734, 0.7978846
        %v1767 = vmul.f32 %v1735, 0.7978846
        %v1768 = vmul.f32 %v1736, 0.7978846
        %v1769 = vmul.f32 %v1737, 0.7978846
        %v1770 = vmul.f32 %v1738, 0.7978846
        %v1771 = vmul.f32 %v1739, 0.7978846
        %v1772 = vmul.f32 %v1740, 0.7978846
        %v1773 = vmul.f32 %v1741, 0.7978846
        %v1774 = vmul.f32 %v1742, 0.7978846
        %v1775 = vmul.f32 %v1743, 0.7978846
        %v1776 = vmul.f32 %v1744, 0.7978846
        %v1777 = vmul.f32 %v1745, 0.7978846
        %v1778 = vmul.f32 %v1746, 0.7978846
        %v1779 = vmul.f32 %v1747, 0.7978846
        %v1780 = vmul.f32 %v1748, 0.7978846
        %v1781 = vmul.f32 %v1749, 0.7978846
        %v1782 = vmul.f32 %v1750, 0.7978846
        %v1783 = vmul.f32 %v1751, 0.7978846
        %v1784 = vmul.f32 %v1752, 0.7978846
        %v1785 = vtanh.pop %v1753
        %v1786 = vtanh.pop %v1754
        %v1787 = vtanh.pop %v1755
        %v1788 = vtanh.pop %v1756
        %v1789 = vtanh.pop %v1757
        %v1790 = vtanh.pop %v1758
        %v1791 = vtanh.pop %v1759
        %v1792 = vtanh.pop %v1760
        %v1793 = vtanh.pop %v1761
        %v1794 = vtanh.pop %v1762
        %v1795 = vtanh.pop %v1763
        %v1796 = vtanh.pop %v1764
        %v1797 = vtanh.pop %v1765
        %v1798 = vtanh.pop %v1766
        %v1799 = vtanh.pop %v1767
        %v1800 = vtanh.pop %v1768
        %v1801 = vtanh.pop %v1769
        %v1802 = vtanh.pop %v1770
        %v1803 = vtanh.pop %v1771
        %v1804 = vtanh.pop %v1772
        %v1805 = vtanh.pop %v1773
        %v1806 = vtanh.pop %v1774
        %v1807 = vtanh.pop %v1775
        %v1808 = vtanh.pop %v1776
        %v1809 = vtanh.pop %v1777
        %v1810 = vtanh.pop %v1778
        %v1811 = vtanh.pop %v1779
        %v1812 = vtanh.pop %v1780
        %v1813 = vtanh.pop %v1781
        %v1814 = vtanh.pop %v1782
        %v1815 = vtanh.pop %v1783
        %v1816 = vtanh.pop %v1784
        %v1817 = vadd.f32 %v1785, 1.0
        %v1818 = vadd.f32 %v1786, 1.0
        %v1819 = vadd.f32 %v1787, 1.0
        %v1820 = vadd.f32 %v1788, 1.0
        %v1821 = vadd.f32 %v1789, 1.0
        %v1822 = vadd.f32 %v1790, 1.0
        %v1823 = vadd.f32 %v1791, 1.0
        %v1824 = vadd.f32 %v1792, 1.0
        %v1825 = vadd.f32 %v1793, 1.0
        %v1826 = vadd.f32 %v1794, 1.0
        %v1827 = vadd.f32 %v1795, 1.0
        %v1828 = vadd.f32 %v1796, 1.0
        %v1829 = vadd.f32 %v1797, 1.0
        %v1830 = vadd.f32 %v1798, 1.0
        %v1831 = vadd.f32 %v1799, 1.0
        %v1832 = vadd.f32 %v1800, 1.0
        %v1833 = vadd.f32 %v1801, 1.0
        %v1834 = vadd.f32 %v1802, 1.0
        %v1835 = vadd.f32 %v1803, 1.0
        %v1836 = vadd.f32 %v1804, 1.0
        %v1837 = vadd.f32 %v1805, 1.0
        %v1838 = vadd.f32 %v1806, 1.0
        %v1839 = vadd.f32 %v1807, 1.0
        %v1840 = vadd.f32 %v1808, 1.0
        %v1841 = vadd.f32 %v1809, 1.0
        %v1842 = vadd.f32 %v1810, 1.0
        %v1843 = vadd.f32 %v1811, 1.0
        %v1844 = vadd.f32 %v1812, 1.0
        %v1845 = vadd.f32 %v1813, 1.0
        %v1846 = vadd.f32 %v1814, 1.0
        %v1847 = vadd.f32 %v1815, 1.0
        %v1848 = vadd.f32 %v1816, 1.0
        %v1849 = vmul.f32 %v1593, %v1817
        %v1850 = vmul.f32 %v1594, %v1818
        %v1851 = vmul.f32 %v1595, %v1819
        %v1852 = vmul.f32 %v1596, %v1820
        %v1853 = vmul.f32 %v1597, %v1821
        %v1854 = vmul.f32 %v1598, %v1822
        %v1855 = vmul.f32 %v1599, %v1823
        %v1856 = vmul.f32 %v1600, %v1824
        %v1857 = vmul.f32 %v1601, %v1825
        %v1858 = vmul.f32 %v1602, %v1826
        %v1859 = vmul.f32 %v1603, %v1827
        %v1860 = vmul.f32 %v1604, %v1828
        %v1861 = vmul.f32 %v1605, %v1829
        %v1862 = vmul.f32 %v1606, %v1830
        %v1863 = vmul.f32 %v1607, %v1831
        %v1864 = vmul.f32 %v1608, %v1832
        %v1865 = vmul.f32 %v1609, %v1833
        %v1866 = vmul.f32 %v1610, %v1834
        %v1867 = vmul.f32 %v1611, %v1835
        %v1868 = vmul.f32 %v1612, %v1836
        %v1869 = vmul.f32 %v1613, %v1837
        %v1870 = vmul.f32 %v1614, %v1838
        %v1871 = vmul.f32 %v1615, %v1839
        %v1872 = vmul.f32 %v1616, %v1840
        %v1873 = vmul.f32 %v1617, %v1841
        %v1874 = vmul.f32 %v1618, %v1842
        %v1875 = vmul.f32 %v1619, %v1843
        %v1876 = vmul.f32 %v1620, %v1844
        %v1877 = vmul.f32 %v1621, %v1845
        %v1878 = vmul.f32 %v1622, %v1846
        %v1879 = vmul.f32 %v1623, %v1847
        %v1880 = vmul.f32 %v1624, %v1848
        %v1881 = vpack.c.bf16 %v1850, %v1849
        %v1882 = vpack.c.bf16 %v1852, %v1851
        %v1883 = vpack.c.bf16 %v1854, %v1853
        %v1884 = vpack.c.bf16 %v1856, %v1855
        %v1885 = vpack.c.bf16 %v1858, %v1857
        %v1886 = vpack.c.bf16 %v1860, %v1859
        %v1887 = vpack.c.bf16 %v1862, %v1861
        %v1888 = vpack.c.bf16 %v1864, %v1863
        %v1889 = vpack.c.bf16 %v1866, %v1865
        %v1890 = vpack.c.bf16 %v1868, %v1867
        %v1891 = vpack.c.bf16 %v1870, %v1869
        %v1892 = vpack.c.bf16 %v1872, %v1871
        %v1893 = vpack.c.bf16 %v1874, %v1873
        %v1894 = vpack.c.bf16 %v1876, %v1875
        %v1895 = vpack.c.bf16 %v1878, %v1877
        %v1896 = vpack.c.bf16 %v1880, %v1879
        %v1897 = vld [vmem:[#allocation11] sm:$0xf]
        %v1898 = vld [vmem:[#allocation11 + $0x4] sm:$0xf]
        %v1899 = vld [vmem:[#allocation11 + $0x8] sm:$0xf]
        %v1900 = vld [vmem:[#allocation11 + $0xc] sm:$0xf]
        %v1901 = vld [vmem:[#allocation11 + $0x10] sm:$0xf]
        %v1902 = vld [vmem:[#allocation11 + $0x14] sm:$0xf]
        %v1903 = vld [vmem:[#allocation11 + $0x18] sm:$0xf]
        %v1904 = vld [vmem:[#allocation11 + $0x1c] sm:$0xf]
        %v1905 = vld [vmem:[#allocation11 + $0x20] sm:$0xf]
        %v1906 = vld [vmem:[#allocation11 + $0x24] sm:$0xf]
        %v1907 = vld [vmem:[#allocation11 + $0x28] sm:$0xf]
        %v1908 = vld [vmem:[#allocation11 + $0x2c] sm:$0xf]
        %v1909 = vld [vmem:[#allocation11 + $0x30] sm:$0xf]
        %v1910 = vld [vmem:[#allocation11 + $0x34] sm:$0xf]
        %v1911 = vld [vmem:[#allocation11 + $0x38] sm:$0xf]
        %v1912 = vld [vmem:[#allocation11 + $0x3c] sm:$0xf]
        %v1913 = vld [vmem:[%s6] sm:$0x1]
        %v1915 = vlaneseq
        %v1916 = vshrl.u32 %v1915, 7
        %v1917 = vsub.s32 0, %v1916
        %v1918 = vrot.slane %v1913, %v1917
        %v1936 = vunpack.c.l.b16 %v1897
        %v1937 = vunpack.c.l.b16 %v1898
        %v1938 = vunpack.c.l.b16 %v1899
        %v1939 = vunpack.c.l.b16 %v1900
        %v1940 = vunpack.c.l.b16 %v1901
        %v1941 = vunpack.c.l.b16 %v1902
        %v1942 = vunpack.c.l.b16 %v1903
        %v1943 = vunpack.c.l.b16 %v1904
        %v1944 = vunpack.c.l.b16 %v1905
        %v1945 = vunpack.c.l.b16 %v1906
        %v1946 = vunpack.c.l.b16 %v1907
        %v1947 = vunpack.c.l.b16 %v1908
        %v1948 = vunpack.c.l.b16 %v1909
        %v1949 = vunpack.c.l.b16 %v1910
        %v1950 = vunpack.c.l.b16 %v1911
        %v1951 = vunpack.c.l.b16 %v1912
        %v1952 = vpack.c.b16 %v1937, %v1936
        %v1953 = vpack.c.b16 %v1939, %v1938
        %v1954 = vpack.c.b16 %v1941, %v1940
        %v1955 = vpack.c.b16 %v1943, %v1942
        %v1956 = vpack.c.b16 %v1945, %v1944
        %v1957 = vpack.c.b16 %v1947, %v1946
        %v1958 = vpack.c.b16 %v1949, %v1948
        %v1959 = vpack.c.b16 %v1951, %v1950
        %1968 = vmatprep.subr.bf16.mxu0 0
        %1969 = vmatpush1.bf16.msra.mxu0 %v1959
        %1970 = vmatprep.subr.bf16.mxu0 0
        %1971 = vmatpush1.bf16.msra.mxu0 %v1958
        %1972 = vmatprep.subr.bf16.mxu0 0
        %1973 = vmatpush1.bf16.msra.mxu0 %v1957
        %1974 = vmatprep.subr.bf16.mxu0 0
        %1975 = vmatpush1.bf16.msra.mxu0 %v1956
        %1976 = vmatprep.subr.bf16.mxu0 0
        %1977 = vmatpush1.bf16.msra.mxu0 %v1955
        %1978 = vmatprep.subr.bf16.mxu0 0
        %1979 = vmatpush1.bf16.msra.mxu0 %v1954
        %1980 = vmatprep.subr.bf16.mxu0 0
        %1981 = vmatpush1.bf16.msra.mxu0 %v1953
        %1982 = vmatprep.subr.bf16.mxu0 0
        %1983 = vmatpush1.bf16.msra.mxu0 %v1952
        %1984 = vmatprep.subr.bf16.mxu0 0
        %1985 = vmatpush2.bf16.msra.mxu0 0
        %1986 = vmatprep.subr.bf16.mxu0 0
        %1987 = vmatpush2.bf16.msra.mxu0 0
        %1988 = vmatprep.subr.bf16.mxu0 0
        %1989 = vmatpush2.bf16.msra.mxu0 0
        %1990 = vmatprep.subr.bf16.mxu0 0
        %1991 = vmatpush2.bf16.msra.mxu0 0
        %1992 = vmatprep.subr.bf16.mxu0 0
        %1993 = vmatpush2.bf16.msra.mxu0 0
        %1994 = vmatprep.subr.bf16.mxu0 0
        %1995 = vmatpush2.bf16.msra.mxu0 0
        %1996 = vmatprep.subr.bf16.mxu0 0
        %1997 = vmatpush2.bf16.msra.mxu0 0
        %1998 = vmatprep.subr.bf16.mxu0 0
        %1999 = vmatpush2.bf16.msra.mxu0 0
        %2000 = vmatprep.mubr.bf16.mxu0 0
        %2001 = vmatmul.mubr.bf16.gmra.mxu0 %v1881
        %v2002 = vpop.f32.mrf.mxu0
        %v2003 = vadd.f32 %v1918, %v2002
        %v2004 = vpop.f32.mrf.mxu0
        %v2005 = vpop.f32.mrf.mxu0
        %v2006 = vadd.f32 %v1918, %v2005
        %v2007 = vpop.f32.mrf.mxu0
        %2008 = vmatprep.mubr.bf16.mxu0 0
        %2009 = vmatmul.mubr.bf16.gmra.mxu0 %v1882
        %v2010 = vpop.f32.mrf.mxu0
        %v2011 = vadd.f32 %v1918, %v2010
        %v2012 = vpop.f32.mrf.mxu0
        %v2013 = vpop.f32.mrf.mxu0
        %v2014 = vadd.f32 %v1918, %v2013
        %v2015 = vpop.f32.mrf.mxu0
        %2016 = vmatprep.mubr.bf16.mxu0 0
        %2017 = vmatmul.mubr.bf16.gmra.mxu0 %v1883
        %v2018 = vpop.f32.mrf.mxu0
        %v2019 = vadd.f32 %v1918, %v2018
        %v2020 = vpop.f32.mrf.mxu0
        %v2021 = vpop.f32.mrf.mxu0
        %v2022 = vadd.f32 %v1918, %v2021
        %v2023 = vpop.f32.mrf.mxu0
        %2024 = vmatprep.mubr.bf16.mxu0 0
        %2025 = vmatmul.mubr.bf16.gmra.mxu0 %v1884
        %v2026 = vpop.f32.mrf.mxu0
        %v2027 = vadd.f32 %v1918, %v2026
        %v2028 = vpop.f32.mrf.mxu0
        %v2029 = vpop.f32.mrf.mxu0
        %v2030 = vadd.f32 %v1918, %v2029
        %v2031 = vpop.f32.mrf.mxu0
        %2032 = vmatprep.mubr.bf16.mxu0 0
        %2033 = vmatmul.mubr.bf16.gmra.mxu0 %v1885
        %v2034 = vpop.f32.mrf.mxu0
        %v2035 = vadd.f32 %v1918, %v2034
        %v2036 = vpop.f32.mrf.mxu0
        %v2037 = vpop.f32.mrf.mxu0
        %v2038 = vadd.f32 %v1918, %v2037
        %v2039 = vpop.f32.mrf.mxu0
        %2040 = vmatprep.mubr.bf16.mxu0 0
        %2041 = vmatmul.mubr.bf16.gmra.mxu0 %v1886
        %v2042 = vpop.f32.mrf.mxu0
        %v2043 = vadd.f32 %v1918, %v2042
        %v2044 = vpop.f32.mrf.mxu0
        %v2045 = vpop.f32.mrf.mxu0
        %v2046 = vadd.f32 %v1918, %v2045
        %v2047 = vpop.f32.mrf.mxu0
        %2048 = vmatprep.mubr.bf16.mxu0 0
        %2049 = vmatmul.mubr.bf16.gmra.mxu0 %v1887
        %v2050 = vpop.f32.mrf.mxu0
        %v2051 = vadd.f32 %v1918, %v2050
        %v2052 = vpop.f32.mrf.mxu0
        %v2053 = vpop.f32.mrf.mxu0
        %v2054 = vadd.f32 %v1918, %v2053
        %v2055 = vpop.f32.mrf.mxu0
        %2056 = vmatprep.mubr.bf16.mxu0 0
        %2057 = vmatmul.mubr.bf16.gmra.mxu0 %v1888
        %v2058 = vpop.f32.mrf.mxu0
        %v2059 = vadd.f32 %v1918, %v2058
        %v2060 = vpop.f32.mrf.mxu0
        %v2061 = vpop.f32.mrf.mxu0
        %v2062 = vadd.f32 %v1918, %v2061
        %v2063 = vpop.f32.mrf.mxu0
        %2064 = vmatprep.mubr.bf16.mxu0 0
        %2065 = vmatmul.mubr.bf16.gmra.mxu0 %v1889
        %v2066 = vpop.f32.mrf.mxu0
        %v2067 = vadd.f32 %v1918, %v2066
        %v2068 = vpop.f32.mrf.mxu0
        %v2069 = vpop.f32.mrf.mxu0
        %v2070 = vadd.f32 %v1918, %v2069
        %v2071 = vpop.f32.mrf.mxu0
        %2072 = vmatprep.mubr.bf16.mxu0 0
        %2073 = vmatmul.mubr.bf16.gmra.mxu0 %v1890
        %v2074 = vpop.f32.mrf.mxu0
        %v2075 = vadd.f32 %v1918, %v2074
        %v2076 = vpop.f32.mrf.mxu0
        %v2077 = vpop.f32.mrf.mxu0
        %v2078 = vadd.f32 %v1918, %v2077
        %v2079 = vpop.f32.mrf.mxu0
        %2080 = vmatprep.mubr.bf16.mxu0 0
        %2081 = vmatmul.mubr.bf16.gmra.mxu0 %v1891
        %v2082 = vpop.f32.mrf.mxu0
        %v2083 = vadd.f32 %v1918, %v2082
        %v2084 = vpop.f32.mrf.mxu0
        %v2085 = vpop.f32.mrf.mxu0
        %v2086 = vadd.f32 %v1918, %v2085
        %v2087 = vpop.f32.mrf.mxu0
        %2088 = vmatprep.mubr.bf16.mxu0 0
        %2089 = vmatmul.mubr.bf16.gmra.mxu0 %v1892
        %v2090 = vpop.f32.mrf.mxu0
        %v2091 = vadd.f32 %v1918, %v2090
        %v2092 = vpop.f32.mrf.mxu0
        %v2093 = vpop.f32.mrf.mxu0
        %v2094 = vadd.f32 %v1918, %v2093
        %v2095 = vpop.f32.mrf.mxu0
        %2096 = vmatprep.mubr.bf16.mxu0 0
        %2097 = vmatmul.mubr.bf16.gmra.mxu0 %v1893
        %v2098 = vpop.f32.mrf.mxu0
        %v2099 = vadd.f32 %v1918, %v2098
        %v2100 = vpop.f32.mrf.mxu0
        %v2101 = vpop.f32.mrf.mxu0
        %v2102 = vadd.f32 %v1918, %v2101
        %v2103 = vpop.f32.mrf.mxu0
        %2104 = vmatprep.mubr.bf16.mxu0 0
        %2105 = vmatmul.mubr.bf16.gmra.mxu0 %v1894
        %v2106 = vpop.f32.mrf.mxu0
        %v2107 = vadd.f32 %v1918, %v2106
        %v2108 = vpop.f32.mrf.mxu0
        %v2109 = vpop.f32.mrf.mxu0
        %v2110 = vadd.f32 %v1918, %v2109
        %v2111 = vpop.f32.mrf.mxu0
        %2112 = vmatprep.mubr.bf16.mxu0 0
        %2113 = vmatmul.mubr.bf16.gmra.mxu0 %v1895
        %v2114 = vpop.f32.mrf.mxu0
        %v2115 = vadd.f32 %v1918, %v2114
        %v2116 = vpop.f32.mrf.mxu0
        %v2117 = vpop.f32.mrf.mxu0
        %v2118 = vadd.f32 %v1918, %v2117
        %v2119 = vpop.f32.mrf.mxu0
        %2120 = vmatprep.mubr.bf16.mxu0 0
        %2121 = vmatmul.mubr.bf16.gmra.mxu0 %v1896
        %v2122 = vpop.f32.mrf.mxu0
        %v2123 = vadd.f32 %v1918, %v2122
        %v2124 = vpop.f32.mrf.mxu0
        %v2125 = vpop.f32.mrf.mxu0
        %v2126 = vadd.f32 %v1918, %v2125
        %v2127 = vpop.f32.mrf.mxu0
        %2128 = vdwg.mxu0
        %v2129 = vld [vmem:[%s9] sm:$0x1]
        %v2130 = vld [vmem:[%s10] sm:$0x1]
        %2131 = vadd.xlane.f32.xlu0 %v2003
        %v2132 = vpop.xlane.xlu0 %2131
        %2133 = vadd.xlane.f32.xlu0 %v2006
        %v2134 = vpop.xlane.xlu0 %2133
        %2135 = vadd.xlane.f32.xlu0 %v2011
        %v2136 = vpop.xlane.xlu0 %2135
        %2137 = vadd.xlane.f32.xlu0 %v2014
        %v2138 = vpop.xlane.xlu0 %2137
        %2139 = vadd.xlane.f32.xlu0 %v2019
        %v2140 = vpop.xlane.xlu0 %2139
        %2141 = vadd.xlane.f32.xlu0 %v2022
        %v2142 = vpop.xlane.xlu0 %2141
        %2143 = vadd.xlane.f32.xlu0 %v2027
        %v2144 = vpop.xlane.xlu0 %2143
        %2145 = vadd.xlane.f32.xlu0 %v2030
        %v2146 = vpop.xlane.xlu0 %2145
        %2147 = vadd.xlane.f32.xlu0 %v2035
        %v2148 = vpop.xlane.xlu0 %2147
        %2149 = vadd.xlane.f32.xlu0 %v2038
        %v2150 = vpop.xlane.xlu0 %2149
        %2151 = vadd.xlane.f32.xlu0 %v2043
        %v2152 = vpop.xlane.xlu0 %2151
        %2153 = vadd.xlane.f32.xlu0 %v2046
        %v2154 = vpop.xlane.xlu0 %2153
        %2155 = vadd.xlane.f32.xlu0 %v2051
        %v2156 = vpop.xlane.xlu0 %2155
        %2157 = vadd.xlane.f32.xlu0 %v2054
        %v2158 = vpop.xlane.xlu0 %2157
        %2159 = vadd.xlane.f32.xlu0 %v2059
        %v2160 = vpop.xlane.xlu0 %2159
        %2161 = vadd.xlane.f32.xlu0 %v2062
        %v2162 = vpop.xlane.xlu0 %2161
        %2163 = vadd.xlane.f32.xlu0 %v2067
        %v2164 = vpop.xlane.xlu0 %2163
        %2165 = vadd.xlane.f32.xlu0 %v2070
        %v2166 = vpop.xlane.xlu0 %2165
        %2167 = vadd.xlane.f32.xlu0 %v2075
        %v2168 = vpop.xlane.xlu0 %2167
        %2169 = vadd.xlane.f32.xlu0 %v2078
        %v2170 = vpop.xlane.xlu0 %2169
        %2171 = vadd.xlane.f32.xlu0 %v2083
        %v2172 = vpop.xlane.xlu0 %2171
        %2173 = vadd.xlane.f32.xlu0 %v2086
        %v2174 = vpop.xlane.xlu0 %2173
        %2175 = vadd.xlane.f32.xlu0 %v2091
        %v2176 = vpop.xlane.xlu0 %2175
        %2177 = vadd.xlane.f32.xlu0 %v2094
        %v2178 = vpop.xlane.xlu0 %2177
        %2179 = vadd.xlane.f32.xlu0 %v2099
        %v2180 = vpop.xlane.xlu0 %2179
        %2181 = vadd.xlane.f32.xlu0 %v2102
        %v2182 = vpop.xlane.xlu0 %2181
        %2183 = vadd.xlane.f32.xlu0 %v2107
        %v2184 = vpop.xlane.xlu0 %2183
        %2185 = vadd.xlane.f32.xlu0 %v2110
        %v2186 = vpop.xlane.xlu0 %2185
        %2187 = vadd.xlane.f32.xlu0 %v2115
        %v2188 = vpop.xlane.xlu0 %2187
        %2189 = vadd.xlane.f32.xlu0 %v2118
        %v2190 = vpop.xlane.xlu0 %2189
        %2191 = vadd.xlane.f32.xlu0 %v2123
        %v2192 = vpop.xlane.xlu0 %2191
        %2193 = vadd.xlane.f32.xlu0 %v2126
        %v2194 = vpop.xlane.xlu0 %2193
        %v2195 = vmul.f32 %v2132, %v1228
        %v2196 = vmul.f32 %v2134, %v1228
        %v2197 = vmul.f32 %v2136, %v1228
        %v2198 = vmul.f32 %v2138, %v1228
        %v2199 = vmul.f32 %v2140, %v1228
        %v2200 = vmul.f32 %v2142, %v1228
        %v2201 = vmul.f32 %v2144, %v1228
        %v2202 = vmul.f32 %v2146, %v1228
        %v2203 = vmul.f32 %v2148, %v1228
        %v2204 = vmul.f32 %v2150, %v1228
        %v2205 = vmul.f32 %v2152, %v1228
        %v2206 = vmul.f32 %v2154, %v1228
        %v2207 = vmul.f32 %v2156, %v1228
        %v2208 = vmul.f32 %v2158, %v1228
        %v2209 = vmul.f32 %v2160, %v1228
        %v2210 = vmul.f32 %v2162, %v1228
        %v2211 = vmul.f32 %v2164, %v1228
        %v2212 = vmul.f32 %v2166, %v1228
        %v2213 = vmul.f32 %v2168, %v1228
        %v2214 = vmul.f32 %v2170, %v1228
        %v2215 = vmul.f32 %v2172, %v1228
        %v2216 = vmul.f32 %v2174, %v1228
        %v2217 = vmul.f32 %v2176, %v1228
        %v2218 = vmul.f32 %v2178, %v1228
        %v2219 = vmul.f32 %v2180, %v1228
        %v2220 = vmul.f32 %v2182, %v1228
        %v2221 = vmul.f32 %v2184, %v1228
        %v2222 = vmul.f32 %v2186, %v1228
        %v2223 = vmul.f32 %v2188, %v1228
        %v2224 = vmul.f32 %v2190, %v1228
        %v2225 = vmul.f32 %v2192, %v1228
        %v2226 = vmul.f32 %v2194, %v1228
        %v2227 = vsub.f32 %v2003, %v2195
        %v2228 = vsub.f32 %v2006, %v2196
        %v2229 = vsub.f32 %v2011, %v2197
        %v2230 = vsub.f32 %v2014, %v2198
        %v2231 = vsub.f32 %v2019, %v2199
        %v2232 = vsub.f32 %v2022, %v2200
        %v2233 = vsub.f32 %v2027, %v2201
        %v2234 = vsub.f32 %v2030, %v2202
        %v2235 = vsub.f32 %v2035, %v2203
        %v2236 = vsub.f32 %v2038, %v2204
        %v2237 = vsub.f32 %v2043, %v2205
        %v2238 = vsub.f32 %v2046, %v2206
        %v2239 = vsub.f32 %v2051, %v2207
        %v2240 = vsub.f32 %v2054, %v2208
        %v2241 = vsub.f32 %v2059, %v2209
        %v2242 = vsub.f32 %v2062, %v2210
        %v2243 = vsub.f32 %v2067, %v2211
        %v2244 = vsub.f32 %v2070, %v2212
        %v2245 = vsub.f32 %v2075, %v2213
        %v2246 = vsub.f32 %v2078, %v2214
        %v2247 = vsub.f32 %v2083, %v2215
        %v2248 = vsub.f32 %v2086, %v2216
        %v2249 = vsub.f32 %v2091, %v2217
        %v2250 = vsub.f32 %v2094, %v2218
        %v2251 = vsub.f32 %v2099, %v2219
        %v2252 = vsub.f32 %v2102, %v2220
        %v2253 = vsub.f32 %v2107, %v2221
        %v2254 = vsub.f32 %v2110, %v2222
        %v2255 = vsub.f32 %v2115, %v2223
        %v2256 = vsub.f32 %v2118, %v2224
        %v2257 = vsub.f32 %v2123, %v2225
        %v2258 = vsub.f32 %v2126, %v2226
        %v2259 = vmul.f32 %v2227, %v2227
        %v2260 = vmul.f32 %v2228, %v2228
        %v2261 = vmul.f32 %v2229, %v2229
        %v2262 = vmul.f32 %v2230, %v2230
        %v2263 = vmul.f32 %v2231, %v2231
        %v2264 = vmul.f32 %v2232, %v2232
        %v2265 = vmul.f32 %v2233, %v2233
        %v2266 = vmul.f32 %v2234, %v2234
        %v2267 = vmul.f32 %v2235, %v2235
        %v2268 = vmul.f32 %v2236, %v2236
        %v2269 = vmul.f32 %v2237, %v2237
        %v2270 = vmul.f32 %v2238, %v2238
        %v2271 = vmul.f32 %v2239, %v2239
        %v2272 = vmul.f32 %v2240, %v2240
        %v2273 = vmul.f32 %v2241, %v2241
        %v2274 = vmul.f32 %v2242, %v2242
        %v2275 = vmul.f32 %v2243, %v2243
        %v2276 = vmul.f32 %v2244, %v2244
        %v2277 = vmul.f32 %v2245, %v2245
        %v2278 = vmul.f32 %v2246, %v2246
        %v2279 = vmul.f32 %v2247, %v2247
        %v2280 = vmul.f32 %v2248, %v2248
        %v2281 = vmul.f32 %v2249, %v2249
        %v2282 = vmul.f32 %v2250, %v2250
        %v2283 = vmul.f32 %v2251, %v2251
        %v2284 = vmul.f32 %v2252, %v2252
        %v2285 = vmul.f32 %v2253, %v2253
        %v2286 = vmul.f32 %v2254, %v2254
        %v2287 = vmul.f32 %v2255, %v2255
        %v2288 = vmul.f32 %v2256, %v2256
        %v2289 = vmul.f32 %v2257, %v2257
        %v2290 = vmul.f32 %v2258, %v2258
        %2291 = vadd.xlane.f32.xlu0 %v2259
        %v2292 = vpop.xlane.xlu0 %2291
        %2293 = vadd.xlane.f32.xlu0 %v2260
        %v2294 = vpop.xlane.xlu0 %2293
        %2295 = vadd.xlane.f32.xlu0 %v2261
        %v2296 = vpop.xlane.xlu0 %2295
        %2297 = vadd.xlane.f32.xlu0 %v2262
        %v2298 = vpop.xlane.xlu0 %2297
        %2299 = vadd.xlane.f32.xlu0 %v2263
        %v2300 = vpop.xlane.xlu0 %2299
        %2301 = vadd.xlane.f32.xlu0 %v2264
        %v2302 = vpop.xlane.xlu0 %2301
        %2303 = vadd.xlane.f32.xlu0 %v2265
        %v2304 = vpop.xlane.xlu0 %2303
        %2305 = vadd.xlane.f32.xlu0 %v2266
        %v2306 = vpop.xlane.xlu0 %2305
        %2307 = vadd.xlane.f32.xlu0 %v2267
        %v2308 = vpop.xlane.xlu0 %2307
        %2309 = vadd.xlane.f32.xlu0 %v2268
        %v2310 = vpop.xlane.xlu0 %2309
        %2311 = vadd.xlane.f32.xlu0 %v2269
        %v2312 = vpop.xlane.xlu0 %2311
        %2313 = vadd.xlane.f32.xlu0 %v2270
        %v2314 = vpop.xlane.xlu0 %2313
        %2315 = vadd.xlane.f32.xlu0 %v2271
        %v2316 = vpop.xlane.xlu0 %2315
        %2317 = vadd.xlane.f32.xlu0 %v2272
        %v2318 = vpop.xlane.xlu0 %2317
        %2319 = vadd.xlane.f32.xlu0 %v2273
        %v2320 = vpop.xlane.xlu0 %2319
        %2321 = vadd.xlane.f32.xlu0 %v2274
        %v2322 = vpop.xlane.xlu0 %2321
        %2323 = vadd.xlane.f32.xlu0 %v2275
        %v2324 = vpop.xlane.xlu0 %2323
        %2325 = vadd.xlane.f32.xlu0 %v2276
        %v2326 = vpop.xlane.xlu0 %2325
        %2327 = vadd.xlane.f32.xlu0 %v2277
        %v2328 = vpop.xlane.xlu0 %2327
        %2329 = vadd.xlane.f32.xlu0 %v2278
        %v2330 = vpop.xlane.xlu0 %2329
        %2331 = vadd.xlane.f32.xlu0 %v2279
        %v2332 = vpop.xlane.xlu0 %2331
        %2333 = vadd.xlane.f32.xlu0 %v2280
        %v2334 = vpop.xlane.xlu0 %2333
        %2335 = vadd.xlane.f32.xlu0 %v2281
        %v2336 = vpop.xlane.xlu0 %2335
        %2337 = vadd.xlane.f32.xlu0 %v2282
        %v2338 = vpop.xlane.xlu0 %2337
        %2339 = vadd.xlane.f32.xlu0 %v2283
        %v2340 = vpop.xlane.xlu0 %2339
        %2341 = vadd.xlane.f32.xlu0 %v2284
        %v2342 = vpop.xlane.xlu0 %2341
        %2343 = vadd.xlane.f32.xlu0 %v2285
        %v2344 = vpop.xlane.xlu0 %2343
        %2345 = vadd.xlane.f32.xlu0 %v2286
        %v2346 = vpop.xlane.xlu0 %2345
        %2347 = vadd.xlane.f32.xlu0 %v2287
        %v2348 = vpop.xlane.xlu0 %2347
        %2349 = vadd.xlane.f32.xlu0 %v2288
        %v2350 = vpop.xlane.xlu0 %2349
        %2351 = vadd.xlane.f32.xlu0 %v2289
        %v2352 = vpop.xlane.xlu0 %2351
        %2353 = vadd.xlane.f32.xlu0 %v2290
        %v2354 = vpop.xlane.xlu0 %2353
        %v2355 = vmul.f32 %v2292, %v1228
        %v2356 = vmul.f32 %v2294, %v1228
        %v2357 = vmul.f32 %v2296, %v1228
        %v2358 = vmul.f32 %v2298, %v1228
        %v2359 = vmul.f32 %v2300, %v1228
        %v2360 = vmul.f32 %v2302, %v1228
        %v2361 = vmul.f32 %v2304, %v1228
        %v2362 = vmul.f32 %v2306, %v1228
        %v2363 = vmul.f32 %v2308, %v1228
        %v2364 = vmul.f32 %v2310, %v1228
        %v2365 = vmul.f32 %v2312, %v1228
        %v2366 = vmul.f32 %v2314, %v1228
        %v2367 = vmul.f32 %v2316, %v1228
        %v2368 = vmul.f32 %v2318, %v1228
        %v2369 = vmul.f32 %v2320, %v1228
        %v2370 = vmul.f32 %v2322, %v1228
        %v2371 = vmul.f32 %v2324, %v1228
        %v2372 = vmul.f32 %v2326, %v1228
        %v2373 = vmul.f32 %v2328, %v1228
        %v2374 = vmul.f32 %v2330, %v1228
        %v2375 = vmul.f32 %v2332, %v1228
        %v2376 = vmul.f32 %v2334, %v1228
        %v2377 = vmul.f32 %v2336, %v1228
        %v2378 = vmul.f32 %v2338, %v1228
        %v2379 = vmul.f32 %v2340, %v1228
        %v2380 = vmul.f32 %v2342, %v1228
        %v2381 = vmul.f32 %v2344, %v1228
        %v2382 = vmul.f32 %v2346, %v1228
        %v2383 = vmul.f32 %v2348, %v1228
        %v2384 = vmul.f32 %v2350, %v1228
        %v2385 = vmul.f32 %v2352, %v1228
        %v2386 = vmul.f32 %v2354, %v1228
        %v2387 = vadd.f32 %v2355, 1e-05
        %v2388 = vadd.f32 %v2356, 1e-05
        %v2389 = vadd.f32 %v2357, 1e-05
        %v2390 = vadd.f32 %v2358, 1e-05
        %v2391 = vadd.f32 %v2359, 1e-05
        %v2392 = vadd.f32 %v2360, 1e-05
        %v2393 = vadd.f32 %v2361, 1e-05
        %v2394 = vadd.f32 %v2362, 1e-05
        %v2395 = vadd.f32 %v2363, 1e-05
        %v2396 = vadd.f32 %v2364, 1e-05
        %v2397 = vadd.f32 %v2365, 1e-05
        %v2398 = vadd.f32 %v2366, 1e-05
        %v2399 = vadd.f32 %v2367, 1e-05
        %v2400 = vadd.f32 %v2368, 1e-05
        %v2401 = vadd.f32 %v2369, 1e-05
        %v2402 = vadd.f32 %v2370, 1e-05
        %v2403 = vadd.f32 %v2371, 1e-05
        %v2404 = vadd.f32 %v2372, 1e-05
        %v2405 = vadd.f32 %v2373, 1e-05
        %v2406 = vadd.f32 %v2374, 1e-05
        %v2407 = vadd.f32 %v2375, 1e-05
        %v2408 = vadd.f32 %v2376, 1e-05
        %v2409 = vadd.f32 %v2377, 1e-05
        %v2410 = vadd.f32 %v2378, 1e-05
        %v2411 = vadd.f32 %v2379, 1e-05
        %v2412 = vadd.f32 %v2380, 1e-05
        %v2413 = vadd.f32 %v2381, 1e-05
        %v2414 = vadd.f32 %v2382, 1e-05
        %v2415 = vadd.f32 %v2383, 1e-05
        %v2416 = vadd.f32 %v2384, 1e-05
        %v2417 = vadd.f32 %v2385, 1e-05
        %v2418 = vadd.f32 %v2386, 1e-05
        %v2419 = vrsqrt.pop %v2387
        %v2420 = vrsqrt.pop %v2388
        %v2421 = vrsqrt.pop %v2389
        %v2422 = vrsqrt.pop %v2390
        %v2423 = vrsqrt.pop %v2391
        %v2424 = vrsqrt.pop %v2392
        %v2425 = vrsqrt.pop %v2393
        %v2426 = vrsqrt.pop %v2394
        %v2427 = vrsqrt.pop %v2395
        %v2428 = vrsqrt.pop %v2396
        %v2429 = vrsqrt.pop %v2397
        %v2430 = vrsqrt.pop %v2398
        %v2431 = vrsqrt.pop %v2399
        %v2432 = vrsqrt.pop %v2400
        %v2433 = vrsqrt.pop %v2401
        %v2434 = vrsqrt.pop %v2402
        %v2435 = vrsqrt.pop %v2403
        %v2436 = vrsqrt.pop %v2404
        %v2437 = vrsqrt.pop %v2405
        %v2438 = vrsqrt.pop %v2406
        %v2439 = vrsqrt.pop %v2407
        %v2440 = vrsqrt.pop %v2408
        %v2441 = vrsqrt.pop %v2409
        %v2442 = vrsqrt.pop %v2410
        %v2443 = vrsqrt.pop %v2411
        %v2444 = vrsqrt.pop %v2412
        %v2445 = vrsqrt.pop %v2413
        %v2446 = vrsqrt.pop %v2414
        %v2447 = vrsqrt.pop %v2415
        %v2448 = vrsqrt.pop %v2416
        %v2449 = vrsqrt.pop %v2417
        %v2450 = vrsqrt.pop %v2418
        %v2451 = vmul.f32 %v2227, %v2419
        %v2452 = vmul.f32 %v2228, %v2420
        %v2453 = vmul.f32 %v2229, %v2421
        %v2454 = vmul.f32 %v2230, %v2422
        %v2455 = vmul.f32 %v2231, %v2423
        %v2456 = vmul.f32 %v2232, %v2424
        %v2457 = vmul.f32 %v2233, %v2425
        %v2458 = vmul.f32 %v2234, %v2426
        %v2459 = vmul.f32 %v2235, %v2427
        %v2460 = vmul.f32 %v2236, %v2428
        %v2461 = vmul.f32 %v2237, %v2429
        %v2462 = vmul.f32 %v2238, %v2430
        %v2463 = vmul.f32 %v2239, %v2431
        %v2464 = vmul.f32 %v2240, %v2432
        %v2465 = vmul.f32 %v2241, %v2433
        %v2466 = vmul.f32 %v2242, %v2434
        %v2467 = vmul.f32 %v2243, %v2435
        %v2468 = vmul.f32 %v2244, %v2436
        %v2469 = vmul.f32 %v2245, %v2437
        %v2470 = vmul.f32 %v2246, %v2438
        %v2471 = vmul.f32 %v2247, %v2439
        %v2472 = vmul.f32 %v2248, %v2440
        %v2473 = vmul.f32 %v2249, %v2441
        %v2474 = vmul.f32 %v2250, %v2442
        %v2475 = vmul.f32 %v2251, %v2443
        %v2476 = vmul.f32 %v2252, %v2444
        %v2477 = vmul.f32 %v2253, %v2445
        %v2478 = vmul.f32 %v2254, %v2446
        %v2479 = vmul.f32 %v2255, %v2447
        %v2480 = vmul.f32 %v2256, %v2448
        %v2481 = vmul.f32 %v2257, %v2449
        %v2482 = vmul.f32 %v2258, %v2450
        %v2484 = vlaneseq
        %v2485 = vshrl.u32 %v2484, 7
        %v2486 = vsub.s32 0, %v2485
        %v2487 = vrot.slane %v2129, %v2486
        %v2489 = vmul.f32 %v2451, %v2487
        %v2490 = vmul.f32 %v2452, %v2487
        %v2491 = vmul.f32 %v2453, %v2487
        %v2492 = vmul.f32 %v2454, %v2487
        %v2493 = vmul.f32 %v2455, %v2487
        %v2494 = vmul.f32 %v2456, %v2487
        %v2495 = vmul.f32 %v2457, %v2487
        %v2496 = vmul.f32 %v2458, %v2487
        %v2497 = vmul.f32 %v2459, %v2487
        %v2498 = vmul.f32 %v2460, %v2487
        %v2499 = vmul.f32 %v2461, %v2487
        %v2500 = vmul.f32 %v2462, %v2487
        %v2501 = vmul.f32 %v2463, %v2487
        %v2502 = vmul.f32 %v2464, %v2487
        %v2503 = vmul.f32 %v2465, %v2487
        %v2504 = vmul.f32 %v2466, %v2487
        %v2505 = vmul.f32 %v2467, %v2487
        %v2506 = vmul.f32 %v2468, %v2487
        %v2507 = vmul.f32 %v2469, %v2487
        %v2508 = vmul.f32 %v2470, %v2487
        %v2509 = vmul.f32 %v2471, %v2487
        %v2510 = vmul.f32 %v2472, %v2487
        %v2511 = vmul.f32 %v2473, %v2487
        %v2512 = vmul.f32 %v2474, %v2487
        %v2513 = vmul.f32 %v2475, %v2487
        %v2514 = vmul.f32 %v2476, %v2487
        %v2515 = vmul.f32 %v2477, %v2487
        %v2516 = vmul.f32 %v2478, %v2487
        %v2517 = vmul.f32 %v2479, %v2487
        %v2518 = vmul.f32 %v2480, %v2487
        %v2519 = vmul.f32 %v2481, %v2487
        %v2520 = vmul.f32 %v2482, %v2487
        %v2522 = vlaneseq
        %v2523 = vshrl.u32 %v2522, 7
        %v2524 = vsub.s32 0, %v2523
        %v2525 = vrot.slane %v2130, %v2524
        %v2527 = vadd.f32 %v2489, %v2525
        %v2528 = vadd.f32 %v2490, %v2525
        %v2529 = vadd.f32 %v2491, %v2525
        %v2530 = vadd.f32 %v2492, %v2525
        %v2531 = vadd.f32 %v2493, %v2525
        %v2532 = vadd.f32 %v2494, %v2525
        %v2533 = vadd.f32 %v2495, %v2525
        %v2534 = vadd.f32 %v2496, %v2525
        %v2535 = vadd.f32 %v2497, %v2525
        %v2536 = vadd.f32 %v2498, %v2525
        %v2537 = vadd.f32 %v2499, %v2525
        %v2538 = vadd.f32 %v2500, %v2525
        %v2539 = vadd.f32 %v2501, %v2525
        %v2540 = vadd.f32 %v2502, %v2525
        %v2541 = vadd.f32 %v2503, %v2525
        %v2542 = vadd.f32 %v2504, %v2525
        %v2543 = vadd.f32 %v2505, %v2525
        %v2544 = vadd.f32 %v2506, %v2525
        %v2545 = vadd.f32 %v2507, %v2525
        %v2546 = vadd.f32 %v2508, %v2525
        %v2547 = vadd.f32 %v2509, %v2525
        %v2548 = vadd.f32 %v2510, %v2525
        %v2549 = vadd.f32 %v2511, %v2525
        %v2550 = vadd.f32 %v2512, %v2525
        %v2551 = vadd.f32 %v2513, %v2525
        %v2552 = vadd.f32 %v2514, %v2525
        %v2553 = vadd.f32 %v2515, %v2525
        %v2554 = vadd.f32 %v2516, %v2525
        %v2555 = vadd.f32 %v2517, %v2525
        %v2556 = vadd.f32 %v2518, %v2525
        %v2557 = vadd.f32 %v2519, %v2525
        %v2558 = vadd.f32 %v2520, %v2525
        %v2559 = vmul.f32 %v2527, 0.5
        %v2560 = vmul.f32 %v2528, 0.5
        %v2561 = vmul.f32 %v2529, 0.5
        %v2562 = vmul.f32 %v2530, 0.5
        %v2563 = vmul.f32 %v2531, 0.5
        %v2564 = vmul.f32 %v2532, 0.5
        %v2565 = vmul.f32 %v2533, 0.5
        %v2566 = vmul.f32 %v2534, 0.5
        %v2567 = vmul.f32 %v2535, 0.5
        %v2568 = vmul.f32 %v2536, 0.5
        %v2569 = vmul.f32 %v2537, 0.5
        %v2570 = vmul.f32 %v2538, 0.5
        %v2571 = vmul.f32 %v2539, 0.5
        %v2572 = vmul.f32 %v2540, 0.5
        %v2573 = vmul.f32 %v2541, 0.5
        %v2574 = vmul.f32 %v2542, 0.5
        %v2575 = vmul.f32 %v2543, 0.5
        %v2576 = vmul.f32 %v2544, 0.5
        %v2577 = vmul.f32 %v2545, 0.5
        %v2578 = vmul.f32 %v2546, 0.5
        %v2579 = vmul.f32 %v2547, 0.5
        %v2580 = vmul.f32 %v2548, 0.5
        %v2581 = vmul.f32 %v2549, 0.5
        %v2582 = vmul.f32 %v2550, 0.5
        %v2583 = vmul.f32 %v2551, 0.5
        %v2584 = vmul.f32 %v2552, 0.5
        %v2585 = vmul.f32 %v2553, 0.5
        %v2586 = vmul.f32 %v2554, 0.5
        %v2587 = vmul.f32 %v2555, 0.5
        %v2588 = vmul.f32 %v2556, 0.5
        %v2589 = vmul.f32 %v2557, 0.5
        %v2590 = vmul.f32 %v2558, 0.5
        %v2591 = vmul.f32 %v2527, 0.044715
        %v2592 = vmul.f32 %v2528, 0.044715
        %v2593 = vmul.f32 %v2529, 0.044715
        %v2594 = vmul.f32 %v2530, 0.044715
        %v2595 = vmul.f32 %v2531, 0.044715
        %v2596 = vmul.f32 %v2532, 0.044715
        %v2597 = vmul.f32 %v2533, 0.044715
        %v2598 = vmul.f32 %v2534, 0.044715
        %v2599 = vmul.f32 %v2535, 0.044715
        %v2600 = vmul.f32 %v2536, 0.044715
        %v2601 = vmul.f32 %v2537, 0.044715
        %v2602 = vmul.f32 %v2538, 0.044715
        %v2603 = vmul.f32 %v2539, 0.044715
        %v2604 = vmul.f32 %v2540, 0.044715
        %v2605 = vmul.f32 %v2541, 0.044715
        %v2606 = vmul.f32 %v2542, 0.044715
        %v2607 = vmul.f32 %v2543, 0.044715
        %v2608 = vmul.f32 %v2544, 0.044715
        %v2609 = vmul.f32 %v2545, 0.044715
        %v2610 = vmul.f32 %v2546, 0.044715
        %v2611 = vmul.f32 %v2547, 0.044715
        %v2612 = vmul.f32 %v2548, 0.044715
        %v2613 = vmul.f32 %v2549, 0.044715
        %v2614 = vmul.f32 %v2550, 0.044715
        %v2615 = vmul.f32 %v2551, 0.044715
        %v2616 = vmul.f32 %v2552, 0.044715
        %v2617 = vmul.f32 %v2553, 0.044715
        %v2618 = vmul.f32 %v2554, 0.044715
        %v2619 = vmul.f32 %v2555, 0.044715
        %v2620 = vmul.f32 %v2556, 0.044715
        %v2621 = vmul.f32 %v2557, 0.044715
        %v2622 = vmul.f32 %v2558, 0.044715
        %v2623 = vmul.f32 %v2591, %v2527
        %v2624 = vmul.f32 %v2592, %v2528
        %v2625 = vmul.f32 %v2593, %v2529
        %v2626 = vmul.f32 %v2594, %v2530
        %v2627 = vmul.f32 %v2595, %v2531
        %v2628 = vmul.f32 %v2596, %v2532
        %v2629 = vmul.f32 %v2597, %v2533
        %v2630 = vmul.f32 %v2598, %v2534
        %v2631 = vmul.f32 %v2599, %v2535
        %v2632 = vmul.f32 %v2600, %v2536
        %v2633 = vmul.f32 %v2601, %v2537
        %v2634 = vmul.f32 %v2602, %v2538
        %v2635 = vmul.f32 %v2603, %v2539
        %v2636 = vmul.f32 %v2604, %v2540
        %v2637 = vmul.f32 %v2605, %v2541
        %v2638 = vmul.f32 %v2606, %v2542
        %v2639 = vmul.f32 %v2607, %v2543
        %v2640 = vmul.f32 %v2608, %v2544
        %v2641 = vmul.f32 %v2609, %v2545
        %v2642 = vmul.f32 %v2610, %v2546
        %v2643 = vmul.f32 %v2611, %v2547
        %v2644 = vmul.f32 %v2612, %v2548
        %v2645 = vmul.f32 %v2613, %v2549
        %v2646 = vmul.f32 %v2614, %v2550
        %v2647 = vmul.f32 %v2615, %v2551
        %v2648 = vmul.f32 %v2616, %v2552
        %v2649 = vmul.f32 %v2617, %v2553
        %v2650 = vmul.f32 %v2618, %v2554
        %v2651 = vmul.f32 %v2619, %v2555
        %v2652 = vmul.f32 %v2620, %v2556
        %v2653 = vmul.f32 %v2621, %v2557
        %v2654 = vmul.f32 %v2622, %v2558
        %v2655 = vmul.f32 %v2623, %v2527
        %v2656 = vmul.f32 %v2624, %v2528
        %v2657 = vmul.f32 %v2625, %v2529
        %v2658 = vmul.f32 %v2626, %v2530
        %v2659 = vmul.f32 %v2627, %v2531
        %v2660 = vmul.f32 %v2628, %v2532
        %v2661 = vmul.f32 %v2629, %v2533
        %v2662 = vmul.f32 %v2630, %v2534
        %v2663 = vmul.f32 %v2631, %v2535
        %v2664 = vmul.f32 %v2632, %v2536
        %v2665 = vmul.f32 %v2633, %v2537
        %v2666 = vmul.f32 %v2634, %v2538
        %v2667 = vmul.f32 %v2635, %v2539
        %v2668 = vmul.f32 %v2636, %v2540
        %v2669 = vmul.f32 %v2637, %v2541
        %v2670 = vmul.f32 %v2638, %v2542
        %v2671 = vmul.f32 %v2639, %v2543
        %v2672 = vmul.f32 %v2640, %v2544
        %v2673 = vmul.f32 %v2641, %v2545
        %v2674 = vmul.f32 %v2642, %v2546
        %v2675 = vmul.f32 %v2643, %v2547
        %v2676 = vmul.f32 %v2644, %v2548
        %v2677 = vmul.f32 %v2645, %v2549
        %v2678 = vmul.f32 %v2646, %v2550
        %v2679 = vmul.f32 %v2647, %v2551
        %v2680 = vmul.f32 %v2648, %v2552
        %v2681 = vmul.f32 %v2649, %v2553
        %v2682 = vmul.f32 %v2650, %v2554
        %v2683 = vmul.f32 %v2651, %v2555
        %v2684 = vmul.f32 %v2652, %v2556
        %v2685 = vmul.f32 %v2653, %v2557
        %v2686 = vmul.f32 %v2654, %v2558
        %v2687 = vadd.f32 %v2527, %v2655
        %v2688 = vadd.f32 %v2528, %v2656
        %v2689 = vadd.f32 %v2529, %v2657
        %v2690 = vadd.f32 %v2530, %v2658
        %v2691 = vadd.f32 %v2531, %v2659
        %v2692 = vadd.f32 %v2532, %v2660
        %v2693 = vadd.f32 %v2533, %v2661
        %v2694 = vadd.f32 %v2534, %v2662
        %v2695 = vadd.f32 %v2535, %v2663
        %v2696 = vadd.f32 %v2536, %v2664
        %v2697 = vadd.f32 %v2537, %v2665
        %v2698 = vadd.f32 %v2538, %v2666
        %v2699 = vadd.f32 %v2539, %v2667
        %v2700 = vadd.f32 %v2540, %v2668
        %v2701 = vadd.f32 %v2541, %v2669
        %v2702 = vadd.f32 %v2542, %v2670
        %v2703 = vadd.f32 %v2543, %v2671
        %v2704 = vadd.f32 %v2544, %v2672
        %v2705 = vadd.f32 %v2545, %v2673
        %v2706 = vadd.f32 %v2546, %v2674
        %v2707 = vadd.f32 %v2547, %v2675
        %v2708 = vadd.f32 %v2548, %v2676
        %v2709 = vadd.f32 %v2549, %v2677
        %v2710 = vadd.f32 %v2550, %v2678
        %v2711 = vadd.f32 %v2551, %v2679
        %v2712 = vadd.f32 %v2552, %v2680
        %v2713 = vadd.f32 %v2553, %v2681
        %v2714 = vadd.f32 %v2554, %v2682
        %v2715 = vadd.f32 %v2555, %v2683
        %v2716 = vadd.f32 %v2556, %v2684
        %v2717 = vadd.f32 %v2557, %v2685
        %v2718 = vadd.f32 %v2558, %v2686
        %v2719 = vmul.f32 %v2687, 0.7978846
        %v2720 = vmul.f32 %v2688, 0.7978846
        %v2721 = vmul.f32 %v2689, 0.7978846
        %v2722 = vmul.f32 %v2690, 0.7978846
        %v2723 = vmul.f32 %v2691, 0.7978846
        %v2724 = vmul.f32 %v2692, 0.7978846
        %v2725 = vmul.f32 %v2693, 0.7978846
        %v2726 = vmul.f32 %v2694, 0.7978846
        %v2727 = vmul.f32 %v2695, 0.7978846
        %v2728 = vmul.f32 %v2696, 0.7978846
        %v2729 = vmul.f32 %v2697, 0.7978846
        %v2730 = vmul.f32 %v2698, 0.7978846
        %v2731 = vmul.f32 %v2699, 0.7978846
        %v2732 = vmul.f32 %v2700, 0.7978846
        %v2733 = vmul.f32 %v2701, 0.7978846
        %v2734 = vmul.f32 %v2702, 0.7978846
        %v2735 = vmul.f32 %v2703, 0.7978846
        %v2736 = vmul.f32 %v2704, 0.7978846
        %v2737 = vmul.f32 %v2705, 0.7978846
        %v2738 = vmul.f32 %v2706, 0.7978846
        %v2739 = vmul.f32 %v2707, 0.7978846
        %v2740 = vmul.f32 %v2708, 0.7978846
        %v2741 = vmul.f32 %v2709, 0.7978846
        %v2742 = vmul.f32 %v2710, 0.7978846
        %v2743 = vmul.f32 %v2711, 0.7978846
        %v2744 = vmul.f32 %v2712, 0.7978846
        %v2745 = vmul.f32 %v2713, 0.7978846
        %v2746 = vmul.f32 %v2714, 0.7978846
        %v2747 = vmul.f32 %v2715, 0.7978846
        %v2748 = vmul.f32 %v2716, 0.7978846
        %v2749 = vmul.f32 %v2717, 0.7978846
        %v2750 = vmul.f32 %v2718, 0.7978846
        %v2751 = vtanh.pop %v2719
        %v2752 = vtanh.pop %v2720
        %v2753 = vtanh.pop %v2721
        %v2754 = vtanh.pop %v2722
        %v2755 = vtanh.pop %v2723
        %v2756 = vtanh.pop %v2724
        %v2757 = vtanh.pop %v2725
        %v2758 = vtanh.pop %v2726
        %v2759 = vtanh.pop %v2727
        %v2760 = vtanh.pop %v2728
        %v2761 = vtanh.pop %v2729
        %v2762 = vtanh.pop %v2730
        %v2763 = vtanh.pop %v2731
        %v2764 = vtanh.pop %v2732
        %v2765 = vtanh.pop %v2733
        %v2766 = vtanh.pop %v2734
        %v2767 = vtanh.pop %v2735
        %v2768 = vtanh.pop %v2736
        %v2769 = vtanh.pop %v2737
        %v2770 = vtanh.pop %v2738
        %v2771 = vtanh.pop %v2739
        %v2772 = vtanh.pop %v2740
        %v2773 = vtanh.pop %v2741
        %v2774 = vtanh.pop %v2742
        %v2775 = vtanh.pop %v2743
        %v2776 = vtanh.pop %v2744
        %v2777 = vtanh.pop %v2745
        %v2778 = vtanh.pop %v2746
        %v2779 = vtanh.pop %v2747
        %v2780 = vtanh.pop %v2748
        %v2781 = vtanh.pop %v2749
        %v2782 = vtanh.pop %v2750
        %v2783 = vadd.f32 %v2751, 1.0
        %v2784 = vadd.f32 %v2752, 1.0
        %v2785 = vadd.f32 %v2753, 1.0
        %v2786 = vadd.f32 %v2754, 1.0
        %v2787 = vadd.f32 %v2755, 1.0
        %v2788 = vadd.f32 %v2756, 1.0
        %v2789 = vadd.f32 %v2757, 1.0
        %v2790 = vadd.f32 %v2758, 1.0
        %v2791 = vadd.f32 %v2759, 1.0
        %v2792 = vadd.f32 %v2760, 1.0
        %v2793 = vadd.f32 %v2761, 1.0
        %v2794 = vadd.f32 %v2762, 1.0
        %v2795 = vadd.f32 %v2763, 1.0
        %v2796 = vadd.f32 %v2764, 1.0
        %v2797 = vadd.f32 %v2765, 1.0
        %v2798 = vadd.f32 %v2766, 1.0
        %v2799 = vadd.f32 %v2767, 1.0
        %v2800 = vadd.f32 %v2768, 1.0
        %v2801 = vadd.f32 %v2769, 1.0
        %v2802 = vadd.f32 %v2770, 1.0
        %v2803 = vadd.f32 %v2771, 1.0
        %v2804 = vadd.f32 %v2772, 1.0
        %v2805 = vadd.f32 %v2773, 1.0
        %v2806 = vadd.f32 %v2774, 1.0
        %v2807 = vadd.f32 %v2775, 1.0
        %v2808 = vadd.f32 %v2776, 1.0
        %v2809 = vadd.f32 %v2777, 1.0
        %v2810 = vadd.f32 %v2778, 1.0
        %v2811 = vadd.f32 %v2779, 1.0
        %v2812 = vadd.f32 %v2780, 1.0
        %v2813 = vadd.f32 %v2781, 1.0
        %v2814 = vadd.f32 %v2782, 1.0
        %v2815 = vmul.f32 %v2559, %v2783
        %v2816 = vmul.f32 %v2560, %v2784
        %v2817 = vmul.f32 %v2561, %v2785
        %v2818 = vmul.f32 %v2562, %v2786
        %v2819 = vmul.f32 %v2563, %v2787
        %v2820 = vmul.f32 %v2564, %v2788
        %v2821 = vmul.f32 %v2565, %v2789
        %v2822 = vmul.f32 %v2566, %v2790
        %v2823 = vmul.f32 %v2567, %v2791
        %v2824 = vmul.f32 %v2568, %v2792
        %v2825 = vmul.f32 %v2569, %v2793
        %v2826 = vmul.f32 %v2570, %v2794
        %v2827 = vmul.f32 %v2571, %v2795
        %v2828 = vmul.f32 %v2572, %v2796
        %v2829 = vmul.f32 %v2573, %v2797
        %v2830 = vmul.f32 %v2574, %v2798
        %v2831 = vmul.f32 %v2575, %v2799
        %v2832 = vmul.f32 %v2576, %v2800
        %v2833 = vmul.f32 %v2577, %v2801
        %v2834 = vmul.f32 %v2578, %v2802
        %v2835 = vmul.f32 %v2579, %v2803
        %v2836 = vmul.f32 %v2580, %v2804
        %v2837 = vmul.f32 %v2581, %v2805
        %v2838 = vmul.f32 %v2582, %v2806
        %v2839 = vmul.f32 %v2583, %v2807
        %v2840 = vmul.f32 %v2584, %v2808
        %v2841 = vmul.f32 %v2585, %v2809
        %v2842 = vmul.f32 %v2586, %v2810
        %v2843 = vmul.f32 %v2587, %v2811
        %v2844 = vmul.f32 %v2588, %v2812
        %v2845 = vmul.f32 %v2589, %v2813
        %v2846 = vmul.f32 %v2590, %v2814
        %v2847 = vld [vmem:[%s451] sm:$0xff]
        %v2848 = vld [vmem:[%s451 + $0x8] sm:$0xff]
        %v2849 = vld [vmem:[%s451 + $0x10] sm:$0xff]
        %v2850 = vld [vmem:[%s451 + $0x18] sm:$0xff]
        %v2851 = vld [vmem:[%s451 + $0x20] sm:$0xff]
        %v2852 = vld [vmem:[%s451 + $0x28] sm:$0xff]
        %v2853 = vld [vmem:[%s451 + $0x30] sm:$0xff]
        %v2854 = vld [vmem:[%s451 + $0x38] sm:$0xff]
        %v2855 = vld [vmem:[%s451 + $0x40] sm:$0xff]
        %v2856 = vld [vmem:[%s451 + $0x48] sm:$0xff]
        %v2857 = vld [vmem:[%s451 + $0x50] sm:$0xff]
        %v2858 = vld [vmem:[%s451 + $0x58] sm:$0xff]
        %v2859 = vld [vmem:[%s451 + $0x60] sm:$0xff]
        %v2860 = vld [vmem:[%s451 + $0x68] sm:$0xff]
        %v2861 = vld [vmem:[%s451 + $0x70] sm:$0xff]
        %v2862 = vld [vmem:[%s451 + $0x78] sm:$0xff]
        %v2863 = vld [vmem:[%s451 + $0x80] sm:$0xff]
        %v2864 = vld [vmem:[%s451 + $0x88] sm:$0xff]
        %v2865 = vld [vmem:[%s451 + $0x90] sm:$0xff]
        %v2866 = vld [vmem:[%s451 + $0x98] sm:$0xff]
        %v2867 = vld [vmem:[%s451 + $0xa0] sm:$0xff]
        %v2868 = vld [vmem:[%s451 + $0xa8] sm:$0xff]
        %v2869 = vld [vmem:[%s451 + $0xb0] sm:$0xff]
        %v2870 = vld [vmem:[%s451 + $0xb8] sm:$0xff]
        %v2871 = vld [vmem:[%s451 + $0xc0] sm:$0xff]
        %v2872 = vld [vmem:[%s451 + $0xc8] sm:$0xff]
        %v2873 = vld [vmem:[%s451 + $0xd0] sm:$0xff]
        %v2874 = vld [vmem:[%s451 + $0xd8] sm:$0xff]
        %v2875 = vld [vmem:[%s451 + $0xe0] sm:$0xff]
        %v2876 = vld [vmem:[%s451 + $0xe8] sm:$0xff]
        %v2877 = vld [vmem:[%s451 + $0xf0] sm:$0xff]
        %v2878 = vld [vmem:[%s451 + $0xf8] sm:$0xff]
        %v2879 = vadd.f32 %v2847, %v2815
        %v2880 = vadd.f32 %v2848, %v2816
        %v2881 = vadd.f32 %v2849, %v2817
        %v2882 = vadd.f32 %v2850, %v2818
        %v2883 = vadd.f32 %v2851, %v2819
        %v2884 = vadd.f32 %v2852, %v2820
        %v2885 = vadd.f32 %v2853, %v2821
        %v2886 = vadd.f32 %v2854, %v2822
        %v2887 = vadd.f32 %v2855, %v2823
        %v2888 = vadd.f32 %v2856, %v2824
        %v2889 = vadd.f32 %v2857, %v2825
        %v2890 = vadd.f32 %v2858, %v2826
        %v2891 = vadd.f32 %v2859, %v2827
        %v2892 = vadd.f32 %v2860, %v2828
        %v2893 = vadd.f32 %v2861, %v2829
        %v2894 = vadd.f32 %v2862, %v2830
        %v2895 = vadd.f32 %v2863, %v2831
        %v2896 = vadd.f32 %v2864, %v2832
        %v2897 = vadd.f32 %v2865, %v2833
        %v2898 = vadd.f32 %v2866, %v2834
        %v2899 = vadd.f32 %v2867, %v2835
        %v2900 = vadd.f32 %v2868, %v2836
        %v2901 = vadd.f32 %v2869, %v2837
        %v2902 = vadd.f32 %v2870, %v2838
        %v2903 = vadd.f32 %v2871, %v2839
        %v2904 = vadd.f32 %v2872, %v2840
        %v2905 = vadd.f32 %v2873, %v2841
        %v2906 = vadd.f32 %v2874, %v2842
        %v2907 = vadd.f32 %v2875, %v2843
        %v2908 = vadd.f32 %v2876, %v2844
        %v2909 = vadd.f32 %v2877, %v2845
        %v2910 = vadd.f32 %v2878, %v2846
        %2911 = vst [vmem:[%s451] sm:$0xff] %v2879
        %2912 = vst [vmem:[%s451 + $0x8] sm:$0xff] %v2880
        %2913 = vst [vmem:[%s451 + $0x10] sm:$0xff] %v2881
        %2914 = vst [vmem:[%s451 + $0x18] sm:$0xff] %v2882
        %2915 = vst [vmem:[%s451 + $0x20] sm:$0xff] %v2883
        %2916 = vst [vmem:[%s451 + $0x28] sm:$0xff] %v2884
        %2917 = vst [vmem:[%s451 + $0x30] sm:$0xff] %v2885
        %2918 = vst [vmem:[%s451 + $0x38] sm:$0xff] %v2886
        %2919 = vst [vmem:[%s451 + $0x40] sm:$0xff] %v2887
        %2920 = vst [vmem:[%s451 + $0x48] sm:$0xff] %v2888
        %2921 = vst [vmem:[%s451 + $0x50] sm:$0xff] %v2889
        %2922 = vst [vmem:[%s451 + $0x58] sm:$0xff] %v2890
        %2923 = vst [vmem:[%s451 + $0x60] sm:$0xff] %v2891
        %2924 = vst [vmem:[%s451 + $0x68] sm:$0xff] %v2892
        %2925 = vst [vmem:[%s451 + $0x70] sm:$0xff] %v2893
        %2926 = vst [vmem:[%s451 + $0x78] sm:$0xff] %v2894
        %2927 = vst [vmem:[%s451 + $0x80] sm:$0xff] %v2895
        %2928 = vst [vmem:[%s451 + $0x88] sm:$0xff] %v2896
        %2929 = vst [vmem:[%s451 + $0x90] sm:$0xff] %v2897
        %2930 = vst [vmem:[%s451 + $0x98] sm:$0xff] %v2898
        %2931 = vst [vmem:[%s451 + $0xa0] sm:$0xff] %v2899
        %2932 = vst [vmem:[%s451 + $0xa8] sm:$0xff] %v2900
        %2933 = vst [vmem:[%s451 + $0xb0] sm:$0xff] %v2901
        %2934 = vst [vmem:[%s451 + $0xb8] sm:$0xff] %v2902
        %2935 = vst [vmem:[%s451 + $0xc0] sm:$0xff] %v2903
        %2936 = vst [vmem:[%s451 + $0xc8] sm:$0xff] %v2904
        %2937 = vst [vmem:[%s451 + $0xd0] sm:$0xff] %v2905
        %2938 = vst [vmem:[%s451 + $0xd8] sm:$0xff] %v2906
        %2939 = vst [vmem:[%s451 + $0xe0] sm:$0xff] %v2907
        %2940 = vst [vmem:[%s451 + $0xe8] sm:$0xff] %v2908
        %2941 = vst [vmem:[%s451 + $0xf0] sm:$0xff] %v2909
        %2942 = vst [vmem:[%s451 + $0xf8] sm:$0xff] %v2910
        %v2943 = vld [vmem:[%s451] sm:$0xff]
        %v2944 = vld [vmem:[%s451 + $0x8] sm:$0xff]
        %v2945 = vld [vmem:[%s451 + $0x10] sm:$0xff]
        %v2946 = vld [vmem:[%s451 + $0x18] sm:$0xff]
        %v2947 = vld [vmem:[%s451 + $0x20] sm:$0xff]
        %v2948 = vld [vmem:[%s451 + $0x28] sm:$0xff]
        %v2949 = vld [vmem:[%s451 + $0x30] sm:$0xff]
        %v2950 = vld [vmem:[%s451 + $0x38] sm:$0xff]
        %v2951 = vld [vmem:[%s451 + $0x40] sm:$0xff]
        %v2952 = vld [vmem:[%s451 + $0x48] sm:$0xff]
        %v2953 = vld [vmem:[%s451 + $0x50] sm:$0xff]
        %v2954 = vld [vmem:[%s451 + $0x58] sm:$0xff]
        %v2955 = vld [vmem:[%s451 + $0x60] sm:$0xff]
        %v2956 = vld [vmem:[%s451 + $0x68] sm:$0xff]
        %v2957 = vld [vmem:[%s451 + $0x70] sm:$0xff]
        %v2958 = vld [vmem:[%s451 + $0x78] sm:$0xff]
        %v2959 = vld [vmem:[%s451 + $0x80] sm:$0xff]
        %v2960 = vld [vmem:[%s451 + $0x88] sm:$0xff]
        %v2961 = vld [vmem:[%s451 + $0x90] sm:$0xff]
        %v2962 = vld [vmem:[%s451 + $0x98] sm:$0xff]
        %v2963 = vld [vmem:[%s451 + $0xa0] sm:$0xff]
        %v2964 = vld [vmem:[%s451 + $0xa8] sm:$0xff]
        %v2965 = vld [vmem:[%s451 + $0xb0] sm:$0xff]
        %v2966 = vld [vmem:[%s451 + $0xb8] sm:$0xff]
        %v2967 = vld [vmem:[%s451 + $0xc0] sm:$0xff]
        %v2968 = vld [vmem:[%s451 + $0xc8] sm:$0xff]
        %v2969 = vld [vmem:[%s451 + $0xd0] sm:$0xff]
        %v2970 = vld [vmem:[%s451 + $0xd8] sm:$0xff]
        %v2971 = vld [vmem:[%s451 + $0xe0] sm:$0xff]
        %v2972 = vld [vmem:[%s451 + $0xe8] sm:$0xff]
        %v2973 = vld [vmem:[%s451 + $0xf0] sm:$0xff]
        %v2974 = vld [vmem:[%s451 + $0xf8] sm:$0xff]
        %v2975 = vmul.f32 %v2943, %v552
        %v2976 = vmul.f32 %v2944, %v553
        %v2977 = vmul.f32 %v2945, %v554
        %v2978 = vmul.f32 %v2946, %v555
        %v2979 = vmul.f32 %v2947, %v556
        %v2980 = vmul.f32 %v2948, %v557
        %v2981 = vmul.f32 %v2949, %v558
        %v2982 = vmul.f32 %v2950, %v559
        %v2983 = vmul.f32 %v2951, %v560
        %v2984 = vmul.f32 %v2952, %v561
        %v2985 = vmul.f32 %v2953, %v562
        %v2986 = vmul.f32 %v2954, %v563
        %v2987 = vmul.f32 %v2955, %v564
        %v2988 = vmul.f32 %v2956, %v565
        %v2989 = vmul.f32 %v2957, %v566
        %v2990 = vmul.f32 %v2958, %v567
        %v2991 = vmul.f32 %v2959, %v568
        %v2992 = vmul.f32 %v2960, %v569
        %v2993 = vmul.f32 %v2961, %v570
        %v2994 = vmul.f32 %v2962, %v571
        %v2995 = vmul.f32 %v2963, %v572
        %v2996 = vmul.f32 %v2964, %v573
        %v2997 = vmul.f32 %v2965, %v574
        %v2998 = vmul.f32 %v2966, %v575
        %v2999 = vmul.f32 %v2967, %v576
        %v3000 = vmul.f32 %v2968, %v577
        %v3001 = vmul.f32 %v2969, %v578
        %v3002 = vmul.f32 %v2970, %v579
        %v3003 = vmul.f32 %v2971, %v580
        %v3004 = vmul.f32 %v2972, %v581
        %v3005 = vmul.f32 %v2973, %v582
        %v3006 = vmul.f32 %v2974, %v583
        %3007 = vst [vmem:[#allocation2 + $0x10] sm:$0xff] %v2975
        %3008 = vst [vmem:[#allocation2 + $0x18] sm:$0xff] %v2976
        %3009 = vst [vmem:[#allocation2 + $0x20] sm:$0xff] %v2977
        %3010 = vst [vmem:[#allocation2 + $0x28] sm:$0xff] %v2978
        %3011 = vst [vmem:[#allocation2 + $0x30] sm:$0xff] %v2979
        %3012 = vst [vmem:[#allocation2 + $0x38] sm:$0xff] %v2980
        %3013 = vst [vmem:[#allocation2 + $0x40] sm:$0xff] %v2981
        %3014 = vst [vmem:[#allocation2 + $0x48] sm:$0xff] %v2982
        %3015 = vst [vmem:[#allocation2 + $0x50] sm:$0xff] %v2983
        %3016 = vst [vmem:[#allocation2 + $0x58] sm:$0xff] %v2984
        %3017 = vst [vmem:[#allocation2 + $0x60] sm:$0xff] %v2985
        %3018 = vst [vmem:[#allocation2 + $0x68] sm:$0xff] %v2986
        %3019 = vst [vmem:[#allocation2 + $0x70] sm:$0xff] %v2987
        %3020 = vst [vmem:[#allocation2 + $0x78] sm:$0xff] %v2988
        %3021 = vst [vmem:[#allocation2 + $0x80] sm:$0xff] %v2989
        %3022 = vst [vmem:[#allocation2 + $0x88] sm:$0xff] %v2990
        %3023 = vst [vmem:[#allocation2 + $0x90] sm:$0xff] %v2991
        %3024 = vst [vmem:[#allocation2 + $0x98] sm:$0xff] %v2992
        %3025 = vst [vmem:[#allocation2 + $0xa0] sm:$0xff] %v2993
        %3026 = vst [vmem:[#allocation2 + $0xa8] sm:$0xff] %v2994
        %3027 = vst [vmem:[#allocation2 + $0xb0] sm:$0xff] %v2995
        %3028 = vst [vmem:[#allocation2 + $0xb8] sm:$0xff] %v2996
        %3029 = vst [vmem:[#allocation2 + $0xc0] sm:$0xff] %v2997
        %3030 = vst [vmem:[#allocation2 + $0xc8] sm:$0xff] %v2998
        %3031 = vst [vmem:[#allocation2 + $0xd0] sm:$0xff] %v2999
        %3032 = vst [vmem:[#allocation2 + $0xd8] sm:$0xff] %v3000
        %3033 = vst [vmem:[#allocation2 + $0xe0] sm:$0xff] %v3001
        %3034 = vst [vmem:[#allocation2 + $0xe8] sm:$0xff] %v3002
        %3035 = vst [vmem:[#allocation2 + $0xf0] sm:$0xff] %v3003
        %3036 = vst [vmem:[#allocation2 + $0xf8] sm:$0xff] %v3004
        %3037 = vst [vmem:[#allocation2 + $0x100] sm:$0xff] %v3005
        %3038 = vst [vmem:[#allocation2 + $0x108] sm:$0xff] %v3006
        %v3039 = vld [vmem:[#allocation2 + $0xd] sm:$0xff]
        %v3040 = vld [vmem:[#allocation2 + $0x15] sm:$0xff]
        %v3041 = vld [vmem:[#allocation2 + $0x1d] sm:$0xff]
        %v3042 = vld [vmem:[#allocation2 + $0x25] sm:$0xff]
        %v3043 = vld [vmem:[#allocation2 + $0x2d] sm:$0xff]
        %v3044 = vld [vmem:[#allocation2 + $0x35] sm:$0xff]
        %v3045 = vld [vmem:[#allocation2 + $0x3d] sm:$0xff]
        %v3046 = vld [vmem:[#allocation2 + $0x45] sm:$0xff]
        %v3047 = vld [vmem:[#allocation2 + $0x4d] sm:$0xff]
        %v3048 = vld [vmem:[#allocation2 + $0x55] sm:$0xff]
        %v3049 = vld [vmem:[#allocation2 + $0x5d] sm:$0xff]
        %v3050 = vld [vmem:[#allocation2 + $0x65] sm:$0xff]
        %v3051 = vld [vmem:[#allocation2 + $0x6d] sm:$0xff]
        %v3052 = vld [vmem:[#allocation2 + $0x75] sm:$0xff]
        %v3053 = vld [vmem:[#allocation2 + $0x7d] sm:$0xff]
        %v3054 = vld [vmem:[#allocation2 + $0x85] sm:$0xff]
        %v3055 = vld [vmem:[#allocation2 + $0x8d] sm:$0xff]
        %v3056 = vld [vmem:[#allocation2 + $0x95] sm:$0xff]
        %v3057 = vld [vmem:[#allocation2 + $0x9d] sm:$0xff]
        %v3058 = vld [vmem:[#allocation2 + $0xa5] sm:$0xff]
        %v3059 = vld [vmem:[#allocation2 + $0xad] sm:$0xff]
        %v3060 = vld [vmem:[#allocation2 + $0xb5] sm:$0xff]
        %v3061 = vld [vmem:[#allocation2 + $0xbd] sm:$0xff]
        %v3062 = vld [vmem:[#allocation2 + $0xc5] sm:$0xff]
        %v3063 = vld [vmem:[#allocation2 + $0xcd] sm:$0xff]
        %v3064 = vld [vmem:[#allocation2 + $0xd5] sm:$0xff]
        %v3065 = vld [vmem:[#allocation2 + $0xdd] sm:$0xff]
        %v3066 = vld [vmem:[#allocation2 + $0xe5] sm:$0xff]
        %v3067 = vld [vmem:[#allocation2 + $0xed] sm:$0xff]
        %v3068 = vld [vmem:[#allocation2 + $0xf5] sm:$0xff]
        %v3069 = vld [vmem:[#allocation2 + $0xfd] sm:$0xff]
        %v3070 = vld [vmem:[#allocation2 + $0x105] sm:$0xff]
        %s3071 = scalar_lea.vmem [#allocation10], 3
        %v3072 = vld [vmem:[%s3071] sm:$0x1]
        %v3074 = vlaneseq
        %v3075 = vshrl.u32 %v3074, 7
        %v3076 = vsub.s32 0, %v3075
        %v3077 = vrot.slane %v3072, %v3076
        %v3079 = vmul.f32 %v3039, %v3077
        %v3080 = vmul.f32 %v3040, %v3077
        %v3081 = vmul.f32 %v3041, %v3077
        %v3082 = vmul.f32 %v3042, %v3077
        %v3083 = vmul.f32 %v3043, %v3077
        %v3084 = vmul.f32 %v3044, %v3077
        %v3085 = vmul.f32 %v3045, %v3077
        %v3086 = vmul.f32 %v3046, %v3077
        %v3087 = vmul.f32 %v3047, %v3077
        %v3088 = vmul.f32 %v3048, %v3077
        %v3089 = vmul.f32 %v3049, %v3077
        %v3090 = vmul.f32 %v3050, %v3077
        %v3091 = vmul.f32 %v3051, %v3077
        %v3092 = vmul.f32 %v3052, %v3077
        %v3093 = vmul.f32 %v3053, %v3077
        %v3094 = vmul.f32 %v3054, %v3077
        %v3095 = vmul.f32 %v3055, %v3077
        %v3096 = vmul.f32 %v3056, %v3077
        %v3097 = vmul.f32 %v3057, %v3077
        %v3098 = vmul.f32 %v3058, %v3077
        %v3099 = vmul.f32 %v3059, %v3077
        %v3100 = vmul.f32 %v3060, %v3077
        %v3101 = vmul.f32 %v3061, %v3077
        %v3102 = vmul.f32 %v3062, %v3077
        %v3103 = vmul.f32 %v3063, %v3077
        %v3104 = vmul.f32 %v3064, %v3077
        %v3105 = vmul.f32 %v3065, %v3077
        %v3106 = vmul.f32 %v3066, %v3077
        %v3107 = vmul.f32 %v3067, %v3077
        %v3108 = vmul.f32 %v3068, %v3077
        %v3109 = vmul.f32 %v3069, %v3077
        %v3110 = vmul.f32 %v3070, %v3077
        %v3111 = vld [vmem:[#allocation2 + $0x10] sm:$0xff]
        %v3112 = vld [vmem:[#allocation2 + $0x18] sm:$0xff]
        %v3113 = vld [vmem:[#allocation2 + $0x20] sm:$0xff]
        %v3114 = vld [vmem:[#allocation2 + $0x28] sm:$0xff]
        %v3115 = vld [vmem:[#allocation2 + $0x30] sm:$0xff]
        %v3116 = vld [vmem:[#allocation2 + $0x38] sm:$0xff]
        %v3117 = vld [vmem:[#allocation2 + $0x40] sm:$0xff]
        %v3118 = vld [vmem:[#allocation2 + $0x48] sm:$0xff]
        %v3119 = vld [vmem:[#allocation2 + $0x50] sm:$0xff]
        %v3120 = vld [vmem:[#allocation2 + $0x58] sm:$0xff]
        %v3121 = vld [vmem:[#allocation2 + $0x60] sm:$0xff]
        %v3122 = vld [vmem:[#allocation2 + $0x68] sm:$0xff]
        %v3123 = vld [vmem:[#allocation2 + $0x70] sm:$0xff]
        %v3124 = vld [vmem:[#allocation2 + $0x78] sm:$0xff]
        %v3125 = vld [vmem:[#allocation2 + $0x80] sm:$0xff]
        %v3126 = vld [vmem:[#allocation2 + $0x88] sm:$0xff]
        %v3127 = vld [vmem:[#allocation2 + $0x90] sm:$0xff]
        %v3128 = vld [vmem:[#allocation2 + $0x98] sm:$0xff]
        %v3129 = vld [vmem:[#allocation2 + $0xa0] sm:$0xff]
        %v3130 = vld [vmem:[#allocation2 + $0xa8] sm:$0xff]
        %v3131 = vld [vmem:[#allocation2 + $0xb0] sm:$0xff]
        %v3132 = vld [vmem:[#allocation2 + $0xb8] sm:$0xff]
        %v3133 = vld [vmem:[#allocation2 + $0xc0] sm:$0xff]
        %v3134 = vld [vmem:[#allocation2 + $0xc8] sm:$0xff]
        %v3135 = vld [vmem:[#allocation2 + $0xd0] sm:$0xff]
        %v3136 = vld [vmem:[#allocation2 + $0xd8] sm:$0xff]
        %v3137 = vld [vmem:[#allocation2 + $0xe0] sm:$0xff]
        %v3138 = vld [vmem:[#allocation2 + $0xe8] sm:$0xff]
        %v3139 = vld [vmem:[#allocation2 + $0xf0] sm:$0xff]
        %v3140 = vld [vmem:[#allocation2 + $0xf8] sm:$0xff]
        %v3141 = vld [vmem:[#allocation2 + $0x100] sm:$0xff]
        %v3142 = vld [vmem:[#allocation2 + $0x108] sm:$0xff]
        %s3143 = scalar_lea.vmem [#allocation10], 4
        %v3144 = vld [vmem:[%s3143] sm:$0x1]
        %v3146 = vlaneseq
        %v3147 = vshrl.u32 %v3146, 7
        %v3148 = vsub.s32 0, %v3147
        %v3149 = vrot.slane %v3144, %v3148
        %v3151 = vmul.f32 %v3111, %v3149
        %v3152 = vmul.f32 %v3112, %v3149
        %v3153 = vmul.f32 %v3113, %v3149
        %v3154 = vmul.f32 %v3114, %v3149
        %v3155 = vmul.f32 %v3115, %v3149
        %v3156 = vmul.f32 %v3116, %v3149
        %v3157 = vmul.f32 %v3117, %v3149
        %v3158 = vmul.f32 %v3118, %v3149
        %v3159 = vmul.f32 %v3119, %v3149
        %v3160 = vmul.f32 %v3120, %v3149
        %v3161 = vmul.f32 %v3121, %v3149
        %v3162 = vmul.f32 %v3122, %v3149
        %v3163 = vmul.f32 %v3123, %v3149
        %v3164 = vmul.f32 %v3124, %v3149
        %v3165 = vmul.f32 %v3125, %v3149
        %v3166 = vmul.f32 %v3126, %v3149
        %v3167 = vmul.f32 %v3127, %v3149
        %v3168 = vmul.f32 %v3128, %v3149
        %v3169 = vmul.f32 %v3129, %v3149
        %v3170 = vmul.f32 %v3130, %v3149
        %v3171 = vmul.f32 %v3131, %v3149
        %v3172 = vmul.f32 %v3132, %v3149
        %v3173 = vmul.f32 %v3133, %v3149
        %v3174 = vmul.f32 %v3134, %v3149
        %v3175 = vmul.f32 %v3135, %v3149
        %v3176 = vmul.f32 %v3136, %v3149
        %v3177 = vmul.f32 %v3137, %v3149
        %v3178 = vmul.f32 %v3138, %v3149
        %v3179 = vmul.f32 %v3139, %v3149
        %v3180 = vmul.f32 %v3140, %v3149
        %v3181 = vmul.f32 %v3141, %v3149
        %v3182 = vmul.f32 %v3142, %v3149
        %v3183 = vadd.f32 %v3079, %v3151
        %v3184 = vadd.f32 %v3080, %v3152
        %v3185 = vadd.f32 %v3081, %v3153
        %v3186 = vadd.f32 %v3082, %v3154
        %v3187 = vadd.f32 %v3083, %v3155
        %v3188 = vadd.f32 %v3084, %v3156
        %v3189 = vadd.f32 %v3085, %v3157
        %v3190 = vadd.f32 %v3086, %v3158
        %v3191 = vadd.f32 %v3087, %v3159
        %v3192 = vadd.f32 %v3088, %v3160
        %v3193 = vadd.f32 %v3089, %v3161
        %v3194 = vadd.f32 %v3090, %v3162
        %v3195 = vadd.f32 %v3091, %v3163
        %v3196 = vadd.f32 %v3092, %v3164
        %v3197 = vadd.f32 %v3093, %v3165
        %v3198 = vadd.f32 %v3094, %v3166
        %v3199 = vadd.f32 %v3095, %v3167
        %v3200 = vadd.f32 %v3096, %v3168
        %v3201 = vadd.f32 %v3097, %v3169
        %v3202 = vadd.f32 %v3098, %v3170
        %v3203 = vadd.f32 %v3099, %v3171
        %v3204 = vadd.f32 %v3100, %v3172
        %v3205 = vadd.f32 %v3101, %v3173
        %v3206 = vadd.f32 %v3102, %v3174
        %v3207 = vadd.f32 %v3103, %v3175
        %v3208 = vadd.f32 %v3104, %v3176
        %v3209 = vadd.f32 %v3105, %v3177
        %v3210 = vadd.f32 %v3106, %v3178
        %v3211 = vadd.f32 %v3107, %v3179
        %v3212 = vadd.f32 %v3108, %v3180
        %v3213 = vadd.f32 %v3109, %v3181
        %v3214 = vadd.f32 %v3110, %v3182
        %v3215 = vld [vmem:[#allocation2 + $0x13] sm:$0xff]
        %v3216 = vld [vmem:[#allocation2 + $0x1b] sm:$0xff]
        %v3217 = vld [vmem:[#allocation2 + $0x23] sm:$0xff]
        %v3218 = vld [vmem:[#allocation2 + $0x2b] sm:$0xff]
        %v3219 = vld [vmem:[#allocation2 + $0x33] sm:$0xff]
        %v3220 = vld [vmem:[#allocation2 + $0x3b] sm:$0xff]
        %v3221 = vld [vmem:[#allocation2 + $0x43] sm:$0xff]
        %v3222 = vld [vmem:[#allocation2 + $0x4b] sm:$0xff]
        %v3223 = vld [vmem:[#allocation2 + $0x53] sm:$0xff]
        %v3224 = vld [vmem:[#allocation2 + $0x5b] sm:$0xff]
        %v3225 = vld [vmem:[#allocation2 + $0x63] sm:$0xff]
        %v3226 = vld [vmem:[#allocation2 + $0x6b] sm:$0xff]
        %v3227 = vld [vmem:[#allocation2 + $0x73] sm:$0xff]
        %v3228 = vld [vmem:[#allocation2 + $0x7b] sm:$0xff]
        %v3229 = vld [vmem:[#allocation2 + $0x83] sm:$0xff]
        %v3230 = vld [vmem:[#allocation2 + $0x8b] sm:$0xff]
        %v3231 = vld [vmem:[#allocation2 + $0x93] sm:$0xff]
        %v3232 = vld [vmem:[#allocation2 + $0x9b] sm:$0xff]
        %v3233 = vld [vmem:[#allocation2 + $0xa3] sm:$0xff]
        %v3234 = vld [vmem:[#allocation2 + $0xab] sm:$0xff]
        %v3235 = vld [vmem:[#allocation2 + $0xb3] sm:$0xff]
        %v3236 = vld [vmem:[#allocation2 + $0xbb] sm:$0xff]
        %v3237 = vld [vmem:[#allocation2 + $0xc3] sm:$0xff]
        %v3238 = vld [vmem:[#allocation2 + $0xcb] sm:$0xff]
        %v3239 = vld [vmem:[#allocation2 + $0xd3] sm:$0xff]
        %v3240 = vld [vmem:[#allocation2 + $0xdb] sm:$0xff]
        %v3241 = vld [vmem:[#allocation2 + $0xe3] sm:$0xff]
        %v3242 = vld [vmem:[#allocation2 + $0xeb] sm:$0xff]
        %v3243 = vld [vmem:[#allocation2 + $0xf3] sm:$0xff]
        %v3244 = vld [vmem:[#allocation2 + $0xfb] sm:$0xff]
        %v3245 = vld [vmem:[#allocation2 + $0x103] sm:$0xff]
        %v3246 = vld [vmem:[#allocation2 + $0x10b] sm:$0xff]
        %s3247 = scalar_lea.vmem [#allocation10], 5
        %v3248 = vld [vmem:[%s3247] sm:$0x1]
        %v3250 = vlaneseq
        %v3251 = vshrl.u32 %v3250, 7
        %v3252 = vsub.s32 0, %v3251
        %v3253 = vrot.slane %v3248, %v3252
        %v3255 = vmul.f32 %v3215, %v3253
        %v3256 = vmul.f32 %v3216, %v3253
        %v3257 = vmul.f32 %v3217, %v3253
        %v3258 = vmul.f32 %v3218, %v3253
        %v3259 = vmul.f32 %v3219, %v3253
        %v3260 = vmul.f32 %v3220, %v3253
        %v3261 = vmul.f32 %v3221, %v3253
        %v3262 = vmul.f32 %v3222, %v3253
        %v3263 = vmul.f32 %v3223, %v3253
        %v3264 = vmul.f32 %v3224, %v3253
        %v3265 = vmul.f32 %v3225, %v3253
        %v3266 = vmul.f32 %v3226, %v3253
        %v3267 = vmul.f32 %v3227, %v3253
        %v3268 = vmul.f32 %v3228, %v3253
        %v3269 = vmul.f32 %v3229, %v3253
        %v3270 = vmul.f32 %v3230, %v3253
        %v3271 = vmul.f32 %v3231, %v3253
        %v3272 = vmul.f32 %v3232, %v3253
        %v3273 = vmul.f32 %v3233, %v3253
        %v3274 = vmul.f32 %v3234, %v3253
        %v3275 = vmul.f32 %v3235, %v3253
        %v3276 = vmul.f32 %v3236, %v3253
        %v3277 = vmul.f32 %v3237, %v3253
        %v3278 = vmul.f32 %v3238, %v3253
        %v3279 = vmul.f32 %v3239, %v3253
        %v3280 = vmul.f32 %v3240, %v3253
        %v3281 = vmul.f32 %v3241, %v3253
        %v3282 = vmul.f32 %v3242, %v3253
        %v3283 = vmul.f32 %v3243, %v3253
        %v3284 = vmul.f32 %v3244, %v3253
        %v3285 = vmul.f32 %v3245, %v3253
        %v3286 = vmul.f32 %v3246, %v3253
        %v3287 = vadd.f32 %v3183, %v3255
        %v3288 = vadd.f32 %v3184, %v3256
        %v3289 = vadd.f32 %v3185, %v3257
        %v3290 = vadd.f32 %v3186, %v3258
        %v3291 = vadd.f32 %v3187, %v3259
        %v3292 = vadd.f32 %v3188, %v3260
        %v3293 = vadd.f32 %v3189, %v3261
        %v3294 = vadd.f32 %v3190, %v3262
        %v3295 = vadd.f32 %v3191, %v3263
        %v3296 = vadd.f32 %v3192, %v3264
        %v3297 = vadd.f32 %v3193, %v3265
        %v3298 = vadd.f32 %v3194, %v3266
        %v3299 = vadd.f32 %v3195, %v3267
        %v3300 = vadd.f32 %v3196, %v3268
        %v3301 = vadd.f32 %v3197, %v3269
        %v3302 = vadd.f32 %v3198, %v3270
        %v3303 = vadd.f32 %v3199, %v3271
        %v3304 = vadd.f32 %v3200, %v3272
        %v3305 = vadd.f32 %v3201, %v3273
        %v3306 = vadd.f32 %v3202, %v3274
        %v3307 = vadd.f32 %v3203, %v3275
        %v3308 = vadd.f32 %v3204, %v3276
        %v3309 = vadd.f32 %v3205, %v3277
        %v3310 = vadd.f32 %v3206, %v3278
        %v3311 = vadd.f32 %v3207, %v3279
        %v3312 = vadd.f32 %v3208, %v3280
        %v3313 = vadd.f32 %v3209, %v3281
        %v3314 = vadd.f32 %v3210, %v3282
        %v3315 = vadd.f32 %v3211, %v3283
        %v3316 = vadd.f32 %v3212, %v3284
        %v3317 = vadd.f32 %v3213, %v3285
        %v3318 = vadd.f32 %v3214, %v3286
        %s3319 = scalar_lea.vmem %s4, 1
        %v3320 = vld [vmem:[%s3319] sm:$0x1]
        %v3322 = vlaneseq
        %v3323 = vshrl.u32 %v3322, 7
        %v3324 = vsub.s32 0, %v3323
        %v3325 = vrot.slane %v3320, %v3324
        %v3327 = vadd.f32 %v3287, %v3325
        %v3328 = vadd.f32 %v3288, %v3325
        %v3329 = vadd.f32 %v3289, %v3325
        %v3330 = vadd.f32 %v3290, %v3325
        %v3331 = vadd.f32 %v3291, %v3325
        %v3332 = vadd.f32 %v3292, %v3325
        %v3333 = vadd.f32 %v3293, %v3325
        %v3334 = vadd.f32 %v3294, %v3325
        %v3335 = vadd.f32 %v3295, %v3325
        %v3336 = vadd.f32 %v3296, %v3325
        %v3337 = vadd.f32 %v3297, %v3325
        %v3338 = vadd.f32 %v3298, %v3325
        %v3339 = vadd.f32 %v3299, %v3325
        %v3340 = vadd.f32 %v3300, %v3325
        %v3341 = vadd.f32 %v3301, %v3325
        %v3342 = vadd.f32 %v3302, %v3325
        %v3343 = vadd.f32 %v3303, %v3325
        %v3344 = vadd.f32 %v3304, %v3325
        %v3345 = vadd.f32 %v3305, %v3325
        %v3346 = vadd.f32 %v3306, %v3325
        %v3347 = vadd.f32 %v3307, %v3325
        %v3348 = vadd.f32 %v3308, %v3325
        %v3349 = vadd.f32 %v3309, %v3325
        %v3350 = vadd.f32 %v3310, %v3325
        %v3351 = vadd.f32 %v3311, %v3325
        %v3352 = vadd.f32 %v3312, %v3325
        %v3353 = vadd.f32 %v3313, %v3325
        %v3354 = vadd.f32 %v3314, %v3325
        %v3355 = vadd.f32 %v3315, %v3325
        %v3356 = vadd.f32 %v3316, %v3325
        %v3357 = vadd.f32 %v3317, %v3325
        %v3358 = vadd.f32 %v3318, %v3325
        %s3359 = scalar_lea.vmem %s7, 1
        %v3360 = vld [vmem:[%s3359] sm:$0x1]
        %s3361 = scalar_lea.vmem %s8, 1
        %v3362 = vld [vmem:[%s3361] sm:$0x1]
        %3363 = vadd.xlane.f32.xlu0 %v3327
        %v3364 = vpop.xlane.xlu0 %3363
        %3365 = vadd.xlane.f32.xlu0 %v3328
        %v3366 = vpop.xlane.xlu0 %3365
        %3367 = vadd.xlane.f32.xlu0 %v3329
        %v3368 = vpop.xlane.xlu0 %3367
        %3369 = vadd.xlane.f32.xlu0 %v3330
        %v3370 = vpop.xlane.xlu0 %3369
        %3371 = vadd.xlane.f32.xlu0 %v3331
        %v3372 = vpop.xlane.xlu0 %3371
        %3373 = vadd.xlane.f32.xlu0 %v3332
        %v3374 = vpop.xlane.xlu0 %3373
        %3375 = vadd.xlane.f32.xlu0 %v3333
        %v3376 = vpop.xlane.xlu0 %3375
        %3377 = vadd.xlane.f32.xlu0 %v3334
        %v3378 = vpop.xlane.xlu0 %3377
        %3379 = vadd.xlane.f32.xlu0 %v3335
        %v3380 = vpop.xlane.xlu0 %3379
        %3381 = vadd.xlane.f32.xlu0 %v3336
        %v3382 = vpop.xlane.xlu0 %3381
        %3383 = vadd.xlane.f32.xlu0 %v3337
        %v3384 = vpop.xlane.xlu0 %3383
        %3385 = vadd.xlane.f32.xlu0 %v3338
        %v3386 = vpop.xlane.xlu0 %3385
        %3387 = vadd.xlane.f32.xlu0 %v3339
        %v3388 = vpop.xlane.xlu0 %3387
        %3389 = vadd.xlane.f32.xlu0 %v3340
        %v3390 = vpop.xlane.xlu0 %3389
        %3391 = vadd.xlane.f32.xlu0 %v3341
        %v3392 = vpop.xlane.xlu0 %3391
        %3393 = vadd.xlane.f32.xlu0 %v3342
        %v3394 = vpop.xlane.xlu0 %3393
        %3395 = vadd.xlane.f32.xlu0 %v3343
        %v3396 = vpop.xlane.xlu0 %3395
        %3397 = vadd.xlane.f32.xlu0 %v3344
        %v3398 = vpop.xlane.xlu0 %3397
        %3399 = vadd.xlane.f32.xlu0 %v3345
        %v3400 = vpop.xlane.xlu0 %3399
        %3401 = vadd.xlane.f32.xlu0 %v3346
        %v3402 = vpop.xlane.xlu0 %3401
        %3403 = vadd.xlane.f32.xlu0 %v3347
        %v3404 = vpop.xlane.xlu0 %3403
        %3405 = vadd.xlane.f32.xlu0 %v3348
        %v3406 = vpop.xlane.xlu0 %3405
        %3407 = vadd.xlane.f32.xlu0 %v3349
        %v3408 = vpop.xlane.xlu0 %3407
        %3409 = vadd.xlane.f32.xlu0 %v3350
        %v3410 = vpop.xlane.xlu0 %3409
        %3411 = vadd.xlane.f32.xlu0 %v3351
        %v3412 = vpop.xlane.xlu0 %3411
        %3413 = vadd.xlane.f32.xlu0 %v3352
        %v3414 = vpop.xlane.xlu0 %3413
        %3415 = vadd.xlane.f32.xlu0 %v3353
        %v3416 = vpop.xlane.xlu0 %3415
        %3417 = vadd.xlane.f32.xlu0 %v3354
        %v3418 = vpop.xlane.xlu0 %3417
        %3419 = vadd.xlane.f32.xlu0 %v3355
        %v3420 = vpop.xlane.xlu0 %3419
        %3421 = vadd.xlane.f32.xlu0 %v3356
        %v3422 = vpop.xlane.xlu0 %3421
        %3423 = vadd.xlane.f32.xlu0 %v3357
        %v3424 = vpop.xlane.xlu0 %3423
        %3425 = vadd.xlane.f32.xlu0 %v3358
        %v3426 = vpop.xlane.xlu0 %3425
        %v3427 = vmul.f32 %v3364, %v1228
        %v3428 = vmul.f32 %v3366, %v1228
        %v3429 = vmul.f32 %v3368, %v1228
        %v3430 = vmul.f32 %v3370, %v1228
        %v3431 = vmul.f32 %v3372, %v1228
        %v3432 = vmul.f32 %v3374, %v1228
        %v3433 = vmul.f32 %v3376, %v1228
        %v3434 = vmul.f32 %v3378, %v1228
        %v3435 = vmul.f32 %v3380, %v1228
        %v3436 = vmul.f32 %v3382, %v1228
        %v3437 = vmul.f32 %v3384, %v1228
        %v3438 = vmul.f32 %v3386, %v1228
        %v3439 = vmul.f32 %v3388, %v1228
        %v3440 = vmul.f32 %v3390, %v1228
        %v3441 = vmul.f32 %v3392, %v1228
        %v3442 = vmul.f32 %v3394, %v1228
        %v3443 = vmul.f32 %v3396, %v1228
        %v3444 = vmul.f32 %v3398, %v1228
        %v3445 = vmul.f32 %v3400, %v1228
        %v3446 = vmul.f32 %v3402, %v1228
        %v3447 = vmul.f32 %v3404, %v1228
        %v3448 = vmul.f32 %v3406, %v1228
        %v3449 = vmul.f32 %v3408, %v1228
        %v3450 = vmul.f32 %v3410, %v1228
        %v3451 = vmul.f32 %v3412, %v1228
        %v3452 = vmul.f32 %v3414, %v1228
        %v3453 = vmul.f32 %v3416, %v1228
        %v3454 = vmul.f32 %v3418, %v1228
        %v3455 = vmul.f32 %v3420, %v1228
        %v3456 = vmul.f32 %v3422, %v1228
        %v3457 = vmul.f32 %v3424, %v1228
        %v3458 = vmul.f32 %v3426, %v1228
        %v3459 = vsub.f32 %v3327, %v3427
        %v3460 = vsub.f32 %v3328, %v3428
        %v3461 = vsub.f32 %v3329, %v3429
        %v3462 = vsub.f32 %v3330, %v3430
        %v3463 = vsub.f32 %v3331, %v3431
        %v3464 = vsub.f32 %v3332, %v3432
        %v3465 = vsub.f32 %v3333, %v3433
        %v3466 = vsub.f32 %v3334, %v3434
        %v3467 = vsub.f32 %v3335, %v3435
        %v3468 = vsub.f32 %v3336, %v3436
        %v3469 = vsub.f32 %v3337, %v3437
        %v3470 = vsub.f32 %v3338, %v3438
        %v3471 = vsub.f32 %v3339, %v3439
        %v3472 = vsub.f32 %v3340, %v3440
        %v3473 = vsub.f32 %v3341, %v3441
        %v3474 = vsub.f32 %v3342, %v3442
        %v3475 = vsub.f32 %v3343, %v3443
        %v3476 = vsub.f32 %v3344, %v3444
        %v3477 = vsub.f32 %v3345, %v3445
        %v3478 = vsub.f32 %v3346, %v3446
        %v3479 = vsub.f32 %v3347, %v3447
        %v3480 = vsub.f32 %v3348, %v3448
        %v3481 = vsub.f32 %v3349, %v3449
        %v3482 = vsub.f32 %v3350, %v3450
        %v3483 = vsub.f32 %v3351, %v3451
        %v3484 = vsub.f32 %v3352, %v3452
        %v3485 = vsub.f32 %v3353, %v3453
        %v3486 = vsub.f32 %v3354, %v3454
        %v3487 = vsub.f32 %v3355, %v3455
        %v3488 = vsub.f32 %v3356, %v3456
        %v3489 = vsub.f32 %v3357, %v3457
        %v3490 = vsub.f32 %v3358, %v3458
        %v3491 = vmul.f32 %v3459, %v3459
        %v3492 = vmul.f32 %v3460, %v3460
        %v3493 = vmul.f32 %v3461, %v3461
        %v3494 = vmul.f32 %v3462, %v3462
        %v3495 = vmul.f32 %v3463, %v3463
        %v3496 = vmul.f32 %v3464, %v3464
        %v3497 = vmul.f32 %v3465, %v3465
        %v3498 = vmul.f32 %v3466, %v3466
        %v3499 = vmul.f32 %v3467, %v3467
        %v3500 = vmul.f32 %v3468, %v3468
        %v3501 = vmul.f32 %v3469, %v3469
        %v3502 = vmul.f32 %v3470, %v3470
        %v3503 = vmul.f32 %v3471, %v3471
        %v3504 = vmul.f32 %v3472, %v3472
        %v3505 = vmul.f32 %v3473, %v3473
        %v3506 = vmul.f32 %v3474, %v3474
        %v3507 = vmul.f32 %v3475, %v3475
        %v3508 = vmul.f32 %v3476, %v3476
        %v3509 = vmul.f32 %v3477, %v3477
        %v3510 = vmul.f32 %v3478, %v3478
        %v3511 = vmul.f32 %v3479, %v3479
        %v3512 = vmul.f32 %v3480, %v3480
        %v3513 = vmul.f32 %v3481, %v3481
        %v3514 = vmul.f32 %v3482, %v3482
        %v3515 = vmul.f32 %v3483, %v3483
        %v3516 = vmul.f32 %v3484, %v3484
        %v3517 = vmul.f32 %v3485, %v3485
        %v3518 = vmul.f32 %v3486, %v3486
        %v3519 = vmul.f32 %v3487, %v3487
        %v3520 = vmul.f32 %v3488, %v3488
        %v3521 = vmul.f32 %v3489, %v3489
        %v3522 = vmul.f32 %v3490, %v3490
        %3523 = vadd.xlane.f32.xlu0 %v3491
        %v3524 = vpop.xlane.xlu0 %3523
        %3525 = vadd.xlane.f32.xlu0 %v3492
        %v3526 = vpop.xlane.xlu0 %3525
        %3527 = vadd.xlane.f32.xlu0 %v3493
        %v3528 = vpop.xlane.xlu0 %3527
        %3529 = vadd.xlane.f32.xlu0 %v3494
        %v3530 = vpop.xlane.xlu0 %3529
        %3531 = vadd.xlane.f32.xlu0 %v3495
        %v3532 = vpop.xlane.xlu0 %3531
        %3533 = vadd.xlane.f32.xlu0 %v3496
        %v3534 = vpop.xlane.xlu0 %3533
        %3535 = vadd.xlane.f32.xlu0 %v3497
        %v3536 = vpop.xlane.xlu0 %3535
        %3537 = vadd.xlane.f32.xlu0 %v3498
        %v3538 = vpop.xlane.xlu0 %3537
        %3539 = vadd.xlane.f32.xlu0 %v3499
        %v3540 = vpop.xlane.xlu0 %3539
        %3541 = vadd.xlane.f32.xlu0 %v3500
        %v3542 = vpop.xlane.xlu0 %3541
        %3543 = vadd.xlane.f32.xlu0 %v3501
        %v3544 = vpop.xlane.xlu0 %3543
        %3545 = vadd.xlane.f32.xlu0 %v3502
        %v3546 = vpop.xlane.xlu0 %3545
        %3547 = vadd.xlane.f32.xlu0 %v3503
        %v3548 = vpop.xlane.xlu0 %3547
        %3549 = vadd.xlane.f32.xlu0 %v3504
        %v3550 = vpop.xlane.xlu0 %3549
        %3551 = vadd.xlane.f32.xlu0 %v3505
        %v3552 = vpop.xlane.xlu0 %3551
        %3553 = vadd.xlane.f32.xlu0 %v3506
        %v3554 = vpop.xlane.xlu0 %3553
        %3555 = vadd.xlane.f32.xlu0 %v3507
        %v3556 = vpop.xlane.xlu0 %3555
        %3557 = vadd.xlane.f32.xlu0 %v3508
        %v3558 = vpop.xlane.xlu0 %3557
        %3559 = vadd.xlane.f32.xlu0 %v3509
        %v3560 = vpop.xlane.xlu0 %3559
        %3561 = vadd.xlane.f32.xlu0 %v3510
        %v3562 = vpop.xlane.xlu0 %3561
        %3563 = vadd.xlane.f32.xlu0 %v3511
        %v3564 = vpop.xlane.xlu0 %3563
        %3565 = vadd.xlane.f32.xlu0 %v3512
        %v3566 = vpop.xlane.xlu0 %3565
        %3567 = vadd.xlane.f32.xlu0 %v3513
        %v3568 = vpop.xlane.xlu0 %3567
        %3569 = vadd.xlane.f32.xlu0 %v3514
        %v3570 = vpop.xlane.xlu0 %3569
        %3571 = vadd.xlane.f32.xlu0 %v3515
        %v3572 = vpop.xlane.xlu0 %3571
        %3573 = vadd.xlane.f32.xlu0 %v3516
        %v3574 = vpop.xlane.xlu0 %3573
        %3575 = vadd.xlane.f32.xlu0 %v3517
        %v3576 = vpop.xlane.xlu0 %3575
        %3577 = vadd.xlane.f32.xlu0 %v3518
        %v3578 = vpop.xlane.xlu0 %3577
        %3579 = vadd.xlane.f32.xlu0 %v3519
        %v3580 = vpop.xlane.xlu0 %3579
        %3581 = vadd.xlane.f32.xlu0 %v3520
        %v3582 = vpop.xlane.xlu0 %3581
        %3583 = vadd.xlane.f32.xlu0 %v3521
        %v3584 = vpop.xlane.xlu0 %3583
        %3585 = vadd.xlane.f32.xlu0 %v3522
        %v3586 = vpop.xlane.xlu0 %3585
        %v3587 = vmul.f32 %v3524, %v1228
        %v3588 = vmul.f32 %v3526, %v1228
        %v3589 = vmul.f32 %v3528, %v1228
        %v3590 = vmul.f32 %v3530, %v1228
        %v3591 = vmul.f32 %v3532, %v1228
        %v3592 = vmul.f32 %v3534, %v1228
        %v3593 = vmul.f32 %v3536, %v1228
        %v3594 = vmul.f32 %v3538, %v1228
        %v3595 = vmul.f32 %v3540, %v1228
        %v3596 = vmul.f32 %v3542, %v1228
        %v3597 = vmul.f32 %v3544, %v1228
        %v3598 = vmul.f32 %v3546, %v1228
        %v3599 = vmul.f32 %v3548, %v1228
        %v3600 = vmul.f32 %v3550, %v1228
        %v3601 = vmul.f32 %v3552, %v1228
        %v3602 = vmul.f32 %v3554, %v1228
        %v3603 = vmul.f32 %v3556, %v1228
        %v3604 = vmul.f32 %v3558, %v1228
        %v3605 = vmul.f32 %v3560, %v1228
        %v3606 = vmul.f32 %v3562, %v1228
        %v3607 = vmul.f32 %v3564, %v1228
        %v3608 = vmul.f32 %v3566, %v1228
        %v3609 = vmul.f32 %v3568, %v1228
        %v3610 = vmul.f32 %v3570, %v1228
        %v3611 = vmul.f32 %v3572, %v1228
        %v3612 = vmul.f32 %v3574, %v1228
        %v3613 = vmul.f32 %v3576, %v1228
        %v3614 = vmul.f32 %v3578, %v1228
        %v3615 = vmul.f32 %v3580, %v1228
        %v3616 = vmul.f32 %v3582, %v1228
        %v3617 = vmul.f32 %v3584, %v1228
        %v3618 = vmul.f32 %v3586, %v1228
        %v3619 = vadd.f32 %v3587, 1e-05
        %v3620 = vadd.f32 %v3588, 1e-05
        %v3621 = vadd.f32 %v3589, 1e-05
        %v3622 = vadd.f32 %v3590, 1e-05
        %v3623 = vadd.f32 %v3591, 1e-05
        %v3624 = vadd.f32 %v3592, 1e-05
        %v3625 = vadd.f32 %v3593, 1e-05
        %v3626 = vadd.f32 %v3594, 1e-05
        %v3627 = vadd.f32 %v3595, 1e-05
        %v3628 = vadd.f32 %v3596, 1e-05
        %v3629 = vadd.f32 %v3597, 1e-05
        %v3630 = vadd.f32 %v3598, 1e-05
        %v3631 = vadd.f32 %v3599, 1e-05
        %v3632 = vadd.f32 %v3600, 1e-05
        %v3633 = vadd.f32 %v3601, 1e-05
        %v3634 = vadd.f32 %v3602, 1e-05
        %v3635 = vadd.f32 %v3603, 1e-05
        %v3636 = vadd.f32 %v3604, 1e-05
        %v3637 = vadd.f32 %v3605, 1e-05
        %v3638 = vadd.f32 %v3606, 1e-05
        %v3639 = vadd.f32 %v3607, 1e-05
        %v3640 = vadd.f32 %v3608, 1e-05
        %v3641 = vadd.f32 %v3609, 1e-05
        %v3642 = vadd.f32 %v3610, 1e-05
        %v3643 = vadd.f32 %v3611, 1e-05
        %v3644 = vadd.f32 %v3612, 1e-05
        %v3645 = vadd.f32 %v3613, 1e-05
        %v3646 = vadd.f32 %v3614, 1e-05
        %v3647 = vadd.f32 %v3615, 1e-05
        %v3648 = vadd.f32 %v3616, 1e-05
        %v3649 = vadd.f32 %v3617, 1e-05
        %v3650 = vadd.f32 %v3618, 1e-05
        %v3651 = vrsqrt.pop %v3619
        %v3652 = vrsqrt.pop %v3620
        %v3653 = vrsqrt.pop %v3621
        %v3654 = vrsqrt.pop %v3622
        %v3655 = vrsqrt.pop %v3623
        %v3656 = vrsqrt.pop %v3624
        %v3657 = vrsqrt.pop %v3625
        %v3658 = vrsqrt.pop %v3626
        %v3659 = vrsqrt.pop %v3627
        %v3660 = vrsqrt.pop %v3628
        %v3661 = vrsqrt.pop %v3629
        %v3662 = vrsqrt.pop %v3630
        %v3663 = vrsqrt.pop %v3631
        %v3664 = vrsqrt.pop %v3632
        %v3665 = vrsqrt.pop %v3633
        %v3666 = vrsqrt.pop %v3634
        %v3667 = vrsqrt.pop %v3635
        %v3668 = vrsqrt.pop %v3636
        %v3669 = vrsqrt.pop %v3637
        %v3670 = vrsqrt.pop %v3638
        %v3671 = vrsqrt.pop %v3639
        %v3672 = vrsqrt.pop %v3640
        %v3673 = vrsqrt.pop %v3641
        %v3674 = vrsqrt.pop %v3642
        %v3675 = vrsqrt.pop %v3643
        %v3676 = vrsqrt.pop %v3644
        %v3677 = vrsqrt.pop %v3645
        %v3678 = vrsqrt.pop %v3646
        %v3679 = vrsqrt.pop %v3647
        %v3680 = vrsqrt.pop %v3648
        %v3681 = vrsqrt.pop %v3649
        %v3682 = vrsqrt.pop %v3650
        %v3683 = vmul.f32 %v3459, %v3651
        %v3684 = vmul.f32 %v3460, %v3652
        %v3685 = vmul.f32 %v3461, %v3653
        %v3686 = vmul.f32 %v3462, %v3654
        %v3687 = vmul.f32 %v3463, %v3655
        %v3688 = vmul.f32 %v3464, %v3656
        %v3689 = vmul.f32 %v3465, %v3657
        %v3690 = vmul.f32 %v3466, %v3658
        %v3691 = vmul.f32 %v3467, %v3659
        %v3692 = vmul.f32 %v3468, %v3660
        %v3693 = vmul.f32 %v3469, %v3661
        %v3694 = vmul.f32 %v3470, %v3662
        %v3695 = vmul.f32 %v3471, %v3663
        %v3696 = vmul.f32 %v3472, %v3664
        %v3697 = vmul.f32 %v3473, %v3665
        %v3698 = vmul.f32 %v3474, %v3666
        %v3699 = vmul.f32 %v3475, %v3667
        %v3700 = vmul.f32 %v3476, %v3668
        %v3701 = vmul.f32 %v3477, %v3669
        %v3702 = vmul.f32 %v3478, %v3670
        %v3703 = vmul.f32 %v3479, %v3671
        %v3704 = vmul.f32 %v3480, %v3672
        %v3705 = vmul.f32 %v3481, %v3673
        %v3706 = vmul.f32 %v3482, %v3674
        %v3707 = vmul.f32 %v3483, %v3675
        %v3708 = vmul.f32 %v3484, %v3676
        %v3709 = vmul.f32 %v3485, %v3677
        %v3710 = vmul.f32 %v3486, %v3678
        %v3711 = vmul.f32 %v3487, %v3679
        %v3712 = vmul.f32 %v3488, %v3680
        %v3713 = vmul.f32 %v3489, %v3681
        %v3714 = vmul.f32 %v3490, %v3682
        %v3716 = vlaneseq
        %v3717 = vshrl.u32 %v3716, 7
        %v3718 = vsub.s32 0, %v3717
        %v3719 = vrot.slane %v3360, %v3718
        %v3721 = vmul.f32 %v3683, %v3719
        %v3722 = vmul.f32 %v3684, %v3719
        %v3723 = vmul.f32 %v3685, %v3719
        %v3724 = vmul.f32 %v3686, %v3719
        %v3725 = vmul.f32 %v3687, %v3719
        %v3726 = vmul.f32 %v3688, %v3719
        %v3727 = vmul.f32 %v3689, %v3719
        %v3728 = vmul.f32 %v3690, %v3719
        %v3729 = vmul.f32 %v3691, %v3719
        %v3730 = vmul.f32 %v3692, %v3719
        %v3731 = vmul.f32 %v3693, %v3719
        %v3732 = vmul.f32 %v3694, %v3719
        %v3733 = vmul.f32 %v3695, %v3719
        %v3734 = vmul.f32 %v3696, %v3719
        %v3735 = vmul.f32 %v3697, %v3719
        %v3736 = vmul.f32 %v3698, %v3719
        %v3737 = vmul.f32 %v3699, %v3719
        %v3738 = vmul.f32 %v3700, %v3719
        %v3739 = vmul.f32 %v3701, %v3719
        %v3740 = vmul.f32 %v3702, %v3719
        %v3741 = vmul.f32 %v3703, %v3719
        %v3742 = vmul.f32 %v3704, %v3719
        %v3743 = vmul.f32 %v3705, %v3719
        %v3744 = vmul.f32 %v3706, %v3719
        %v3745 = vmul.f32 %v3707, %v3719
        %v3746 = vmul.f32 %v3708, %v3719
        %v3747 = vmul.f32 %v3709, %v3719
        %v3748 = vmul.f32 %v3710, %v3719
        %v3749 = vmul.f32 %v3711, %v3719
        %v3750 = vmul.f32 %v3712, %v3719
        %v3751 = vmul.f32 %v3713, %v3719
        %v3752 = vmul.f32 %v3714, %v3719
        %v3754 = vlaneseq
        %v3755 = vshrl.u32 %v3754, 7
        %v3756 = vsub.s32 0, %v3755
        %v3757 = vrot.slane %v3362, %v3756
        %v3759 = vadd.f32 %v3721, %v3757
        %v3760 = vadd.f32 %v3722, %v3757
        %v3761 = vadd.f32 %v3723, %v3757
        %v3762 = vadd.f32 %v3724, %v3757
        %v3763 = vadd.f32 %v3725, %v3757
        %v3764 = vadd.f32 %v3726, %v3757
        %v3765 = vadd.f32 %v3727, %v3757
        %v3766 = vadd.f32 %v3728, %v3757
        %v3767 = vadd.f32 %v3729, %v3757
        %v3768 = vadd.f32 %v3730, %v3757
        %v3769 = vadd.f32 %v3731, %v3757
        %v3770 = vadd.f32 %v3732, %v3757
        %v3771 = vadd.f32 %v3733, %v3757
        %v3772 = vadd.f32 %v3734, %v3757
        %v3773 = vadd.f32 %v3735, %v3757
        %v3774 = vadd.f32 %v3736, %v3757
        %v3775 = vadd.f32 %v3737, %v3757
        %v3776 = vadd.f32 %v3738, %v3757
        %v3777 = vadd.f32 %v3739, %v3757
        %v3778 = vadd.f32 %v3740, %v3757
        %v3779 = vadd.f32 %v3741, %v3757
        %v3780 = vadd.f32 %v3742, %v3757
        %v3781 = vadd.f32 %v3743, %v3757
        %v3782 = vadd.f32 %v3744, %v3757
        %v3783 = vadd.f32 %v3745, %v3757
        %v3784 = vadd.f32 %v3746, %v3757
        %v3785 = vadd.f32 %v3747, %v3757
        %v3786 = vadd.f32 %v3748, %v3757
        %v3787 = vadd.f32 %v3749, %v3757
        %v3788 = vadd.f32 %v3750, %v3757
        %v3789 = vadd.f32 %v3751, %v3757
        %v3790 = vadd.f32 %v3752, %v3757
        %v3791 = vmul.f32 %v3759, 0.5
        %v3792 = vmul.f32 %v3760, 0.5
        %v3793 = vmul.f32 %v3761, 0.5
        %v3794 = vmul.f32 %v3762, 0.5
        %v3795 = vmul.f32 %v3763, 0.5
        %v3796 = vmul.f32 %v3764, 0.5
        %v3797 = vmul.f32 %v3765, 0.5
        %v3798 = vmul.f32 %v3766, 0.5
        %v3799 = vmul.f32 %v3767, 0.5
        %v3800 = vmul.f32 %v3768, 0.5
        %v3801 = vmul.f32 %v3769, 0.5
        %v3802 = vmul.f32 %v3770, 0.5
        %v3803 = vmul.f32 %v3771, 0.5
        %v3804 = vmul.f32 %v3772, 0.5
        %v3805 = vmul.f32 %v3773, 0.5
        %v3806 = vmul.f32 %v3774, 0.5
        %v3807 = vmul.f32 %v3775, 0.5
        %v3808 = vmul.f32 %v3776, 0.5
        %v3809 = vmul.f32 %v3777, 0.5
        %v3810 = vmul.f32 %v3778, 0.5
        %v3811 = vmul.f32 %v3779, 0.5
        %v3812 = vmul.f32 %v3780, 0.5
        %v3813 = vmul.f32 %v3781, 0.5
        %v3814 = vmul.f32 %v3782, 0.5
        %v3815 = vmul.f32 %v3783, 0.5
        %v3816 = vmul.f32 %v3784, 0.5
        %v3817 = vmul.f32 %v3785, 0.5
        %v3818 = vmul.f32 %v3786, 0.5
        %v3819 = vmul.f32 %v3787, 0.5
        %v3820 = vmul.f32 %v3788, 0.5
        %v3821 = vmul.f32 %v3789, 0.5
        %v3822 = vmul.f32 %v3790, 0.5
        %v3823 = vmul.f32 %v3759, 0.044715
        %v3824 = vmul.f32 %v3760, 0.044715
        %v3825 = vmul.f32 %v3761, 0.044715
        %v3826 = vmul.f32 %v3762, 0.044715
        %v3827 = vmul.f32 %v3763, 0.044715
        %v3828 = vmul.f32 %v3764, 0.044715
        %v3829 = vmul.f32 %v3765, 0.044715
        %v3830 = vmul.f32 %v3766, 0.044715
        %v3831 = vmul.f32 %v3767, 0.044715
        %v3832 = vmul.f32 %v3768, 0.044715
        %v3833 = vmul.f32 %v3769, 0.044715
        %v3834 = vmul.f32 %v3770, 0.044715
        %v3835 = vmul.f32 %v3771, 0.044715
        %v3836 = vmul.f32 %v3772, 0.044715
        %v3837 = vmul.f32 %v3773, 0.044715
        %v3838 = vmul.f32 %v3774, 0.044715
        %v3839 = vmul.f32 %v3775, 0.044715
        %v3840 = vmul.f32 %v3776, 0.044715
        %v3841 = vmul.f32 %v3777, 0.044715
        %v3842 = vmul.f32 %v3778, 0.044715
        %v3843 = vmul.f32 %v3779, 0.044715
        %v3844 = vmul.f32 %v3780, 0.044715
        %v3845 = vmul.f32 %v3781, 0.044715
        %v3846 = vmul.f32 %v3782, 0.044715
        %v3847 = vmul.f32 %v3783, 0.044715
        %v3848 = vmul.f32 %v3784, 0.044715
        %v3849 = vmul.f32 %v3785, 0.044715
        %v3850 = vmul.f32 %v3786, 0.044715
        %v3851 = vmul.f32 %v3787, 0.044715
        %v3852 = vmul.f32 %v3788, 0.044715
        %v3853 = vmul.f32 %v3789, 0.044715
        %v3854 = vmul.f32 %v3790, 0.044715
        %v3855 = vmul.f32 %v3823, %v3759
        %v3856 = vmul.f32 %v3824, %v3760
        %v3857 = vmul.f32 %v3825, %v3761
        %v3858 = vmul.f32 %v3826, %v3762
        %v3859 = vmul.f32 %v3827, %v3763
        %v3860 = vmul.f32 %v3828, %v3764
        %v3861 = vmul.f32 %v3829, %v3765
        %v3862 = vmul.f32 %v3830, %v3766
        %v3863 = vmul.f32 %v3831, %v3767
        %v3864 = vmul.f32 %v3832, %v3768
        %v3865 = vmul.f32 %v3833, %v3769
        %v3866 = vmul.f32 %v3834, %v3770
        %v3867 = vmul.f32 %v3835, %v3771
        %v3868 = vmul.f32 %v3836, %v3772
        %v3869 = vmul.f32 %v3837, %v3773
        %v3870 = vmul.f32 %v3838, %v3774
        %v3871 = vmul.f32 %v3839, %v3775
        %v3872 = vmul.f32 %v3840, %v3776
        %v3873 = vmul.f32 %v3841, %v3777
        %v3874 = vmul.f32 %v3842, %v3778
        %v3875 = vmul.f32 %v3843, %v3779
        %v3876 = vmul.f32 %v3844, %v3780
        %v3877 = vmul.f32 %v3845, %v3781
        %v3878 = vmul.f32 %v3846, %v3782
        %v3879 = vmul.f32 %v3847, %v3783
        %v3880 = vmul.f32 %v3848, %v3784
        %v3881 = vmul.f32 %v3849, %v3785
        %v3882 = vmul.f32 %v3850, %v3786
        %v3883 = vmul.f32 %v3851, %v3787
        %v3884 = vmul.f32 %v3852, %v3788
        %v3885 = vmul.f32 %v3853, %v3789
        %v3886 = vmul.f32 %v3854, %v3790
        %v3887 = vmul.f32 %v3855, %v3759
        %v3888 = vmul.f32 %v3856, %v3760
        %v3889 = vmul.f32 %v3857, %v3761
        %v3890 = vmul.f32 %v3858, %v3762
        %v3891 = vmul.f32 %v3859, %v3763
        %v3892 = vmul.f32 %v3860, %v3764
        %v3893 = vmul.f32 %v3861, %v3765
        %v3894 = vmul.f32 %v3862, %v3766
        %v3895 = vmul.f32 %v3863, %v3767
        %v3896 = vmul.f32 %v3864, %v3768
        %v3897 = vmul.f32 %v3865, %v3769
        %v3898 = vmul.f32 %v3866, %v3770
        %v3899 = vmul.f32 %v3867, %v3771
        %v3900 = vmul.f32 %v3868, %v3772
        %v3901 = vmul.f32 %v3869, %v3773
        %v3902 = vmul.f32 %v3870, %v3774
        %v3903 = vmul.f32 %v3871, %v3775
        %v3904 = vmul.f32 %v3872, %v3776
        %v3905 = vmul.f32 %v3873, %v3777
        %v3906 = vmul.f32 %v3874, %v3778
        %v3907 = vmul.f32 %v3875, %v3779
        %v3908 = vmul.f32 %v3876, %v3780
        %v3909 = vmul.f32 %v3877, %v3781
        %v3910 = vmul.f32 %v3878, %v3782
        %v3911 = vmul.f32 %v3879, %v3783
        %v3912 = vmul.f32 %v3880, %v3784
        %v3913 = vmul.f32 %v3881, %v3785
        %v3914 = vmul.f32 %v3882, %v3786
        %v3915 = vmul.f32 %v3883, %v3787
        %v3916 = vmul.f32 %v3884, %v3788
        %v3917 = vmul.f32 %v3885, %v3789
        %v3918 = vmul.f32 %v3886, %v3790
        %v3919 = vadd.f32 %v3759, %v3887
        %v3920 = vadd.f32 %v3760, %v3888
        %v3921 = vadd.f32 %v3761, %v3889
        %v3922 = vadd.f32 %v3762, %v3890
        %v3923 = vadd.f32 %v3763, %v3891
        %v3924 = vadd.f32 %v3764, %v3892
        %v3925 = vadd.f32 %v3765, %v3893
        %v3926 = vadd.f32 %v3766, %v3894
        %v3927 = vadd.f32 %v3767, %v3895
        %v3928 = vadd.f32 %v3768, %v3896
        %v3929 = vadd.f32 %v3769, %v3897
        %v3930 = vadd.f32 %v3770, %v3898
        %v3931 = vadd.f32 %v3771, %v3899
        %v3932 = vadd.f32 %v3772, %v3900
        %v3933 = vadd.f32 %v3773, %v3901
        %v3934 = vadd.f32 %v3774, %v3902
        %v3935 = vadd.f32 %v3775, %v3903
        %v3936 = vadd.f32 %v3776, %v3904
        %v3937 = vadd.f32 %v3777, %v3905
        %v3938 = vadd.f32 %v3778, %v3906
        %v3939 = vadd.f32 %v3779, %v3907
        %v3940 = vadd.f32 %v3780, %v3908
        %v3941 = vadd.f32 %v3781, %v3909
        %v3942 = vadd.f32 %v3782, %v3910
        %v3943 = vadd.f32 %v3783, %v3911
        %v3944 = vadd.f32 %v3784, %v3912
        %v3945 = vadd.f32 %v3785, %v3913
        %v3946 = vadd.f32 %v3786, %v3914
        %v3947 = vadd.f32 %v3787, %v3915
        %v3948 = vadd.f32 %v3788, %v3916
        %v3949 = vadd.f32 %v3789, %v3917
        %v3950 = vadd.f32 %v3790, %v3918
        %v3951 = vmul.f32 %v3919, 0.7978846
        %v3952 = vmul.f32 %v3920, 0.7978846
        %v3953 = vmul.f32 %v3921, 0.7978846
        %v3954 = vmul.f32 %v3922, 0.7978846
        %v3955 = vmul.f32 %v3923, 0.7978846
        %v3956 = vmul.f32 %v3924, 0.7978846
        %v3957 = vmul.f32 %v3925, 0.7978846
        %v3958 = vmul.f32 %v3926, 0.7978846
        %v3959 = vmul.f32 %v3927, 0.7978846
        %v3960 = vmul.f32 %v3928, 0.7978846
        %v3961 = vmul.f32 %v3929, 0.7978846
        %v3962 = vmul.f32 %v3930, 0.7978846
        %v3963 = vmul.f32 %v3931, 0.7978846
        %v3964 = vmul.f32 %v3932, 0.7978846
        %v3965 = vmul.f32 %v3933, 0.7978846
        %v3966 = vmul.f32 %v3934, 0.7978846
        %v3967 = vmul.f32 %v3935, 0.7978846
        %v3968 = vmul.f32 %v3936, 0.7978846
        %v3969 = vmul.f32 %v3937, 0.7978846
        %v3970 = vmul.f32 %v3938, 0.7978846
        %v3971 = vmul.f32 %v3939, 0.7978846
        %v3972 = vmul.f32 %v3940, 0.7978846
        %v3973 = vmul.f32 %v3941, 0.7978846
        %v3974 = vmul.f32 %v3942, 0.7978846
        %v3975 = vmul.f32 %v3943, 0.7978846
        %v3976 = vmul.f32 %v3944, 0.7978846
        %v3977 = vmul.f32 %v3945, 0.7978846
        %v3978 = vmul.f32 %v3946, 0.7978846
        %v3979 = vmul.f32 %v3947, 0.7978846
        %v3980 = vmul.f32 %v3948, 0.7978846
        %v3981 = vmul.f32 %v3949, 0.7978846
        %v3982 = vmul.f32 %v3950, 0.7978846
        %v3983 = vtanh.pop %v3951
        %v3984 = vtanh.pop %v3952
        %v3985 = vtanh.pop %v3953
        %v3986 = vtanh.pop %v3954
        %v3987 = vtanh.pop %v3955
        %v3988 = vtanh.pop %v3956
        %v3989 = vtanh.pop %v3957
        %v3990 = vtanh.pop %v3958
        %v3991 = vtanh.pop %v3959
        %v3992 = vtanh.pop %v3960
        %v3993 = vtanh.pop %v3961
        %v3994 = vtanh.pop %v3962
        %v3995 = vtanh.pop %v3963
        %v3996 = vtanh.pop %v3964
        %v3997 = vtanh.pop %v3965
        %v3998 = vtanh.pop %v3966
        %v3999 = vtanh.pop %v3967
        %v4000 = vtanh.pop %v3968
        %v4001 = vtanh.pop %v3969
        %v4002 = vtanh.pop %v3970
        %v4003 = vtanh.pop %v3971
        %v4004 = vtanh.pop %v3972
        %v4005 = vtanh.pop %v3973
        %v4006 = vtanh.pop %v3974
        %v4007 = vtanh.pop %v3975
        %v4008 = vtanh.pop %v3976
        %v4009 = vtanh.pop %v3977
        %v4010 = vtanh.pop %v3978
        %v4011 = vtanh.pop %v3979
        %v4012 = vtanh.pop %v3980
        %v4013 = vtanh.pop %v3981
        %v4014 = vtanh.pop %v3982
        %v4015 = vadd.f32 %v3983, 1.0
        %v4016 = vadd.f32 %v3984, 1.0
        %v4017 = vadd.f32 %v3985, 1.0
        %v4018 = vadd.f32 %v3986, 1.0
        %v4019 = vadd.f32 %v3987, 1.0
        %v4020 = vadd.f32 %v3988, 1.0
        %v4021 = vadd.f32 %v3989, 1.0
        %v4022 = vadd.f32 %v3990, 1.0
        %v4023 = vadd.f32 %v3991, 1.0
        %v4024 = vadd.f32 %v3992, 1.0
        %v4025 = vadd.f32 %v3993, 1.0
        %v4026 = vadd.f32 %v3994, 1.0
        %v4027 = vadd.f32 %v3995, 1.0
        %v4028 = vadd.f32 %v3996, 1.0
        %v4029 = vadd.f32 %v3997, 1.0
        %v4030 = vadd.f32 %v3998, 1.0
        %v4031 = vadd.f32 %v3999, 1.0
        %v4032 = vadd.f32 %v4000, 1.0
        %v4033 = vadd.f32 %v4001, 1.0
        %v4034 = vadd.f32 %v4002, 1.0
        %v4035 = vadd.f32 %v4003, 1.0
        %v4036 = vadd.f32 %v4004, 1.0
        %v4037 = vadd.f32 %v4005, 1.0
        %v4038 = vadd.f32 %v4006, 1.0
        %v4039 = vadd.f32 %v4007, 1.0
        %v4040 = vadd.f32 %v4008, 1.0
        %v4041 = vadd.f32 %v4009, 1.0
        %v4042 = vadd.f32 %v4010, 1.0
        %v4043 = vadd.f32 %v4011, 1.0
        %v4044 = vadd.f32 %v4012, 1.0
        %v4045 = vadd.f32 %v4013, 1.0
        %v4046 = vadd.f32 %v4014, 1.0
        %v4047 = vmul.f32 %v3791, %v4015
        %v4048 = vmul.f32 %v3792, %v4016
        %v4049 = vmul.f32 %v3793, %v4017
        %v4050 = vmul.f32 %v3794, %v4018
        %v4051 = vmul.f32 %v3795, %v4019
        %v4052 = vmul.f32 %v3796, %v4020
        %v4053 = vmul.f32 %v3797, %v4021
        %v4054 = vmul.f32 %v3798, %v4022
        %v4055 = vmul.f32 %v3799, %v4023
        %v4056 = vmul.f32 %v3800, %v4024
        %v4057 = vmul.f32 %v3801, %v4025
        %v4058 = vmul.f32 %v3802, %v4026
        %v4059 = vmul.f32 %v3803, %v4027
        %v4060 = vmul.f32 %v3804, %v4028
        %v4061 = vmul.f32 %v3805, %v4029
        %v4062 = vmul.f32 %v3806, %v4030
        %v4063 = vmul.f32 %v3807, %v4031
        %v4064 = vmul.f32 %v3808, %v4032
        %v4065 = vmul.f32 %v3809, %v4033
        %v4066 = vmul.f32 %v3810, %v4034
        %v4067 = vmul.f32 %v3811, %v4035
        %v4068 = vmul.f32 %v3812, %v4036
        %v4069 = vmul.f32 %v3813, %v4037
        %v4070 = vmul.f32 %v3814, %v4038
        %v4071 = vmul.f32 %v3815, %v4039
        %v4072 = vmul.f32 %v3816, %v4040
        %v4073 = vmul.f32 %v3817, %v4041
        %v4074 = vmul.f32 %v3818, %v4042
        %v4075 = vmul.f32 %v3819, %v4043
        %v4076 = vmul.f32 %v3820, %v4044
        %v4077 = vmul.f32 %v3821, %v4045
        %v4078 = vmul.f32 %v3822, %v4046
        %v4079 = vpack.c.bf16 %v4048, %v4047
        %v4080 = vpack.c.bf16 %v4050, %v4049
        %v4081 = vpack.c.bf16 %v4052, %v4051
        %v4082 = vpack.c.bf16 %v4054, %v4053
        %v4083 = vpack.c.bf16 %v4056, %v4055
        %v4084 = vpack.c.bf16 %v4058, %v4057
        %v4085 = vpack.c.bf16 %v4060, %v4059
        %v4086 = vpack.c.bf16 %v4062, %v4061
        %v4087 = vpack.c.bf16 %v4064, %v4063
        %v4088 = vpack.c.bf16 %v4066, %v4065
        %v4089 = vpack.c.bf16 %v4068, %v4067
        %v4090 = vpack.c.bf16 %v4070, %v4069
        %v4091 = vpack.c.bf16 %v4072, %v4071
        %v4092 = vpack.c.bf16 %v4074, %v4073
        %v4093 = vpack.c.bf16 %v4076, %v4075
        %v4094 = vpack.c.bf16 %v4078, %v4077
        %s4095 = scalar_lea.vmem [#allocation11], 64
        %v4096 = vld [vmem:[%s4095] sm:$0xf]
        %v4097 = vld [vmem:[%s4095 + $0x4] sm:$0xf]
        %v4098 = vld [vmem:[%s4095 + $0x8] sm:$0xf]
        %v4099 = vld [vmem:[%s4095 + $0xc] sm:$0xf]
        %v4100 = vld [vmem:[%s4095 + $0x10] sm:$0xf]
        %v4101 = vld [vmem:[%s4095 + $0x14] sm:$0xf]
        %v4102 = vld [vmem:[%s4095 + $0x18] sm:$0xf]
        %v4103 = vld [vmem:[%s4095 + $0x1c] sm:$0xf]
        %v4104 = vld [vmem:[%s4095 + $0x20] sm:$0xf]
        %v4105 = vld [vmem:[%s4095 + $0x24] sm:$0xf]
        %v4106 = vld [vmem:[%s4095 + $0x28] sm:$0xf]
        %v4107 = vld [vmem:[%s4095 + $0x2c] sm:$0xf]
        %v4108 = vld [vmem:[%s4095 + $0x30] sm:$0xf]
        %v4109 = vld [vmem:[%s4095 + $0x34] sm:$0xf]
        %v4110 = vld [vmem:[%s4095 + $0x38] sm:$0xf]
        %v4111 = vld [vmem:[%s4095 + $0x3c] sm:$0xf]
        %s4112 = scalar_lea.vmem %s6, 1
        %v4113 = vld [vmem:[%s4112] sm:$0x1]
        %v4115 = vlaneseq
        %v4116 = vshrl.u32 %v4115, 7
        %v4117 = vsub.s32 0, %v4116
        %v4118 = vrot.slane %v4113, %v4117
        %v4136 = vunpack.c.l.b16 %v4096
        %v4137 = vunpack.c.l.b16 %v4097
        %v4138 = vunpack.c.l.b16 %v4098
        %v4139 = vunpack.c.l.b16 %v4099
        %v4140 = vunpack.c.l.b16 %v4100
        %v4141 = vunpack.c.l.b16 %v4101
        %v4142 = vunpack.c.l.b16 %v4102
        %v4143 = vunpack.c.l.b16 %v4103
        %v4144 = vunpack.c.l.b16 %v4104
        %v4145 = vunpack.c.l.b16 %v4105
        %v4146 = vunpack.c.l.b16 %v4106
        %v4147 = vunpack.c.l.b16 %v4107
        %v4148 = vunpack.c.l.b16 %v4108
        %v4149 = vunpack.c.l.b16 %v4109
        %v4150 = vunpack.c.l.b16 %v4110
        %v4151 = vunpack.c.l.b16 %v4111
        %v4152 = vpack.c.b16 %v4137, %v4136
        %v4153 = vpack.c.b16 %v4139, %v4138
        %v4154 = vpack.c.b16 %v4141, %v4140
        %v4155 = vpack.c.b16 %v4143, %v4142
        %v4156 = vpack.c.b16 %v4145, %v4144
        %v4157 = vpack.c.b16 %v4147, %v4146
        %v4158 = vpack.c.b16 %v4149, %v4148
        %v4159 = vpack.c.b16 %v4151, %v4150
        %4168 = vmatprep.subr.bf16.mxu0 0
        %4169 = vmatpush1.bf16.msra.mxu0 %v4159
        %4170 = vmatprep.subr.bf16.mxu0 0
        %4171 = vmatpush1.bf16.msra.mxu0 %v4158
        %4172 = vmatprep.subr.bf16.mxu0 0
        %4173 = vmatpush1.bf16.msra.mxu0 %v4157
        %4174 = vmatprep.subr.bf16.mxu0 0
        %4175 = vmatpush1.bf16.msra.mxu0 %v4156
        %4176 = vmatprep.subr.bf16.mxu0 0
        %4177 = vmatpush1.bf16.msra.mxu0 %v4155
        %4178 = vmatprep.subr.bf16.mxu0 0
        %4179 = vmatpush1.bf16.msra.mxu0 %v4154
        %4180 = vmatprep.subr.bf16.mxu0 0
        %4181 = vmatpush1.bf16.msra.mxu0 %v4153
        %4182 = vmatprep.subr.bf16.mxu0 0
        %4183 = vmatpush1.bf16.msra.mxu0 %v4152
        %4184 = vmatprep.subr.bf16.mxu0 0
        %4185 = vmatpush2.bf16.msra.mxu0 0
        %4186 = vmatprep.subr.bf16.mxu0 0
        %4187 = vmatpush2.bf16.msra.mxu0 0
        %4188 = vmatprep.subr.bf16.mxu0 0
        %4189 = vmatpush2.bf16.msra.mxu0 0
        %4190 = vmatprep.subr.bf16.mxu0 0
        %4191 = vmatpush2.bf16.msra.mxu0 0
        %4192 = vmatprep.subr.bf16.mxu0 0
        %4193 = vmatpush2.bf16.msra.mxu0 0
        %4194 = vmatprep.subr.bf16.mxu0 0
        %4195 = vmatpush2.bf16.msra.mxu0 0
        %4196 = vmatprep.subr.bf16.mxu0 0
        %4197 = vmatpush2.bf16.msra.mxu0 0
        %4198 = vmatprep.subr.bf16.mxu0 0
        %4199 = vmatpush2.bf16.msra.mxu0 0
        %4200 = vmatprep.mubr.bf16.mxu0 0
        %4201 = vmatmul.mubr.bf16.gmra.mxu0 %v4079
        %v4202 = vpop.f32.mrf.mxu0
        %v4203 = vadd.f32 %v4118, %v4202
        %v4204 = vpop.f32.mrf.mxu0
        %v4205 = vpop.f32.mrf.mxu0
        %v4206 = vadd.f32 %v4118, %v4205
        %v4207 = vpop.f32.mrf.mxu0
        %4208 = vmatprep.mubr.bf16.mxu0 0
        %4209 = vmatmul.mubr.bf16.gmra.mxu0 %v4080
        %v4210 = vpop.f32.mrf.mxu0
        %v4211 = vadd.f32 %v4118, %v4210
        %v4212 = vpop.f32.mrf.mxu0
        %v4213 = vpop.f32.mrf.mxu0
        %v4214 = vadd.f32 %v4118, %v4213
        %v4215 = vpop.f32.mrf.mxu0
        %4216 = vmatprep.mubr.bf16.mxu0 0
        %4217 = vmatmul.mubr.bf16.gmra.mxu0 %v4081
        %v4218 = vpop.f32.mrf.mxu0
        %v4219 = vadd.f32 %v4118, %v4218
        %v4220 = vpop.f32.mrf.mxu0
        %v4221 = vpop.f32.mrf.mxu0
        %v4222 = vadd.f32 %v4118, %v4221
        %v4223 = vpop.f32.mrf.mxu0
        %4224 = vmatprep.mubr.bf16.mxu0 0
        %4225 = vmatmul.mubr.bf16.gmra.mxu0 %v4082
        %v4226 = vpop.f32.mrf.mxu0
        %v4227 = vadd.f32 %v4118, %v4226
        %v4228 = vpop.f32.mrf.mxu0
        %v4229 = vpop.f32.mrf.mxu0
        %v4230 = vadd.f32 %v4118, %v4229
        %v4231 = vpop.f32.mrf.mxu0
        %4232 = vmatprep.mubr.bf16.mxu0 0
        %4233 = vmatmul.mubr.bf16.gmra.mxu0 %v4083
        %v4234 = vpop.f32.mrf.mxu0
        %v4235 = vadd.f32 %v4118, %v4234
        %v4236 = vpop.f32.mrf.mxu0
        %v4237 = vpop.f32.mrf.mxu0
        %v4238 = vadd.f32 %v4118, %v4237
        %v4239 = vpop.f32.mrf.mxu0
        %4240 = vmatprep.mubr.bf16.mxu0 0
        %4241 = vmatmul.mubr.bf16.gmra.mxu0 %v4084
        %v4242 = vpop.f32.mrf.mxu0
        %v4243 = vadd.f32 %v4118, %v4242
        %v4244 = vpop.f32.mrf.mxu0
        %v4245 = vpop.f32.mrf.mxu0
        %v4246 = vadd.f32 %v4118, %v4245
        %v4247 = vpop.f32.mrf.mxu0
        %4248 = vmatprep.mubr.bf16.mxu0 0
        %4249 = vmatmul.mubr.bf16.gmra.mxu0 %v4085
        %v4250 = vpop.f32.mrf.mxu0
        %v4251 = vadd.f32 %v4118, %v4250
        %v4252 = vpop.f32.mrf.mxu0
        %v4253 = vpop.f32.mrf.mxu0
        %v4254 = vadd.f32 %v4118, %v4253
        %v4255 = vpop.f32.mrf.mxu0
        %4256 = vmatprep.mubr.bf16.mxu0 0
        %4257 = vmatmul.mubr.bf16.gmra.mxu0 %v4086
        %v4258 = vpop.f32.mrf.mxu0
        %v4259 = vadd.f32 %v4118, %v4258
        %v4260 = vpop.f32.mrf.mxu0
        %v4261 = vpop.f32.mrf.mxu0
        %v4262 = vadd.f32 %v4118, %v4261
        %v4263 = vpop.f32.mrf.mxu0
        %4264 = vmatprep.mubr.bf16.mxu0 0
        %4265 = vmatmul.mubr.bf16.gmra.mxu0 %v4087
        %v4266 = vpop.f32.mrf.mxu0
        %v4267 = vadd.f32 %v4118, %v4266
        %v4268 = vpop.f32.mrf.mxu0
        %v4269 = vpop.f32.mrf.mxu0
        %v4270 = vadd.f32 %v4118, %v4269
        %v4271 = vpop.f32.mrf.mxu0
        %4272 = vmatprep.mubr.bf16.mxu0 0
        %4273 = vmatmul.mubr.bf16.gmra.mxu0 %v4088
        %v4274 = vpop.f32.mrf.mxu0
        %v4275 = vadd.f32 %v4118, %v4274
        %v4276 = vpop.f32.mrf.mxu0
        %v4277 = vpop.f32.mrf.mxu0
        %v4278 = vadd.f32 %v4118, %v4277
        %v4279 = vpop.f32.mrf.mxu0
        %4280 = vmatprep.mubr.bf16.mxu0 0
        %4281 = vmatmul.mubr.bf16.gmra.mxu0 %v4089
        %v4282 = vpop.f32.mrf.mxu0
        %v4283 = vadd.f32 %v4118, %v4282
        %v4284 = vpop.f32.mrf.mxu0
        %v4285 = vpop.f32.mrf.mxu0
        %v4286 = vadd.f32 %v4118, %v4285
        %v4287 = vpop.f32.mrf.mxu0
        %4288 = vmatprep.mubr.bf16.mxu0 0
        %4289 = vmatmul.mubr.bf16.gmra.mxu0 %v4090
        %v4290 = vpop.f32.mrf.mxu0
        %v4291 = vadd.f32 %v4118, %v4290
        %v4292 = vpop.f32.mrf.mxu0
        %v4293 = vpop.f32.mrf.mxu0
        %v4294 = vadd.f32 %v4118, %v4293
        %v4295 = vpop.f32.mrf.mxu0
        %4296 = vmatprep.mubr.bf16.mxu0 0
        %4297 = vmatmul.mubr.bf16.gmra.mxu0 %v4091
        %v4298 = vpop.f32.mrf.mxu0
        %v4299 = vadd.f32 %v4118, %v4298
        %v4300 = vpop.f32.mrf.mxu0
        %v4301 = vpop.f32.mrf.mxu0
        %v4302 = vadd.f32 %v4118, %v4301
        %v4303 = vpop.f32.mrf.mxu0
        %4304 = vmatprep.mubr.bf16.mxu0 0
        %4305 = vmatmul.mubr.bf16.gmra.mxu0 %v4092
        %v4306 = vpop.f32.mrf.mxu0
        %v4307 = vadd.f32 %v4118, %v4306
        %v4308 = vpop.f32.mrf.mxu0
        %v4309 = vpop.f32.mrf.mxu0
        %v4310 = vadd.f32 %v4118, %v4309
        %v4311 = vpop.f32.mrf.mxu0
        %4312 = vmatprep.mubr.bf16.mxu0 0
        %4313 = vmatmul.mubr.bf16.gmra.mxu0 %v4093
        %v4314 = vpop.f32.mrf.mxu0
        %v4315 = vadd.f32 %v4118, %v4314
        %v4316 = vpop.f32.mrf.mxu0
        %v4317 = vpop.f32.mrf.mxu0
        %v4318 = vadd.f32 %v4118, %v4317
        %v4319 = vpop.f32.mrf.mxu0
        %4320 = vmatprep.mubr.bf16.mxu0 0
        %4321 = vmatmul.mubr.bf16.gmra.mxu0 %v4094
        %v4322 = vpop.f32.mrf.mxu0
        %v4323 = vadd.f32 %v4118, %v4322
        %v4324 = vpop.f32.mrf.mxu0
        %v4325 = vpop.f32.mrf.mxu0
        %v4326 = vadd.f32 %v4118, %v4325
        %v4327 = vpop.f32.mrf.mxu0
        %4328 = vdwg.mxu0
        %s4329 = scalar_lea.vmem %s9, 1
        %v4330 = vld [vmem:[%s4329] sm:$0x1]
        %s4331 = scalar_lea.vmem %s10, 1
        %v4332 = vld [vmem:[%s4331] sm:$0x1]
        %4333 = vadd.xlane.f32.xlu0 %v4203
        %v4334 = vpop.xlane.xlu0 %4333
        %4335 = vadd.xlane.f32.xlu0 %v4206
        %v4336 = vpop.xlane.xlu0 %4335
        %4337 = vadd.xlane.f32.xlu0 %v4211
        %v4338 = vpop.xlane.xlu0 %4337
        %4339 = vadd.xlane.f32.xlu0 %v4214
        %v4340 = vpop.xlane.xlu0 %4339
        %4341 = vadd.xlane.f32.xlu0 %v4219
        %v4342 = vpop.xlane.xlu0 %4341
        %4343 = vadd.xlane.f32.xlu0 %v4222
        %v4344 = vpop.xlane.xlu0 %4343
        %4345 = vadd.xlane.f32.xlu0 %v4227
        %v4346 = vpop.xlane.xlu0 %4345
        %4347 = vadd.xlane.f32.xlu0 %v4230
        %v4348 = vpop.xlane.xlu0 %4347
        %4349 = vadd.xlane.f32.xlu0 %v4235
        %v4350 = vpop.xlane.xlu0 %4349
        %4351 = vadd.xlane.f32.xlu0 %v4238
        %v4352 = vpop.xlane.xlu0 %4351
        %4353 = vadd.xlane.f32.xlu0 %v4243
        %v4354 = vpop.xlane.xlu0 %4353
        %4355 = vadd.xlane.f32.xlu0 %v4246
        %v4356 = vpop.xlane.xlu0 %4355
        %4357 = vadd.xlane.f32.xlu0 %v4251
        %v4358 = vpop.xlane.xlu0 %4357
        %4359 = vadd.xlane.f32.xlu0 %v4254
        %v4360 = vpop.xlane.xlu0 %4359
        %4361 = vadd.xlane.f32.xlu0 %v4259
        %v4362 = vpop.xlane.xlu0 %4361
        %4363 = vadd.xlane.f32.xlu0 %v4262
        %v4364 = vpop.xlane.xlu0 %4363
        %4365 = vadd.xlane.f32.xlu0 %v4267
        %v4366 = vpop.xlane.xlu0 %4365
        %4367 = vadd.xlane.f32.xlu0 %v4270
        %v4368 = vpop.xlane.xlu0 %4367
        %4369 = vadd.xlane.f32.xlu0 %v4275
        %v4370 = vpop.xlane.xlu0 %4369
        %4371 = vadd.xlane.f32.xlu0 %v4278
        %v4372 = vpop.xlane.xlu0 %4371
        %4373 = vadd.xlane.f32.xlu0 %v4283
        %v4374 = vpop.xlane.xlu0 %4373
        %4375 = vadd.xlane.f32.xlu0 %v4286
        %v4376 = vpop.xlane.xlu0 %4375
        %4377 = vadd.xlane.f32.xlu0 %v4291
        %v4378 = vpop.xlane.xlu0 %4377
        %4379 = vadd.xlane.f32.xlu0 %v4294
        %v4380 = vpop.xlane.xlu0 %4379
        %4381 = vadd.xlane.f32.xlu0 %v4299
        %v4382 = vpop.xlane.xlu0 %4381
        %4383 = vadd.xlane.f32.xlu0 %v4302
        %v4384 = vpop.xlane.xlu0 %4383
        %4385 = vadd.xlane.f32.xlu0 %v4307
        %v4386 = vpop.xlane.xlu0 %4385
        %4387 = vadd.xlane.f32.xlu0 %v4310
        %v4388 = vpop.xlane.xlu0 %4387
        %4389 = vadd.xlane.f32.xlu0 %v4315
        %v4390 = vpop.xlane.xlu0 %4389
        %4391 = vadd.xlane.f32.xlu0 %v4318
        %v4392 = vpop.xlane.xlu0 %4391
        %4393 = vadd.xlane.f32.xlu0 %v4323
        %v4394 = vpop.xlane.xlu0 %4393
        %4395 = vadd.xlane.f32.xlu0 %v4326
        %v4396 = vpop.xlane.xlu0 %4395
        %v4397 = vmul.f32 %v4334, %v1228
        %v4398 = vmul.f32 %v4336, %v1228
        %v4399 = vmul.f32 %v4338, %v1228
        %v4400 = vmul.f32 %v4340, %v1228
        %v4401 = vmul.f32 %v4342, %v1228
        %v4402 = vmul.f32 %v4344, %v1228
        %v4403 = vmul.f32 %v4346, %v1228
        %v4404 = vmul.f32 %v4348, %v1228
        %v4405 = vmul.f32 %v4350, %v1228
        %v4406 = vmul.f32 %v4352, %v1228
        %v4407 = vmul.f32 %v4354, %v1228
        %v4408 = vmul.f32 %v4356, %v1228
        %v4409 = vmul.f32 %v4358, %v1228
        %v4410 = vmul.f32 %v4360, %v1228
        %v4411 = vmul.f32 %v4362, %v1228
        %v4412 = vmul.f32 %v4364, %v1228
        %v4413 = vmul.f32 %v4366, %v1228
        %v4414 = vmul.f32 %v4368, %v1228
        %v4415 = vmul.f32 %v4370, %v1228
        %v4416 = vmul.f32 %v4372, %v1228
        %v4417 = vmul.f32 %v4374, %v1228
        %v4418 = vmul.f32 %v4376, %v1228
        %v4419 = vmul.f32 %v4378, %v1228
        %v4420 = vmul.f32 %v4380, %v1228
        %v4421 = vmul.f32 %v4382, %v1228
        %v4422 = vmul.f32 %v4384, %v1228
        %v4423 = vmul.f32 %v4386, %v1228
        %v4424 = vmul.f32 %v4388, %v1228
        %v4425 = vmul.f32 %v4390, %v1228
        %v4426 = vmul.f32 %v4392, %v1228
        %v4427 = vmul.f32 %v4394, %v1228
        %v4428 = vmul.f32 %v4396, %v1228
        %v4429 = vsub.f32 %v4203, %v4397
        %v4430 = vsub.f32 %v4206, %v4398
        %v4431 = vsub.f32 %v4211, %v4399
        %v4432 = vsub.f32 %v4214, %v4400
        %v4433 = vsub.f32 %v4219, %v4401
        %v4434 = vsub.f32 %v4222, %v4402
        %v4435 = vsub.f32 %v4227, %v4403
        %v4436 = vsub.f32 %v4230, %v4404
        %v4437 = vsub.f32 %v4235, %v4405
        %v4438 = vsub.f32 %v4238, %v4406
        %v4439 = vsub.f32 %v4243, %v4407
        %v4440 = vsub.f32 %v4246, %v4408
        %v4441 = vsub.f32 %v4251, %v4409
        %v4442 = vsub.f32 %v4254, %v4410
        %v4443 = vsub.f32 %v4259, %v4411
        %v4444 = vsub.f32 %v4262, %v4412
        %v4445 = vsub.f32 %v4267, %v4413
        %v4446 = vsub.f32 %v4270, %v4414
        %v4447 = vsub.f32 %v4275, %v4415
        %v4448 = vsub.f32 %v4278, %v4416
        %v4449 = vsub.f32 %v4283, %v4417
        %v4450 = vsub.f32 %v4286, %v4418
        %v4451 = vsub.f32 %v4291, %v4419
        %v4452 = vsub.f32 %v4294, %v4420
        %v4453 = vsub.f32 %v4299, %v4421
        %v4454 = vsub.f32 %v4302, %v4422
        %v4455 = vsub.f32 %v4307, %v4423
        %v4456 = vsub.f32 %v4310, %v4424
        %v4457 = vsub.f32 %v4315, %v4425
        %v4458 = vsub.f32 %v4318, %v4426
        %v4459 = vsub.f32 %v4323, %v4427
        %v4460 = vsub.f32 %v4326, %v4428
        %v4461 = vmul.f32 %v4429, %v4429
        %v4462 = vmul.f32 %v4430, %v4430
        %v4463 = vmul.f32 %v4431, %v4431
        %v4464 = vmul.f32 %v4432, %v4432
        %v4465 = vmul.f32 %v4433, %v4433
        %v4466 = vmul.f32 %v4434, %v4434
        %v4467 = vmul.f32 %v4435, %v4435
        %v4468 = vmul.f32 %v4436, %v4436
        %v4469 = vmul.f32 %v4437, %v4437
        %v4470 = vmul.f32 %v4438, %v4438
        %v4471 = vmul.f32 %v4439, %v4439
        %v4472 = vmul.f32 %v4440, %v4440
        %v4473 = vmul.f32 %v4441, %v4441
        %v4474 = vmul.f32 %v4442, %v4442
        %v4475 = vmul.f32 %v4443, %v4443
        %v4476 = vmul.f32 %v4444, %v4444
        %v4477 = vmul.f32 %v4445, %v4445
        %v4478 = vmul.f32 %v4446, %v4446
        %v4479 = vmul.f32 %v4447, %v4447
        %v4480 = vmul.f32 %v4448, %v4448
        %v4481 = vmul.f32 %v4449, %v4449
        %v4482 = vmul.f32 %v4450, %v4450
        %v4483 = vmul.f32 %v4451, %v4451
        %v4484 = vmul.f32 %v4452, %v4452
        %v4485 = vmul.f32 %v4453, %v4453
        %v4486 = vmul.f32 %v4454, %v4454
        %v4487 = vmul.f32 %v4455, %v4455
        %v4488 = vmul.f32 %v4456, %v4456
        %v4489 = vmul.f32 %v4457, %v4457
        %v4490 = vmul.f32 %v4458, %v4458
        %v4491 = vmul.f32 %v4459, %v4459
        %v4492 = vmul.f32 %v4460, %v4460
        %4493 = vadd.xlane.f32.xlu0 %v4461
        %v4494 = vpop.xlane.xlu0 %4493
        %4495 = vadd.xlane.f32.xlu0 %v4462
        %v4496 = vpop.xlane.xlu0 %4495
        %4497 = vadd.xlane.f32.xlu0 %v4463
        %v4498 = vpop.xlane.xlu0 %4497
        %4499 = vadd.xlane.f32.xlu0 %v4464
        %v4500 = vpop.xlane.xlu0 %4499
        %4501 = vadd.xlane.f32.xlu0 %v4465
        %v4502 = vpop.xlane.xlu0 %4501
        %4503 = vadd.xlane.f32.xlu0 %v4466
        %v4504 = vpop.xlane.xlu0 %4503
        %4505 = vadd.xlane.f32.xlu0 %v4467
        %v4506 = vpop.xlane.xlu0 %4505
        %4507 = vadd.xlane.f32.xlu0 %v4468
        %v4508 = vpop.xlane.xlu0 %4507
        %4509 = vadd.xlane.f32.xlu0 %v4469
        %v4510 = vpop.xlane.xlu0 %4509
        %4511 = vadd.xlane.f32.xlu0 %v4470
        %v4512 = vpop.xlane.xlu0 %4511
        %4513 = vadd.xlane.f32.xlu0 %v4471
        %v4514 = vpop.xlane.xlu0 %4513
        %4515 = vadd.xlane.f32.xlu0 %v4472
        %v4516 = vpop.xlane.xlu0 %4515
        %4517 = vadd.xlane.f32.xlu0 %v4473
        %v4518 = vpop.xlane.xlu0 %4517
        %4519 = vadd.xlane.f32.xlu0 %v4474
        %v4520 = vpop.xlane.xlu0 %4519
        %4521 = vadd.xlane.f32.xlu0 %v4475
        %v4522 = vpop.xlane.xlu0 %4521
        %4523 = vadd.xlane.f32.xlu0 %v4476
        %v4524 = vpop.xlane.xlu0 %4523
        %4525 = vadd.xlane.f32.xlu0 %v4477
        %v4526 = vpop.xlane.xlu0 %4525
        %4527 = vadd.xlane.f32.xlu0 %v4478
        %v4528 = vpop.xlane.xlu0 %4527
        %4529 = vadd.xlane.f32.xlu0 %v4479
        %v4530 = vpop.xlane.xlu0 %4529
        %4531 = vadd.xlane.f32.xlu0 %v4480
        %v4532 = vpop.xlane.xlu0 %4531
        %4533 = vadd.xlane.f32.xlu0 %v4481
        %v4534 = vpop.xlane.xlu0 %4533
        %4535 = vadd.xlane.f32.xlu0 %v4482
        %v4536 = vpop.xlane.xlu0 %4535
        %4537 = vadd.xlane.f32.xlu0 %v4483
        %v4538 = vpop.xlane.xlu0 %4537
        %4539 = vadd.xlane.f32.xlu0 %v4484
        %v4540 = vpop.xlane.xlu0 %4539
        %4541 = vadd.xlane.f32.xlu0 %v4485
        %v4542 = vpop.xlane.xlu0 %4541
        %4543 = vadd.xlane.f32.xlu0 %v4486
        %v4544 = vpop.xlane.xlu0 %4543
        %4545 = vadd.xlane.f32.xlu0 %v4487
        %v4546 = vpop.xlane.xlu0 %4545
        %4547 = vadd.xlane.f32.xlu0 %v4488
        %v4548 = vpop.xlane.xlu0 %4547
        %4549 = vadd.xlane.f32.xlu0 %v4489
        %v4550 = vpop.xlane.xlu0 %4549
        %4551 = vadd.xlane.f32.xlu0 %v4490
        %v4552 = vpop.xlane.xlu0 %4551
        %4553 = vadd.xlane.f32.xlu0 %v4491
        %v4554 = vpop.xlane.xlu0 %4553
        %4555 = vadd.xlane.f32.xlu0 %v4492
        %v4556 = vpop.xlane.xlu0 %4555
        %v4557 = vmul.f32 %v4494, %v1228
        %v4558 = vmul.f32 %v4496, %v1228
        %v4559 = vmul.f32 %v4498, %v1228
        %v4560 = vmul.f32 %v4500, %v1228
        %v4561 = vmul.f32 %v4502, %v1228
        %v4562 = vmul.f32 %v4504, %v1228
        %v4563 = vmul.f32 %v4506, %v1228
        %v4564 = vmul.f32 %v4508, %v1228
        %v4565 = vmul.f32 %v4510, %v1228
        %v4566 = vmul.f32 %v4512, %v1228
        %v4567 = vmul.f32 %v4514, %v1228
        %v4568 = vmul.f32 %v4516, %v1228
        %v4569 = vmul.f32 %v4518, %v1228
        %v4570 = vmul.f32 %v4520, %v1228
        %v4571 = vmul.f32 %v4522, %v1228
        %v4572 = vmul.f32 %v4524, %v1228
        %v4573 = vmul.f32 %v4526, %v1228
        %v4574 = vmul.f32 %v4528, %v1228
        %v4575 = vmul.f32 %v4530, %v1228
        %v4576 = vmul.f32 %v4532, %v1228
        %v4577 = vmul.f32 %v4534, %v1228
        %v4578 = vmul.f32 %v4536, %v1228
        %v4579 = vmul.f32 %v4538, %v1228
        %v4580 = vmul.f32 %v4540, %v1228
        %v4581 = vmul.f32 %v4542, %v1228
        %v4582 = vmul.f32 %v4544, %v1228
        %v4583 = vmul.f32 %v4546, %v1228
        %v4584 = vmul.f32 %v4548, %v1228
        %v4585 = vmul.f32 %v4550, %v1228
        %v4586 = vmul.f32 %v4552, %v1228
        %v4587 = vmul.f32 %v4554, %v1228
        %v4588 = vmul.f32 %v4556, %v1228
        %v4589 = vadd.f32 %v4557, 1e-05
        %v4590 = vadd.f32 %v4558, 1e-05
        %v4591 = vadd.f32 %v4559, 1e-05
        %v4592 = vadd.f32 %v4560, 1e-05
        %v4593 = vadd.f32 %v4561, 1e-05
        %v4594 = vadd.f32 %v4562, 1e-05
        %v4595 = vadd.f32 %v4563, 1e-05
        %v4596 = vadd.f32 %v4564, 1e-05
        %v4597 = vadd.f32 %v4565, 1e-05
        %v4598 = vadd.f32 %v4566, 1e-05
        %v4599 = vadd.f32 %v4567, 1e-05
        %v4600 = vadd.f32 %v4568, 1e-05
        %v4601 = vadd.f32 %v4569, 1e-05
        %v4602 = vadd.f32 %v4570, 1e-05
        %v4603 = vadd.f32 %v4571, 1e-05
        %v4604 = vadd.f32 %v4572, 1e-05
        %v4605 = vadd.f32 %v4573, 1e-05
        %v4606 = vadd.f32 %v4574, 1e-05
        %v4607 = vadd.f32 %v4575, 1e-05
        %v4608 = vadd.f32 %v4576, 1e-05
        %v4609 = vadd.f32 %v4577, 1e-05
        %v4610 = vadd.f32 %v4578, 1e-05
        %v4611 = vadd.f32 %v4579, 1e-05
        %v4612 = vadd.f32 %v4580, 1e-05
        %v4613 = vadd.f32 %v4581, 1e-05
        %v4614 = vadd.f32 %v4582, 1e-05
        %v4615 = vadd.f32 %v4583, 1e-05
        %v4616 = vadd.f32 %v4584, 1e-05
        %v4617 = vadd.f32 %v4585, 1e-05
        %v4618 = vadd.f32 %v4586, 1e-05
        %v4619 = vadd.f32 %v4587, 1e-05
        %v4620 = vadd.f32 %v4588, 1e-05
        %v4621 = vrsqrt.pop %v4589
        %v4622 = vrsqrt.pop %v4590
        %v4623 = vrsqrt.pop %v4591
        %v4624 = vrsqrt.pop %v4592
        %v4625 = vrsqrt.pop %v4593
        %v4626 = vrsqrt.pop %v4594
        %v4627 = vrsqrt.pop %v4595
        %v4628 = vrsqrt.pop %v4596
        %v4629 = vrsqrt.pop %v4597
        %v4630 = vrsqrt.pop %v4598
        %v4631 = vrsqrt.pop %v4599
        %v4632 = vrsqrt.pop %v4600
        %v4633 = vrsqrt.pop %v4601
        %v4634 = vrsqrt.pop %v4602
        %v4635 = vrsqrt.pop %v4603
        %v4636 = vrsqrt.pop %v4604
        %v4637 = vrsqrt.pop %v4605
        %v4638 = vrsqrt.pop %v4606
        %v4639 = vrsqrt.pop %v4607
        %v4640 = vrsqrt.pop %v4608
        %v4641 = vrsqrt.pop %v4609
        %v4642 = vrsqrt.pop %v4610
        %v4643 = vrsqrt.pop %v4611
        %v4644 = vrsqrt.pop %v4612
        %v4645 = vrsqrt.pop %v4613
        %v4646 = vrsqrt.pop %v4614
        %v4647 = vrsqrt.pop %v4615
        %v4648 = vrsqrt.pop %v4616
        %v4649 = vrsqrt.pop %v4617
        %v4650 = vrsqrt.pop %v4618
        %v4651 = vrsqrt.pop %v4619
        %v4652 = vrsqrt.pop %v4620
        %v4653 = vmul.f32 %v4429, %v4621
        %v4654 = vmul.f32 %v4430, %v4622
        %v4655 = vmul.f32 %v4431, %v4623
        %v4656 = vmul.f32 %v4432, %v4624
        %v4657 = vmul.f32 %v4433, %v4625
        %v4658 = vmul.f32 %v4434, %v4626
        %v4659 = vmul.f32 %v4435, %v4627
        %v4660 = vmul.f32 %v4436, %v4628
        %v4661 = vmul.f32 %v4437, %v4629
        %v4662 = vmul.f32 %v4438, %v4630
        %v4663 = vmul.f32 %v4439, %v4631
        %v4664 = vmul.f32 %v4440, %v4632
        %v4665 = vmul.f32 %v4441, %v4633
        %v4666 = vmul.f32 %v4442, %v4634
        %v4667 = vmul.f32 %v4443, %v4635
        %v4668 = vmul.f32 %v4444, %v4636
        %v4669 = vmul.f32 %v4445, %v4637
        %v4670 = vmul.f32 %v4446, %v4638
        %v4671 = vmul.f32 %v4447, %v4639
        %v4672 = vmul.f32 %v4448, %v4640
        %v4673 = vmul.f32 %v4449, %v4641
        %v4674 = vmul.f32 %v4450, %v4642
        %v4675 = vmul.f32 %v4451, %v4643
        %v4676 = vmul.f32 %v4452, %v4644
        %v4677 = vmul.f32 %v4453, %v4645
        %v4678 = vmul.f32 %v4454, %v4646
        %v4679 = vmul.f32 %v4455, %v4647
        %v4680 = vmul.f32 %v4456, %v4648
        %v4681 = vmul.f32 %v4457, %v4649
        %v4682 = vmul.f32 %v4458, %v4650
        %v4683 = vmul.f32 %v4459, %v4651
        %v4684 = vmul.f32 %v4460, %v4652
        %v4686 = vlaneseq
        %v4687 = vshrl.u32 %v4686, 7
        %v4688 = vsub.s32 0, %v4687
        %v4689 = vrot.slane %v4330, %v4688
        %v4691 = vmul.f32 %v4653, %v4689
        %v4692 = vmul.f32 %v4654, %v4689
        %v4693 = vmul.f32 %v4655, %v4689
        %v4694 = vmul.f32 %v4656, %v4689
        %v4695 = vmul.f32 %v4657, %v4689
        %v4696 = vmul.f32 %v4658, %v4689
        %v4697 = vmul.f32 %v4659, %v4689
        %v4698 = vmul.f32 %v4660, %v4689
        %v4699 = vmul.f32 %v4661, %v4689
        %v4700 = vmul.f32 %v4662, %v4689
        %v4701 = vmul.f32 %v4663, %v4689
        %v4702 = vmul.f32 %v4664, %v4689
        %v4703 = vmul.f32 %v4665, %v4689
        %v4704 = vmul.f32 %v4666, %v4689
        %v4705 = vmul.f32 %v4667, %v4689
        %v4706 = vmul.f32 %v4668, %v4689
        %v4707 = vmul.f32 %v4669, %v4689
        %v4708 = vmul.f32 %v4670, %v4689
        %v4709 = vmul.f32 %v4671, %v4689
        %v4710 = vmul.f32 %v4672, %v4689
        %v4711 = vmul.f32 %v4673, %v4689
        %v4712 = vmul.f32 %v4674, %v4689
        %v4713 = vmul.f32 %v4675, %v4689
        %v4714 = vmul.f32 %v4676, %v4689
        %v4715 = vmul.f32 %v4677, %v4689
        %v4716 = vmul.f32 %v4678, %v4689
        %v4717 = vmul.f32 %v4679, %v4689
        %v4718 = vmul.f32 %v4680, %v4689
        %v4719 = vmul.f32 %v4681, %v4689
        %v4720 = vmul.f32 %v4682, %v4689
        %v4721 = vmul.f32 %v4683, %v4689
        %v4722 = vmul.f32 %v4684, %v4689
        %v4724 = vlaneseq
        %v4725 = vshrl.u32 %v4724, 7
        %v4726 = vsub.s32 0, %v4725
        %v4727 = vrot.slane %v4332, %v4726
        %v4729 = vadd.f32 %v4691, %v4727
        %v4730 = vadd.f32 %v4692, %v4727
        %v4731 = vadd.f32 %v4693, %v4727
        %v4732 = vadd.f32 %v4694, %v4727
        %v4733 = vadd.f32 %v4695, %v4727
        %v4734 = vadd.f32 %v4696, %v4727
        %v4735 = vadd.f32 %v4697, %v4727
        %v4736 = vadd.f32 %v4698, %v4727
        %v4737 = vadd.f32 %v4699, %v4727
        %v4738 = vadd.f32 %v4700, %v4727
        %v4739 = vadd.f32 %v4701, %v4727
        %v4740 = vadd.f32 %v4702, %v4727
        %v4741 = vadd.f32 %v4703, %v4727
        %v4742 = vadd.f32 %v4704, %v4727
        %v4743 = vadd.f32 %v4705, %v4727
        %v4744 = vadd.f32 %v4706, %v4727
        %v4745 = vadd.f32 %v4707, %v4727
        %v4746 = vadd.f32 %v4708, %v4727
        %v4747 = vadd.f32 %v4709, %v4727
        %v4748 = vadd.f32 %v4710, %v4727
        %v4749 = vadd.f32 %v4711, %v4727
        %v4750 = vadd.f32 %v4712, %v4727
        %v4751 = vadd.f32 %v4713, %v4727
        %v4752 = vadd.f32 %v4714, %v4727
        %v4753 = vadd.f32 %v4715, %v4727
        %v4754 = vadd.f32 %v4716, %v4727
        %v4755 = vadd.f32 %v4717, %v4727
        %v4756 = vadd.f32 %v4718, %v4727
        %v4757 = vadd.f32 %v4719, %v4727
        %v4758 = vadd.f32 %v4720, %v4727
        %v4759 = vadd.f32 %v4721, %v4727
        %v4760 = vadd.f32 %v4722, %v4727
        %v4761 = vmul.f32 %v4729, 0.5
        %v4762 = vmul.f32 %v4730, 0.5
        %v4763 = vmul.f32 %v4731, 0.5
        %v4764 = vmul.f32 %v4732, 0.5
        %v4765 = vmul.f32 %v4733, 0.5
        %v4766 = vmul.f32 %v4734, 0.5
        %v4767 = vmul.f32 %v4735, 0.5
        %v4768 = vmul.f32 %v4736, 0.5
        %v4769 = vmul.f32 %v4737, 0.5
        %v4770 = vmul.f32 %v4738, 0.5
        %v4771 = vmul.f32 %v4739, 0.5
        %v4772 = vmul.f32 %v4740, 0.5
        %v4773 = vmul.f32 %v4741, 0.5
        %v4774 = vmul.f32 %v4742, 0.5
        %v4775 = vmul.f32 %v4743, 0.5
        %v4776 = vmul.f32 %v4744, 0.5
        %v4777 = vmul.f32 %v4745, 0.5
        %v4778 = vmul.f32 %v4746, 0.5
        %v4779 = vmul.f32 %v4747, 0.5
        %v4780 = vmul.f32 %v4748, 0.5
        %v4781 = vmul.f32 %v4749, 0.5
        %v4782 = vmul.f32 %v4750, 0.5
        %v4783 = vmul.f32 %v4751, 0.5
        %v4784 = vmul.f32 %v4752, 0.5
        %v4785 = vmul.f32 %v4753, 0.5
        %v4786 = vmul.f32 %v4754, 0.5
        %v4787 = vmul.f32 %v4755, 0.5
        %v4788 = vmul.f32 %v4756, 0.5
        %v4789 = vmul.f32 %v4757, 0.5
        %v4790 = vmul.f32 %v4758, 0.5
        %v4791 = vmul.f32 %v4759, 0.5
        %v4792 = vmul.f32 %v4760, 0.5
        %v4793 = vmul.f32 %v4729, 0.044715
        %v4794 = vmul.f32 %v4730, 0.044715
        %v4795 = vmul.f32 %v4731, 0.044715
        %v4796 = vmul.f32 %v4732, 0.044715
        %v4797 = vmul.f32 %v4733, 0.044715
        %v4798 = vmul.f32 %v4734, 0.044715
        %v4799 = vmul.f32 %v4735, 0.044715
        %v4800 = vmul.f32 %v4736, 0.044715
        %v4801 = vmul.f32 %v4737, 0.044715
        %v4802 = vmul.f32 %v4738, 0.044715
        %v4803 = vmul.f32 %v4739, 0.044715
        %v4804 = vmul.f32 %v4740, 0.044715
        %v4805 = vmul.f32 %v4741, 0.044715
        %v4806 = vmul.f32 %v4742, 0.044715
        %v4807 = vmul.f32 %v4743, 0.044715
        %v4808 = vmul.f32 %v4744, 0.044715
        %v4809 = vmul.f32 %v4745, 0.044715
        %v4810 = vmul.f32 %v4746, 0.044715
        %v4811 = vmul.f32 %v4747, 0.044715
        %v4812 = vmul.f32 %v4748, 0.044715
        %v4813 = vmul.f32 %v4749, 0.044715
        %v4814 = vmul.f32 %v4750, 0.044715
        %v4815 = vmul.f32 %v4751, 0.044715
        %v4816 = vmul.f32 %v4752, 0.044715
        %v4817 = vmul.f32 %v4753, 0.044715
        %v4818 = vmul.f32 %v4754, 0.044715
        %v4819 = vmul.f32 %v4755, 0.044715
        %v4820 = vmul.f32 %v4756, 0.044715
        %v4821 = vmul.f32 %v4757, 0.044715
        %v4822 = vmul.f32 %v4758, 0.044715
        %v4823 = vmul.f32 %v4759, 0.044715
        %v4824 = vmul.f32 %v4760, 0.044715
        %v4825 = vmul.f32 %v4793, %v4729
        %v4826 = vmul.f32 %v4794, %v4730
        %v4827 = vmul.f32 %v4795, %v4731
        %v4828 = vmul.f32 %v4796, %v4732
        %v4829 = vmul.f32 %v4797, %v4733
        %v4830 = vmul.f32 %v4798, %v4734
        %v4831 = vmul.f32 %v4799, %v4735
        %v4832 = vmul.f32 %v4800, %v4736
        %v4833 = vmul.f32 %v4801, %v4737
        %v4834 = vmul.f32 %v4802, %v4738
        %v4835 = vmul.f32 %v4803, %v4739
        %v4836 = vmul.f32 %v4804, %v4740
        %v4837 = vmul.f32 %v4805, %v4741
        %v4838 = vmul.f32 %v4806, %v4742
        %v4839 = vmul.f32 %v4807, %v4743
        %v4840 = vmul.f32 %v4808, %v4744
        %v4841 = vmul.f32 %v4809, %v4745
        %v4842 = vmul.f32 %v4810, %v4746
        %v4843 = vmul.f32 %v4811, %v4747
        %v4844 = vmul.f32 %v4812, %v4748
        %v4845 = vmul.f32 %v4813, %v4749
        %v4846 = vmul.f32 %v4814, %v4750
        %v4847 = vmul.f32 %v4815, %v4751
        %v4848 = vmul.f32 %v4816, %v4752
        %v4849 = vmul.f32 %v4817, %v4753
        %v4850 = vmul.f32 %v4818, %v4754
        %v4851 = vmul.f32 %v4819, %v4755
        %v4852 = vmul.f32 %v4820, %v4756
        %v4853 = vmul.f32 %v4821, %v4757
        %v4854 = vmul.f32 %v4822, %v4758
        %v4855 = vmul.f32 %v4823, %v4759
        %v4856 = vmul.f32 %v4824, %v4760
        %v4857 = vmul.f32 %v4825, %v4729
        %v4858 = vmul.f32 %v4826, %v4730
        %v4859 = vmul.f32 %v4827, %v4731
        %v4860 = vmul.f32 %v4828, %v4732
        %v4861 = vmul.f32 %v4829, %v4733
        %v4862 = vmul.f32 %v4830, %v4734
        %v4863 = vmul.f32 %v4831, %v4735
        %v4864 = vmul.f32 %v4832, %v4736
        %v4865 = vmul.f32 %v4833, %v4737
        %v4866 = vmul.f32 %v4834, %v4738
        %v4867 = vmul.f32 %v4835, %v4739
        %v4868 = vmul.f32 %v4836, %v4740
        %v4869 = vmul.f32 %v4837, %v4741
        %v4870 = vmul.f32 %v4838, %v4742
        %v4871 = vmul.f32 %v4839, %v4743
        %v4872 = vmul.f32 %v4840, %v4744
        %v4873 = vmul.f32 %v4841, %v4745
        %v4874 = vmul.f32 %v4842, %v4746
        %v4875 = vmul.f32 %v4843, %v4747
        %v4876 = vmul.f32 %v4844, %v4748
        %v4877 = vmul.f32 %v4845, %v4749
        %v4878 = vmul.f32 %v4846, %v4750
        %v4879 = vmul.f32 %v4847, %v4751
        %v4880 = vmul.f32 %v4848, %v4752
        %v4881 = vmul.f32 %v4849, %v4753
        %v4882 = vmul.f32 %v4850, %v4754
        %v4883 = vmul.f32 %v4851, %v4755
        %v4884 = vmul.f32 %v4852, %v4756
        %v4885 = vmul.f32 %v4853, %v4757
        %v4886 = vmul.f32 %v4854, %v4758
        %v4887 = vmul.f32 %v4855, %v4759
        %v4888 = vmul.f32 %v4856, %v4760
        %v4889 = vadd.f32 %v4729, %v4857
        %v4890 = vadd.f32 %v4730, %v4858
        %v4891 = vadd.f32 %v4731, %v4859
        %v4892 = vadd.f32 %v4732, %v4860
        %v4893 = vadd.f32 %v4733, %v4861
        %v4894 = vadd.f32 %v4734, %v4862
        %v4895 = vadd.f32 %v4735, %v4863
        %v4896 = vadd.f32 %v4736, %v4864
        %v4897 = vadd.f32 %v4737, %v4865
        %v4898 = vadd.f32 %v4738, %v4866
        %v4899 = vadd.f32 %v4739, %v4867
        %v4900 = vadd.f32 %v4740, %v4868
        %v4901 = vadd.f32 %v4741, %v4869
        %v4902 = vadd.f32 %v4742, %v4870
        %v4903 = vadd.f32 %v4743, %v4871
        %v4904 = vadd.f32 %v4744, %v4872
        %v4905 = vadd.f32 %v4745, %v4873
        %v4906 = vadd.f32 %v4746, %v4874
        %v4907 = vadd.f32 %v4747, %v4875
        %v4908 = vadd.f32 %v4748, %v4876
        %v4909 = vadd.f32 %v4749, %v4877
        %v4910 = vadd.f32 %v4750, %v4878
        %v4911 = vadd.f32 %v4751, %v4879
        %v4912 = vadd.f32 %v4752, %v4880
        %v4913 = vadd.f32 %v4753, %v4881
        %v4914 = vadd.f32 %v4754, %v4882
        %v4915 = vadd.f32 %v4755, %v4883
        %v4916 = vadd.f32 %v4756, %v4884
        %v4917 = vadd.f32 %v4757, %v4885
        %v4918 = vadd.f32 %v4758, %v4886
        %v4919 = vadd.f32 %v4759, %v4887
        %v4920 = vadd.f32 %v4760, %v4888
        %v4921 = vmul.f32 %v4889, 0.7978846
        %v4922 = vmul.f32 %v4890, 0.7978846
        %v4923 = vmul.f32 %v4891, 0.7978846
        %v4924 = vmul.f32 %v4892, 0.7978846
        %v4925 = vmul.f32 %v4893, 0.7978846
        %v4926 = vmul.f32 %v4894, 0.7978846
        %v4927 = vmul.f32 %v4895, 0.7978846
        %v4928 = vmul.f32 %v4896, 0.7978846
        %v4929 = vmul.f32 %v4897, 0.7978846
        %v4930 = vmul.f32 %v4898, 0.7978846
        %v4931 = vmul.f32 %v4899, 0.7978846
        %v4932 = vmul.f32 %v4900, 0.7978846
        %v4933 = vmul.f32 %v4901, 0.7978846
        %v4934 = vmul.f32 %v4902, 0.7978846
        %v4935 = vmul.f32 %v4903, 0.7978846
        %v4936 = vmul.f32 %v4904, 0.7978846
        %v4937 = vmul.f32 %v4905, 0.7978846
        %v4938 = vmul.f32 %v4906, 0.7978846
        %v4939 = vmul.f32 %v4907, 0.7978846
        %v4940 = vmul.f32 %v4908, 0.7978846
        %v4941 = vmul.f32 %v4909, 0.7978846
        %v4942 = vmul.f32 %v4910, 0.7978846
        %v4943 = vmul.f32 %v4911, 0.7978846
        %v4944 = vmul.f32 %v4912, 0.7978846
        %v4945 = vmul.f32 %v4913, 0.7978846
        %v4946 = vmul.f32 %v4914, 0.7978846
        %v4947 = vmul.f32 %v4915, 0.7978846
        %v4948 = vmul.f32 %v4916, 0.7978846
        %v4949 = vmul.f32 %v4917, 0.7978846
        %v4950 = vmul.f32 %v4918, 0.7978846
        %v4951 = vmul.f32 %v4919, 0.7978846
        %v4952 = vmul.f32 %v4920, 0.7978846
        %v4953 = vtanh.pop %v4921
        %v4954 = vtanh.pop %v4922
        %v4955 = vtanh.pop %v4923
        %v4956 = vtanh.pop %v4924
        %v4957 = vtanh.pop %v4925
        %v4958 = vtanh.pop %v4926
        %v4959 = vtanh.pop %v4927
        %v4960 = vtanh.pop %v4928
        %v4961 = vtanh.pop %v4929
        %v4962 = vtanh.pop %v4930
        %v4963 = vtanh.pop %v4931
        %v4964 = vtanh.pop %v4932
        %v4965 = vtanh.pop %v4933
        %v4966 = vtanh.pop %v4934
        %v4967 = vtanh.pop %v4935
        %v4968 = vtanh.pop %v4936
        %v4969 = vtanh.pop %v4937
        %v4970 = vtanh.pop %v4938
        %v4971 = vtanh.pop %v4939
        %v4972 = vtanh.pop %v4940
        %v4973 = vtanh.pop %v4941
        %v4974 = vtanh.pop %v4942
        %v4975 = vtanh.pop %v4943
        %v4976 = vtanh.pop %v4944
        %v4977 = vtanh.pop %v4945
        %v4978 = vtanh.pop %v4946
        %v4979 = vtanh.pop %v4947
        %v4980 = vtanh.pop %v4948
        %v4981 = vtanh.pop %v4949
        %v4982 = vtanh.pop %v4950
        %v4983 = vtanh.pop %v4951
        %v4984 = vtanh.pop %v4952
        %v4985 = vadd.f32 %v4953, 1.0
        %v4986 = vadd.f32 %v4954, 1.0
        %v4987 = vadd.f32 %v4955, 1.0
        %v4988 = vadd.f32 %v4956, 1.0
        %v4989 = vadd.f32 %v4957, 1.0
        %v4990 = vadd.f32 %v4958, 1.0
        %v4991 = vadd.f32 %v4959, 1.0
        %v4992 = vadd.f32 %v4960, 1.0
        %v4993 = vadd.f32 %v4961, 1.0
        %v4994 = vadd.f32 %v4962, 1.0
        %v4995 = vadd.f32 %v4963, 1.0
        %v4996 = vadd.f32 %v4964, 1.0
        %v4997 = vadd.f32 %v4965, 1.0
        %v4998 = vadd.f32 %v4966, 1.0
        %v4999 = vadd.f32 %v4967, 1.0
        %v5000 = vadd.f32 %v4968, 1.0
        %v5001 = vadd.f32 %v4969, 1.0
        %v5002 = vadd.f32 %v4970, 1.0
        %v5003 = vadd.f32 %v4971, 1.0
        %v5004 = vadd.f32 %v4972, 1.0
        %v5005 = vadd.f32 %v4973, 1.0
        %v5006 = vadd.f32 %v4974, 1.0
        %v5007 = vadd.f32 %v4975, 1.0
        %v5008 = vadd.f32 %v4976, 1.0
        %v5009 = vadd.f32 %v4977, 1.0
        %v5010 = vadd.f32 %v4978, 1.0
        %v5011 = vadd.f32 %v4979, 1.0
        %v5012 = vadd.f32 %v4980, 1.0
        %v5013 = vadd.f32 %v4981, 1.0
        %v5014 = vadd.f32 %v4982, 1.0
        %v5015 = vadd.f32 %v4983, 1.0
        %v5016 = vadd.f32 %v4984, 1.0
        %v5017 = vmul.f32 %v4761, %v4985
        %v5018 = vmul.f32 %v4762, %v4986
        %v5019 = vmul.f32 %v4763, %v4987
        %v5020 = vmul.f32 %v4764, %v4988
        %v5021 = vmul.f32 %v4765, %v4989
        %v5022 = vmul.f32 %v4766, %v4990
        %v5023 = vmul.f32 %v4767, %v4991
        %v5024 = vmul.f32 %v4768, %v4992
        %v5025 = vmul.f32 %v4769, %v4993
        %v5026 = vmul.f32 %v4770, %v4994
        %v5027 = vmul.f32 %v4771, %v4995
        %v5028 = vmul.f32 %v4772, %v4996
        %v5029 = vmul.f32 %v4773, %v4997
        %v5030 = vmul.f32 %v4774, %v4998
        %v5031 = vmul.f32 %v4775, %v4999
        %v5032 = vmul.f32 %v4776, %v5000
        %v5033 = vmul.f32 %v4777, %v5001
        %v5034 = vmul.f32 %v4778, %v5002
        %v5035 = vmul.f32 %v4779, %v5003
        %v5036 = vmul.f32 %v4780, %v5004
        %v5037 = vmul.f32 %v4781, %v5005
        %v5038 = vmul.f32 %v4782, %v5006
        %v5039 = vmul.f32 %v4783, %v5007
        %v5040 = vmul.f32 %v4784, %v5008
        %v5041 = vmul.f32 %v4785, %v5009
        %v5042 = vmul.f32 %v4786, %v5010
        %v5043 = vmul.f32 %v4787, %v5011
        %v5044 = vmul.f32 %v4788, %v5012
        %v5045 = vmul.f32 %v4789, %v5013
        %v5046 = vmul.f32 %v4790, %v5014
        %v5047 = vmul.f32 %v4791, %v5015
        %v5048 = vmul.f32 %v4792, %v5016
        %v5049 = vld [vmem:[%s451] sm:$0xff]
        %v5050 = vld [vmem:[%s451 + $0x8] sm:$0xff]
        %v5051 = vld [vmem:[%s451 + $0x10] sm:$0xff]
        %v5052 = vld [vmem:[%s451 + $0x18] sm:$0xff]
        %v5053 = vld [vmem:[%s451 + $0x20] sm:$0xff]
        %v5054 = vld [vmem:[%s451 + $0x28] sm:$0xff]
        %v5055 = vld [vmem:[%s451 + $0x30] sm:$0xff]
        %v5056 = vld [vmem:[%s451 + $0x38] sm:$0xff]
        %v5057 = vld [vmem:[%s451 + $0x40] sm:$0xff]
        %v5058 = vld [vmem:[%s451 + $0x48] sm:$0xff]
        %v5059 = vld [vmem:[%s451 + $0x50] sm:$0xff]
        %v5060 = vld [vmem:[%s451 + $0x58] sm:$0xff]
        %v5061 = vld [vmem:[%s451 + $0x60] sm:$0xff]
        %v5062 = vld [vmem:[%s451 + $0x68] sm:$0xff]
        %v5063 = vld [vmem:[%s451 + $0x70] sm:$0xff]
        %v5064 = vld [vmem:[%s451 + $0x78] sm:$0xff]
        %v5065 = vld [vmem:[%s451 + $0x80] sm:$0xff]
        %v5066 = vld [vmem:[%s451 + $0x88] sm:$0xff]
        %v5067 = vld [vmem:[%s451 + $0x90] sm:$0xff]
        %v5068 = vld [vmem:[%s451 + $0x98] sm:$0xff]
        %v5069 = vld [vmem:[%s451 + $0xa0] sm:$0xff]
        %v5070 = vld [vmem:[%s451 + $0xa8] sm:$0xff]
        %v5071 = vld [vmem:[%s451 + $0xb0] sm:$0xff]
        %v5072 = vld [vmem:[%s451 + $0xb8] sm:$0xff]
        %v5073 = vld [vmem:[%s451 + $0xc0] sm:$0xff]
        %v5074 = vld [vmem:[%s451 + $0xc8] sm:$0xff]
        %v5075 = vld [vmem:[%s451 + $0xd0] sm:$0xff]
        %v5076 = vld [vmem:[%s451 + $0xd8] sm:$0xff]
        %v5077 = vld [vmem:[%s451 + $0xe0] sm:$0xff]
        %v5078 = vld [vmem:[%s451 + $0xe8] sm:$0xff]
        %v5079 = vld [vmem:[%s451 + $0xf0] sm:$0xff]
        %v5080 = vld [vmem:[%s451 + $0xf8] sm:$0xff]
        %v5081 = vadd.f32 %v5049, %v5017
        %v5082 = vadd.f32 %v5050, %v5018
        %v5083 = vadd.f32 %v5051, %v5019
        %v5084 = vadd.f32 %v5052, %v5020
        %v5085 = vadd.f32 %v5053, %v5021
        %v5086 = vadd.f32 %v5054, %v5022
        %v5087 = vadd.f32 %v5055, %v5023
        %v5088 = vadd.f32 %v5056, %v5024
        %v5089 = vadd.f32 %v5057, %v5025
        %v5090 = vadd.f32 %v5058, %v5026
        %v5091 = vadd.f32 %v5059, %v5027
        %v5092 = vadd.f32 %v5060, %v5028
        %v5093 = vadd.f32 %v5061, %v5029
        %v5094 = vadd.f32 %v5062, %v5030
        %v5095 = vadd.f32 %v5063, %v5031
        %v5096 = vadd.f32 %v5064, %v5032
        %v5097 = vadd.f32 %v5065, %v5033
        %v5098 = vadd.f32 %v5066, %v5034
        %v5099 = vadd.f32 %v5067, %v5035
        %v5100 = vadd.f32 %v5068, %v5036
        %v5101 = vadd.f32 %v5069, %v5037
        %v5102 = vadd.f32 %v5070, %v5038
        %v5103 = vadd.f32 %v5071, %v5039
        %v5104 = vadd.f32 %v5072, %v5040
        %v5105 = vadd.f32 %v5073, %v5041
        %v5106 = vadd.f32 %v5074, %v5042
        %v5107 = vadd.f32 %v5075, %v5043
        %v5108 = vadd.f32 %v5076, %v5044
        %v5109 = vadd.f32 %v5077, %v5045
        %v5110 = vadd.f32 %v5078, %v5046
        %v5111 = vadd.f32 %v5079, %v5047
        %v5112 = vadd.f32 %v5080, %v5048
        %5113 = vst [vmem:[%s451] sm:$0xff] %v5081
        %5114 = vst [vmem:[%s451 + $0x8] sm:$0xff] %v5082
        %5115 = vst [vmem:[%s451 + $0x10] sm:$0xff] %v5083
        %5116 = vst [vmem:[%s451 + $0x18] sm:$0xff] %v5084
        %5117 = vst [vmem:[%s451 + $0x20] sm:$0xff] %v5085
        %5118 = vst [vmem:[%s451 + $0x28] sm:$0xff] %v5086
        %5119 = vst [vmem:[%s451 + $0x30] sm:$0xff] %v5087
        %5120 = vst [vmem:[%s451 + $0x38] sm:$0xff] %v5088
        %5121 = vst [vmem:[%s451 + $0x40] sm:$0xff] %v5089
        %5122 = vst [vmem:[%s451 + $0x48] sm:$0xff] %v5090
        %5123 = vst [vmem:[%s451 + $0x50] sm:$0xff] %v5091
        %5124 = vst [vmem:[%s451 + $0x58] sm:$0xff] %v5092
        %5125 = vst [vmem:[%s451 + $0x60] sm:$0xff] %v5093
        %5126 = vst [vmem:[%s451 + $0x68] sm:$0xff] %v5094
        %5127 = vst [vmem:[%s451 + $0x70] sm:$0xff] %v5095
        %5128 = vst [vmem:[%s451 + $0x78] sm:$0xff] %v5096
        %5129 = vst [vmem:[%s451 + $0x80] sm:$0xff] %v5097
        %5130 = vst [vmem:[%s451 + $0x88] sm:$0xff] %v5098
        %5131 = vst [vmem:[%s451 + $0x90] sm:$0xff] %v5099
        %5132 = vst [vmem:[%s451 + $0x98] sm:$0xff] %v5100
        %5133 = vst [vmem:[%s451 + $0xa0] sm:$0xff] %v5101
        %5134 = vst [vmem:[%s451 + $0xa8] sm:$0xff] %v5102
        %5135 = vst [vmem:[%s451 + $0xb0] sm:$0xff] %v5103
        %5136 = vst [vmem:[%s451 + $0xb8] sm:$0xff] %v5104
        %5137 = vst [vmem:[%s451 + $0xc0] sm:$0xff] %v5105
        %5138 = vst [vmem:[%s451 + $0xc8] sm:$0xff] %v5106
        %5139 = vst [vmem:[%s451 + $0xd0] sm:$0xff] %v5107
        %5140 = vst [vmem:[%s451 + $0xd8] sm:$0xff] %v5108
        %5141 = vst [vmem:[%s451 + $0xe0] sm:$0xff] %v5109
        %5142 = vst [vmem:[%s451 + $0xe8] sm:$0xff] %v5110
        %5143 = vst [vmem:[%s451 + $0xf0] sm:$0xff] %v5111
        %5144 = vst [vmem:[%s451 + $0xf8] sm:$0xff] %v5112
        %v5145 = vld [vmem:[%s451] sm:$0xff]
        %v5146 = vld [vmem:[%s451 + $0x8] sm:$0xff]
        %v5147 = vld [vmem:[%s451 + $0x10] sm:$0xff]
        %v5148 = vld [vmem:[%s451 + $0x18] sm:$0xff]
        %v5149 = vld [vmem:[%s451 + $0x20] sm:$0xff]
        %v5150 = vld [vmem:[%s451 + $0x28] sm:$0xff]
        %v5151 = vld [vmem:[%s451 + $0x30] sm:$0xff]
        %v5152 = vld [vmem:[%s451 + $0x38] sm:$0xff]
        %v5153 = vld [vmem:[%s451 + $0x40] sm:$0xff]
        %v5154 = vld [vmem:[%s451 + $0x48] sm:$0xff]
        %v5155 = vld [vmem:[%s451 + $0x50] sm:$0xff]
        %v5156 = vld [vmem:[%s451 + $0x58] sm:$0xff]
        %v5157 = vld [vmem:[%s451 + $0x60] sm:$0xff]
        %v5158 = vld [vmem:[%s451 + $0x68] sm:$0xff]
        %v5159 = vld [vmem:[%s451 + $0x70] sm:$0xff]
        %v5160 = vld [vmem:[%s451 + $0x78] sm:$0xff]
        %v5161 = vld [vmem:[%s451 + $0x80] sm:$0xff]
        %v5162 = vld [vmem:[%s451 + $0x88] sm:$0xff]
        %v5163 = vld [vmem:[%s451 + $0x90] sm:$0xff]
        %v5164 = vld [vmem:[%s451 + $0x98] sm:$0xff]
        %v5165 = vld [vmem:[%s451 + $0xa0] sm:$0xff]
        %v5166 = vld [vmem:[%s451 + $0xa8] sm:$0xff]
        %v5167 = vld [vmem:[%s451 + $0xb0] sm:$0xff]
        %v5168 = vld [vmem:[%s451 + $0xb8] sm:$0xff]
        %v5169 = vld [vmem:[%s451 + $0xc0] sm:$0xff]
        %v5170 = vld [vmem:[%s451 + $0xc8] sm:$0xff]
        %v5171 = vld [vmem:[%s451 + $0xd0] sm:$0xff]
        %v5172 = vld [vmem:[%s451 + $0xd8] sm:$0xff]
        %v5173 = vld [vmem:[%s451 + $0xe0] sm:$0xff]
        %v5174 = vld [vmem:[%s451 + $0xe8] sm:$0xff]
        %v5175 = vld [vmem:[%s451 + $0xf0] sm:$0xff]
        %v5176 = vld [vmem:[%s451 + $0xf8] sm:$0xff]
        %v5177 = vmul.f32 %v5145, %v552
        %v5178 = vmul.f32 %v5146, %v553
        %v5179 = vmul.f32 %v5147, %v554
        %v5180 = vmul.f32 %v5148, %v555
        %v5181 = vmul.f32 %v5149, %v556
        %v5182 = vmul.f32 %v5150, %v557
        %v5183 = vmul.f32 %v5151, %v558
        %v5184 = vmul.f32 %v5152, %v559
        %v5185 = vmul.f32 %v5153, %v560
        %v5186 = vmul.f32 %v5154, %v561
        %v5187 = vmul.f32 %v5155, %v562
        %v5188 = vmul.f32 %v5156, %v563
        %v5189 = vmul.f32 %v5157, %v564
        %v5190 = vmul.f32 %v5158, %v565
        %v5191 = vmul.f32 %v5159, %v566
        %v5192 = vmul.f32 %v5160, %v567
        %v5193 = vmul.f32 %v5161, %v568
        %v5194 = vmul.f32 %v5162, %v569
        %v5195 = vmul.f32 %v5163, %v570
        %v5196 = vmul.f32 %v5164, %v571
        %v5197 = vmul.f32 %v5165, %v572
        %v5198 = vmul.f32 %v5166, %v573
        %v5199 = vmul.f32 %v5167, %v574
        %v5200 = vmul.f32 %v5168, %v575
        %v5201 = vmul.f32 %v5169, %v576
        %v5202 = vmul.f32 %v5170, %v577
        %v5203 = vmul.f32 %v5171, %v578
        %v5204 = vmul.f32 %v5172, %v579
        %v5205 = vmul.f32 %v5173, %v580
        %v5206 = vmul.f32 %v5174, %v581
        %v5207 = vmul.f32 %v5175, %v582
        %v5208 = vmul.f32 %v5176, %v583
        %5209 = vst [vmem:[#allocation2 + $0x10] sm:$0xff] %v5177
        %5210 = vst [vmem:[#allocation2 + $0x18] sm:$0xff] %v5178
        %5211 = vst [vmem:[#allocation2 + $0x20] sm:$0xff] %v5179
        %5212 = vst [vmem:[#allocation2 + $0x28] sm:$0xff] %v5180
        %5213 = vst [vmem:[#allocation2 + $0x30] sm:$0xff] %v5181
        %5214 = vst [vmem:[#allocation2 + $0x38] sm:$0xff] %v5182
        %5215 = vst [vmem:[#allocation2 + $0x40] sm:$0xff] %v5183
        %5216 = vst [vmem:[#allocation2 + $0x48] sm:$0xff] %v5184
        %5217 = vst [vmem:[#allocation2 + $0x50] sm:$0xff] %v5185
        %5218 = vst [vmem:[#allocation2 + $0x58] sm:$0xff] %v5186
        %5219 = vst [vmem:[#allocation2 + $0x60] sm:$0xff] %v5187
        %5220 = vst [vmem:[#allocation2 + $0x68] sm:$0xff] %v5188
        %5221 = vst [vmem:[#allocation2 + $0x70] sm:$0xff] %v5189
        %5222 = vst [vmem:[#allocation2 + $0x78] sm:$0xff] %v5190
        %5223 = vst [vmem:[#allocation2 + $0x80] sm:$0xff] %v5191
        %5224 = vst [vmem:[#allocation2 + $0x88] sm:$0xff] %v5192
        %5225 = vst [vmem:[#allocation2 + $0x90] sm:$0xff] %v5193
        %5226 = vst [vmem:[#allocation2 + $0x98] sm:$0xff] %v5194
        %5227 = vst [vmem:[#allocation2 + $0xa0] sm:$0xff] %v5195
        %5228 = vst [vmem:[#allocation2 + $0xa8] sm:$0xff] %v5196
        %5229 = vst [vmem:[#allocation2 + $0xb0] sm:$0xff] %v5197
        %5230 = vst [vmem:[#allocation2 + $0xb8] sm:$0xff] %v5198
        %5231 = vst [vmem:[#allocation2 + $0xc0] sm:$0xff] %v5199
        %5232 = vst [vmem:[#allocation2 + $0xc8] sm:$0xff] %v5200
        %5233 = vst [vmem:[#allocation2 + $0xd0] sm:$0xff] %v5201
        %5234 = vst [vmem:[#allocation2 + $0xd8] sm:$0xff] %v5202
        %5235 = vst [vmem:[#allocation2 + $0xe0] sm:$0xff] %v5203
        %5236 = vst [vmem:[#allocation2 + $0xe8] sm:$0xff] %v5204
        %5237 = vst [vmem:[#allocation2 + $0xf0] sm:$0xff] %v5205
        %5238 = vst [vmem:[#allocation2 + $0xf8] sm:$0xff] %v5206
        %5239 = vst [vmem:[#allocation2 + $0x100] sm:$0xff] %v5207
        %5240 = vst [vmem:[#allocation2 + $0x108] sm:$0xff] %v5208
        %v5241 = vld [vmem:[#allocation2 + $0x7] sm:$0xff]
        %v5242 = vld [vmem:[#allocation2 + $0xf] sm:$0xff]
        %v5243 = vld [vmem:[#allocation2 + $0x17] sm:$0xff]
        %v5244 = vld [vmem:[#allocation2 + $0x1f] sm:$0xff]
        %v5245 = vld [vmem:[#allocation2 + $0x27] sm:$0xff]
        %v5246 = vld [vmem:[#allocation2 + $0x2f] sm:$0xff]
        %v5247 = vld [vmem:[#allocation2 + $0x37] sm:$0xff]
        %v5248 = vld [vmem:[#allocation2 + $0x3f] sm:$0xff]
        %v5249 = vld [vmem:[#allocation2 + $0x47] sm:$0xff]
        %v5250 = vld [vmem:[#allocation2 + $0x4f] sm:$0xff]
        %v5251 = vld [vmem:[#allocation2 + $0x57] sm:$0xff]
        %v5252 = vld [vmem:[#allocation2 + $0x5f] sm:$0xff]
        %v5253 = vld [vmem:[#allocation2 + $0x67] sm:$0xff]
        %v5254 = vld [vmem:[#allocation2 + $0x6f] sm:$0xff]
        %v5255 = vld [vmem:[#allocation2 + $0x77] sm:$0xff]
        %v5256 = vld [vmem:[#allocation2 + $0x7f] sm:$0xff]
        %v5257 = vld [vmem:[#allocation2 + $0x87] sm:$0xff]
        %v5258 = vld [vmem:[#allocation2 + $0x8f] sm:$0xff]
        %v5259 = vld [vmem:[#allocation2 + $0x97] sm:$0xff]
        %v5260 = vld [vmem:[#allocation2 + $0x9f] sm:$0xff]
        %v5261 = vld [vmem:[#allocation2 + $0xa7] sm:$0xff]
        %v5262 = vld [vmem:[#allocation2 + $0xaf] sm:$0xff]
        %v5263 = vld [vmem:[#allocation2 + $0xb7] sm:$0xff]
        %v5264 = vld [vmem:[#allocation2 + $0xbf] sm:$0xff]
        %v5265 = vld [vmem:[#allocation2 + $0xc7] sm:$0xff]
        %v5266 = vld [vmem:[#allocation2 + $0xcf] sm:$0xff]
        %v5267 = vld [vmem:[#allocation2 + $0xd7] sm:$0xff]
        %v5268 = vld [vmem:[#allocation2 + $0xdf] sm:$0xff]
        %v5269 = vld [vmem:[#allocation2 + $0xe7] sm:$0xff]
        %v5270 = vld [vmem:[#allocation2 + $0xef] sm:$0xff]
        %v5271 = vld [vmem:[#allocation2 + $0xf7] sm:$0xff]
        %v5272 = vld [vmem:[#allocation2 + $0xff] sm:$0xff]
        %s5273 = scalar_lea.vmem [#allocation10], 6
        %v5274 = vld [vmem:[%s5273] sm:$0x1]
        %v5276 = vlaneseq
        %v5277 = vshrl.u32 %v5276, 7
        %v5278 = vsub.s32 0, %v5277
        %v5279 = vrot.slane %v5274, %v5278
        %v5281 = vmul.f32 %v5241, %v5279
        %v5282 = vmul.f32 %v5242, %v5279
        %v5283 = vmul.f32 %v5243, %v5279
        %v5284 = vmul.f32 %v5244, %v5279
        %v5285 = vmul.f32 %v5245, %v5279
        %v5286 = vmul.f32 %v5246, %v5279
        %v5287 = vmul.f32 %v5247, %v5279
        %v5288 = vmul.f32 %v5248, %v5279
        %v5289 = vmul.f32 %v5249, %v5279
        %v5290 = vmul.f32 %v5250, %v5279
        %v5291 = vmul.f32 %v5251, %v5279
        %v5292 = vmul.f32 %v5252, %v5279
        %v5293 = vmul.f32 %v5253, %v5279
        %v5294 = vmul.f32 %v5254, %v5279
        %v5295 = vmul.f32 %v5255, %v5279
        %v5296 = vmul.f32 %v5256, %v5279
        %v5297 = vmul.f32 %v5257, %v5279
        %v5298 = vmul.f32 %v5258, %v5279
        %v5299 = vmul.f32 %v5259, %v5279
        %v5300 = vmul.f32 %v5260, %v5279
        %v5301 = vmul.f32 %v5261, %v5279
        %v5302 = vmul.f32 %v5262, %v5279
        %v5303 = vmul.f32 %v5263, %v5279
        %v5304 = vmul.f32 %v5264, %v5279
        %v5305 = vmul.f32 %v5265, %v5279
        %v5306 = vmul.f32 %v5266, %v5279
        %v5307 = vmul.f32 %v5267, %v5279
        %v5308 = vmul.f32 %v5268, %v5279
        %v5309 = vmul.f32 %v5269, %v5279
        %v5310 = vmul.f32 %v5270, %v5279
        %v5311 = vmul.f32 %v5271, %v5279
        %v5312 = vmul.f32 %v5272, %v5279
        %v5313 = vld [vmem:[#allocation2 + $0x10] sm:$0xff]
        %v5314 = vld [vmem:[#allocation2 + $0x18] sm:$0xff]
        %v5315 = vld [vmem:[#allocation2 + $0x20] sm:$0xff]
        %v5316 = vld [vmem:[#allocation2 + $0x28] sm:$0xff]
        %v5317 = vld [vmem:[#allocation2 + $0x30] sm:$0xff]
        %v5318 = vld [vmem:[#allocation2 + $0x38] sm:$0xff]
        %v5319 = vld [vmem:[#allocation2 + $0x40] sm:$0xff]
        %v5320 = vld [vmem:[#allocation2 + $0x48] sm:$0xff]
        %v5321 = vld [vmem:[#allocation2 + $0x50] sm:$0xff]
        %v5322 = vld [vmem:[#allocation2 + $0x58] sm:$0xff]
        %v5323 = vld [vmem:[#allocation2 + $0x60] sm:$0xff]
        %v5324 = vld [vmem:[#allocation2 + $0x68] sm:$0xff]
        %v5325 = vld [vmem:[#allocation2 + $0x70] sm:$0xff]
        %v5326 = vld [vmem:[#allocation2 + $0x78] sm:$0xff]
        %v5327 = vld [vmem:[#allocation2 + $0x80] sm:$0xff]
        %v5328 = vld [vmem:[#allocation2 + $0x88] sm:$0xff]
        %v5329 = vld [vmem:[#allocation2 + $0x90] sm:$0xff]
        %v5330 = vld [vmem:[#allocation2 + $0x98] sm:$0xff]
        %v5331 = vld [vmem:[#allocation2 + $0xa0] sm:$0xff]
        %v5332 = vld [vmem:[#allocation2 + $0xa8] sm:$0xff]
        %v5333 = vld [vmem:[#allocation2 + $0xb0] sm:$0xff]
        %v5334 = vld [vmem:[#allocation2 + $0xb8] sm:$0xff]
        %v5335 = vld [vmem:[#allocation2 + $0xc0] sm:$0xff]
        %v5336 = vld [vmem:[#allocation2 + $0xc8] sm:$0xff]
        %v5337 = vld [vmem:[#allocation2 + $0xd0] sm:$0xff]
        %v5338 = vld [vmem:[#allocation2 + $0xd8] sm:$0xff]
        %v5339 = vld [vmem:[#allocation2 + $0xe0] sm:$0xff]
        %v5340 = vld [vmem:[#allocation2 + $0xe8] sm:$0xff]
        %v5341 = vld [vmem:[#allocation2 + $0xf0] sm:$0xff]
        %v5342 = vld [vmem:[#allocation2 + $0xf8] sm:$0xff]
        %v5343 = vld [vmem:[#allocation2 + $0x100] sm:$0xff]
        %v5344 = vld [vmem:[#allocation2 + $0x108] sm:$0xff]
        %s5345 = scalar_lea.vmem [#allocation10], 7
        %v5346 = vld [vmem:[%s5345] sm:$0x1]
        %v5348 = vlaneseq
        %v5349 = vshrl.u32 %v5348, 7
        %v5350 = vsub.s32 0, %v5349
        %v5351 = vrot.slane %v5346, %v5350
        %v5353 = vmul.f32 %v5313, %v5351
        %v5354 = vmul.f32 %v5314, %v5351
        %v5355 = vmul.f32 %v5315, %v5351
        %v5356 = vmul.f32 %v5316, %v5351
        %v5357 = vmul.f32 %v5317, %v5351
        %v5358 = vmul.f32 %v5318, %v5351
        %v5359 = vmul.f32 %v5319, %v5351
        %v5360 = vmul.f32 %v5320, %v5351
        %v5361 = vmul.f32 %v5321, %v5351
        %v5362 = vmul.f32 %v5322, %v5351
        %v5363 = vmul.f32 %v5323, %v5351
        %v5364 = vmul.f32 %v5324, %v5351
        %v5365 = vmul.f32 %v5325, %v5351
        %v5366 = vmul.f32 %v5326, %v5351
        %v5367 = vmul.f32 %v5327, %v5351
        %v5368 = vmul.f32 %v5328, %v5351
        %v5369 = vmul.f32 %v5329, %v5351
        %v5370 = vmul.f32 %v5330, %v5351
        %v5371 = vmul.f32 %v5331, %v5351
        %v5372 = vmul.f32 %v5332, %v5351
        %v5373 = vmul.f32 %v5333, %v5351
        %v5374 = vmul.f32 %v5334, %v5351
        %v5375 = vmul.f32 %v5335, %v5351
        %v5376 = vmul.f32 %v5336, %v5351
        %v5377 = vmul.f32 %v5337, %v5351
        %v5378 = vmul.f32 %v5338, %v5351
        %v5379 = vmul.f32 %v5339, %v5351
        %v5380 = vmul.f32 %v5340, %v5351
        %v5381 = vmul.f32 %v5341, %v5351
        %v5382 = vmul.f32 %v5342, %v5351
        %v5383 = vmul.f32 %v5343, %v5351
        %v5384 = vmul.f32 %v5344, %v5351
        %v5385 = vadd.f32 %v5281, %v5353
        %v5386 = vadd.f32 %v5282, %v5354
        %v5387 = vadd.f32 %v5283, %v5355
        %v5388 = vadd.f32 %v5284, %v5356
        %v5389 = vadd.f32 %v5285, %v5357
        %v5390 = vadd.f32 %v5286, %v5358
        %v5391 = vadd.f32 %v5287, %v5359
        %v5392 = vadd.f32 %v5288, %v5360
        %v5393 = vadd.f32 %v5289, %v5361
        %v5394 = vadd.f32 %v5290, %v5362
        %v5395 = vadd.f32 %v5291, %v5363
        %v5396 = vadd.f32 %v5292, %v5364
        %v5397 = vadd.f32 %v5293, %v5365
        %v5398 = vadd.f32 %v5294, %v5366
        %v5399 = vadd.f32 %v5295, %v5367
        %v5400 = vadd.f32 %v5296, %v5368
        %v5401 = vadd.f32 %v5297, %v5369
        %v5402 = vadd.f32 %v5298, %v5370
        %v5403 = vadd.f32 %v5299, %v5371
        %v5404 = vadd.f32 %v5300, %v5372
        %v5405 = vadd.f32 %v5301, %v5373
        %v5406 = vadd.f32 %v5302, %v5374
        %v5407 = vadd.f32 %v5303, %v5375
        %v5408 = vadd.f32 %v5304, %v5376
        %v5409 = vadd.f32 %v5305, %v5377
        %v5410 = vadd.f32 %v5306, %v5378
        %v5411 = vadd.f32 %v5307, %v5379
        %v5412 = vadd.f32 %v5308, %v5380
        %v5413 = vadd.f32 %v5309, %v5381
        %v5414 = vadd.f32 %v5310, %v5382
        %v5415 = vadd.f32 %v5311, %v5383
        %v5416 = vadd.f32 %v5312, %v5384
        %v5417 = vld [vmem:[#allocation2 + $0x19] sm:$0xff]
        %v5418 = vld [vmem:[#allocation2 + $0x21] sm:$0xff]
        %v5419 = vld [vmem:[#allocation2 + $0x29] sm:$0xff]
        %v5420 = vld [vmem:[#allocation2 + $0x31] sm:$0xff]
        %v5421 = vld [vmem:[#allocation2 + $0x39] sm:$0xff]
        %v5422 = vld [vmem:[#allocation2 + $0x41] sm:$0xff]
        %v5423 = vld [vmem:[#allocation2 + $0x49] sm:$0xff]
        %v5424 = vld [vmem:[#allocation2 + $0x51] sm:$0xff]
        %v5425 = vld [vmem:[#allocation2 + $0x59] sm:$0xff]
        %v5426 = vld [vmem:[#allocation2 + $0x61] sm:$0xff]
        %v5427 = vld [vmem:[#allocation2 + $0x69] sm:$0xff]
        %v5428 = vld [vmem:[#allocation2 + $0x71] sm:$0xff]
        %v5429 = vld [vmem:[#allocation2 + $0x79] sm:$0xff]
        %v5430 = vld [vmem:[#allocation2 + $0x81] sm:$0xff]
        %v5431 = vld [vmem:[#allocation2 + $0x89] sm:$0xff]
        %v5432 = vld [vmem:[#allocation2 + $0x91] sm:$0xff]
        %v5433 = vld [vmem:[#allocation2 + $0x99] sm:$0xff]
        %v5434 = vld [vmem:[#allocation2 + $0xa1] sm:$0xff]
        %v5435 = vld [vmem:[#allocation2 + $0xa9] sm:$0xff]
        %v5436 = vld [vmem:[#allocation2 + $0xb1] sm:$0xff]
        %v5437 = vld [vmem:[#allocation2 + $0xb9] sm:$0xff]
        %v5438 = vld [vmem:[#allocation2 + $0xc1] sm:$0xff]
        %v5439 = vld [vmem:[#allocation2 + $0xc9] sm:$0xff]
        %v5440 = vld [vmem:[#allocation2 + $0xd1] sm:$0xff]
        %v5441 = vld [vmem:[#allocation2 + $0xd9] sm:$0xff]
        %v5442 = vld [vmem:[#allocation2 + $0xe1] sm:$0xff]
        %v5443 = vld [vmem:[#allocation2 + $0xe9] sm:$0xff]
        %v5444 = vld [vmem:[#allocation2 + $0xf1] sm:$0xff]
        %v5445 = vld [vmem:[#allocation2 + $0xf9] sm:$0xff]
        %v5446 = vld [vmem:[#allocation2 + $0x101] sm:$0xff]
        %v5447 = vld [vmem:[#allocation2 + $0x109] sm:$0xff]
        %v5448 = vld [vmem:[#allocation2 + $0x111] sm:$0xff]
        %s5449 = scalar_lea.vmem [#allocation10], 8
        %v5450 = vld [vmem:[%s5449] sm:$0x1]
        %v5452 = vlaneseq
        %v5453 = vshrl.u32 %v5452, 7
        %v5454 = vsub.s32 0, %v5453
        %v5455 = vrot.slane %v5450, %v5454
        %v5457 = vmul.f32 %v5417, %v5455
        %v5458 = vmul.f32 %v5418, %v5455
        %v5459 = vmul.f32 %v5419, %v5455
        %v5460 = vmul.f32 %v5420, %v5455
        %v5461 = vmul.f32 %v5421, %v5455
        %v5462 = vmul.f32 %v5422, %v5455
        %v5463 = vmul.f32 %v5423, %v5455
        %v5464 = vmul.f32 %v5424, %v5455
        %v5465 = vmul.f32 %v5425, %v5455
        %v5466 = vmul.f32 %v5426, %v5455
        %v5467 = vmul.f32 %v5427, %v5455
        %v5468 = vmul.f32 %v5428, %v5455
        %v5469 = vmul.f32 %v5429, %v5455
        %v5470 = vmul.f32 %v5430, %v5455
        %v5471 = vmul.f32 %v5431, %v5455
        %v5472 = vmul.f32 %v5432, %v5455
        %v5473 = vmul.f32 %v5433, %v5455
        %v5474 = vmul.f32 %v5434, %v5455
        %v5475 = vmul.f32 %v5435, %v5455
        %v5476 = vmul.f32 %v5436, %v5455
        %v5477 = vmul.f32 %v5437, %v5455
        %v5478 = vmul.f32 %v5438, %v5455
        %v5479 = vmul.f32 %v5439, %v5455
        %v5480 = vmul.f32 %v5440, %v5455
        %v5481 = vmul.f32 %v5441, %v5455
        %v5482 = vmul.f32 %v5442, %v5455
        %v5483 = vmul.f32 %v5443, %v5455
        %v5484 = vmul.f32 %v5444, %v5455
        %v5485 = vmul.f32 %v5445, %v5455
        %v5486 = vmul.f32 %v5446, %v5455
        %v5487 = vmul.f32 %v5447, %v5455
        %v5488 = vmul.f32 %v5448, %v5455
        %v5489 = vadd.f32 %v5385, %v5457
        %v5490 = vadd.f32 %v5386, %v5458
        %v5491 = vadd.f32 %v5387, %v5459
        %v5492 = vadd.f32 %v5388, %v5460
        %v5493 = vadd.f32 %v5389, %v5461
        %v5494 = vadd.f32 %v5390, %v5462
        %v5495 = vadd.f32 %v5391, %v5463
        %v5496 = vadd.f32 %v5392, %v5464
        %v5497 = vadd.f32 %v5393, %v5465
        %v5498 = vadd.f32 %v5394, %v5466
        %v5499 = vadd.f32 %v5395, %v5467
        %v5500 = vadd.f32 %v5396, %v5468
        %v5501 = vadd.f32 %v5397, %v5469
        %v5502 = vadd.f32 %v5398, %v5470
        %v5503 = vadd.f32 %v5399, %v5471
        %v5504 = vadd.f32 %v5400, %v5472
        %v5505 = vadd.f32 %v5401, %v5473
        %v5506 = vadd.f32 %v5402, %v5474
        %v5507 = vadd.f32 %v5403, %v5475
        %v5508 = vadd.f32 %v5404, %v5476
        %v5509 = vadd.f32 %v5405, %v5477
        %v5510 = vadd.f32 %v5406, %v5478
        %v5511 = vadd.f32 %v5407, %v5479
        %v5512 = vadd.f32 %v5408, %v5480
        %v5513 = vadd.f32 %v5409, %v5481
        %v5514 = vadd.f32 %v5410, %v5482
        %v5515 = vadd.f32 %v5411, %v5483
        %v5516 = vadd.f32 %v5412, %v5484
        %v5517 = vadd.f32 %v5413, %v5485
        %v5518 = vadd.f32 %v5414, %v5486
        %v5519 = vadd.f32 %v5415, %v5487
        %v5520 = vadd.f32 %v5416, %v5488
        %s5521 = scalar_lea.vmem %s4, 2
        %v5522 = vld [vmem:[%s5521] sm:$0x1]
        %v5524 = vlaneseq
        %v5525 = vshrl.u32 %v5524, 7
        %v5526 = vsub.s32 0, %v5525
        %v5527 = vrot.slane %v5522, %v5526
        %v5529 = vadd.f32 %v5489, %v5527
        %v5530 = vadd.f32 %v5490, %v5527
        %v5531 = vadd.f32 %v5491, %v5527
        %v5532 = vadd.f32 %v5492, %v5527
        %v5533 = vadd.f32 %v5493, %v5527
        %v5534 = vadd.f32 %v5494, %v5527
        %v5535 = vadd.f32 %v5495, %v5527
        %v5536 = vadd.f32 %v5496, %v5527
        %v5537 = vadd.f32 %v5497, %v5527
        %v5538 = vadd.f32 %v5498, %v5527
        %v5539 = vadd.f32 %v5499, %v5527
        %v5540 = vadd.f32 %v5500, %v5527
        %v5541 = vadd.f32 %v5501, %v5527
        %v5542 = vadd.f32 %v5502, %v5527
        %v5543 = vadd.f32 %v5503, %v5527
        %v5544 = vadd.f32 %v5504, %v5527
        %v5545 = vadd.f32 %v5505, %v5527
        %v5546 = vadd.f32 %v5506, %v5527
        %v5547 = vadd.f32 %v5507, %v5527
        %v5548 = vadd.f32 %v5508, %v5527
        %v5549 = vadd.f32 %v5509, %v5527
        %v5550 = vadd.f32 %v5510, %v5527
        %v5551 = vadd.f32 %v5511, %v5527
        %v5552 = vadd.f32 %v5512, %v5527
        %v5553 = vadd.f32 %v5513, %v5527
        %v5554 = vadd.f32 %v5514, %v5527
        %v5555 = vadd.f32 %v5515, %v5527
        %v5556 = vadd.f32 %v5516, %v5527
        %v5557 = vadd.f32 %v5517, %v5527
        %v5558 = vadd.f32 %v5518, %v5527
        %v5559 = vadd.f32 %v5519, %v5527
        %v5560 = vadd.f32 %v5520, %v5527
        %s5561 = scalar_lea.vmem %s7, 2
        %v5562 = vld [vmem:[%s5561] sm:$0x1]
        %s5563 = scalar_lea.vmem %s8, 2
        %v5564 = vld [vmem:[%s5563] sm:$0x1]
        %5565 = vadd.xlane.f32.xlu0 %v5529
        %v5566 = vpop.xlane.xlu0 %5565
        %5567 = vadd.xlane.f32.xlu0 %v5530
        %v5568 = vpop.xlane.xlu0 %5567
        %5569 = vadd.xlane.f32.xlu0 %v5531
        %v5570 = vpop.xlane.xlu0 %5569
        %5571 = vadd.xlane.f32.xlu0 %v5532
        %v5572 = vpop.xlane.xlu0 %5571
        %5573 = vadd.xlane.f32.xlu0 %v5533
        %v5574 = vpop.xlane.xlu0 %5573
        %5575 = vadd.xlane.f32.xlu0 %v5534
        %v5576 = vpop.xlane.xlu0 %5575
        %5577 = vadd.xlane.f32.xlu0 %v5535
        %v5578 = vpop.xlane.xlu0 %5577
        %5579 = vadd.xlane.f32.xlu0 %v5536
        %v5580 = vpop.xlane.xlu0 %5579
        %5581 = vadd.xlane.f32.xlu0 %v5537
        %v5582 = vpop.xlane.xlu0 %5581
        %5583 = vadd.xlane.f32.xlu0 %v5538
        %v5584 = vpop.xlane.xlu0 %5583
        %5585 = vadd.xlane.f32.xlu0 %v5539
        %v5586 = vpop.xlane.xlu0 %5585
        %5587 = vadd.xlane.f32.xlu0 %v5540
        %v5588 = vpop.xlane.xlu0 %5587
        %5589 = vadd.xlane.f32.xlu0 %v5541
        %v5590 = vpop.xlane.xlu0 %5589
        %5591 = vadd.xlane.f32.xlu0 %v5542
        %v5592 = vpop.xlane.xlu0 %5591
        %5593 = vadd.xlane.f32.xlu0 %v5543
        %v5594 = vpop.xlane.xlu0 %5593
        %5595 = vadd.xlane.f32.xlu0 %v5544
        %v5596 = vpop.xlane.xlu0 %5595
        %5597 = vadd.xlane.f32.xlu0 %v5545
        %v5598 = vpop.xlane.xlu0 %5597
        %5599 = vadd.xlane.f32.xlu0 %v5546
        %v5600 = vpop.xlane.xlu0 %5599
        %5601 = vadd.xlane.f32.xlu0 %v5547
        %v5602 = vpop.xlane.xlu0 %5601
        %5603 = vadd.xlane.f32.xlu0 %v5548
        %v5604 = vpop.xlane.xlu0 %5603
        %5605 = vadd.xlane.f32.xlu0 %v5549
        %v5606 = vpop.xlane.xlu0 %5605
        %5607 = vadd.xlane.f32.xlu0 %v5550
        %v5608 = vpop.xlane.xlu0 %5607
        %5609 = vadd.xlane.f32.xlu0 %v5551
        %v5610 = vpop.xlane.xlu0 %5609
        %5611 = vadd.xlane.f32.xlu0 %v5552
        %v5612 = vpop.xlane.xlu0 %5611
        %5613 = vadd.xlane.f32.xlu0 %v5553
        %v5614 = vpop.xlane.xlu0 %5613
        %5615 = vadd.xlane.f32.xlu0 %v5554
        %v5616 = vpop.xlane.xlu0 %5615
        %5617 = vadd.xlane.f32.xlu0 %v5555
        %v5618 = vpop.xlane.xlu0 %5617
        %5619 = vadd.xlane.f32.xlu0 %v5556
        %v5620 = vpop.xlane.xlu0 %5619
        %5621 = vadd.xlane.f32.xlu0 %v5557
        %v5622 = vpop.xlane.xlu0 %5621
        %5623 = vadd.xlane.f32.xlu0 %v5558
        %v5624 = vpop.xlane.xlu0 %5623
        %5625 = vadd.xlane.f32.xlu0 %v5559
        %v5626 = vpop.xlane.xlu0 %5625
        %5627 = vadd.xlane.f32.xlu0 %v5560
        %v5628 = vpop.xlane.xlu0 %5627
        %v5629 = vmul.f32 %v5566, %v1228
        %v5630 = vmul.f32 %v5568, %v1228
        %v5631 = vmul.f32 %v5570, %v1228
        %v5632 = vmul.f32 %v5572, %v1228
        %v5633 = vmul.f32 %v5574, %v1228
        %v5634 = vmul.f32 %v5576, %v1228
        %v5635 = vmul.f32 %v5578, %v1228
        %v5636 = vmul.f32 %v5580, %v1228
        %v5637 = vmul.f32 %v5582, %v1228
        %v5638 = vmul.f32 %v5584, %v1228
        %v5639 = vmul.f32 %v5586, %v1228
        %v5640 = vmul.f32 %v5588, %v1228
        %v5641 = vmul.f32 %v5590, %v1228
        %v5642 = vmul.f32 %v5592, %v1228
        %v5643 = vmul.f32 %v5594, %v1228
        %v5644 = vmul.f32 %v5596, %v1228
        %v5645 = vmul.f32 %v5598, %v1228
        %v5646 = vmul.f32 %v5600, %v1228
        %v5647 = vmul.f32 %v5602, %v1228
        %v5648 = vmul.f32 %v5604, %v1228
        %v5649 = vmul.f32 %v5606, %v1228
        %v5650 = vmul.f32 %v5608, %v1228
        %v5651 = vmul.f32 %v5610, %v1228
        %v5652 = vmul.f32 %v5612, %v1228
        %v5653 = vmul.f32 %v5614, %v1228
        %v5654 = vmul.f32 %v5616, %v1228
        %v5655 = vmul.f32 %v5618, %v1228
        %v5656 = vmul.f32 %v5620, %v1228
        %v5657 = vmul.f32 %v5622, %v1228
        %v5658 = vmul.f32 %v5624, %v1228
        %v5659 = vmul.f32 %v5626, %v1228
        %v5660 = vmul.f32 %v5628, %v1228
        %v5661 = vsub.f32 %v5529, %v5629
        %v5662 = vsub.f32 %v5530, %v5630
        %v5663 = vsub.f32 %v5531, %v5631
        %v5664 = vsub.f32 %v5532, %v5632
        %v5665 = vsub.f32 %v5533, %v5633
        %v5666 = vsub.f32 %v5534, %v5634
        %v5667 = vsub.f32 %v5535, %v5635
        %v5668 = vsub.f32 %v5536, %v5636
        %v5669 = vsub.f32 %v5537, %v5637
        %v5670 = vsub.f32 %v5538, %v5638
        %v5671 = vsub.f32 %v5539, %v5639
        %v5672 = vsub.f32 %v5540, %v5640
        %v5673 = vsub.f32 %v5541, %v5641
        %v5674 = vsub.f32 %v5542, %v5642
        %v5675 = vsub.f32 %v5543, %v5643
        %v5676 = vsub.f32 %v5544, %v5644
        %v5677 = vsub.f32 %v5545, %v5645
        %v5678 = vsub.f32 %v5546, %v5646
        %v5679 = vsub.f32 %v5547, %v5647
        %v5680 = vsub.f32 %v5548, %v5648
        %v5681 = vsub.f32 %v5549, %v5649
        %v5682 = vsub.f32 %v5550, %v5650
        %v5683 = vsub.f32 %v5551, %v5651
        %v5684 = vsub.f32 %v5552, %v5652
        %v5685 = vsub.f32 %v5553, %v5653
        %v5686 = vsub.f32 %v5554, %v5654
        %v5687 = vsub.f32 %v5555, %v5655
        %v5688 = vsub.f32 %v5556, %v5656
        %v5689 = vsub.f32 %v5557, %v5657
        %v5690 = vsub.f32 %v5558, %v5658
        %v5691 = vsub.f32 %v5559, %v5659
        %v5692 = vsub.f32 %v5560, %v5660
        %v5693 = vmul.f32 %v5661, %v5661
        %v5694 = vmul.f32 %v5662, %v5662
        %v5695 = vmul.f32 %v5663, %v5663
        %v5696 = vmul.f32 %v5664, %v5664
        %v5697 = vmul.f32 %v5665, %v5665
        %v5698 = vmul.f32 %v5666, %v5666
        %v5699 = vmul.f32 %v5667, %v5667
        %v5700 = vmul.f32 %v5668, %v5668
        %v5701 = vmul.f32 %v5669, %v5669
        %v5702 = vmul.f32 %v5670, %v5670
        %v5703 = vmul.f32 %v5671, %v5671
        %v5704 = vmul.f32 %v5672, %v5672
        %v5705 = vmul.f32 %v5673, %v5673
        %v5706 = vmul.f32 %v5674, %v5674
        %v5707 = vmul.f32 %v5675, %v5675
        %v5708 = vmul.f32 %v5676, %v5676
        %v5709 = vmul.f32 %v5677, %v5677
        %v5710 = vmul.f32 %v5678, %v5678
        %v5711 = vmul.f32 %v5679, %v5679
        %v5712 = vmul.f32 %v5680, %v5680
        %v5713 = vmul.f32 %v5681, %v5681
        %v5714 = vmul.f32 %v5682, %v5682
        %v5715 = vmul.f32 %v5683, %v5683
        %v5716 = vmul.f32 %v5684, %v5684
        %v5717 = vmul.f32 %v5685, %v5685
        %v5718 = vmul.f32 %v5686, %v5686
        %v5719 = vmul.f32 %v5687, %v5687
        %v5720 = vmul.f32 %v5688, %v5688
        %v5721 = vmul.f32 %v5689, %v5689
        %v5722 = vmul.f32 %v5690, %v5690
        %v5723 = vmul.f32 %v5691, %v5691
        %v5724 = vmul.f32 %v5692, %v5692
        %5725 = vadd.xlane.f32.xlu0 %v5693
        %v5726 = vpop.xlane.xlu0 %5725
        %5727 = vadd.xlane.f32.xlu0 %v5694
        %v5728 = vpop.xlane.xlu0 %5727
        %5729 = vadd.xlane.f32.xlu0 %v5695
        %v5730 = vpop.xlane.xlu0 %5729
        %5731 = vadd.xlane.f32.xlu0 %v5696
        %v5732 = vpop.xlane.xlu0 %5731
        %5733 = vadd.xlane.f32.xlu0 %v5697
        %v5734 = vpop.xlane.xlu0 %5733
        %5735 = vadd.xlane.f32.xlu0 %v5698
        %v5736 = vpop.xlane.xlu0 %5735
        %5737 = vadd.xlane.f32.xlu0 %v5699
        %v5738 = vpop.xlane.xlu0 %5737
        %5739 = vadd.xlane.f32.xlu0 %v5700
        %v5740 = vpop.xlane.xlu0 %5739
        %5741 = vadd.xlane.f32.xlu0 %v5701
        %v5742 = vpop.xlane.xlu0 %5741
        %5743 = vadd.xlane.f32.xlu0 %v5702
        %v5744 = vpop.xlane.xlu0 %5743
        %5745 = vadd.xlane.f32.xlu0 %v5703
        %v5746 = vpop.xlane.xlu0 %5745
        %5747 = vadd.xlane.f32.xlu0 %v5704
        %v5748 = vpop.xlane.xlu0 %5747
        %5749 = vadd.xlane.f32.xlu0 %v5705
        %v5750 = vpop.xlane.xlu0 %5749
        %5751 = vadd.xlane.f32.xlu0 %v5706
        %v5752 = vpop.xlane.xlu0 %5751
        %5753 = vadd.xlane.f32.xlu0 %v5707
        %v5754 = vpop.xlane.xlu0 %5753
        %5755 = vadd.xlane.f32.xlu0 %v5708
        %v5756 = vpop.xlane.xlu0 %5755
        %5757 = vadd.xlane.f32.xlu0 %v5709
        %v5758 = vpop.xlane.xlu0 %5757
        %5759 = vadd.xlane.f32.xlu0 %v5710
        %v5760 = vpop.xlane.xlu0 %5759
        %5761 = vadd.xlane.f32.xlu0 %v5711
        %v5762 = vpop.xlane.xlu0 %5761
        %5763 = vadd.xlane.f32.xlu0 %v5712
        %v5764 = vpop.xlane.xlu0 %5763
        %5765 = vadd.xlane.f32.xlu0 %v5713
        %v5766 = vpop.xlane.xlu0 %5765
        %5767 = vadd.xlane.f32.xlu0 %v5714
        %v5768 = vpop.xlane.xlu0 %5767
        %5769 = vadd.xlane.f32.xlu0 %v5715
        %v5770 = vpop.xlane.xlu0 %5769
        %5771 = vadd.xlane.f32.xlu0 %v5716
        %v5772 = vpop.xlane.xlu0 %5771
        %5773 = vadd.xlane.f32.xlu0 %v5717
        %v5774 = vpop.xlane.xlu0 %5773
        %5775 = vadd.xlane.f32.xlu0 %v5718
        %v5776 = vpop.xlane.xlu0 %5775
        %5777 = vadd.xlane.f32.xlu0 %v5719
        %v5778 = vpop.xlane.xlu0 %5777
        %5779 = vadd.xlane.f32.xlu0 %v5720
        %v5780 = vpop.xlane.xlu0 %5779
        %5781 = vadd.xlane.f32.xlu0 %v5721
        %v5782 = vpop.xlane.xlu0 %5781
        %5783 = vadd.xlane.f32.xlu0 %v5722
        %v5784 = vpop.xlane.xlu0 %5783
        %5785 = vadd.xlane.f32.xlu0 %v5723
        %v5786 = vpop.xlane.xlu0 %5785
        %5787 = vadd.xlane.f32.xlu0 %v5724
        %v5788 = vpop.xlane.xlu0 %5787
        %v5789 = vmul.f32 %v5726, %v1228
        %v5790 = vmul.f32 %v5728, %v1228
        %v5791 = vmul.f32 %v5730, %v1228
        %v5792 = vmul.f32 %v5732, %v1228
        %v5793 = vmul.f32 %v5734, %v1228
        %v5794 = vmul.f32 %v5736, %v1228
        %v5795 = vmul.f32 %v5738, %v1228
        %v5796 = vmul.f32 %v5740, %v1228
        %v5797 = vmul.f32 %v5742, %v1228
        %v5798 = vmul.f32 %v5744, %v1228
        %v5799 = vmul.f32 %v5746, %v1228
        %v5800 = vmul.f32 %v5748, %v1228
        %v5801 = vmul.f32 %v5750, %v1228
        %v5802 = vmul.f32 %v5752, %v1228
        %v5803 = vmul.f32 %v5754, %v1228
        %v5804 = vmul.f32 %v5756, %v1228
        %v5805 = vmul.f32 %v5758, %v1228
        %v5806 = vmul.f32 %v5760, %v1228
        %v5807 = vmul.f32 %v5762, %v1228
        %v5808 = vmul.f32 %v5764, %v1228
        %v5809 = vmul.f32 %v5766, %v1228
        %v5810 = vmul.f32 %v5768, %v1228
        %v5811 = vmul.f32 %v5770, %v1228
        %v5812 = vmul.f32 %v5772, %v1228
        %v5813 = vmul.f32 %v5774, %v1228
        %v5814 = vmul.f32 %v5776, %v1228
        %v5815 = vmul.f32 %v5778, %v1228
        %v5816 = vmul.f32 %v5780, %v1228
        %v5817 = vmul.f32 %v5782, %v1228
        %v5818 = vmul.f32 %v5784, %v1228
        %v5819 = vmul.f32 %v5786, %v1228
        %v5820 = vmul.f32 %v5788, %v1228
        %v5821 = vadd.f32 %v5789, 1e-05
        %v5822 = vadd.f32 %v5790, 1e-05
        %v5823 = vadd.f32 %v5791, 1e-05
        %v5824 = vadd.f32 %v5792, 1e-05
        %v5825 = vadd.f32 %v5793, 1e-05
        %v5826 = vadd.f32 %v5794, 1e-05
        %v5827 = vadd.f32 %v5795, 1e-05
        %v5828 = vadd.f32 %v5796, 1e-05
        %v5829 = vadd.f32 %v5797, 1e-05
        %v5830 = vadd.f32 %v5798, 1e-05
        %v5831 = vadd.f32 %v5799, 1e-05
        %v5832 = vadd.f32 %v5800, 1e-05
        %v5833 = vadd.f32 %v5801, 1e-05
        %v5834 = vadd.f32 %v5802, 1e-05
        %v5835 = vadd.f32 %v5803, 1e-05
        %v5836 = vadd.f32 %v5804, 1e-05
        %v5837 = vadd.f32 %v5805, 1e-05
        %v5838 = vadd.f32 %v5806, 1e-05
        %v5839 = vadd.f32 %v5807, 1e-05
        %v5840 = vadd.f32 %v5808, 1e-05
        %v5841 = vadd.f32 %v5809, 1e-05
        %v5842 = vadd.f32 %v5810, 1e-05
        %v5843 = vadd.f32 %v5811, 1e-05
        %v5844 = vadd.f32 %v5812, 1e-05
        %v5845 = vadd.f32 %v5813, 1e-05
        %v5846 = vadd.f32 %v5814, 1e-05
        %v5847 = vadd.f32 %v5815, 1e-05
        %v5848 = vadd.f32 %v5816, 1e-05
        %v5849 = vadd.f32 %v5817, 1e-05
        %v5850 = vadd.f32 %v5818, 1e-05
        %v5851 = vadd.f32 %v5819, 1e-05
        %v5852 = vadd.f32 %v5820, 1e-05
        %v5853 = vrsqrt.pop %v5821
        %v5854 = vrsqrt.pop %v5822
        %v5855 = vrsqrt.pop %v5823
        %v5856 = vrsqrt.pop %v5824
        %v5857 = vrsqrt.pop %v5825
        %v5858 = vrsqrt.pop %v5826
        %v5859 = vrsqrt.pop %v5827
        %v5860 = vrsqrt.pop %v5828
        %v5861 = vrsqrt.pop %v5829
        %v5862 = vrsqrt.pop %v5830
        %v5863 = vrsqrt.pop %v5831
        %v5864 = vrsqrt.pop %v5832
        %v5865 = vrsqrt.pop %v5833
        %v5866 = vrsqrt.pop %v5834
        %v5867 = vrsqrt.pop %v5835
        %v5868 = vrsqrt.pop %v5836
        %v5869 = vrsqrt.pop %v5837
        %v5870 = vrsqrt.pop %v5838
        %v5871 = vrsqrt.pop %v5839
        %v5872 = vrsqrt.pop %v5840
        %v5873 = vrsqrt.pop %v5841
        %v5874 = vrsqrt.pop %v5842
        %v5875 = vrsqrt.pop %v5843
        %v5876 = vrsqrt.pop %v5844
        %v5877 = vrsqrt.pop %v5845
        %v5878 = vrsqrt.pop %v5846
        %v5879 = vrsqrt.pop %v5847
        %v5880 = vrsqrt.pop %v5848
        %v5881 = vrsqrt.pop %v5849
        %v5882 = vrsqrt.pop %v5850
        %v5883 = vrsqrt.pop %v5851
        %v5884 = vrsqrt.pop %v5852
        %v5885 = vmul.f32 %v5661, %v5853
        %v5886 = vmul.f32 %v5662, %v5854
        %v5887 = vmul.f32 %v5663, %v5855
        %v5888 = vmul.f32 %v5664, %v5856
        %v5889 = vmul.f32 %v5665, %v5857
        %v5890 = vmul.f32 %v5666, %v5858
        %v5891 = vmul.f32 %v5667, %v5859
        %v5892 = vmul.f32 %v5668, %v5860
        %v5893 = vmul.f32 %v5669, %v5861
        %v5894 = vmul.f32 %v5670, %v5862
        %v5895 = vmul.f32 %v5671, %v5863
        %v5896 = vmul.f32 %v5672, %v5864
        %v5897 = vmul.f32 %v5673, %v5865
        %v5898 = vmul.f32 %v5674, %v5866
        %v5899 = vmul.f32 %v5675, %v5867
        %v5900 = vmul.f32 %v5676, %v5868
        %v5901 = vmul.f32 %v5677, %v5869
        %v5902 = vmul.f32 %v5678, %v5870
        %v5903 = vmul.f32 %v5679, %v5871
        %v5904 = vmul.f32 %v5680, %v5872
        %v5905 = vmul.f32 %v5681, %v5873
        %v5906 = vmul.f32 %v5682, %v5874
        %v5907 = vmul.f32 %v5683, %v5875
        %v5908 = vmul.f32 %v5684, %v5876
        %v5909 = vmul.f32 %v5685, %v5877
        %v5910 = vmul.f32 %v5686, %v5878
        %v5911 = vmul.f32 %v5687, %v5879
        %v5912 = vmul.f32 %v5688, %v5880
        %v5913 = vmul.f32 %v5689, %v5881
        %v5914 = vmul.f32 %v5690, %v5882
        %v5915 = vmul.f32 %v5691, %v5883
        %v5916 = vmul.f32 %v5692, %v5884
        %v5918 = vlaneseq
        %v5919 = vshrl.u32 %v5918, 7
        %v5920 = vsub.s32 0, %v5919
        %v5921 = vrot.slane %v5562, %v5920
        %v5923 = vmul.f32 %v5885, %v5921
        %v5924 = vmul.f32 %v5886, %v5921
        %v5925 = vmul.f32 %v5887, %v5921
        %v5926 = vmul.f32 %v5888, %v5921
        %v5927 = vmul.f32 %v5889, %v5921
        %v5928 = vmul.f32 %v5890, %v5921
        %v5929 = vmul.f32 %v5891, %v5921
        %v5930 = vmul.f32 %v5892, %v5921
        %v5931 = vmul.f32 %v5893, %v5921
        %v5932 = vmul.f32 %v5894, %v5921
        %v5933 = vmul.f32 %v5895, %v5921
        %v5934 = vmul.f32 %v5896, %v5921
        %v5935 = vmul.f32 %v5897, %v5921
        %v5936 = vmul.f32 %v5898, %v5921
        %v5937 = vmul.f32 %v5899, %v5921
        %v5938 = vmul.f32 %v5900, %v5921
        %v5939 = vmul.f32 %v5901, %v5921
        %v5940 = vmul.f32 %v5902, %v5921
        %v5941 = vmul.f32 %v5903, %v5921
        %v5942 = vmul.f32 %v5904, %v5921
        %v5943 = vmul.f32 %v5905, %v5921
        %v5944 = vmul.f32 %v5906, %v5921
        %v5945 = vmul.f32 %v5907, %v5921
        %v5946 = vmul.f32 %v5908, %v5921
        %v5947 = vmul.f32 %v5909, %v5921
        %v5948 = vmul.f32 %v5910, %v5921
        %v5949 = vmul.f32 %v5911, %v5921
        %v5950 = vmul.f32 %v5912, %v5921
        %v5951 = vmul.f32 %v5913, %v5921
        %v5952 = vmul.f32 %v5914, %v5921
        %v5953 = vmul.f32 %v5915, %v5921
        %v5954 = vmul.f32 %v5916, %v5921
        %v5956 = vlaneseq
        %v5957 = vshrl.u32 %v5956, 7
        %v5958 = vsub.s32 0, %v5957
        %v5959 = vrot.slane %v5564, %v5958
        %v5961 = vadd.f32 %v5923, %v5959
        %v5962 = vadd.f32 %v5924, %v5959
        %v5963 = vadd.f32 %v5925, %v5959
        %v5964 = vadd.f32 %v5926, %v5959
        %v5965 = vadd.f32 %v5927, %v5959
        %v5966 = vadd.f32 %v5928, %v5959
        %v5967 = vadd.f32 %v5929, %v5959
        %v5968 = vadd.f32 %v5930, %v5959
        %v5969 = vadd.f32 %v5931, %v5959
        %v5970 = vadd.f32 %v5932, %v5959
        %v5971 = vadd.f32 %v5933, %v5959
        %v5972 = vadd.f32 %v5934, %v5959
        %v5973 = vadd.f32 %v5935, %v5959
        %v5974 = vadd.f32 %v5936, %v5959
        %v5975 = vadd.f32 %v5937, %v5959
        %v5976 = vadd.f32 %v5938, %v5959
        %v5977 = vadd.f32 %v5939, %v5959
        %v5978 = vadd.f32 %v5940, %v5959
        %v5979 = vadd.f32 %v5941, %v5959
        %v5980 = vadd.f32 %v5942, %v5959
        %v5981 = vadd.f32 %v5943, %v5959
        %v5982 = vadd.f32 %v5944, %v5959
        %v5983 = vadd.f32 %v5945, %v5959
        %v5984 = vadd.f32 %v5946, %v5959
        %v5985 = vadd.f32 %v5947, %v5959
        %v5986 = vadd.f32 %v5948, %v5959
        %v5987 = vadd.f32 %v5949, %v5959
        %v5988 = vadd.f32 %v5950, %v5959
        %v5989 = vadd.f32 %v5951, %v5959
        %v5990 = vadd.f32 %v5952, %v5959
        %v5991 = vadd.f32 %v5953, %v5959
        %v5992 = vadd.f32 %v5954, %v5959
        %v5993 = vmul.f32 %v5961, 0.5
        %v5994 = vmul.f32 %v5962, 0.5
        %v5995 = vmul.f32 %v5963, 0.5
        %v5996 = vmul.f32 %v5964, 0.5
        %v5997 = vmul.f32 %v5965, 0.5
        %v5998 = vmul.f32 %v5966, 0.5
        %v5999 = vmul.f32 %v5967, 0.5
        %v6000 = vmul.f32 %v5968, 0.5
        %v6001 = vmul.f32 %v5969, 0.5
        %v6002 = vmul.f32 %v5970, 0.5
        %v6003 = vmul.f32 %v5971, 0.5
        %v6004 = vmul.f32 %v5972, 0.5
        %v6005 = vmul.f32 %v5973, 0.5
        %v6006 = vmul.f32 %v5974, 0.5
        %v6007 = vmul.f32 %v5975, 0.5
        %v6008 = vmul.f32 %v5976, 0.5
        %v6009 = vmul.f32 %v5977, 0.5
        %v6010 = vmul.f32 %v5978, 0.5
        %v6011 = vmul.f32 %v5979, 0.5
        %v6012 = vmul.f32 %v5980, 0.5
        %v6013 = vmul.f32 %v5981, 0.5
        %v6014 = vmul.f32 %v5982, 0.5
        %v6015 = vmul.f32 %v5983, 0.5
        %v6016 = vmul.f32 %v5984, 0.5
        %v6017 = vmul.f32 %v5985, 0.5
        %v6018 = vmul.f32 %v5986, 0.5
        %v6019 = vmul.f32 %v5987, 0.5
        %v6020 = vmul.f32 %v5988, 0.5
        %v6021 = vmul.f32 %v5989, 0.5
        %v6022 = vmul.f32 %v5990, 0.5
        %v6023 = vmul.f32 %v5991, 0.5
        %v6024 = vmul.f32 %v5992, 0.5
        %v6025 = vmul.f32 %v5961, 0.044715
        %v6026 = vmul.f32 %v5962, 0.044715
        %v6027 = vmul.f32 %v5963, 0.044715
        %v6028 = vmul.f32 %v5964, 0.044715
        %v6029 = vmul.f32 %v5965, 0.044715
        %v6030 = vmul.f32 %v5966, 0.044715
        %v6031 = vmul.f32 %v5967, 0.044715
        %v6032 = vmul.f32 %v5968, 0.044715
        %v6033 = vmul.f32 %v5969, 0.044715
        %v6034 = vmul.f32 %v5970, 0.044715
        %v6035 = vmul.f32 %v5971, 0.044715
        %v6036 = vmul.f32 %v5972, 0.044715
        %v6037 = vmul.f32 %v5973, 0.044715
        %v6038 = vmul.f32 %v5974, 0.044715
        %v6039 = vmul.f32 %v5975, 0.044715
        %v6040 = vmul.f32 %v5976, 0.044715
        %v6041 = vmul.f32 %v5977, 0.044715
        %v6042 = vmul.f32 %v5978, 0.044715
        %v6043 = vmul.f32 %v5979, 0.044715
        %v6044 = vmul.f32 %v5980, 0.044715
        %v6045 = vmul.f32 %v5981, 0.044715
        %v6046 = vmul.f32 %v5982, 0.044715
        %v6047 = vmul.f32 %v5983, 0.044715
        %v6048 = vmul.f32 %v5984, 0.044715
        %v6049 = vmul.f32 %v5985, 0.044715
        %v6050 = vmul.f32 %v5986, 0.044715
        %v6051 = vmul.f32 %v5987, 0.044715
        %v6052 = vmul.f32 %v5988, 0.044715
        %v6053 = vmul.f32 %v5989, 0.044715
        %v6054 = vmul.f32 %v5990, 0.044715
        %v6055 = vmul.f32 %v5991, 0.044715
        %v6056 = vmul.f32 %v5992, 0.044715
        %v6057 = vmul.f32 %v6025, %v5961
        %v6058 = vmul.f32 %v6026, %v5962
        %v6059 = vmul.f32 %v6027, %v5963
        %v6060 = vmul.f32 %v6028, %v5964
        %v6061 = vmul.f32 %v6029, %v5965
        %v6062 = vmul.f32 %v6030, %v5966
        %v6063 = vmul.f32 %v6031, %v5967
        %v6064 = vmul.f32 %v6032, %v5968
        %v6065 = vmul.f32 %v6033, %v5969
        %v6066 = vmul.f32 %v6034, %v5970
        %v6067 = vmul.f32 %v6035, %v5971
        %v6068 = vmul.f32 %v6036, %v5972
        %v6069 = vmul.f32 %v6037, %v5973
        %v6070 = vmul.f32 %v6038, %v5974
        %v6071 = vmul.f32 %v6039, %v5975
        %v6072 = vmul.f32 %v6040, %v5976
        %v6073 = vmul.f32 %v6041, %v5977
        %v6074 = vmul.f32 %v6042, %v5978
        %v6075 = vmul.f32 %v6043, %v5979
        %v6076 = vmul.f32 %v6044, %v5980
        %v6077 = vmul.f32 %v6045, %v5981
        %v6078 = vmul.f32 %v6046, %v5982
        %v6079 = vmul.f32 %v6047, %v5983
        %v6080 = vmul.f32 %v6048, %v5984
        %v6081 = vmul.f32 %v6049, %v5985
        %v6082 = vmul.f32 %v6050, %v5986
        %v6083 = vmul.f32 %v6051, %v5987
        %v6084 = vmul.f32 %v6052, %v5988
        %v6085 = vmul.f32 %v6053, %v5989
        %v6086 = vmul.f32 %v6054, %v5990
        %v6087 = vmul.f32 %v6055, %v5991
        %v6088 = vmul.f32 %v6056, %v5992
        %v6089 = vmul.f32 %v6057, %v5961
        %v6090 = vmul.f32 %v6058, %v5962
        %v6091 = vmul.f32 %v6059, %v5963
        %v6092 = vmul.f32 %v6060, %v5964
        %v6093 = vmul.f32 %v6061, %v5965
        %v6094 = vmul.f32 %v6062, %v5966
        %v6095 = vmul.f32 %v6063, %v5967
        %v6096 = vmul.f32 %v6064, %v5968
        %v6097 = vmul.f32 %v6065, %v5969
        %v6098 = vmul.f32 %v6066, %v5970
        %v6099 = vmul.f32 %v6067, %v5971
        %v6100 = vmul.f32 %v6068, %v5972
        %v6101 = vmul.f32 %v6069, %v5973
        %v6102 = vmul.f32 %v6070, %v5974
        %v6103 = vmul.f32 %v6071, %v5975
        %v6104 = vmul.f32 %v6072, %v5976
        %v6105 = vmul.f32 %v6073, %v5977
        %v6106 = vmul.f32 %v6074, %v5978
        %v6107 = vmul.f32 %v6075, %v5979
        %v6108 = vmul.f32 %v6076, %v5980
        %v6109 = vmul.f32 %v6077, %v5981
        %v6110 = vmul.f32 %v6078, %v5982
        %v6111 = vmul.f32 %v6079, %v5983
        %v6112 = vmul.f32 %v6080, %v5984
        %v6113 = vmul.f32 %v6081, %v5985
        %v6114 = vmul.f32 %v6082, %v5986
        %v6115 = vmul.f32 %v6083, %v5987
        %v6116 = vmul.f32 %v6084, %v5988
        %v6117 = vmul.f32 %v6085, %v5989
        %v6118 = vmul.f32 %v6086, %v5990
        %v6119 = vmul.f32 %v6087, %v5991
        %v6120 = vmul.f32 %v6088, %v5992
        %v6121 = vadd.f32 %v5961, %v6089
        %v6122 = vadd.f32 %v5962, %v6090
        %v6123 = vadd.f32 %v5963, %v6091
        %v6124 = vadd.f32 %v5964, %v6092
        %v6125 = vadd.f32 %v5965, %v6093
        %v6126 = vadd.f32 %v5966, %v6094
        %v6127 = vadd.f32 %v5967, %v6095
        %v6128 = vadd.f32 %v5968, %v6096
        %v6129 = vadd.f32 %v5969, %v6097
        %v6130 = vadd.f32 %v5970, %v6098
        %v6131 = vadd.f32 %v5971, %v6099
        %v6132 = vadd.f32 %v5972, %v6100
        %v6133 = vadd.f32 %v5973, %v6101
        %v6134 = vadd.f32 %v5974, %v6102
        %v6135 = vadd.f32 %v5975, %v6103
        %v6136 = vadd.f32 %v5976, %v6104
        %v6137 = vadd.f32 %v5977, %v6105
        %v6138 = vadd.f32 %v5978, %v6106
        %v6139 = vadd.f32 %v5979, %v6107
        %v6140 = vadd.f32 %v5980, %v6108
        %v6141 = vadd.f32 %v5981, %v6109
        %v6142 = vadd.f32 %v5982, %v6110
        %v6143 = vadd.f32 %v5983, %v6111
        %v6144 = vadd.f32 %v5984, %v6112
        %v6145 = vadd.f32 %v5985, %v6113
        %v6146 = vadd.f32 %v5986, %v6114
        %v6147 = vadd.f32 %v5987, %v6115
        %v6148 = vadd.f32 %v5988, %v6116
        %v6149 = vadd.f32 %v5989, %v6117
        %v6150 = vadd.f32 %v5990, %v6118
        %v6151 = vadd.f32 %v5991, %v6119
        %v6152 = vadd.f32 %v5992, %v6120
        %v6153 = vmul.f32 %v6121, 0.7978846
        %v6154 = vmul.f32 %v6122, 0.7978846
        %v6155 = vmul.f32 %v6123, 0.7978846
        %v6156 = vmul.f32 %v6124, 0.7978846
        %v6157 = vmul.f32 %v6125, 0.7978846
        %v6158 = vmul.f32 %v6126, 0.7978846
        %v6159 = vmul.f32 %v6127, 0.7978846
        %v6160 = vmul.f32 %v6128, 0.7978846
        %v6161 = vmul.f32 %v6129, 0.7978846
        %v6162 = vmul.f32 %v6130, 0.7978846
        %v6163 = vmul.f32 %v6131, 0.7978846
        %v6164 = vmul.f32 %v6132, 0.7978846
        %v6165 = vmul.f32 %v6133, 0.7978846
        %v6166 = vmul.f32 %v6134, 0.7978846
        %v6167 = vmul.f32 %v6135, 0.7978846
        %v6168 = vmul.f32 %v6136, 0.7978846
        %v6169 = vmul.f32 %v6137, 0.7978846
        %v6170 = vmul.f32 %v6138, 0.7978846
        %v6171 = vmul.f32 %v6139, 0.7978846
        %v6172 = vmul.f32 %v6140, 0.7978846
        %v6173 = vmul.f32 %v6141, 0.7978846
        %v6174 = vmul.f32 %v6142, 0.7978846
        %v6175 = vmul.f32 %v6143, 0.7978846
        %v6176 = vmul.f32 %v6144, 0.7978846
        %v6177 = vmul.f32 %v6145, 0.7978846
        %v6178 = vmul.f32 %v6146, 0.7978846
        %v6179 = vmul.f32 %v6147, 0.7978846
        %v6180 = vmul.f32 %v6148, 0.7978846
        %v6181 = vmul.f32 %v6149, 0.7978846
        %v6182 = vmul.f32 %v6150, 0.7978846
        %v6183 = vmul.f32 %v6151, 0.7978846
        %v6184 = vmul.f32 %v6152, 0.7978846
        %v6185 = vtanh.pop %v6153
        %v6186 = vtanh.pop %v6154
        %v6187 = vtanh.pop %v6155
        %v6188 = vtanh.pop %v6156
        %v6189 = vtanh.pop %v6157
        %v6190 = vtanh.pop %v6158
        %v6191 = vtanh.pop %v6159
        %v6192 = vtanh.pop %v6160
        %v6193 = vtanh.pop %v6161
        %v6194 = vtanh.pop %v6162
        %v6195 = vtanh.pop %v6163
        %v6196 = vtanh.pop %v6164
        %v6197 = vtanh.pop %v6165
        %v6198 = vtanh.pop %v6166
        %v6199 = vtanh.pop %v6167
        %v6200 = vtanh.pop %v6168
        %v6201 = vtanh.pop %v6169
        %v6202 = vtanh.pop %v6170
        %v6203 = vtanh.pop %v6171
        %v6204 = vtanh.pop %v6172
        %v6205 = vtanh.pop %v6173
        %v6206 = vtanh.pop %v6174
        %v6207 = vtanh.pop %v6175
        %v6208 = vtanh.pop %v6176
        %v6209 = vtanh.pop %v6177
        %v6210 = vtanh.pop %v6178
        %v6211 = vtanh.pop %v6179
        %v6212 = vtanh.pop %v6180
        %v6213 = vtanh.pop %v6181
        %v6214 = vtanh.pop %v6182
        %v6215 = vtanh.pop %v6183
        %v6216 = vtanh.pop %v6184
        %v6217 = vadd.f32 %v6185, 1.0
        %v6218 = vadd.f32 %v6186, 1.0
        %v6219 = vadd.f32 %v6187, 1.0
        %v6220 = vadd.f32 %v6188, 1.0
        %v6221 = vadd.f32 %v6189, 1.0
        %v6222 = vadd.f32 %v6190, 1.0
        %v6223 = vadd.f32 %v6191, 1.0
        %v6224 = vadd.f32 %v6192, 1.0
        %v6225 = vadd.f32 %v6193, 1.0
        %v6226 = vadd.f32 %v6194, 1.0
        %v6227 = vadd.f32 %v6195, 1.0
        %v6228 = vadd.f32 %v6196, 1.0
        %v6229 = vadd.f32 %v6197, 1.0
        %v6230 = vadd.f32 %v6198, 1.0
        %v6231 = vadd.f32 %v6199, 1.0
        %v6232 = vadd.f32 %v6200, 1.0
        %v6233 = vadd.f32 %v6201, 1.0
        %v6234 = vadd.f32 %v6202, 1.0
        %v6235 = vadd.f32 %v6203, 1.0
        %v6236 = vadd.f32 %v6204, 1.0
        %v6237 = vadd.f32 %v6205, 1.0
        %v6238 = vadd.f32 %v6206, 1.0
        %v6239 = vadd.f32 %v6207, 1.0
        %v6240 = vadd.f32 %v6208, 1.0
        %v6241 = vadd.f32 %v6209, 1.0
        %v6242 = vadd.f32 %v6210, 1.0
        %v6243 = vadd.f32 %v6211, 1.0
        %v6244 = vadd.f32 %v6212, 1.0
        %v6245 = vadd.f32 %v6213, 1.0
        %v6246 = vadd.f32 %v6214, 1.0
        %v6247 = vadd.f32 %v6215, 1.0
        %v6248 = vadd.f32 %v6216, 1.0
        %v6249 = vmul.f32 %v5993, %v6217
        %v6250 = vmul.f32 %v5994, %v6218
        %v6251 = vmul.f32 %v5995, %v6219
        %v6252 = vmul.f32 %v5996, %v6220
        %v6253 = vmul.f32 %v5997, %v6221
        %v6254 = vmul.f32 %v5998, %v6222
        %v6255 = vmul.f32 %v5999, %v6223
        %v6256 = vmul.f32 %v6000, %v6224
        %v6257 = vmul.f32 %v6001, %v6225
        %v6258 = vmul.f32 %v6002, %v6226
        %v6259 = vmul.f32 %v6003, %v6227
        %v6260 = vmul.f32 %v6004, %v6228
        %v6261 = vmul.f32 %v6005, %v6229
        %v6262 = vmul.f32 %v6006, %v6230
        %v6263 = vmul.f32 %v6007, %v6231
        %v6264 = vmul.f32 %v6008, %v6232
        %v6265 = vmul.f32 %v6009, %v6233
        %v6266 = vmul.f32 %v6010, %v6234
        %v6267 = vmul.f32 %v6011, %v6235
        %v6268 = vmul.f32 %v6012, %v6236
        %v6269 = vmul.f32 %v6013, %v6237
        %v6270 = vmul.f32 %v6014, %v6238
        %v6271 = vmul.f32 %v6015, %v6239
        %v6272 = vmul.f32 %v6016, %v6240
        %v6273 = vmul.f32 %v6017, %v6241
        %v6274 = vmul.f32 %v6018, %v6242
        %v6275 = vmul.f32 %v6019, %v6243
        %v6276 = vmul.f32 %v6020, %v6244
        %v6277 = vmul.f32 %v6021, %v6245
        %v6278 = vmul.f32 %v6022, %v6246
        %v6279 = vmul.f32 %v6023, %v6247
        %v6280 = vmul.f32 %v6024, %v6248
        %v6281 = vpack.c.bf16 %v6250, %v6249
        %v6282 = vpack.c.bf16 %v6252, %v6251
        %v6283 = vpack.c.bf16 %v6254, %v6253
        %v6284 = vpack.c.bf16 %v6256, %v6255
        %v6285 = vpack.c.bf16 %v6258, %v6257
        %v6286 = vpack.c.bf16 %v6260, %v6259
        %v6287 = vpack.c.bf16 %v6262, %v6261
        %v6288 = vpack.c.bf16 %v6264, %v6263
        %v6289 = vpack.c.bf16 %v6266, %v6265
        %v6290 = vpack.c.bf16 %v6268, %v6267
        %v6291 = vpack.c.bf16 %v6270, %v6269
        %v6292 = vpack.c.bf16 %v6272, %v6271
        %v6293 = vpack.c.bf16 %v6274, %v6273
        %v6294 = vpack.c.bf16 %v6276, %v6275
        %v6295 = vpack.c.bf16 %v6278, %v6277
        %v6296 = vpack.c.bf16 %v6280, %v6279
        %s6297 = scalar_lea.vmem [#allocation11], 128
        %v6298 = vld [vmem:[%s6297] sm:$0xf]
        %v6299 = vld [vmem:[%s6297 + $0x4] sm:$0xf]
        %v6300 = vld [vmem:[%s6297 + $0x8] sm:$0xf]
        %v6301 = vld [vmem:[%s6297 + $0xc] sm:$0xf]
        %v6302 = vld [vmem:[%s6297 + $0x10] sm:$0xf]
        %v6303 = vld [vmem:[%s6297 + $0x14] sm:$0xf]
        %v6304 = vld [vmem:[%s6297 + $0x18] sm:$0xf]
        %v6305 = vld [vmem:[%s6297 + $0x1c] sm:$0xf]
        %v6306 = vld [vmem:[%s6297 + $0x20] sm:$0xf]
        %v6307 = vld [vmem:[%s6297 + $0x24] sm:$0xf]
        %v6308 = vld [vmem:[%s6297 + $0x28] sm:$0xf]
        %v6309 = vld [vmem:[%s6297 + $0x2c] sm:$0xf]
        %v6310 = vld [vmem:[%s6297 + $0x30] sm:$0xf]
        %v6311 = vld [vmem:[%s6297 + $0x34] sm:$0xf]
        %v6312 = vld [vmem:[%s6297 + $0x38] sm:$0xf]
        %v6313 = vld [vmem:[%s6297 + $0x3c] sm:$0xf]
        %s6314 = scalar_lea.vmem %s6, 2
        %v6315 = vld [vmem:[%s6314] sm:$0x1]
        %v6317 = vlaneseq
        %v6318 = vshrl.u32 %v6317, 7
        %v6319 = vsub.s32 0, %v6318
        %v6320 = vrot.slane %v6315, %v6319
        %v6338 = vunpack.c.l.b16 %v6298
        %v6339 = vunpack.c.l.b16 %v6299
        %v6340 = vunpack.c.l.b16 %v6300
        %v6341 = vunpack.c.l.b16 %v6301
        %v6342 = vunpack.c.l.b16 %v6302
        %v6343 = vunpack.c.l.b16 %v6303
        %v6344 = vunpack.c.l.b16 %v6304
        %v6345 = vunpack.c.l.b16 %v6305
        %v6346 = vunpack.c.l.b16 %v6306
        %v6347 = vunpack.c.l.b16 %v6307
        %v6348 = vunpack.c.l.b16 %v6308
        %v6349 = vunpack.c.l.b16 %v6309
        %v6350 = vunpack.c.l.b16 %v6310
        %v6351 = vunpack.c.l.b16 %v6311
        %v6352 = vunpack.c.l.b16 %v6312
        %v6353 = vunpack.c.l.b16 %v6313
        %v6354 = vpack.c.b16 %v6339, %v6338
        %v6355 = vpack.c.b16 %v6341, %v6340
        %v6356 = vpack.c.b16 %v6343, %v6342
        %v6357 = vpack.c.b16 %v6345, %v6344
        %v6358 = vpack.c.b16 %v6347, %v6346
        %v6359 = vpack.c.b16 %v6349, %v6348
        %v6360 = vpack.c.b16 %v6351, %v6350
        %v6361 = vpack.c.b16 %v6353, %v6352
        %6370 = vmatprep.subr.bf16.mxu0 0
        %6371 = vmatpush1.bf16.msra.mxu0 %v6361
        %6372 = vmatprep.subr.bf16.mxu0 0
        %6373 = vmatpush1.bf16.msra.mxu0 %v6360
        %6374 = vmatprep.subr.bf16.mxu0 0
        %6375 = vmatpush1.bf16.msra.mxu0 %v6359
        %6376 = vmatprep.subr.bf16.mxu0 0
        %6377 = vmatpush1.bf16.msra.mxu0 %v6358
        %6378 = vmatprep.subr.bf16.mxu0 0
        %6379 = vmatpush1.bf16.msra.mxu0 %v6357
        %6380 = vmatprep.subr.bf16.mxu0 0
        %6381 = vmatpush1.bf16.msra.mxu0 %v6356
        %6382 = vmatprep.subr.bf16.mxu0 0
        %6383 = vmatpush1.bf16.msra.mxu0 %v6355
        %6384 = vmatprep.subr.bf16.mxu0 0
        %6385 = vmatpush1.bf16.msra.mxu0 %v6354
        %6386 = vmatprep.subr.bf16.mxu0 0
        %6387 = vmatpush2.bf16.msra.mxu0 0
        %6388 = vmatprep.subr.bf16.mxu0 0
        %6389 = vmatpush2.bf16.msra.mxu0 0
        %6390 = vmatprep.subr.bf16.mxu0 0
        %6391 = vmatpush2.bf16.msra.mxu0 0
        %6392 = vmatprep.subr.bf16.mxu0 0
        %6393 = vmatpush2.bf16.msra.mxu0 0
        %6394 = vmatprep.subr.bf16.mxu0 0
        %6395 = vmatpush2.bf16.msra.mxu0 0
        %6396 = vmatprep.subr.bf16.mxu0 0
        %6397 = vmatpush2.bf16.msra.mxu0 0
        %6398 = vmatprep.subr.bf16.mxu0 0
        %6399 = vmatpush2.bf16.msra.mxu0 0
        %6400 = vmatprep.subr.bf16.mxu0 0
        %6401 = vmatpush2.bf16.msra.mxu0 0
        %6402 = vmatprep.mubr.bf16.mxu0 0
        %6403 = vmatmul.mubr.bf16.gmra.mxu0 %v6281
        %v6404 = vpop.f32.mrf.mxu0
        %v6405 = vadd.f32 %v6320, %v6404
        %v6406 = vpop.f32.mrf.mxu0
        %v6407 = vpop.f32.mrf.mxu0
        %v6408 = vadd.f32 %v6320, %v6407
        %v6409 = vpop.f32.mrf.mxu0
        %6410 = vmatprep.mubr.bf16.mxu0 0
        %6411 = vmatmul.mubr.bf16.gmra.mxu0 %v6282
        %v6412 = vpop.f32.mrf.mxu0
        %v6413 = vadd.f32 %v6320, %v6412
        %v6414 = vpop.f32.mrf.mxu0
        %v6415 = vpop.f32.mrf.mxu0
        %v6416 = vadd.f32 %v6320, %v6415
        %v6417 = vpop.f32.mrf.mxu0
        %6418 = vmatprep.mubr.bf16.mxu0 0
        %6419 = vmatmul.mubr.bf16.gmra.mxu0 %v6283
        %v6420 = vpop.f32.mrf.mxu0
        %v6421 = vadd.f32 %v6320, %v6420
        %v6422 = vpop.f32.mrf.mxu0
        %v6423 = vpop.f32.mrf.mxu0
        %v6424 = vadd.f32 %v6320, %v6423
        %v6425 = vpop.f32.mrf.mxu0
        %6426 = vmatprep.mubr.bf16.mxu0 0
        %6427 = vmatmul.mubr.bf16.gmra.mxu0 %v6284
        %v6428 = vpop.f32.mrf.mxu0
        %v6429 = vadd.f32 %v6320, %v6428
        %v6430 = vpop.f32.mrf.mxu0
        %v6431 = vpop.f32.mrf.mxu0
        %v6432 = vadd.f32 %v6320, %v6431
        %v6433 = vpop.f32.mrf.mxu0
        %6434 = vmatprep.mubr.bf16.mxu0 0
        %6435 = vmatmul.mubr.bf16.gmra.mxu0 %v6285
        %v6436 = vpop.f32.mrf.mxu0
        %v6437 = vadd.f32 %v6320, %v6436
        %v6438 = vpop.f32.mrf.mxu0
        %v6439 = vpop.f32.mrf.mxu0
        %v6440 = vadd.f32 %v6320, %v6439
        %v6441 = vpop.f32.mrf.mxu0
        %6442 = vmatprep.mubr.bf16.mxu0 0
        %6443 = vmatmul.mubr.bf16.gmra.mxu0 %v6286
        %v6444 = vpop.f32.mrf.mxu0
        %v6445 = vadd.f32 %v6320, %v6444
        %v6446 = vpop.f32.mrf.mxu0
        %v6447 = vpop.f32.mrf.mxu0
        %v6448 = vadd.f32 %v6320, %v6447
        %v6449 = vpop.f32.mrf.mxu0
        %6450 = vmatprep.mubr.bf16.mxu0 0
        %6451 = vmatmul.mubr.bf16.gmra.mxu0 %v6287
        %v6452 = vpop.f32.mrf.mxu0
        %v6453 = vadd.f32 %v6320, %v6452
        %v6454 = vpop.f32.mrf.mxu0
        %v6455 = vpop.f32.mrf.mxu0
        %v6456 = vadd.f32 %v6320, %v6455
        %v6457 = vpop.f32.mrf.mxu0
        %6458 = vmatprep.mubr.bf16.mxu0 0
        %6459 = vmatmul.mubr.bf16.gmra.mxu0 %v6288
        %v6460 = vpop.f32.mrf.mxu0
        %v6461 = vadd.f32 %v6320, %v6460
        %v6462 = vpop.f32.mrf.mxu0
        %v6463 = vpop.f32.mrf.mxu0
        %v6464 = vadd.f32 %v6320, %v6463
        %v6465 = vpop.f32.mrf.mxu0
        %6466 = vmatprep.mubr.bf16.mxu0 0
        %6467 = vmatmul.mubr.bf16.gmra.mxu0 %v6289
        %v6468 = vpop.f32.mrf.mxu0
        %v6469 = vadd.f32 %v6320, %v6468
        %v6470 = vpop.f32.mrf.mxu0
        %v6471 = vpop.f32.mrf.mxu0
        %v6472 = vadd.f32 %v6320, %v6471
        %v6473 = vpop.f32.mrf.mxu0
        %6474 = vmatprep.mubr.bf16.mxu0 0
        %6475 = vmatmul.mubr.bf16.gmra.mxu0 %v6290
        %v6476 = vpop.f32.mrf.mxu0
        %v6477 = vadd.f32 %v6320, %v6476
        %v6478 = vpop.f32.mrf.mxu0
        %v6479 = vpop.f32.mrf.mxu0
        %v6480 = vadd.f32 %v6320, %v6479
        %v6481 = vpop.f32.mrf.mxu0
        %6482 = vmatprep.mubr.bf16.mxu0 0
        %6483 = vmatmul.mubr.bf16.gmra.mxu0 %v6291
        %v6484 = vpop.f32.mrf.mxu0
        %v6485 = vadd.f32 %v6320, %v6484
        %v6486 = vpop.f32.mrf.mxu0
        %v6487 = vpop.f32.mrf.mxu0
        %v6488 = vadd.f32 %v6320, %v6487
        %v6489 = vpop.f32.mrf.mxu0
        %6490 = vmatprep.mubr.bf16.mxu0 0
        %6491 = vmatmul.mubr.bf16.gmra.mxu0 %v6292
        %v6492 = vpop.f32.mrf.mxu0
        %v6493 = vadd.f32 %v6320, %v6492
        %v6494 = vpop.f32.mrf.mxu0
        %v6495 = vpop.f32.mrf.mxu0
        %v6496 = vadd.f32 %v6320, %v6495
        %v6497 = vpop.f32.mrf.mxu0
        %6498 = vmatprep.mubr.bf16.mxu0 0
        %6499 = vmatmul.mubr.bf16.gmra.mxu0 %v6293
        %v6500 = vpop.f32.mrf.mxu0
        %v6501 = vadd.f32 %v6320, %v6500
        %v6502 = vpop.f32.mrf.mxu0
        %v6503 = vpop.f32.mrf.mxu0
        %v6504 = vadd.f32 %v6320, %v6503
        %v6505 = vpop.f32.mrf.mxu0
        %6506 = vmatprep.mubr.bf16.mxu0 0
        %6507 = vmatmul.mubr.bf16.gmra.mxu0 %v6294
        %v6508 = vpop.f32.mrf.mxu0
        %v6509 = vadd.f32 %v6320, %v6508
        %v6510 = vpop.f32.mrf.mxu0
        %v6511 = vpop.f32.mrf.mxu0
        %v6512 = vadd.f32 %v6320, %v6511
        %v6513 = vpop.f32.mrf.mxu0
        %6514 = vmatprep.mubr.bf16.mxu0 0
        %6515 = vmatmul.mubr.bf16.gmra.mxu0 %v6295
        %v6516 = vpop.f32.mrf.mxu0
        %v6517 = vadd.f32 %v6320, %v6516
        %v6518 = vpop.f32.mrf.mxu0
        %v6519 = vpop.f32.mrf.mxu0
        %v6520 = vadd.f32 %v6320, %v6519
        %v6521 = vpop.f32.mrf.mxu0
        %6522 = vmatprep.mubr.bf16.mxu0 0
        %6523 = vmatmul.mubr.bf16.gmra.mxu0 %v6296
        %v6524 = vpop.f32.mrf.mxu0
        %v6525 = vadd.f32 %v6320, %v6524
        %v6526 = vpop.f32.mrf.mxu0
        %v6527 = vpop.f32.mrf.mxu0
        %v6528 = vadd.f32 %v6320, %v6527
        %v6529 = vpop.f32.mrf.mxu0
        %6530 = vdwg.mxu0
        %s6531 = scalar_lea.vmem %s9, 2
        %v6532 = vld [vmem:[%s6531] sm:$0x1]
        %s6533 = scalar_lea.vmem %s10, 2
        %v6534 = vld [vmem:[%s6533] sm:$0x1]
        %6535 = vadd.xlane.f32.xlu0 %v6405
        %v6536 = vpop.xlane.xlu0 %6535
        %6537 = vadd.xlane.f32.xlu0 %v6408
        %v6538 = vpop.xlane.xlu0 %6537
        %6539 = vadd.xlane.f32.xlu0 %v6413
        %v6540 = vpop.xlane.xlu0 %6539
        %6541 = vadd.xlane.f32.xlu0 %v6416
        %v6542 = vpop.xlane.xlu0 %6541
        %6543 = vadd.xlane.f32.xlu0 %v6421
        %v6544 = vpop.xlane.xlu0 %6543
        %6545 = vadd.xlane.f32.xlu0 %v6424
        %v6546 = vpop.xlane.xlu0 %6545
        %6547 = vadd.xlane.f32.xlu0 %v6429
        %v6548 = vpop.xlane.xlu0 %6547
        %6549 = vadd.xlane.f32.xlu0 %v6432
        %v6550 = vpop.xlane.xlu0 %6549
        %6551 = vadd.xlane.f32.xlu0 %v6437
        %v6552 = vpop.xlane.xlu0 %6551
        %6553 = vadd.xlane.f32.xlu0 %v6440
        %v6554 = vpop.xlane.xlu0 %6553
        %6555 = vadd.xlane.f32.xlu0 %v6445
        %v6556 = vpop.xlane.xlu0 %6555
        %6557 = vadd.xlane.f32.xlu0 %v6448
        %v6558 = vpop.xlane.xlu0 %6557
        %6559 = vadd.xlane.f32.xlu0 %v6453
        %v6560 = vpop.xlane.xlu0 %6559
        %6561 = vadd.xlane.f32.xlu0 %v6456
        %v6562 = vpop.xlane.xlu0 %6561
        %6563 = vadd.xlane.f32.xlu0 %v6461
        %v6564 = vpop.xlane.xlu0 %6563
        %6565 = vadd.xlane.f32.xlu0 %v6464
        %v6566 = vpop.xlane.xlu0 %6565
        %6567 = vadd.xlane.f32.xlu0 %v6469
        %v6568 = vpop.xlane.xlu0 %6567
        %6569 = vadd.xlane.f32.xlu0 %v6472
        %v6570 = vpop.xlane.xlu0 %6569
        %6571 = vadd.xlane.f32.xlu0 %v6477
        %v6572 = vpop.xlane.xlu0 %6571
        %6573 = vadd.xlane.f32.xlu0 %v6480
        %v6574 = vpop.xlane.xlu0 %6573
        %6575 = vadd.xlane.f32.xlu0 %v6485
        %v6576 = vpop.xlane.xlu0 %6575
        %6577 = vadd.xlane.f32.xlu0 %v6488
        %v6578 = vpop.xlane.xlu0 %6577
        %6579 = vadd.xlane.f32.xlu0 %v6493
        %v6580 = vpop.xlane.xlu0 %6579
        %6581 = vadd.xlane.f32.xlu0 %v6496
        %v6582 = vpop.xlane.xlu0 %6581
        %6583 = vadd.xlane.f32.xlu0 %v6501
        %v6584 = vpop.xlane.xlu0 %6583
        %6585 = vadd.xlane.f32.xlu0 %v6504
        %v6586 = vpop.xlane.xlu0 %6585
        %6587 = vadd.xlane.f32.xlu0 %v6509
        %v6588 = vpop.xlane.xlu0 %6587
        %6589 = vadd.xlane.f32.xlu0 %v6512
        %v6590 = vpop.xlane.xlu0 %6589
        %6591 = vadd.xlane.f32.xlu0 %v6517
        %v6592 = vpop.xlane.xlu0 %6591
        %6593 = vadd.xlane.f32.xlu0 %v6520
        %v6594 = vpop.xlane.xlu0 %6593
        %6595 = vadd.xlane.f32.xlu0 %v6525
        %v6596 = vpop.xlane.xlu0 %6595
        %6597 = vadd.xlane.f32.xlu0 %v6528
        %v6598 = vpop.xlane.xlu0 %6597
        %v6599 = vmul.f32 %v6536, %v1228
        %v6600 = vmul.f32 %v6538, %v1228
        %v6601 = vmul.f32 %v6540, %v1228
        %v6602 = vmul.f32 %v6542, %v1228
        %v6603 = vmul.f32 %v6544, %v1228
        %v6604 = vmul.f32 %v6546, %v1228
        %v6605 = vmul.f32 %v6548, %v1228
        %v6606 = vmul.f32 %v6550, %v1228
        %v6607 = vmul.f32 %v6552, %v1228
        %v6608 = vmul.f32 %v6554, %v1228
        %v6609 = vmul.f32 %v6556, %v1228
        %v6610 = vmul.f32 %v6558, %v1228
        %v6611 = vmul.f32 %v6560, %v1228
        %v6612 = vmul.f32 %v6562, %v1228
        %v6613 = vmul.f32 %v6564, %v1228
        %v6614 = vmul.f32 %v6566, %v1228
        %v6615 = vmul.f32 %v6568, %v1228
        %v6616 = vmul.f32 %v6570, %v1228
        %v6617 = vmul.f32 %v6572, %v1228
        %v6618 = vmul.f32 %v6574, %v1228
        %v6619 = vmul.f32 %v6576, %v1228
        %v6620 = vmul.f32 %v6578, %v1228
        %v6621 = vmul.f32 %v6580, %v1228
        %v6622 = vmul.f32 %v6582, %v1228
        %v6623 = vmul.f32 %v6584, %v1228
        %v6624 = vmul.f32 %v6586, %v1228
        %v6625 = vmul.f32 %v6588, %v1228
        %v6626 = vmul.f32 %v6590, %v1228
        %v6627 = vmul.f32 %v6592, %v1228
        %v6628 = vmul.f32 %v6594, %v1228
        %v6629 = vmul.f32 %v6596, %v1228
        %v6630 = vmul.f32 %v6598, %v1228
        %v6631 = vsub.f32 %v6405, %v6599
        %v6632 = vsub.f32 %v6408, %v6600
        %v6633 = vsub.f32 %v6413, %v6601
        %v6634 = vsub.f32 %v6416, %v6602
        %v6635 = vsub.f32 %v6421, %v6603
        %v6636 = vsub.f32 %v6424, %v6604
        %v6637 = vsub.f32 %v6429, %v6605
        %v6638 = vsub.f32 %v6432, %v6606
        %v6639 = vsub.f32 %v6437, %v6607
        %v6640 = vsub.f32 %v6440, %v6608
        %v6641 = vsub.f32 %v6445, %v6609
        %v6642 = vsub.f32 %v6448, %v6610
        %v6643 = vsub.f32 %v6453, %v6611
        %v6644 = vsub.f32 %v6456, %v6612
        %v6645 = vsub.f32 %v6461, %v6613
        %v6646 = vsub.f32 %v6464, %v6614
        %v6647 = vsub.f32 %v6469, %v6615
        %v6648 = vsub.f32 %v6472, %v6616
        %v6649 = vsub.f32 %v6477, %v6617
        %v6650 = vsub.f32 %v6480, %v6618
        %v6651 = vsub.f32 %v6485, %v6619
        %v6652 = vsub.f32 %v6488, %v6620
        %v6653 = vsub.f32 %v6493, %v6621
        %v6654 = vsub.f32 %v6496, %v6622
        %v6655 = vsub.f32 %v6501, %v6623
        %v6656 = vsub.f32 %v6504, %v6624
        %v6657 = vsub.f32 %v6509, %v6625
        %v6658 = vsub.f32 %v6512, %v6626
        %v6659 = vsub.f32 %v6517, %v6627
        %v6660 = vsub.f32 %v6520, %v6628
        %v6661 = vsub.f32 %v6525, %v6629
        %v6662 = vsub.f32 %v6528, %v6630
        %v6663 = vmul.f32 %v6631, %v6631
        %v6664 = vmul.f32 %v6632, %v6632
        %v6665 = vmul.f32 %v6633, %v6633
        %v6666 = vmul.f32 %v6634, %v6634
        %v6667 = vmul.f32 %v6635, %v6635
        %v6668 = vmul.f32 %v6636, %v6636
        %v6669 = vmul.f32 %v6637, %v6637
        %v6670 = vmul.f32 %v6638, %v6638
        %v6671 = vmul.f32 %v6639, %v6639
        %v6672 = vmul.f32 %v6640, %v6640
        %v6673 = vmul.f32 %v6641, %v6641
        %v6674 = vmul.f32 %v6642, %v6642
        %v6675 = vmul.f32 %v6643, %v6643
        %v6676 = vmul.f32 %v6644, %v6644
        %v6677 = vmul.f32 %v6645, %v6645
        %v6678 = vmul.f32 %v6646, %v6646
        %v6679 = vmul.f32 %v6647, %v6647
        %v6680 = vmul.f32 %v6648, %v6648
        %v6681 = vmul.f32 %v6649, %v6649
        %v6682 = vmul.f32 %v6650, %v6650
        %v6683 = vmul.f32 %v6651, %v6651
        %v6684 = vmul.f32 %v6652, %v6652
        %v6685 = vmul.f32 %v6653, %v6653
        %v6686 = vmul.f32 %v6654, %v6654
        %v6687 = vmul.f32 %v6655, %v6655
        %v6688 = vmul.f32 %v6656, %v6656
        %v6689 = vmul.f32 %v6657, %v6657
        %v6690 = vmul.f32 %v6658, %v6658
        %v6691 = vmul.f32 %v6659, %v6659
        %v6692 = vmul.f32 %v6660, %v6660
        %v6693 = vmul.f32 %v6661, %v6661
        %v6694 = vmul.f32 %v6662, %v6662
        %6695 = vadd.xlane.f32.xlu0 %v6663
        %v6696 = vpop.xlane.xlu0 %6695
        %6697 = vadd.xlane.f32.xlu0 %v6664
        %v6698 = vpop.xlane.xlu0 %6697
        %6699 = vadd.xlane.f32.xlu0 %v6665
        %v6700 = vpop.xlane.xlu0 %6699
        %6701 = vadd.xlane.f32.xlu0 %v6666
        %v6702 = vpop.xlane.xlu0 %6701
        %6703 = vadd.xlane.f32.xlu0 %v6667
        %v6704 = vpop.xlane.xlu0 %6703
        %6705 = vadd.xlane.f32.xlu0 %v6668
        %v6706 = vpop.xlane.xlu0 %6705
        %6707 = vadd.xlane.f32.xlu0 %v6669
        %v6708 = vpop.xlane.xlu0 %6707
        %6709 = vadd.xlane.f32.xlu0 %v6670
        %v6710 = vpop.xlane.xlu0 %6709
        %6711 = vadd.xlane.f32.xlu0 %v6671
        %v6712 = vpop.xlane.xlu0 %6711
        %6713 = vadd.xlane.f32.xlu0 %v6672
        %v6714 = vpop.xlane.xlu0 %6713
        %6715 = vadd.xlane.f32.xlu0 %v6673
        %v6716 = vpop.xlane.xlu0 %6715
        %6717 = vadd.xlane.f32.xlu0 %v6674
        %v6718 = vpop.xlane.xlu0 %6717
        %6719 = vadd.xlane.f32.xlu0 %v6675
        %v6720 = vpop.xlane.xlu0 %6719
        %6721 = vadd.xlane.f32.xlu0 %v6676
        %v6722 = vpop.xlane.xlu0 %6721
        %6723 = vadd.xlane.f32.xlu0 %v6677
        %v6724 = vpop.xlane.xlu0 %6723
        %6725 = vadd.xlane.f32.xlu0 %v6678
        %v6726 = vpop.xlane.xlu0 %6725
        %6727 = vadd.xlane.f32.xlu0 %v6679
        %v6728 = vpop.xlane.xlu0 %6727
        %6729 = vadd.xlane.f32.xlu0 %v6680
        %v6730 = vpop.xlane.xlu0 %6729
        %6731 = vadd.xlane.f32.xlu0 %v6681
        %v6732 = vpop.xlane.xlu0 %6731
        %6733 = vadd.xlane.f32.xlu0 %v6682
        %v6734 = vpop.xlane.xlu0 %6733
        %6735 = vadd.xlane.f32.xlu0 %v6683
        %v6736 = vpop.xlane.xlu0 %6735
        %6737 = vadd.xlane.f32.xlu0 %v6684
        %v6738 = vpop.xlane.xlu0 %6737
        %6739 = vadd.xlane.f32.xlu0 %v6685
        %v6740 = vpop.xlane.xlu0 %6739
        %6741 = vadd.xlane.f32.xlu0 %v6686
        %v6742 = vpop.xlane.xlu0 %6741
        %6743 = vadd.xlane.f32.xlu0 %v6687
        %v6744 = vpop.xlane.xlu0 %6743
        %6745 = vadd.xlane.f32.xlu0 %v6688
        %v6746 = vpop.xlane.xlu0 %6745
        %6747 = vadd.xlane.f32.xlu0 %v6689
        %v6748 = vpop.xlane.xlu0 %6747
        %6749 = vadd.xlane.f32.xlu0 %v6690
        %v6750 = vpop.xlane.xlu0 %6749
        %6751 = vadd.xlane.f32.xlu0 %v6691
        %v6752 = vpop.xlane.xlu0 %6751
        %6753 = vadd.xlane.f32.xlu0 %v6692
        %v6754 = vpop.xlane.xlu0 %6753
        %6755 = vadd.xlane.f32.xlu0 %v6693
        %v6756 = vpop.xlane.xlu0 %6755
        %6757 = vadd.xlane.f32.xlu0 %v6694
        %v6758 = vpop.xlane.xlu0 %6757
        %v6759 = vmul.f32 %v6696, %v1228
        %v6760 = vmul.f32 %v6698, %v1228
        %v6761 = vmul.f32 %v6700, %v1228
        %v6762 = vmul.f32 %v6702, %v1228
        %v6763 = vmul.f32 %v6704, %v1228
        %v6764 = vmul.f32 %v6706, %v1228
        %v6765 = vmul.f32 %v6708, %v1228
        %v6766 = vmul.f32 %v6710, %v1228
        %v6767 = vmul.f32 %v6712, %v1228
        %v6768 = vmul.f32 %v6714, %v1228
        %v6769 = vmul.f32 %v6716, %v1228
        %v6770 = vmul.f32 %v6718, %v1228
        %v6771 = vmul.f32 %v6720, %v1228
        %v6772 = vmul.f32 %v6722, %v1228
        %v6773 = vmul.f32 %v6724, %v1228
        %v6774 = vmul.f32 %v6726, %v1228
        %v6775 = vmul.f32 %v6728, %v1228
        %v6776 = vmul.f32 %v6730, %v1228
        %v6777 = vmul.f32 %v6732, %v1228
        %v6778 = vmul.f32 %v6734, %v1228
        %v6779 = vmul.f32 %v6736, %v1228
        %v6780 = vmul.f32 %v6738, %v1228
        %v6781 = vmul.f32 %v6740, %v1228
        %v6782 = vmul.f32 %v6742, %v1228
        %v6783 = vmul.f32 %v6744, %v1228
        %v6784 = vmul.f32 %v6746, %v1228
        %v6785 = vmul.f32 %v6748, %v1228
        %v6786 = vmul.f32 %v6750, %v1228
        %v6787 = vmul.f32 %v6752, %v1228
        %v6788 = vmul.f32 %v6754, %v1228
        %v6789 = vmul.f32 %v6756, %v1228
        %v6790 = vmul.f32 %v6758, %v1228
        %v6791 = vadd.f32 %v6759, 1e-05
        %v6792 = vadd.f32 %v6760, 1e-05
        %v6793 = vadd.f32 %v6761, 1e-05
        %v6794 = vadd.f32 %v6762, 1e-05
        %v6795 = vadd.f32 %v6763, 1e-05
        %v6796 = vadd.f32 %v6764, 1e-05
        %v6797 = vadd.f32 %v6765, 1e-05
        %v6798 = vadd.f32 %v6766, 1e-05
        %v6799 = vadd.f32 %v6767, 1e-05
        %v6800 = vadd.f32 %v6768, 1e-05
        %v6801 = vadd.f32 %v6769, 1e-05
        %v6802 = vadd.f32 %v6770, 1e-05
        %v6803 = vadd.f32 %v6771, 1e-05
        %v6804 = vadd.f32 %v6772, 1e-05
        %v6805 = vadd.f32 %v6773, 1e-05
        %v6806 = vadd.f32 %v6774, 1e-05
        %v6807 = vadd.f32 %v6775, 1e-05
        %v6808 = vadd.f32 %v6776, 1e-05
        %v6809 = vadd.f32 %v6777, 1e-05
        %v6810 = vadd.f32 %v6778, 1e-05
        %v6811 = vadd.f32 %v6779, 1e-05
        %v6812 = vadd.f32 %v6780, 1e-05
        %v6813 = vadd.f32 %v6781, 1e-05
        %v6814 = vadd.f32 %v6782, 1e-05
        %v6815 = vadd.f32 %v6783, 1e-05
        %v6816 = vadd.f32 %v6784, 1e-05
        %v6817 = vadd.f32 %v6785, 1e-05
        %v6818 = vadd.f32 %v6786, 1e-05
        %v6819 = vadd.f32 %v6787, 1e-05
        %v6820 = vadd.f32 %v6788, 1e-05
        %v6821 = vadd.f32 %v6789, 1e-05
        %v6822 = vadd.f32 %v6790, 1e-05
        %v6823 = vrsqrt.pop %v6791
        %v6824 = vrsqrt.pop %v6792
        %v6825 = vrsqrt.pop %v6793
        %v6826 = vrsqrt.pop %v6794
        %v6827 = vrsqrt.pop %v6795
        %v6828 = vrsqrt.pop %v6796
        %v6829 = vrsqrt.pop %v6797
        %v6830 = vrsqrt.pop %v6798
        %v6831 = vrsqrt.pop %v6799
        %v6832 = vrsqrt.pop %v6800
        %v6833 = vrsqrt.pop %v6801
        %v6834 = vrsqrt.pop %v6802
        %v6835 = vrsqrt.pop %v6803
        %v6836 = vrsqrt.pop %v6804
        %v6837 = vrsqrt.pop %v6805
        %v6838 = vrsqrt.pop %v6806
        %v6839 = vrsqrt.pop %v6807
        %v6840 = vrsqrt.pop %v6808
        %v6841 = vrsqrt.pop %v6809
        %v6842 = vrsqrt.pop %v6810
        %v6843 = vrsqrt.pop %v6811
        %v6844 = vrsqrt.pop %v6812
        %v6845 = vrsqrt.pop %v6813
        %v6846 = vrsqrt.pop %v6814
        %v6847 = vrsqrt.pop %v6815
        %v6848 = vrsqrt.pop %v6816
        %v6849 = vrsqrt.pop %v6817
        %v6850 = vrsqrt.pop %v6818
        %v6851 = vrsqrt.pop %v6819
        %v6852 = vrsqrt.pop %v6820
        %v6853 = vrsqrt.pop %v6821
        %v6854 = vrsqrt.pop %v6822
        %v6855 = vmul.f32 %v6631, %v6823
        %v6856 = vmul.f32 %v6632, %v6824
        %v6857 = vmul.f32 %v6633, %v6825
        %v6858 = vmul.f32 %v6634, %v6826
        %v6859 = vmul.f32 %v6635, %v6827
        %v6860 = vmul.f32 %v6636, %v6828
        %v6861 = vmul.f32 %v6637, %v6829
        %v6862 = vmul.f32 %v6638, %v6830
        %v6863 = vmul.f32 %v6639, %v6831
        %v6864 = vmul.f32 %v6640, %v6832
        %v6865 = vmul.f32 %v6641, %v6833
        %v6866 = vmul.f32 %v6642, %v6834
        %v6867 = vmul.f32 %v6643, %v6835
        %v6868 = vmul.f32 %v6644, %v6836
        %v6869 = vmul.f32 %v6645, %v6837
        %v6870 = vmul.f32 %v6646, %v6838
        %v6871 = vmul.f32 %v6647, %v6839
        %v6872 = vmul.f32 %v6648, %v6840
        %v6873 = vmul.f32 %v6649, %v6841
        %v6874 = vmul.f32 %v6650, %v6842
        %v6875 = vmul.f32 %v6651, %v6843
        %v6876 = vmul.f32 %v6652, %v6844
        %v6877 = vmul.f32 %v6653, %v6845
        %v6878 = vmul.f32 %v6654, %v6846
        %v6879 = vmul.f32 %v6655, %v6847
        %v6880 = vmul.f32 %v6656, %v6848
        %v6881 = vmul.f32 %v6657, %v6849
        %v6882 = vmul.f32 %v6658, %v6850
        %v6883 = vmul.f32 %v6659, %v6851
        %v6884 = vmul.f32 %v6660, %v6852
        %v6885 = vmul.f32 %v6661, %v6853
        %v6886 = vmul.f32 %v6662, %v6854
        %v6888 = vlaneseq
        %v6889 = vshrl.u32 %v6888, 7
        %v6890 = vsub.s32 0, %v6889
        %v6891 = vrot.slane %v6532, %v6890
        %v6893 = vmul.f32 %v6855, %v6891
        %v6894 = vmul.f32 %v6856, %v6891
        %v6895 = vmul.f32 %v6857, %v6891
        %v6896 = vmul.f32 %v6858, %v6891
        %v6897 = vmul.f32 %v6859, %v6891
        %v6898 = vmul.f32 %v6860, %v6891
        %v6899 = vmul.f32 %v6861, %v6891
        %v6900 = vmul.f32 %v6862, %v6891
        %v6901 = vmul.f32 %v6863, %v6891
        %v6902 = vmul.f32 %v6864, %v6891
        %v6903 = vmul.f32 %v6865, %v6891
        %v6904 = vmul.f32 %v6866, %v6891
        %v6905 = vmul.f32 %v6867, %v6891
        %v6906 = vmul.f32 %v6868, %v6891
        %v6907 = vmul.f32 %v6869, %v6891
        %v6908 = vmul.f32 %v6870, %v6891
        %v6909 = vmul.f32 %v6871, %v6891
        %v6910 = vmul.f32 %v6872, %v6891
        %v6911 = vmul.f32 %v6873, %v6891
        %v6912 = vmul.f32 %v6874, %v6891
        %v6913 = vmul.f32 %v6875, %v6891
        %v6914 = vmul.f32 %v6876, %v6891
        %v6915 = vmul.f32 %v6877, %v6891
        %v6916 = vmul.f32 %v6878, %v6891
        %v6917 = vmul.f32 %v6879, %v6891
        %v6918 = vmul.f32 %v6880, %v6891
        %v6919 = vmul.f32 %v6881, %v6891
        %v6920 = vmul.f32 %v6882, %v6891
        %v6921 = vmul.f32 %v6883, %v6891
        %v6922 = vmul.f32 %v6884, %v6891
        %v6923 = vmul.f32 %v6885, %v6891
        %v6924 = vmul.f32 %v6886, %v6891
        %v6926 = vlaneseq
        %v6927 = vshrl.u32 %v6926, 7
        %v6928 = vsub.s32 0, %v6927
        %v6929 = vrot.slane %v6534, %v6928
        %v6931 = vadd.f32 %v6893, %v6929
        %v6932 = vadd.f32 %v6894, %v6929
        %v6933 = vadd.f32 %v6895, %v6929
        %v6934 = vadd.f32 %v6896, %v6929
        %v6935 = vadd.f32 %v6897, %v6929
        %v6936 = vadd.f32 %v6898, %v6929
        %v6937 = vadd.f32 %v6899, %v6929
        %v6938 = vadd.f32 %v6900, %v6929
        %v6939 = vadd.f32 %v6901, %v6929
        %v6940 = vadd.f32 %v6902, %v6929
        %v6941 = vadd.f32 %v6903, %v6929
        %v6942 = vadd.f32 %v6904, %v6929
        %v6943 = vadd.f32 %v6905, %v6929
        %v6944 = vadd.f32 %v6906, %v6929
        %v6945 = vadd.f32 %v6907, %v6929
        %v6946 = vadd.f32 %v6908, %v6929
        %v6947 = vadd.f32 %v6909, %v6929
        %v6948 = vadd.f32 %v6910, %v6929
        %v6949 = vadd.f32 %v6911, %v6929
        %v6950 = vadd.f32 %v6912, %v6929
        %v6951 = vadd.f32 %v6913, %v6929
        %v6952 = vadd.f32 %v6914, %v6929
        %v6953 = vadd.f32 %v6915, %v6929
        %v6954 = vadd.f32 %v6916, %v6929
        %v6955 = vadd.f32 %v6917, %v6929
        %v6956 = vadd.f32 %v6918, %v6929
        %v6957 = vadd.f32 %v6919, %v6929
        %v6958 = vadd.f32 %v6920, %v6929
        %v6959 = vadd.f32 %v6921, %v6929
        %v6960 = vadd.f32 %v6922, %v6929
        %v6961 = vadd.f32 %v6923, %v6929
        %v6962 = vadd.f32 %v6924, %v6929
        %v6963 = vmul.f32 %v6931, 0.5
        %v6964 = vmul.f32 %v6932, 0.5
        %v6965 = vmul.f32 %v6933, 0.5
        %v6966 = vmul.f32 %v6934, 0.5
        %v6967 = vmul.f32 %v6935, 0.5
        %v6968 = vmul.f32 %v6936, 0.5
        %v6969 = vmul.f32 %v6937, 0.5
        %v6970 = vmul.f32 %v6938, 0.5
        %v6971 = vmul.f32 %v6939, 0.5
        %v6972 = vmul.f32 %v6940, 0.5
        %v6973 = vmul.f32 %v6941, 0.5
        %v6974 = vmul.f32 %v6942, 0.5
        %v6975 = vmul.f32 %v6943, 0.5
        %v6976 = vmul.f32 %v6944, 0.5
        %v6977 = vmul.f32 %v6945, 0.5
        %v6978 = vmul.f32 %v6946, 0.5
        %v6979 = vmul.f32 %v6947, 0.5
        %v6980 = vmul.f32 %v6948, 0.5
        %v6981 = vmul.f32 %v6949, 0.5
        %v6982 = vmul.f32 %v6950, 0.5
        %v6983 = vmul.f32 %v6951, 0.5
        %v6984 = vmul.f32 %v6952, 0.5
        %v6985 = vmul.f32 %v6953, 0.5
        %v6986 = vmul.f32 %v6954, 0.5
        %v6987 = vmul.f32 %v6955, 0.5
        %v6988 = vmul.f32 %v6956, 0.5
        %v6989 = vmul.f32 %v6957, 0.5
        %v6990 = vmul.f32 %v6958, 0.5
        %v6991 = vmul.f32 %v6959, 0.5
        %v6992 = vmul.f32 %v6960, 0.5
        %v6993 = vmul.f32 %v6961, 0.5
        %v6994 = vmul.f32 %v6962, 0.5
        %v6995 = vmul.f32 %v6931, 0.044715
        %v6996 = vmul.f32 %v6932, 0.044715
        %v6997 = vmul.f32 %v6933, 0.044715
        %v6998 = vmul.f32 %v6934, 0.044715
        %v6999 = vmul.f32 %v6935, 0.044715
        %v7000 = vmul.f32 %v6936, 0.044715
        %v7001 = vmul.f32 %v6937, 0.044715
        %v7002 = vmul.f32 %v6938, 0.044715
        %v7003 = vmul.f32 %v6939, 0.044715
        %v7004 = vmul.f32 %v6940, 0.044715
        %v7005 = vmul.f32 %v6941, 0.044715
        %v7006 = vmul.f32 %v6942, 0.044715
        %v7007 = vmul.f32 %v6943, 0.044715
        %v7008 = vmul.f32 %v6944, 0.044715
        %v7009 = vmul.f32 %v6945, 0.044715
        %v7010 = vmul.f32 %v6946, 0.044715
        %v7011 = vmul.f32 %v6947, 0.044715
        %v7012 = vmul.f32 %v6948, 0.044715
        %v7013 = vmul.f32 %v6949, 0.044715
        %v7014 = vmul.f32 %v6950, 0.044715
        %v7015 = vmul.f32 %v6951, 0.044715
        %v7016 = vmul.f32 %v6952, 0.044715
        %v7017 = vmul.f32 %v6953, 0.044715
        %v7018 = vmul.f32 %v6954, 0.044715
        %v7019 = vmul.f32 %v6955, 0.044715
        %v7020 = vmul.f32 %v6956, 0.044715
        %v7021 = vmul.f32 %v6957, 0.044715
        %v7022 = vmul.f32 %v6958, 0.044715
        %v7023 = vmul.f32 %v6959, 0.044715
        %v7024 = vmul.f32 %v6960, 0.044715
        %v7025 = vmul.f32 %v6961, 0.044715
        %v7026 = vmul.f32 %v6962, 0.044715
        %v7027 = vmul.f32 %v6995, %v6931
        %v7028 = vmul.f32 %v6996, %v6932
        %v7029 = vmul.f32 %v6997, %v6933
        %v7030 = vmul.f32 %v6998, %v6934
        %v7031 = vmul.f32 %v6999, %v6935
        %v7032 = vmul.f32 %v7000, %v6936
        %v7033 = vmul.f32 %v7001, %v6937
        %v7034 = vmul.f32 %v7002, %v6938
        %v7035 = vmul.f32 %v7003, %v6939
        %v7036 = vmul.f32 %v7004, %v6940
        %v7037 = vmul.f32 %v7005, %v6941
        %v7038 = vmul.f32 %v7006, %v6942
        %v7039 = vmul.f32 %v7007, %v6943
        %v7040 = vmul.f32 %v7008, %v6944
        %v7041 = vmul.f32 %v7009, %v6945
        %v7042 = vmul.f32 %v7010, %v6946
        %v7043 = vmul.f32 %v7011, %v6947
        %v7044 = vmul.f32 %v7012, %v6948
        %v7045 = vmul.f32 %v7013, %v6949
        %v7046 = vmul.f32 %v7014, %v6950
        %v7047 = vmul.f32 %v7015, %v6951
        %v7048 = vmul.f32 %v7016, %v6952
        %v7049 = vmul.f32 %v7017, %v6953
        %v7050 = vmul.f32 %v7018, %v6954
        %v7051 = vmul.f32 %v7019, %v6955
        %v7052 = vmul.f32 %v7020, %v6956
        %v7053 = vmul.f32 %v7021, %v6957
        %v7054 = vmul.f32 %v7022, %v6958
        %v7055 = vmul.f32 %v7023, %v6959
        %v7056 = vmul.f32 %v7024, %v6960
        %v7057 = vmul.f32 %v7025, %v6961
        %v7058 = vmul.f32 %v7026, %v6962
        %v7059 = vmul.f32 %v7027, %v6931
        %v7060 = vmul.f32 %v7028, %v6932
        %v7061 = vmul.f32 %v7029, %v6933
        %v7062 = vmul.f32 %v7030, %v6934
        %v7063 = vmul.f32 %v7031, %v6935
        %v7064 = vmul.f32 %v7032, %v6936
        %v7065 = vmul.f32 %v7033, %v6937
        %v7066 = vmul.f32 %v7034, %v6938
        %v7067 = vmul.f32 %v7035, %v6939
        %v7068 = vmul.f32 %v7036, %v6940
        %v7069 = vmul.f32 %v7037, %v6941
        %v7070 = vmul.f32 %v7038, %v6942
        %v7071 = vmul.f32 %v7039, %v6943
        %v7072 = vmul.f32 %v7040, %v6944
        %v7073 = vmul.f32 %v7041, %v6945
        %v7074 = vmul.f32 %v7042, %v6946
        %v7075 = vmul.f32 %v7043, %v6947
        %v7076 = vmul.f32 %v7044, %v6948
        %v7077 = vmul.f32 %v7045, %v6949
        %v7078 = vmul.f32 %v7046, %v6950
        %v7079 = vmul.f32 %v7047, %v6951
        %v7080 = vmul.f32 %v7048, %v6952
        %v7081 = vmul.f32 %v7049, %v6953
        %v7082 = vmul.f32 %v7050, %v6954
        %v7083 = vmul.f32 %v7051, %v6955
        %v7084 = vmul.f32 %v7052, %v6956
        %v7085 = vmul.f32 %v7053, %v6957
        %v7086 = vmul.f32 %v7054, %v6958
        %v7087 = vmul.f32 %v7055, %v6959
        %v7088 = vmul.f32 %v7056, %v6960
        %v7089 = vmul.f32 %v7057, %v6961
        %v7090 = vmul.f32 %v7058, %v6962
        %v7091 = vadd.f32 %v6931, %v7059
        %v7092 = vadd.f32 %v6932, %v7060
        %v7093 = vadd.f32 %v6933, %v7061
        %v7094 = vadd.f32 %v6934, %v7062
        %v7095 = vadd.f32 %v6935, %v7063
        %v7096 = vadd.f32 %v6936, %v7064
        %v7097 = vadd.f32 %v6937, %v7065
        %v7098 = vadd.f32 %v6938, %v7066
        %v7099 = vadd.f32 %v6939, %v7067
        %v7100 = vadd.f32 %v6940, %v7068
        %v7101 = vadd.f32 %v6941, %v7069
        %v7102 = vadd.f32 %v6942, %v7070
        %v7103 = vadd.f32 %v6943, %v7071
        %v7104 = vadd.f32 %v6944, %v7072
        %v7105 = vadd.f32 %v6945, %v7073
        %v7106 = vadd.f32 %v6946, %v7074
        %v7107 = vadd.f32 %v6947, %v7075
        %v7108 = vadd.f32 %v6948, %v7076
        %v7109 = vadd.f32 %v6949, %v7077
        %v7110 = vadd.f32 %v6950, %v7078
        %v7111 = vadd.f32 %v6951, %v7079
        %v7112 = vadd.f32 %v6952, %v7080
        %v7113 = vadd.f32 %v6953, %v7081
        %v7114 = vadd.f32 %v6954, %v7082
        %v7115 = vadd.f32 %v6955, %v7083
        %v7116 = vadd.f32 %v6956, %v7084
        %v7117 = vadd.f32 %v6957, %v7085
        %v7118 = vadd.f32 %v6958, %v7086
        %v7119 = vadd.f32 %v6959, %v7087
        %v7120 = vadd.f32 %v6960, %v7088
        %v7121 = vadd.f32 %v6961, %v7089
        %v7122 = vadd.f32 %v6962, %v7090
        %v7123 = vmul.f32 %v7091, 0.7978846
        %v7124 = vmul.f32 %v7092, 0.7978846
        %v7125 = vmul.f32 %v7093, 0.7978846
        %v7126 = vmul.f32 %v7094, 0.7978846
        %v7127 = vmul.f32 %v7095, 0.7978846
        %v7128 = vmul.f32 %v7096, 0.7978846
        %v7129 = vmul.f32 %v7097, 0.7978846
        %v7130 = vmul.f32 %v7098, 0.7978846
        %v7131 = vmul.f32 %v7099, 0.7978846
        %v7132 = vmul.f32 %v7100, 0.7978846
        %v7133 = vmul.f32 %v7101, 0.7978846
        %v7134 = vmul.f32 %v7102, 0.7978846
        %v7135 = vmul.f32 %v7103, 0.7978846
        %v7136 = vmul.f32 %v7104, 0.7978846
        %v7137 = vmul.f32 %v7105, 0.7978846
        %v7138 = vmul.f32 %v7106, 0.7978846
        %v7139 = vmul.f32 %v7107, 0.7978846
        %v7140 = vmul.f32 %v7108, 0.7978846
        %v7141 = vmul.f32 %v7109, 0.7978846
        %v7142 = vmul.f32 %v7110, 0.7978846
        %v7143 = vmul.f32 %v7111, 0.7978846
        %v7144 = vmul.f32 %v7112, 0.7978846
        %v7145 = vmul.f32 %v7113, 0.7978846
        %v7146 = vmul.f32 %v7114, 0.7978846
        %v7147 = vmul.f32 %v7115, 0.7978846
        %v7148 = vmul.f32 %v7116, 0.7978846
        %v7149 = vmul.f32 %v7117, 0.7978846
        %v7150 = vmul.f32 %v7118, 0.7978846
        %v7151 = vmul.f32 %v7119, 0.7978846
        %v7152 = vmul.f32 %v7120, 0.7978846
        %v7153 = vmul.f32 %v7121, 0.7978846
        %v7154 = vmul.f32 %v7122, 0.7978846
        %v7155 = vtanh.pop %v7123
        %v7156 = vtanh.pop %v7124
        %v7157 = vtanh.pop %v7125
        %v7158 = vtanh.pop %v7126
        %v7159 = vtanh.pop %v7127
        %v7160 = vtanh.pop %v7128
        %v7161 = vtanh.pop %v7129
        %v7162 = vtanh.pop %v7130
        %v7163 = vtanh.pop %v7131
        %v7164 = vtanh.pop %v7132
        %v7165 = vtanh.pop %v7133
        %v7166 = vtanh.pop %v7134
        %v7167 = vtanh.pop %v7135
        %v7168 = vtanh.pop %v7136
        %v7169 = vtanh.pop %v7137
        %v7170 = vtanh.pop %v7138
        %v7171 = vtanh.pop %v7139
        %v7172 = vtanh.pop %v7140
        %v7173 = vtanh.pop %v7141
        %v7174 = vtanh.pop %v7142
        %v7175 = vtanh.pop %v7143
        %v7176 = vtanh.pop %v7144
        %v7177 = vtanh.pop %v7145
        %v7178 = vtanh.pop %v7146
        %v7179 = vtanh.pop %v7147
        %v7180 = vtanh.pop %v7148
        %v7181 = vtanh.pop %v7149
        %v7182 = vtanh.pop %v7150
        %v7183 = vtanh.pop %v7151
        %v7184 = vtanh.pop %v7152
        %v7185 = vtanh.pop %v7153
        %v7186 = vtanh.pop %v7154
        %v7187 = vadd.f32 %v7155, 1.0
        %v7188 = vadd.f32 %v7156, 1.0
        %v7189 = vadd.f32 %v7157, 1.0
        %v7190 = vadd.f32 %v7158, 1.0
        %v7191 = vadd.f32 %v7159, 1.0
        %v7192 = vadd.f32 %v7160, 1.0
        %v7193 = vadd.f32 %v7161, 1.0
        %v7194 = vadd.f32 %v7162, 1.0
        %v7195 = vadd.f32 %v7163, 1.0
        %v7196 = vadd.f32 %v7164, 1.0
        %v7197 = vadd.f32 %v7165, 1.0
        %v7198 = vadd.f32 %v7166, 1.0
        %v7199 = vadd.f32 %v7167, 1.0
        %v7200 = vadd.f32 %v7168, 1.0
        %v7201 = vadd.f32 %v7169, 1.0
        %v7202 = vadd.f32 %v7170, 1.0
        %v7203 = vadd.f32 %v7171, 1.0
        %v7204 = vadd.f32 %v7172, 1.0
        %v7205 = vadd.f32 %v7173, 1.0
        %v7206 = vadd.f32 %v7174, 1.0
        %v7207 = vadd.f32 %v7175, 1.0
        %v7208 = vadd.f32 %v7176, 1.0
        %v7209 = vadd.f32 %v7177, 1.0
        %v7210 = vadd.f32 %v7178, 1.0
        %v7211 = vadd.f32 %v7179, 1.0
        %v7212 = vadd.f32 %v7180, 1.0
        %v7213 = vadd.f32 %v7181, 1.0
        %v7214 = vadd.f32 %v7182, 1.0
        %v7215 = vadd.f32 %v7183, 1.0
        %v7216 = vadd.f32 %v7184, 1.0
        %v7217 = vadd.f32 %v7185, 1.0
        %v7218 = vadd.f32 %v7186, 1.0
        %v7219 = vmul.f32 %v6963, %v7187
        %v7220 = vmul.f32 %v6964, %v7188
        %v7221 = vmul.f32 %v6965, %v7189
        %v7222 = vmul.f32 %v6966, %v7190
        %v7223 = vmul.f32 %v6967, %v7191
        %v7224 = vmul.f32 %v6968, %v7192
        %v7225 = vmul.f32 %v6969, %v7193
        %v7226 = vmul.f32 %v6970, %v7194
        %v7227 = vmul.f32 %v6971, %v7195
        %v7228 = vmul.f32 %v6972, %v7196
        %v7229 = vmul.f32 %v6973, %v7197
        %v7230 = vmul.f32 %v6974, %v7198
        %v7231 = vmul.f32 %v6975, %v7199
        %v7232 = vmul.f32 %v6976, %v7200
        %v7233 = vmul.f32 %v6977, %v7201
        %v7234 = vmul.f32 %v6978, %v7202
        %v7235 = vmul.f32 %v6979, %v7203
        %v7236 = vmul.f32 %v6980, %v7204
        %v7237 = vmul.f32 %v6981, %v7205
        %v7238 = vmul.f32 %v6982, %v7206
        %v7239 = vmul.f32 %v6983, %v7207
        %v7240 = vmul.f32 %v6984, %v7208
        %v7241 = vmul.f32 %v6985, %v7209
        %v7242 = vmul.f32 %v6986, %v7210
        %v7243 = vmul.f32 %v6987, %v7211
        %v7244 = vmul.f32 %v6988, %v7212
        %v7245 = vmul.f32 %v6989, %v7213
        %v7246 = vmul.f32 %v6990, %v7214
        %v7247 = vmul.f32 %v6991, %v7215
        %v7248 = vmul.f32 %v6992, %v7216
        %v7249 = vmul.f32 %v6993, %v7217
        %v7250 = vmul.f32 %v6994, %v7218
        %v7251 = vld [vmem:[%s451] sm:$0xff]
        %v7252 = vld [vmem:[%s451 + $0x8] sm:$0xff]
        %v7253 = vld [vmem:[%s451 + $0x10] sm:$0xff]
        %v7254 = vld [vmem:[%s451 + $0x18] sm:$0xff]
        %v7255 = vld [vmem:[%s451 + $0x20] sm:$0xff]
        %v7256 = vld [vmem:[%s451 + $0x28] sm:$0xff]
        %v7257 = vld [vmem:[%s451 + $0x30] sm:$0xff]
        %v7258 = vld [vmem:[%s451 + $0x38] sm:$0xff]
        %v7259 = vld [vmem:[%s451 + $0x40] sm:$0xff]
        %v7260 = vld [vmem:[%s451 + $0x48] sm:$0xff]
        %v7261 = vld [vmem:[%s451 + $0x50] sm:$0xff]
        %v7262 = vld [vmem:[%s451 + $0x58] sm:$0xff]
        %v7263 = vld [vmem:[%s451 + $0x60] sm:$0xff]
        %v7264 = vld [vmem:[%s451 + $0x68] sm:$0xff]
        %v7265 = vld [vmem:[%s451 + $0x70] sm:$0xff]
        %v7266 = vld [vmem:[%s451 + $0x78] sm:$0xff]
        %v7267 = vld [vmem:[%s451 + $0x80] sm:$0xff]
        %v7268 = vld [vmem:[%s451 + $0x88] sm:$0xff]
        %v7269 = vld [vmem:[%s451 + $0x90] sm:$0xff]
        %v7270 = vld [vmem:[%s451 + $0x98] sm:$0xff]
        %v7271 = vld [vmem:[%s451 + $0xa0] sm:$0xff]
        %v7272 = vld [vmem:[%s451 + $0xa8] sm:$0xff]
        %v7273 = vld [vmem:[%s451 + $0xb0] sm:$0xff]
        %v7274 = vld [vmem:[%s451 + $0xb8] sm:$0xff]
        %v7275 = vld [vmem:[%s451 + $0xc0] sm:$0xff]
        %v7276 = vld [vmem:[%s451 + $0xc8] sm:$0xff]
        %v7277 = vld [vmem:[%s451 + $0xd0] sm:$0xff]
        %v7278 = vld [vmem:[%s451 + $0xd8] sm:$0xff]
        %v7279 = vld [vmem:[%s451 + $0xe0] sm:$0xff]
        %v7280 = vld [vmem:[%s451 + $0xe8] sm:$0xff]
        %v7281 = vld [vmem:[%s451 + $0xf0] sm:$0xff]
        %v7282 = vld [vmem:[%s451 + $0xf8] sm:$0xff]
        %v7283 = vadd.f32 %v7251, %v7219
        %v7284 = vadd.f32 %v7252, %v7220
        %v7285 = vadd.f32 %v7253, %v7221
        %v7286 = vadd.f32 %v7254, %v7222
        %v7287 = vadd.f32 %v7255, %v7223
        %v7288 = vadd.f32 %v7256, %v7224
        %v7289 = vadd.f32 %v7257, %v7225
        %v7290 = vadd.f32 %v7258, %v7226
        %v7291 = vadd.f32 %v7259, %v7227
        %v7292 = vadd.f32 %v7260, %v7228
        %v7293 = vadd.f32 %v7261, %v7229
        %v7294 = vadd.f32 %v7262, %v7230
        %v7295 = vadd.f32 %v7263, %v7231
        %v7296 = vadd.f32 %v7264, %v7232
        %v7297 = vadd.f32 %v7265, %v7233
        %v7298 = vadd.f32 %v7266, %v7234
        %v7299 = vadd.f32 %v7267, %v7235
        %v7300 = vadd.f32 %v7268, %v7236
        %v7301 = vadd.f32 %v7269, %v7237
        %v7302 = vadd.f32 %v7270, %v7238
        %v7303 = vadd.f32 %v7271, %v7239
        %v7304 = vadd.f32 %v7272, %v7240
        %v7305 = vadd.f32 %v7273, %v7241
        %v7306 = vadd.f32 %v7274, %v7242
        %v7307 = vadd.f32 %v7275, %v7243
        %v7308 = vadd.f32 %v7276, %v7244
        %v7309 = vadd.f32 %v7277, %v7245
        %v7310 = vadd.f32 %v7278, %v7246
        %v7311 = vadd.f32 %v7279, %v7247
        %v7312 = vadd.f32 %v7280, %v7248
        %v7313 = vadd.f32 %v7281, %v7249
        %v7314 = vadd.f32 %v7282, %v7250
        %7315 = vst [vmem:[%s451] sm:$0xff] %v7283
        %7316 = vst [vmem:[%s451 + $0x8] sm:$0xff] %v7284
        %7317 = vst [vmem:[%s451 + $0x10] sm:$0xff] %v7285
        %7318 = vst [vmem:[%s451 + $0x18] sm:$0xff] %v7286
        %7319 = vst [vmem:[%s451 + $0x20] sm:$0xff] %v7287
        %7320 = vst [vmem:[%s451 + $0x28] sm:$0xff] %v7288
        %7321 = vst [vmem:[%s451 + $0x30] sm:$0xff] %v7289
        %7322 = vst [vmem:[%s451 + $0x38] sm:$0xff] %v7290
        %7323 = vst [vmem:[%s451 + $0x40] sm:$0xff] %v7291
        %7324 = vst [vmem:[%s451 + $0x48] sm:$0xff] %v7292
        %7325 = vst [vmem:[%s451 + $0x50] sm:$0xff] %v7293
        %7326 = vst [vmem:[%s451 + $0x58] sm:$0xff] %v7294
        %7327 = vst [vmem:[%s451 + $0x60] sm:$0xff] %v7295
        %7328 = vst [vmem:[%s451 + $0x68] sm:$0xff] %v7296
        %7329 = vst [vmem:[%s451 + $0x70] sm:$0xff] %v7297
        %7330 = vst [vmem:[%s451 + $0x78] sm:$0xff] %v7298
        %7331 = vst [vmem:[%s451 + $0x80] sm:$0xff] %v7299
        %7332 = vst [vmem:[%s451 + $0x88] sm:$0xff] %v7300
        %7333 = vst [vmem:[%s451 + $0x90] sm:$0xff] %v7301
        %7334 = vst [vmem:[%s451 + $0x98] sm:$0xff] %v7302
        %7335 = vst [vmem:[%s451 + $0xa0] sm:$0xff] %v7303
        %7336 = vst [vmem:[%s451 + $0xa8] sm:$0xff] %v7304
        %7337 = vst [vmem:[%s451 + $0xb0] sm:$0xff] %v7305
        %7338 = vst [vmem:[%s451 + $0xb8] sm:$0xff] %v7306
        %7339 = vst [vmem:[%s451 + $0xc0] sm:$0xff] %v7307
        %7340 = vst [vmem:[%s451 + $0xc8] sm:$0xff] %v7308
        %7341 = vst [vmem:[%s451 + $0xd0] sm:$0xff] %v7309
        %7342 = vst [vmem:[%s451 + $0xd8] sm:$0xff] %v7310
        %7343 = vst [vmem:[%s451 + $0xe0] sm:$0xff] %v7311
        %7344 = vst [vmem:[%s451 + $0xe8] sm:$0xff] %v7312
        %7345 = vst [vmem:[%s451 + $0xf0] sm:$0xff] %v7313
        %7346 = vst [vmem:[%s451 + $0xf8] sm:$0xff] %v7314
        %v7347 = vld [vmem:[%s451] sm:$0xff]
        %v7348 = vld [vmem:[%s451 + $0x8] sm:$0xff]
        %v7349 = vld [vmem:[%s451 + $0x10] sm:$0xff]
        %v7350 = vld [vmem:[%s451 + $0x18] sm:$0xff]
        %v7351 = vld [vmem:[%s451 + $0x20] sm:$0xff]
        %v7352 = vld [vmem:[%s451 + $0x28] sm:$0xff]
        %v7353 = vld [vmem:[%s451 + $0x30] sm:$0xff]
        %v7354 = vld [vmem:[%s451 + $0x38] sm:$0xff]
        %v7355 = vld [vmem:[%s451 + $0x40] sm:$0xff]
        %v7356 = vld [vmem:[%s451 + $0x48] sm:$0xff]
        %v7357 = vld [vmem:[%s451 + $0x50] sm:$0xff]
        %v7358 = vld [vmem:[%s451 + $0x58] sm:$0xff]
        %v7359 = vld [vmem:[%s451 + $0x60] sm:$0xff]
        %v7360 = vld [vmem:[%s451 + $0x68] sm:$0xff]
        %v7361 = vld [vmem:[%s451 + $0x70] sm:$0xff]
        %v7362 = vld [vmem:[%s451 + $0x78] sm:$0xff]
        %v7363 = vld [vmem:[%s451 + $0x80] sm:$0xff]
        %v7364 = vld [vmem:[%s451 + $0x88] sm:$0xff]
        %v7365 = vld [vmem:[%s451 + $0x90] sm:$0xff]
        %v7366 = vld [vmem:[%s451 + $0x98] sm:$0xff]
        %v7367 = vld [vmem:[%s451 + $0xa0] sm:$0xff]
        %v7368 = vld [vmem:[%s451 + $0xa8] sm:$0xff]
        %v7369 = vld [vmem:[%s451 + $0xb0] sm:$0xff]
        %v7370 = vld [vmem:[%s451 + $0xb8] sm:$0xff]
        %v7371 = vld [vmem:[%s451 + $0xc0] sm:$0xff]
        %v7372 = vld [vmem:[%s451 + $0xc8] sm:$0xff]
        %v7373 = vld [vmem:[%s451 + $0xd0] sm:$0xff]
        %v7374 = vld [vmem:[%s451 + $0xd8] sm:$0xff]
        %v7375 = vld [vmem:[%s451 + $0xe0] sm:$0xff]
        %v7376 = vld [vmem:[%s451 + $0xe8] sm:$0xff]
        %v7377 = vld [vmem:[%s451 + $0xf0] sm:$0xff]
        %v7378 = vld [vmem:[%s451 + $0xf8] sm:$0xff]
        %v7379 = vmul.f32 %v7347, %v552
        %v7380 = vmul.f32 %v7348, %v553
        %v7381 = vmul.f32 %v7349, %v554
        %v7382 = vmul.f32 %v7350, %v555
        %v7383 = vmul.f32 %v7351, %v556
        %v7384 = vmul.f32 %v7352, %v557
        %v7385 = vmul.f32 %v7353, %v558
        %v7386 = vmul.f32 %v7354, %v559
        %v7387 = vmul.f32 %v7355, %v560
        %v7388 = vmul.f32 %v7356, %v561
        %v7389 = vmul.f32 %v7357, %v562
        %v7390 = vmul.f32 %v7358, %v563
        %v7391 = vmul.f32 %v7359, %v564
        %v7392 = vmul.f32 %v7360, %v565
        %v7393 = vmul.f32 %v7361, %v566
        %v7394 = vmul.f32 %v7362, %v567
        %v7395 = vmul.f32 %v7363, %v568
        %v7396 = vmul.f32 %v7364, %v569
        %v7397 = vmul.f32 %v7365, %v570
        %v7398 = vmul.f32 %v7366, %v571
        %v7399 = vmul.f32 %v7367, %v572
        %v7400 = vmul.f32 %v7368, %v573
        %v7401 = vmul.f32 %v7369, %v574
        %v7402 = vmul.f32 %v7370, %v575
        %v7403 = vmul.f32 %v7371, %v576
        %v7404 = vmul.f32 %v7372, %v577
        %v7405 = vmul.f32 %v7373, %v578
        %v7406 = vmul.f32 %v7374, %v579
        %v7407 = vmul.f32 %v7375, %v580
        %v7408 = vmul.f32 %v7376, %v581
        %v7409 = vmul.f32 %v7377, %v582
        %v7410 = vmul.f32 %v7378, %v583
        %7411 = vst [vmem:[%s451] sm:$0xff] %v7379
        %7412 = vst [vmem:[%s451 + $0x8] sm:$0xff] %v7380
        %7413 = vst [vmem:[%s451 + $0x10] sm:$0xff] %v7381
        %7414 = vst [vmem:[%s451 + $0x18] sm:$0xff] %v7382
        %7415 = vst [vmem:[%s451 + $0x20] sm:$0xff] %v7383
        %7416 = vst [vmem:[%s451 + $0x28] sm:$0xff] %v7384
        %7417 = vst [vmem:[%s451 + $0x30] sm:$0xff] %v7385
        %7418 = vst [vmem:[%s451 + $0x38] sm:$0xff] %v7386
        %7419 = vst [vmem:[%s451 + $0x40] sm:$0xff] %v7387
        %7420 = vst [vmem:[%s451 + $0x48] sm:$0xff] %v7388
        %7421 = vst [vmem:[%s451 + $0x50] sm:$0xff] %v7389
        %7422 = vst [vmem:[%s451 + $0x58] sm:$0xff] %v7390
        %7423 = vst [vmem:[%s451 + $0x60] sm:$0xff] %v7391
        %7424 = vst [vmem:[%s451 + $0x68] sm:$0xff] %v7392
        %7425 = vst [vmem:[%s451 + $0x70] sm:$0xff] %v7393
        %7426 = vst [vmem:[%s451 + $0x78] sm:$0xff] %v7394
        %7427 = vst [vmem:[%s451 + $0x80] sm:$0xff] %v7395
        %7428 = vst [vmem:[%s451 + $0x88] sm:$0xff] %v7396
        %7429 = vst [vmem:[%s451 + $0x90] sm:$0xff] %v7397
        %7430 = vst [vmem:[%s451 + $0x98] sm:$0xff] %v7398
        %7431 = vst [vmem:[%s451 + $0xa0] sm:$0xff] %v7399
        %7432 = vst [vmem:[%s451 + $0xa8] sm:$0xff] %v7400
        %7433 = vst [vmem:[%s451 + $0xb0] sm:$0xff] %v7401
        %7434 = vst [vmem:[%s451 + $0xb8] sm:$0xff] %v7402
        %7435 = vst [vmem:[%s451 + $0xc0] sm:$0xff] %v7403
        %7436 = vst [vmem:[%s451 + $0xc8] sm:$0xff] %v7404
        %7437 = vst [vmem:[%s451 + $0xd0] sm:$0xff] %v7405
        %7438 = vst [vmem:[%s451 + $0xd8] sm:$0xff] %v7406
        %7439 = vst [vmem:[%s451 + $0xe0] sm:$0xff] %v7407
        %7440 = vst [vmem:[%s451 + $0xe8] sm:$0xff] %v7408
        %7441 = vst [vmem:[%s451 + $0xf0] sm:$0xff] %v7409
        %7442 = vst [vmem:[%s451 + $0xf8] sm:$0xff] %v7410
        %s7443 = sand.u32 %s264, 1
        %s7444 = scalar_lea.sflag [#allocation7], %s7443
        %s7445 = sand.u32 %s264, 1
        %s7446 = smul.addr %s7445, 256
        %s7447 = scalar_lea.vmem [#allocation13], %s7446
        // Predicated region
        $region77: #{tpu_custom_call.1} parent=59 // pred_check
          %p7448 = pneg %p274
        $region78: #{tpu_custom_call.1} parent=59 // pred_check_branch
          %7450 = sbr.rel (%p7448) target = $region80
        $region79: #{tpu_custom_call.1} parent=59 // pred_region
          %s7452 = ssub.s32 4096, 4096
          %7453 = vsyncadd %s7444, %s7452
          %s7454 = smul.addr %s36, 32
          %s7455 = smul.addr %s7454, 128
          %s7456 = scalar_lea.hbm %s11, %s7455
          %s7457 = sshll.u32 %s7447, 4
          %s7458 = int_to_ptr.vmem [resolvable:$true] %s7457
          %7463 = dma.vmem_to_hbm [thread:$0]  %s7458, 4096, %s7456, %s7444, 128, 128, 8
        $region80: #{tpu_custom_call.1} parent=59 // pred_fallthru
          _
      $region60: #{tpu_custom_call.1} parent=5 // pred_fallthru
        _
      %p7464 = scmp.le.s32.totalorder 2, %s31
      // Predicated region
      $region81: #{tpu_custom_call.1} parent=5 // pred_check
        %p7465 = pneg %p7464
      $region82: #{tpu_custom_call.1} parent=5 // pred_check_branch
        %7467 = sbr.rel (%p7465) target = $region84
      $region83: #{tpu_custom_call.1} parent=5 // pred_region
        %s7468 = ssub.s32 %s31, 2
        // Predicated region
        $region85: #{tpu_custom_call.1} parent=83 // pred_check
          %p7469 = pneg %p280
        $region86: #{tpu_custom_call.1} parent=83 // pred_check_branch
          %7471 = sbr.rel (%p7469) target = $region88
        $region87: #{tpu_custom_call.1} parent=83 // pred_region
          %s7472 = sand.u32 %s265, 1
          %s7473 = scalar_lea.sflag [#allocation7], %s7472
          %s7474 = sand.u32 %s265, 1
          %s7475 = smul.addr %s7474, 256
          %s7476 = scalar_lea.vmem [#allocation13], %s7475
          %7477 = dma.done %s7473, 4096
        $region88: #{tpu_custom_call.1} parent=83 // pred_fallthru
          _
      $region84: #{tpu_custom_call.1} parent=5 // pred_fallthru
        _
    $region6: #{tpu_custom_call.1} parent=1 // loop_footer
      %s35 = sadd.s32 1, %s31
    $region7: #{tpu_custom_call.1} parent=1 // loop_footer_branch
      %30 = sbr.rel target = $region3
    $region8: #{tpu_custom_call.1} parent=1 // loop_exit
      _
    %7478 = vsyncpa [#allocation6], 1
    %s7479 = scalar_lea.sflag [#allocation6], 1
    %7480 = vsyncpa %s7479, 1
    %7481 = vsyncpa [#allocation9], 1
    %s7482 = scalar_lea.sflag [#allocation9], 1
    %7483 = vsyncpa %s7482, 1
    %7484 = vsyncpa [#allocation12], 1
    %7485 = vsyncpa [#allocation7], 1
    %s7486 = scalar_lea.sflag [#allocation7], 1
    %7487 = vsyncpa %s7486, 1

</llo_original>
